<compile_context>
chip_gen: v6e
topology: v6e:2x2x1
jax: 0.10.0
libtpu: 0.0.40
codegen_flags: <defaults>
</compile_context>

<pallas_src>
import math

import jax
import jax.numpy as jnp
from jax.experimental import pallas as pl
from jax.experimental.pallas import tpu as pltpu

INTERMEDIATE = 512  # hardcoded in the module


# ----------------------------------------------------------------------------
# PositionalEncoding table (dropout=0 -> deterministic additive PE)
# ----------------------------------------------------------------------------
def sinusoidal_pe(t, d, dtype=jnp.float32):
    position = jnp.arange(t, dtype=jnp.float32)[:, None]
    div_term = jnp.exp(
        jnp.arange(0, d, 2, dtype=jnp.float32) * (-math.log(10000.0) / d))
    pe = jnp.zeros((t, d), dtype=jnp.float32)
    pe = pe.at[:, 0::2].set(jnp.sin(position * div_term))
    pe = pe.at[:, 1::2].set(jnp.cos(position * div_term))
    return pe.astype(dtype)


# ----------------------------------------------------------------------------
# Fused kernel: per grid step n (one waypoint)
#   res_n  = relu(context + PE).reshape(B, T*D) @ W_trans[n] + b_trans[n*D:(n+1)*D]
#   out_n  = relu(res_n) @ W_head[:D] + relu(state) @ W_head[D:] + b_head
# ----------------------------------------------------------------------------
def _fused_kernel(x_ref, pe_ref, wt_ref, bt_ref, st_ref, whx_ref, whs_ref,
                  bh_ref, o_ref):
    n = pl.program_id(0)
    d = wt_ref.shape[-1]

    # fused PositionalEncoding add + ReLU (dropout p=0 is identity); the (B, T*D)
    # elementwise recompute per step is trivial VPU work hidden under the weight DMA.
    xr = jnp.maximum(x_ref[...] + pe_ref[...], 0.0).astype(wt_ref.dtype)   # (B, K) bf16

    # transformer Linear, waypoint n: contiguous (K, D) bf16 block, f32 MXU accumulation.
    res = jnp.dot(xr, wt_ref[0], preferred_element_type=jnp.float32)       # (B, D) f32

    # resident bias: dynamic lane slice (128-aligned start) of the (1, N) bias held in VMEM.
    bt = bt_ref[:, pl.ds(pl.multiple_of(n * d, 128), d)]                   # (1, D)
    res = jnp.maximum(res + bt, 0.0)                                       # relu(res + b_trans)

    # head epilogue: relu(concat(res, state)) @ W_head + b_head, split along K.
    head = (jnp.dot(res, whx_ref[...], preferred_element_type=jnp.float32)
            + jnp.dot(jnp.maximum(st_ref[...], 0.0), whs_ref[...],
                      preferred_element_type=jnp.float32)
            + bh_ref[...])                                                 # (B, A) f32
    o_ref[...] = head[None].astype(o_ref.dtype)


def fused_forward(x_flat, pe_flat, w_trans_wkd, b_trans, state, w_head, b_head):
    B, K = x_flat.shape
    Wp, Kw, D = w_trans_wkd.shape            # (waypoints, K, D), pre-laid-out contiguous blocks
    assert Kw == K and D == INTERMEDIATE
    N = Wp * D
    S = state.shape[-1]
    A = w_head.shape[-1]
    assert w_head.shape[0] == D + S
    assert b_trans.shape == (N,)

    pe2 = pe_flat.reshape(1, K)
    bt2 = b_trans.reshape(1, N)               # resident in VMEM, sliced per step in-kernel
    bh2 = b_head.reshape(1, A)
    wh_x = w_head[:D]                         # (D, A)
    wh_s = w_head[D:]                         # (S, A)

    itemsize_w = jnp.dtype(w_trans_wkd.dtype).itemsize
    flops = 2 * B * K * N + 2 * B * Wp * (D + S) * A
    bytes_accessed = (Wp * K * D * itemsize_w            # dominant weight stream
                      + (x_flat.size + pe2.size + bt2.size + state.size
                         + wh_x.size + wh_s.size + bh2.size + Wp * B * A) * 4)

    out = pl.pallas_call(
        _fused_kernel,
        out_shape=jax.ShapeDtypeStruct((Wp, B, A), jnp.float32),
        grid_spec=pltpu.PrefetchScalarGridSpec(
            num_scalar_prefetch=0,
            grid=(Wp,),
            in_specs=[
                pl.BlockSpec((B, K), lambda n: (0, 0)),       # x            (resident)
                pl.BlockSpec((1, K), lambda n: (0, 0)),       # PE           (resident)
                pl.BlockSpec((1, K, D), lambda n: (n, 0, 0)), # W_trans[n]   (bf16, contiguous stream)
                pl.BlockSpec((1, N), lambda n: (0, 0)),       # b_trans      (resident)
                pl.BlockSpec((B, S), lambda n: (0, 0)),       # state        (resident)
                pl.BlockSpec((D, A), lambda n: (0, 0)),       # W_head[:D]   (resident)
                pl.BlockSpec((S, A), lambda n: (0, 0)),       # W_head[D:]   (resident)
                pl.BlockSpec((1, A), lambda n: (0, 0)),       # b_head       (resident)
            ],
            out_specs=pl.BlockSpec((1, B, A), lambda n: (n, 0, 0)),
        ),
        compiler_params=pltpu.CompilerParams(
            dimension_semantics=("parallel",),        # even 5/5 split on v7x's 2 TCs
            vmem_limit_bytes=28 * 1024 * 1024),       # explicit: fits v5e/v6e/v7x
        cost_estimate=pl.CostEstimate(flops=flops, transcendentals=0,
                                      bytes_accessed=bytes_accessed),
    )(x_flat, pe2, w_trans_wkd, bt2, state, wh_x, wh_s, bh2)
    return out  # (waypoints, B, A)


# ----------------------------------------------------------------------------
# Full forward (context_only=True, no_state=False, pe=True, dropout=0)
# ----------------------------------------------------------------------------
def full_connect_ours_forward(params, state, context):
    B, T, D = context.shape
    x_flat = context.reshape(B, T * D)
    pe_flat = params["pe"].reshape(T * D)
    out_wba = fused_forward(x_flat, pe_flat, params["w_trans"], params["b_trans"],
                            state, params["w_head"], params["b_head"])
    return jnp.transpose(out_wba, (1, 0, 2))  # (B, waypoints, action_dim)


def reference_forward(params, state, context):
    B, T, D = context.shape
    W = params["waypoints"]
    xr = jnp.maximum(context + params["pe"][None], 0.0).reshape(B, T * D)
    xr = xr.astype(params["w_trans"].dtype)   # same bf16 rounding as the kernel
    res = jnp.einsum("bk,wkd->bwd", xr, params["w_trans"],
                     preferred_element_type=jnp.float32)
    res = res + params["b_trans"].reshape(1, W, D)
    se = jnp.broadcast_to(state[:, None, :], (B, W, state.shape[-1]))
    joined = jnp.maximum(jnp.concatenate([res, se], axis=-1), 0.0)
    return (jnp.dot(joined, params["w_head"],
                    precision=jax.lax.Precision.HIGHEST) + params["b_head"])


if __name__ == "__main__":
    B = 2                      # batch
    T = 10                     # context_size (no_context=False -> 10 frames)
    D = INTERMEDIATE           # 512, hardcoded in the module
    waypoints = 10
    state_dim = 8
    action_dim = 4

    key = jax.random.PRNGKey(0)
    k1, k2, k3, k4, k5, k6 = jax.random.split(key, 6)

    context = jax.random.normal(k1, (B, T, D), jnp.float32)   # pre-extracted feats
    state = jax.random.normal(k2, (B, state_dim), jnp.float32)

    # nn.Linear(T*D, waypoints*D) init (uniform +/- 1/sqrt(fan_in)), stored as (in, out)
    bt = 1.0 / math.sqrt(T * D)
    w_trans_2d = jax.random.uniform(k3, (T * D, waypoints * D), jnp.float32, -bt, bt)
    b_trans = jax.random.uniform(k4, (waypoints * D,), jnp.float32, -bt, bt)
    # One-time host-side layout transform (weights are static): (K, W*D) -> (W, K, D) bf16
    # so each waypoint's weight block is a contiguous 5 MiB DMA.
    w_trans_wkd = jnp.transpose(
        w_trans_2d.reshape(T * D, waypoints, D), (1, 0, 2)).astype(jnp.bfloat16)

    # nn.Linear(D + state_dim, action_dim)
    bh = 1.0 / math.sqrt(D + state_dim)
    w_head = jax.random.uniform(k5, (D + state_dim, action_dim), jnp.float32, -bh, bh)
    b_head = jax.random.uniform(k6, (action_dim,), jnp.float32, -bh, bh)

    params = dict(pe=sinusoidal_pe(T, D),
                  w_trans=w_trans_wkd,       # (waypoints, K, D) bf16 streamed weight
                  b_trans=b_trans,
                  w_head=w_head, b_head=b_head,
                  waypoints=waypoints)

    out = full_connect_ours_forward(params, state, context)
    out = jax.block_until_ready(out)
    assert out.shape == (B, waypoints, action_dim), out.shape

    ref = jax.block_until_ready(reference_forward(params, state, context))
    assert jnp.allclose(out, ref, rtol=2e-3, atol=2e-3), "mismatch vs reference"

    print("KERNEL_OK")
</pallas_src>

<mosaic_0001>
module attributes {stable_mosaic.version = 11 : i64} {
  func.func @_fused_kernel(%arg0: i32, %arg1: memref<2x5120xf32, #tpu.memory_space<vmem>>, %arg2: memref<1x5120xf32, #tpu.memory_space<vmem>>, %arg3: memref<1x5120x512xbf16, #tpu.memory_space<vmem>>, %arg4: memref<1x5120xf32, #tpu.memory_space<vmem>>, %arg5: memref<2x8xf32, #tpu.memory_space<vmem>>, %arg6: memref<512x4xf32, #tpu.memory_space<vmem>>, %arg7: memref<8x4xf32, #tpu.memory_space<vmem>>, %arg8: memref<1x4xf32, #tpu.memory_space<vmem>>, %arg9: memref<1x2x4xf32, #tpu.memory_space<vmem>>) attributes {dimension_semantics = [#tpu.dimension_semantics<parallel>], iteration_bounds = array<i64: 10>, scalar_prefetch = 0 : i64, scratch_operands = 0 : i64, tpu.core_type = #tpu.core_type<tc>, window_params = [{pipeline_mode = #tpu.pipeline_mode<synchronous>, transform_indices = @transform_0, window_bounds = array<i64: 2, 5120>}, {pipeline_mode = #tpu.pipeline_mode<synchronous>, transform_indices = @transform_1, window_bounds = array<i64: 1, 5120>}, {transform_indices = @transform_2, window_bounds = array<i64: 1, 5120, 512>}, {pipeline_mode = #tpu.pipeline_mode<synchronous>, transform_indices = @transform_3, window_bounds = array<i64: 1, 5120>}, {pipeline_mode = #tpu.pipeline_mode<synchronous>, transform_indices = @transform_4, window_bounds = array<i64: 2, 8>}, {pipeline_mode = #tpu.pipeline_mode<synchronous>, transform_indices = @transform_5, window_bounds = array<i64: 512, 4>}, {pipeline_mode = #tpu.pipeline_mode<synchronous>, transform_indices = @transform_6, window_bounds = array<i64: 8, 4>}, {pipeline_mode = #tpu.pipeline_mode<synchronous>, transform_indices = @transform_7, window_bounds = array<i64: 1, 4>}, {transform_indices = @transform_8, window_bounds = array<i64: 1, 2, 4>}]} {
    %c0 = arith.constant 0 : index
    %c0_0 = arith.constant 0 : index
    %0 = vector.load %arg1[%c0, %c0_0] : memref<2x5120xf32, #tpu.memory_space<vmem>>, vector<2x5120xf32>
    %c0_1 = arith.constant 0 : index
    %c0_2 = arith.constant 0 : index
    %1 = vector.load %arg2[%c0_1, %c0_2] : memref<1x5120xf32, #tpu.memory_space<vmem>>, vector<1x5120xf32>
    %2 = vector.broadcast %1 : vector<1x5120xf32> to vector<2x5120xf32>
    %3 = arith.addf %0, %2 : vector<2x5120xf32>
    %cst = arith.constant 0.000000e+00 : f32
    %4 = vector.broadcast %cst : f32 to vector<2x5120xf32>
    %5 = arith.maximumf %3, %4 : vector<2x5120xf32>
    %6 = arith.truncf %5 : vector<2x5120xf32> to vector<2x5120xbf16>
    %c0_3 = arith.constant 0 : index
    %c0_4 = arith.constant 0 : index
    %c0_5 = arith.constant 0 : index
    %7 = vector.load %arg3[%c0_3, %c0_4, %c0_5] : memref<1x5120x512xbf16, #tpu.memory_space<vmem>>, vector<1x5120x512xbf16>
    %8 = vector.shape_cast %7 : vector<1x5120x512xbf16> to vector<5120x512xbf16>
    %cst_6 = arith.constant dense<0.000000e+00> : vector<2x512xf32>
    %9 = tpu.matmul %6, %8, %cst_6 {dimension_numbers = #tpu.dot_dimension_numbers<[1], [0], [0], [1], [0, 0, 1, 1], [], []>} : vector<2x5120xbf16>, vector<5120x512xbf16>, vector<2x512xf32> -> vector<2x512xf32>
    %c512_i32 = arith.constant 512 : i32
    %10 = arith.muli %arg0, %c512_i32 : i32
    %11 = tpu.assume_multiple %10, 128 : i32
    %c0_7 = arith.constant 0 : index
    %12 = arith.index_cast %11 : i32 to index
    %13 = vector.load %arg4[%c0_7, %12] : memref<1x5120xf32, #tpu.memory_space<vmem>>, vector<1x512xf32>
    %14 = vector.broadcast %13 : vector<1x512xf32> to vector<2x512xf32>
    %15 = arith.addf %9, %14 : vector<2x512xf32>
    %cst_8 = arith.constant 0.000000e+00 : f32
    %16 = vector.broadcast %cst_8 : f32 to vector<2x512xf32>
    %17 = arith.maximumf %15, %16 : vector<2x512xf32>
    %c0_9 = arith.constant 0 : index
    %c0_10 = arith.constant 0 : index
    %18 = vector.load %arg6[%c0_9, %c0_10] : memref<512x4xf32, #tpu.memory_space<vmem>>, vector<512x4xf32>
    %cst_11 = arith.constant dense<0.000000e+00> : vector<2x4xf32>
    %19 = tpu.matmul %17, %18, %cst_11 {dimension_numbers = #tpu.dot_dimension_numbers<[1], [0], [0], [1], [0, 0, 1, 1], [], []>} : vector<2x512xf32>, vector<512x4xf32>, vector<2x4xf32> -> vector<2x4xf32>
    %c0_12 = arith.constant 0 : index
    %c0_13 = arith.constant 0 : index
    %20 = vector.load %arg5[%c0_12, %c0_13] : memref<2x8xf32, #tpu.memory_space<vmem>>, vector<2x8xf32>
    %cst_14 = arith.constant 0.000000e+00 : f32
    %21 = vector.broadcast %cst_14 : f32 to vector<2x8xf32>
    %22 = arith.maximumf %20, %21 : vector<2x8xf32>
    %c0_15 = arith.constant 0 : index
    %c0_16 = arith.constant 0 : index
    %23 = vector.load %arg7[%c0_15, %c0_16] : memref<8x4xf32, #tpu.memory_space<vmem>>, vector<8x4xf32>
    %cst_17 = arith.constant dense<0.000000e+00> : vector<2x4xf32>
    %24 = tpu.matmul %22, %23, %cst_17 {dimension_numbers = #tpu.dot_dimension_numbers<[1], [0], [0], [1], [0, 0, 1, 1], [], []>} : vector<2x8xf32>, vector<8x4xf32>, vector<2x4xf32> -> vector<2x4xf32>
    %25 = arith.addf %19, %24 : vector<2x4xf32>
    %c0_18 = arith.constant 0 : index
    %c0_19 = arith.constant 0 : index
    %26 = vector.load %arg8[%c0_18, %c0_19] : memref<1x4xf32, #tpu.memory_space<vmem>>, vector<1x4xf32>
    %27 = vector.broadcast %26 : vector<1x4xf32> to vector<2x4xf32>
    %28 = arith.addf %25, %27 : vector<2x4xf32>
    %29 = vector.shape_cast %28 : vector<2x4xf32> to vector<1x2x4xf32>
    %c0_20 = arith.constant 0 : index
    %c0_21 = arith.constant 0 : index
    %c0_22 = arith.constant 0 : index
    %30 = vector.load %arg9[%c0_20, %c0_21, %c0_22] : memref<1x2x4xf32, #tpu.memory_space<vmem>>, vector<1x2x4xf32>
    tpu.vector_store %arg9[%c0_20, %c0_21, %c0_22], %29 {strides = array<i32>} : memref<1x2x4xf32, #tpu.memory_space<vmem>>, vector<1x2x4xf32>,
    return
  }
  func.func @transform_0(%arg0: i32) -> (i32, i32) {
    %c0_i32 = arith.constant 0 : i32
    %c0_i32_0 = arith.constant 0 : i32
    %c0_i32_1 = arith.constant 0 : i32
    return %c0_i32, %c0_i32_0 : i32, i32
  }
  func.func @transform_1(%arg0: i32) -> (i32, i32) {
    %c0_i32 = arith.constant 0 : i32
    %c0_i32_0 = arith.constant 0 : i32
    %c0_i32_1 = arith.constant 0 : i32
    return %c0_i32, %c0_i32_0 : i32, i32
  }
  func.func @transform_2(%arg0: i32) -> (i32, i32, i32) {
    %c0_i32 = arith.constant 0 : i32
    %c0_i32_0 = arith.constant 0 : i32
    %c0_i32_1 = arith.constant 0 : i32
    return %arg0, %c0_i32, %c0_i32_0 : i32, i32, i32
  }
  func.func @transform_3(%arg0: i32) -> (i32, i32) {
    %c0_i32 = arith.constant 0 : i32
    %c0_i32_0 = arith.constant 0 : i32
    %c0_i32_1 = arith.constant 0 : i32
    return %c0_i32, %c0_i32_0 : i32, i32
  }
  func.func @transform_4(%arg0: i32) -> (i32, i32) {
    %c0_i32 = arith.constant 0 : i32
    %c0_i32_0 = arith.constant 0 : i32
    %c0_i32_1 = arith.constant 0 : i32
    return %c0_i32, %c0_i32_0 : i32, i32
  }
  func.func @transform_5(%arg0: i32) -> (i32, i32) {
    %c0_i32 = arith.constant 0 : i32
    %c0_i32_0 = arith.constant 0 : i32
    %c0_i32_1 = arith.constant 0 : i32
    return %c0_i32, %c0_i32_0 : i32, i32
  }
  func.func @transform_6(%arg0: i32) -> (i32, i32) {
    %c0_i32 = arith.constant 0 : i32
    %c0_i32_0 = arith.constant 0 : i32
    %c0_i32_1 = arith.constant 0 : i32
    return %c0_i32, %c0_i32_0 : i32, i32
  }
  func.func @transform_7(%arg0: i32) -> (i32, i32) {
    %c0_i32 = arith.constant 0 : i32
    %c0_i32_0 = arith.constant 0 : i32
    %c0_i32_1 = arith.constant 0 : i32
    return %c0_i32, %c0_i32_0 : i32, i32
  }
  func.func @transform_8(%arg0: i32) -> (i32, i32, i32) {
    %c0_i32 = arith.constant 0 : i32
    %c0_i32_0 = arith.constant 0 : i32
    %c0_i32_1 = arith.constant 0 : i32
    return %arg0, %c0_i32, %c0_i32_0 : i32, i32, i32
  }
}

</mosaic_0001>

<llo_original>
// kernel: tpu_custom_call.1
$region0: #{tpu_custom_call.1}
  #allocation0 [shape = 'u32[]', space=smem, size = 0x4, offset = 0x4, fixed_abs, tag = 'smem constant byte address 0x4 - core index']
  #allocation1 [shape = 'u32[144,128]{1,0:T(1,128)}', space=vmem, size = 0x12000, scoped, tag = 'internal scratch']
  %s0 = inlined_call_operand.hbm [shape: f32[2,5120], index: 0, kind: input, shape index: {}]
  %s1 = inlined_call_operand.hbm [shape: f32[1,5120], index: 1, kind: input, shape index: {}]
  %s2 = inlined_call_operand.hbm [shape: bf16[10,5120,512], index: 2, kind: input, shape index: {}]
  %s3 = inlined_call_operand.hbm [shape: f32[1,5120], index: 3, kind: input, shape index: {}]
  %s4 = inlined_call_operand.hbm [shape: f32[2,8], index: 4, kind: input, shape index: {}]
  %s5 = inlined_call_operand.vmem [shape: f32[512,4], index: 5, kind: input, shape index: {}]
  %s6 = inlined_call_operand.vmem [shape: f32[8,4], index: 6, kind: input, shape index: {}]
  %s7 = inlined_call_operand.hbm [shape: f32[1,4], index: 7, kind: input, shape index: {}]
  %s8 = inlined_call_operand.vmem [shape: f32[10,2,4], index: 8, kind: output, shape index: {}]
  %s9 = sld [smem:[#allocation0]]
  $region89: #{tpu_custom_call.1} parent=0
    _
  %s11 = ssub.s32 1, %s9
  %s12 = scalar_select 0, %s11, %s9
  $region1: #{tpu_custom_call.1} parent=0
    #allocation2 [shape = 'u8[40960]{0}', space=vmem, size = 0xa000, scoped, tag = 'input window, operand 0, single buffered']
    #allocation3 [shape = 's32[2]{0}', space=sflag, size = 0x8, scoped, tag = 'scoped memory for tpu_custom_call.1']
    #allocation4 [shape = 'u8[20480]{0}', space=vmem, size = 0x5000, scoped, tag = 'input window, operand 1, single buffered']
    #allocation5 [shape = 's32[1]{0}', space=sflag, size = 0x4, scoped, tag = 'scoped memory for tpu_custom_call.1']
    #allocation6 [shape = 'u8[10485760]{0}', space=vmem, size = 0xa00000, scoped, tag = 'input window, operand 2']
    #allocation7 [shape = 'u8[20480]{0}', space=vmem, size = 0x5000, scoped, tag = 'input window, operand 3, single buffered']
    #allocation8 [shape = 'u8[1024]{0}', space=vmem, size = 0x400, scoped, tag = 'input window, operand 4, single buffered']
    #allocation9 [shape = 's32[1]{0}', space=sflag, size = 0x4, scoped, tag = 'scoped memory for tpu_custom_call.1']
    #allocation10 [shape = 'u8[512]{0}', space=vmem, size = 0x400, scoped, tag = 'input window, operand 7, single buffered']
    %13 = vsyncpa [#allocation3], 0
    %14 = vsyncpa [#allocation5], 0
    %15 = vsyncpa [#allocation9], 0
    loop: start=0, step=1, limit=12
    $region2: #{tpu_custom_call.1} parent=1 // loop_pre_header
      _
    $region3: #{tpu_custom_call.1} parent=1 // loop_header
      %s17 = sphi 0, %s21
      %p18 = scmp.ge.s32.totalorder %s17, 12
      %s25 = sphi 0, %s25
      %s27 = sphi 0, %s25
      %s28 = sphi 0, %s27
      %s42 = sphi 0, %s28
      %s46 = sphi 0, %s46
      %s48 = sphi 0, %s46
      %s49 = sphi 0, %s48
      %s63 = sphi 0, %s49
      %s69 = sphi 0, %s71
      %s72 = sphi 0, %s69
      %s73 = sphi 0, %s72
      %s89 = sphi 0, %s73
      %s93 = sphi 0, %s93
      %s95 = sphi 0, %s93
      %s96 = sphi 0, %s95
      %s110 = sphi 0, %s96
      %s114 = sphi 0, %s114
      %s116 = sphi 0, %s114
      %s117 = sphi 0, %s116
      %s131 = sphi 0, %s117
      %s135 = sphi 0, %s135
      %s137 = sphi 0, %s135
      %s138 = sphi 0, %s137
      %s152 = sphi 0, %s138
      %s156 = sphi 0, %s156
      %s158 = sphi 0, %s156
      %s159 = sphi 0, %s158
      %s173 = sphi 0, %s159
      %s177 = sphi 0, %s177
      %s179 = sphi 0, %s177
      %s180 = sphi 0, %s179
      %s194 = sphi 0, %s180
      %s200 = sphi 0, %s202
      %s203 = sphi 0, %s200
      %s204 = sphi 0, %s203
      %s220 = sphi 0, %s204
    $region4: #{tpu_custom_call.1} parent=1 // loop_header_branch
      %20 = sbr.rel (%p18) target = $region8
    $region5: #{tpu_custom_call.1} parent=1 // loop_body
      %s22 = ssub.s32 %s17, 1
      %s23 = ssub.s32 %s17, 2
      %s24 = sadd.s32 %s17, 1
      %s26 = sadd.s32 %s25, 1
      %p29 = scmp.eq.s32.totalorder %s17, 9
      %p30 = scmp.ne.s32.totalorder %s25, %s27
      %p31 = scmp.eq.s32.totalorder %s17, 0
      %p32 = por %p30, %p31
      %p33 = scmp.ne.s32.totalorder %s25, %s27
      %p34 = scmp.eq.s32.totalorder %s22, 9
      %p35 = por %p33, %p34
      %p36 = scmp.ne.s32.totalorder %s27, %s28
      %p37 = scmp.eq.s32.totalorder %s22, 0
      %p38 = por %p36, %p37
      %p39 = scmp.ne.s32.totalorder %s27, %s28
      %p40 = scmp.eq.s32.totalorder %s23, 9
      %p41 = por %p39, %p40
      %p43 = scmp.ne.s32.totalorder %s28, %s42
      %p44 = scmp.eq.s32.totalorder %s23, 0
      %p45 = por %p43, %p44
      %s47 = sadd.s32 %s46, 1
      %p50 = scmp.eq.s32.totalorder %s17, 9
      %p51 = scmp.ne.s32.totalorder %s46, %s48
      %p52 = scmp.eq.s32.totalorder %s17, 0
      %p53 = por %p51, %p52
      %p54 = scmp.ne.s32.totalorder %s46, %s48
      %p55 = scmp.eq.s32.totalorder %s22, 9
      %p56 = por %p54, %p55
      %p57 = scmp.ne.s32.totalorder %s48, %s49
      %p58 = scmp.eq.s32.totalorder %s22, 0
      %p59 = por %p57, %p58
      %p60 = scmp.ne.s32.totalorder %s48, %s49
      %p61 = scmp.eq.s32.totalorder %s23, 9
      %p62 = por %p60, %p61
      %p64 = scmp.ne.s32.totalorder %s49, %s63
      %p65 = scmp.eq.s32.totalorder %s23, 0
      %p66 = por %p64, %p65
      %s67 = ssub.s32 %s17, %s24
      %p68 = scmp.eq.s32.totalorder %s67, 0
      %s70 = sadd.s32 %s69, 1
      %s71 = scalar_select %p68, %s69, %s70
      %p74 = pneg %p68
      %p75 = scmp.eq.s32.totalorder %s17, 9
      %p76 = por %p74, %p75
      %p77 = scmp.ne.s32.totalorder %s69, %s72
      %p78 = scmp.eq.s32.totalorder %s17, 0
      %p79 = por %p77, %p78
      %p80 = scmp.ne.s32.totalorder %s69, %s72
      %p81 = scmp.eq.s32.totalorder %s22, 9
      %p82 = por %p80, %p81
      %p83 = scmp.ne.s32.totalorder %s72, %s73
      %p84 = scmp.eq.s32.totalorder %s22, 0
      %p85 = por %p83, %p84
      %p86 = scmp.ne.s32.totalorder %s72, %s73
      %p87 = scmp.eq.s32.totalorder %s23, 9
      %p88 = por %p86, %p87
      %p90 = scmp.ne.s32.totalorder %s73, %s89
      %p91 = scmp.eq.s32.totalorder %s23, 0
      %p92 = por %p90, %p91
      %s94 = sadd.s32 %s93, 1
      %p97 = scmp.eq.s32.totalorder %s17, 9
      %p98 = scmp.ne.s32.totalorder %s93, %s95
      %p99 = scmp.eq.s32.totalorder %s17, 0
      %p100 = por %p98, %p99
      %p101 = scmp.ne.s32.totalorder %s93, %s95
      %p102 = scmp.eq.s32.totalorder %s22, 9
      %p103 = por %p101, %p102
      %p104 = scmp.ne.s32.totalorder %s95, %s96
      %p105 = scmp.eq.s32.totalorder %s22, 0
      %p106 = por %p104, %p105
      %p107 = scmp.ne.s32.totalorder %s95, %s96
      %p108 = scmp.eq.s32.totalorder %s23, 9
      %p109 = por %p107, %p108
      %p111 = scmp.ne.s32.totalorder %s96, %s110
      %p112 = scmp.eq.s32.totalorder %s23, 0
      %p113 = por %p111, %p112
      %s115 = sadd.s32 %s114, 1
      %p118 = scmp.eq.s32.totalorder %s17, 9
      %p119 = scmp.ne.s32.totalorder %s114, %s116
      %p120 = scmp.eq.s32.totalorder %s17, 0
      %p121 = por %p119, %p120
      %p122 = scmp.ne.s32.totalorder %s114, %s116
      %p123 = scmp.eq.s32.totalorder %s22, 9
      %p124 = por %p122, %p123
      %p125 = scmp.ne.s32.totalorder %s116, %s117
      %p126 = scmp.eq.s32.totalorder %s22, 0
      %p127 = por %p125, %p126
      %p128 = scmp.ne.s32.totalorder %s116, %s117
      %p129 = scmp.eq.s32.totalorder %s23, 9
      %p130 = por %p128, %p129
      %p132 = scmp.ne.s32.totalorder %s117, %s131
      %p133 = scmp.eq.s32.totalorder %s23, 0
      %p134 = por %p132, %p133
      %s136 = sadd.s32 %s135, 1
      %p139 = scmp.eq.s32.totalorder %s17, 9
      %p140 = scmp.ne.s32.totalorder %s135, %s137
      %p141 = scmp.eq.s32.totalorder %s17, 0
      %p142 = por %p140, %p141
      %p143 = scmp.ne.s32.totalorder %s135, %s137
      %p144 = scmp.eq.s32.totalorder %s22, 9
      %p145 = por %p143, %p144
      %p146 = scmp.ne.s32.totalorder %s137, %s138
      %p147 = scmp.eq.s32.totalorder %s22, 0
      %p148 = por %p146, %p147
      %p149 = scmp.ne.s32.totalorder %s137, %s138
      %p150 = scmp.eq.s32.totalorder %s23, 9
      %p151 = por %p149, %p150
      %p153 = scmp.ne.s32.totalorder %s138, %s152
      %p154 = scmp.eq.s32.totalorder %s23, 0
      %p155 = por %p153, %p154
      %s157 = sadd.s32 %s156, 1
      %p160 = scmp.eq.s32.totalorder %s17, 9
      %p161 = scmp.ne.s32.totalorder %s156, %s158
      %p162 = scmp.eq.s32.totalorder %s17, 0
      %p163 = por %p161, %p162
      %p164 = scmp.ne.s32.totalorder %s156, %s158
      %p165 = scmp.eq.s32.totalorder %s22, 9
      %p166 = por %p164, %p165
      %p167 = scmp.ne.s32.totalorder %s158, %s159
      %p168 = scmp.eq.s32.totalorder %s22, 0
      %p169 = por %p167, %p168
      %p170 = scmp.ne.s32.totalorder %s158, %s159
      %p171 = scmp.eq.s32.totalorder %s23, 9
      %p172 = por %p170, %p171
      %p174 = scmp.ne.s32.totalorder %s159, %s173
      %p175 = scmp.eq.s32.totalorder %s23, 0
      %p176 = por %p174, %p175
      %s178 = sadd.s32 %s177, 1
      %p181 = scmp.eq.s32.totalorder %s17, 9
      %p182 = scmp.ne.s32.totalorder %s177, %s179
      %p183 = scmp.eq.s32.totalorder %s17, 0
      %p184 = por %p182, %p183
      %p185 = scmp.ne.s32.totalorder %s177, %s179
      %p186 = scmp.eq.s32.totalorder %s22, 9
      %p187 = por %p185, %p186
      %p188 = scmp.ne.s32.totalorder %s179, %s180
      %p189 = scmp.eq.s32.totalorder %s22, 0
      %p190 = por %p188, %p189
      %p191 = scmp.ne.s32.totalorder %s179, %s180
      %p192 = scmp.eq.s32.totalorder %s23, 9
      %p193 = por %p191, %p192
      %p195 = scmp.ne.s32.totalorder %s180, %s194
      %p196 = scmp.eq.s32.totalorder %s23, 0
      %p197 = por %p195, %p196
      %s198 = ssub.s32 %s17, %s24
      %p199 = scmp.eq.s32.totalorder %s198, 0
      %s201 = sadd.s32 %s200, 1
      %s202 = scalar_select %p199, %s200, %s201
      %p205 = pneg %p199
      %p206 = scmp.eq.s32.totalorder %s17, 9
      %p207 = por %p205, %p206
      %p208 = scmp.ne.s32.totalorder %s200, %s203
      %p209 = scmp.eq.s32.totalorder %s17, 0
      %p210 = por %p208, %p209
      %p211 = scmp.ne.s32.totalorder %s200, %s203
      %p212 = scmp.eq.s32.totalorder %s22, 9
      %p213 = por %p211, %p212
      %p214 = scmp.ne.s32.totalorder %s203, %s204
      %p215 = scmp.eq.s32.totalorder %s22, 0
      %p216 = por %p214, %p215
      %p217 = scmp.ne.s32.totalorder %s203, %s204
      %p218 = scmp.eq.s32.totalorder %s23, 9
      %p219 = por %p217, %p218
      %p221 = scmp.ne.s32.totalorder %s204, %s220
      %p222 = scmp.eq.s32.totalorder %s23, 0
      %p223 = por %p221, %p222
      %p224 = scmp.le.s32.totalorder 1, %s17
      %p225 = scmp.lt.s32.totalorder %s17, 11
      %p226 = pnand %p224, %p225
      %p227 = pneg %p226
      // Predicated region
      $region9: #{tpu_custom_call.1} parent=5 // pred_check
        _
      $region10: #{tpu_custom_call.1} parent=5 // pred_check_branch
        %229 = sbr.rel (%p226) target = $region12
      $region11: #{tpu_custom_call.1} parent=5 // pred_region
        %s230 = ssub.s32 %s17, 1
        // Predicated region
        $region13: #{tpu_custom_call.1} parent=11 // pred_check
          %p231 = pneg %p38
        $region14: #{tpu_custom_call.1} parent=11 // pred_check_branch
          %233 = sbr.rel (%p231) target = $region16
        $region15: #{tpu_custom_call.1} parent=11 // pred_region
          %s235 = ssub.s32 1280, 1280
          %236 = vsyncadd [#allocation3], %s235
          %s238 = sshll.u32 [#allocation2], 4
          %s239 = int_to_ptr.vmem [resolvable:$true] %s238
          %241 = dma.hbm_to_vmem [thread:$0]  %s0, 1280, %s239, [#allocation3]
        $region16: #{tpu_custom_call.1} parent=11 // pred_fallthru
          _
        // Predicated region
        $region17: #{tpu_custom_call.1} parent=11 // pred_check
          %p242 = pneg %p59
        $region18: #{tpu_custom_call.1} parent=11 // pred_check_branch
          %244 = sbr.rel (%p242) target = $region20
        $region19: #{tpu_custom_call.1} parent=11 // pred_region
          %s246 = ssub.s32 640, 640
          %247 = vsyncadd [#allocation5], %s246
          %s249 = sshll.u32 [#allocation4], 4
          %s250 = int_to_ptr.vmem [resolvable:$true] %s249
          %252 = dma.hbm_to_vmem [thread:$0]  %s1, 640, %s250, [#allocation5]
        $region20: #{tpu_custom_call.1} parent=11 // pred_fallthru
          _
        // Predicated region
        $region21: #{tpu_custom_call.1} parent=11 // pred_check
          %p253 = pneg %p106
        $region22: #{tpu_custom_call.1} parent=11 // pred_check_branch
          %255 = sbr.rel (%p253) target = $region24
        $region23: #{tpu_custom_call.1} parent=11 // pred_region
          %s257 = ssub.s32 640, 640
          %258 = vsyncadd [#allocation5], %s257
          %s260 = sshll.u32 [#allocation7], 4
          %s261 = int_to_ptr.vmem [resolvable:$true] %s260
          %263 = dma.hbm_to_vmem [thread:$0]  %s3, 640, %s261, [#allocation5]
        $region24: #{tpu_custom_call.1} parent=11 // pred_fallthru
          _
        // Predicated region
        $region25: #{tpu_custom_call.1} parent=11 // pred_check
          %p264 = pneg %p127
        $region26: #{tpu_custom_call.1} parent=11 // pred_check_branch
          %266 = sbr.rel (%p264) target = $region28
        $region27: #{tpu_custom_call.1} parent=11 // pred_region
          %s268 = ssub.s32 32, 32
          %269 = vsyncadd [#allocation9], %s268
          %s271 = sshll.u32 [#allocation8], 4
          %s272 = int_to_ptr.vmem [resolvable:$true] %s271
          %274 = dma.hbm_to_vmem [thread:$0]  %s4, 32, %s272, [#allocation9]
        $region28: #{tpu_custom_call.1} parent=11 // pred_fallthru
          _
        // Predicated region
        $region29: #{tpu_custom_call.1} parent=11 // pred_check
          %p275 = pneg %p148
        $region30: #{tpu_custom_call.1} parent=11 // pred_check_branch
          %277 = sbr.rel (%p275) target = $region32
        $region31: #{tpu_custom_call.1} parent=11 // pred_region
          _
        $region32: #{tpu_custom_call.1} parent=11 // pred_fallthru
          _
        // Predicated region
        $region33: #{tpu_custom_call.1} parent=11 // pred_check
          %p278 = pneg %p169
        $region34: #{tpu_custom_call.1} parent=11 // pred_check_branch
          %280 = sbr.rel (%p278) target = $region36
        $region35: #{tpu_custom_call.1} parent=11 // pred_region
          _
        $region36: #{tpu_custom_call.1} parent=11 // pred_fallthru
          _
        // Predicated region
        $region37: #{tpu_custom_call.1} parent=11 // pred_check
          %p281 = pneg %p190
        $region38: #{tpu_custom_call.1} parent=11 // pred_check_branch
          %283 = sbr.rel (%p281) target = $region40
        $region39: #{tpu_custom_call.1} parent=11 // pred_region
          %s285 = ssub.s32 16, 16
          %286 = vsyncadd [#allocation9], %s285
          %s288 = sshll.u32 [#allocation10], 4
          %s289 = int_to_ptr.vmem [resolvable:$true] %s288
          %291 = dma.hbm_to_vmem [thread:$0]  %s7, 16, %s289, [#allocation9]
        $region40: #{tpu_custom_call.1} parent=11 // pred_fallthru
          _
      $region12: #{tpu_custom_call.1} parent=5 // pred_fallthru
        _
      %p292 = scmp.lt.s32.totalorder %s17, 10
      // Predicated region
      $region41: #{tpu_custom_call.1} parent=5 // pred_check
        %p293 = pneg %p292
      $region42: #{tpu_custom_call.1} parent=5 // pred_check_branch
        %295 = sbr.rel (%p293) target = $region44
      $region43: #{tpu_custom_call.1} parent=5 // pred_region
        // Predicated region
        $region45: #{tpu_custom_call.1} parent=43 // pred_check
          %p296 = pneg %p79
        $region46: #{tpu_custom_call.1} parent=43 // pred_check_branch
          %298 = sbr.rel (%p296) target = $region48
        $region47: #{tpu_custom_call.1} parent=43 // pred_region
          %s299 = sand.u32 %s17, 1
          %s300 = scalar_lea.sflag [#allocation3], %s299
          %s301 = sand.u32 %s69, 1
          %s302 = smul.addr %s301, 10240
          %s303 = scalar_lea.vmem [#allocation6], %s302
          %s305 = ssub.s32 163840, 163840
          %306 = vsyncadd %s300, %s305
          %s307 = smul.addr %s17, 2560
          %s308 = smul.addr %s307, 64
          %s309 = scalar_lea.hbm %s2, %s308
          %s310 = sshll.u32 %s303, 4
          %s311 = int_to_ptr.vmem [resolvable:$true] %s310
          %316 = dma.hbm_to_vmem [thread:$0]  %s309, 163840, %s311, %s300, 256, 256, 16
        $region48: #{tpu_custom_call.1} parent=43 // pred_fallthru
          _
      $region44: #{tpu_custom_call.1} parent=5 // pred_fallthru
        _
      %p317 = scmp.le.s32.totalorder 1, %s17
      %p318 = scmp.lt.s32.totalorder %s17, 11
      %p319 = pnand %p317, %p318
      %p320 = pneg %p319
      // Predicated region
      $region49: #{tpu_custom_call.1} parent=5 // pred_check
        _
      $region50: #{tpu_custom_call.1} parent=5 // pred_check_branch
        %322 = sbr.rel (%p319) target = $region52
      $region51: #{tpu_custom_call.1} parent=5 // pred_region
        %s323 = ssub.s32 %s17, 1
        // Predicated region
        $region53: #{tpu_custom_call.1} parent=51 // pred_check
          %p324 = pneg %p38
        $region54: #{tpu_custom_call.1} parent=51 // pred_check_branch
          %326 = sbr.rel (%p324) target = $region56
        $region55: #{tpu_custom_call.1} parent=51 // pred_region
          %327 = dma.done [#allocation3], 1280
        $region56: #{tpu_custom_call.1} parent=51 // pred_fallthru
          _
        // Predicated region
        $region57: #{tpu_custom_call.1} parent=51 // pred_check
          %p328 = pneg %p59
        $region58: #{tpu_custom_call.1} parent=51 // pred_check_branch
          %330 = sbr.rel (%p328) target = $region60
        $region59: #{tpu_custom_call.1} parent=51 // pred_region
          %331 = dma.done [#allocation5], 640
        $region60: #{tpu_custom_call.1} parent=51 // pred_fallthru
          _
        %s332 = sand.u32 %s22, 1
        %s333 = scalar_lea.sflag [#allocation3], %s332
        %s334 = sand.u32 %s72, 1
        %s335 = smul.addr %s334, 10240
        %s336 = scalar_lea.vmem [#allocation6], %s335
        // Predicated region
        $region61: #{tpu_custom_call.1} parent=51 // pred_check
          %p337 = pneg %p85
        $region62: #{tpu_custom_call.1} parent=51 // pred_check_branch
          %339 = sbr.rel (%p337) target = $region64
        $region63: #{tpu_custom_call.1} parent=51 // pred_region
          %340 = dma.done %s333, 163840
        $region64: #{tpu_custom_call.1} parent=51 // pred_fallthru
          _
        // Predicated region
        $region65: #{tpu_custom_call.1} parent=51 // pred_check
          %p341 = pneg %p106
        $region66: #{tpu_custom_call.1} parent=51 // pred_check_branch
          %343 = sbr.rel (%p341) target = $region68
        $region67: #{tpu_custom_call.1} parent=51 // pred_region
          %344 = dma.done [#allocation5], 640
        $region68: #{tpu_custom_call.1} parent=51 // pred_fallthru
          _
        // Predicated region
        $region69: #{tpu_custom_call.1} parent=51 // pred_check
          %p345 = pneg %p127
        $region70: #{tpu_custom_call.1} parent=51 // pred_check_branch
          %347 = sbr.rel (%p345) target = $region72
        $region71: #{tpu_custom_call.1} parent=51 // pred_region
          %348 = dma.done [#allocation9], 32
        $region72: #{tpu_custom_call.1} parent=51 // pred_fallthru
          _
        // Predicated region
        $region73: #{tpu_custom_call.1} parent=51 // pred_check
          %p349 = pneg %p190
        $region74: #{tpu_custom_call.1} parent=51 // pred_check_branch
          %351 = sbr.rel (%p349) target = $region76
        $region75: #{tpu_custom_call.1} parent=51 // pred_region
          %352 = dma.done [#allocation9], 16
        $region76: #{tpu_custom_call.1} parent=51 // pred_fallthru
          _
        %p353 = pneg %p38
        %p354 = pneg %p35
        %p355 = pneg %p59
        %p356 = pneg %p56
        %s357 = sand.u32 %s22, 1
        %s358 = scalar_lea.sflag [#allocation3], %s357
        %s359 = sand.u32 %s72, 1
        %s360 = smul.addr %s359, 10240
        %s361 = scalar_lea.vmem [#allocation6], %s360
        %p362 = pneg %p85
        %p363 = pneg %p82
        %p364 = pneg %p106
        %p365 = pneg %p103
        %p366 = pneg %p127
        %p367 = pneg %p124
        %p368 = pneg %p148
        %p369 = pneg %p145
        %p370 = pneg %p169
        %p371 = pneg %p166
        %p372 = pneg %p190
        %p373 = pneg %p187
        %p374 = pneg %p216
        %p375 = pneg %p213
        %p376 = scmp.lt.s32.totalorder %s22, 9
        %s377 = scalar_select %p376, %s22, 9
        %s378 = smul.addr %s377, 2
        %s379 = scalar_lea.vmem %s8, %s378
        %p380 = scmp.lt.s32.totalorder %s22, 9
        %s381 = scalar_select %p380, %s22, 9
        %s382 = smul.addr %s381, 2
        %s383 = scalar_lea.vmem %s8, %s382
        %v384 = vld [vmem:[#allocation2] sm:$0xff]
        %v385 = vld [vmem:[#allocation2 + $0x8] sm:$0xff]
        %v386 = vld [vmem:[#allocation2 + $0x10] sm:$0xff]
        %v387 = vld [vmem:[#allocation2 + $0x18] sm:$0xff]
        %v388 = vld [vmem:[#allocation2 + $0x20] sm:$0xff]
        %v389 = vld [vmem:[#allocation2 + $0x28] sm:$0xff]
        %v390 = vld [vmem:[#allocation2 + $0x30] sm:$0xff]
        %v391 = vld [vmem:[#allocation2 + $0x38] sm:$0xff]
        %v392 = vld [vmem:[#allocation2 + $0x40] sm:$0xff]
        %v393 = vld [vmem:[#allocation2 + $0x48] sm:$0xff]
        %v394 = vld [vmem:[#allocation4] sm:$0xff]
        %v395 = vld [vmem:[#allocation4 + $0x8] sm:$0xff]
        %v396 = vld [vmem:[#allocation4 + $0x10] sm:$0xff]
        %v397 = vld [vmem:[#allocation4 + $0x18] sm:$0xff]
        %v398 = vld [vmem:[#allocation4 + $0x20] sm:$0xff]
        %v404 = vlaneseq
        %v405 = vshrl.u32 %v404, 7
        %v406 = vsub.s32 0, %v405
        %v407 = vrot.slane %v394, %v406
        %v408 = vlaneseq
        %v409 = vshrl.u32 %v408, 7
        %v410 = vsub.s32 1, %v409
        %v411 = vrot.slane %v394, %v410
        %v412 = vlaneseq
        %v413 = vshrl.u32 %v412, 7
        %v414 = vsub.s32 2, %v413
        %v415 = vrot.slane %v394, %v414
        %v416 = vlaneseq
        %v417 = vshrl.u32 %v416, 7
        %v418 = vsub.s32 3, %v417
        %v419 = vrot.slane %v394, %v418
        %v420 = vlaneseq
        %v421 = vshrl.u32 %v420, 7
        %v422 = vsub.s32 4, %v421
        %v423 = vrot.slane %v394, %v422
        %v424 = vlaneseq
        %v425 = vshrl.u32 %v424, 7
        %v426 = vsub.s32 5, %v425
        %v427 = vrot.slane %v394, %v426
        %v428 = vlaneseq
        %v429 = vshrl.u32 %v428, 7
        %v430 = vsub.s32 6, %v429
        %v431 = vrot.slane %v394, %v430
        %v432 = vlaneseq
        %v433 = vshrl.u32 %v432, 7
        %v434 = vsub.s32 7, %v433
        %v435 = vrot.slane %v394, %v434
        %v436 = vlaneseq
        %v437 = vshrl.u32 %v436, 7
        %v438 = vsub.s32 0, %v437
        %v439 = vrot.slane %v395, %v438
        %v440 = vlaneseq
        %v441 = vshrl.u32 %v440, 7
        %v442 = vsub.s32 1, %v441
        %v443 = vrot.slane %v395, %v442
        %v444 = vlaneseq
        %v445 = vshrl.u32 %v444, 7
        %v446 = vsub.s32 2, %v445
        %v447 = vrot.slane %v395, %v446
        %v448 = vlaneseq
        %v449 = vshrl.u32 %v448, 7
        %v450 = vsub.s32 3, %v449
        %v451 = vrot.slane %v395, %v450
        %v452 = vlaneseq
        %v453 = vshrl.u32 %v452, 7
        %v454 = vsub.s32 4, %v453
        %v455 = vrot.slane %v395, %v454
        %v456 = vlaneseq
        %v457 = vshrl.u32 %v456, 7
        %v458 = vsub.s32 5, %v457
        %v459 = vrot.slane %v395, %v458
        %v460 = vlaneseq
        %v461 = vshrl.u32 %v460, 7
        %v462 = vsub.s32 6, %v461
        %v463 = vrot.slane %v395, %v462
        %v464 = vlaneseq
        %v465 = vshrl.u32 %v464, 7
        %v466 = vsub.s32 7, %v465
        %v467 = vrot.slane %v395, %v466
        %v468 = vlaneseq
        %v469 = vshrl.u32 %v468, 7
        %v470 = vsub.s32 0, %v469
        %v471 = vrot.slane %v396, %v470
        %v472 = vlaneseq
        %v473 = vshrl.u32 %v472, 7
        %v474 = vsub.s32 1, %v473
        %v475 = vrot.slane %v396, %v474
        %v476 = vlaneseq
        %v477 = vshrl.u32 %v476, 7
        %v478 = vsub.s32 2, %v477
        %v479 = vrot.slane %v396, %v478
        %v480 = vlaneseq
        %v481 = vshrl.u32 %v480, 7
        %v482 = vsub.s32 3, %v481
        %v483 = vrot.slane %v396, %v482
        %v484 = vlaneseq
        %v485 = vshrl.u32 %v484, 7
        %v486 = vsub.s32 4, %v485
        %v487 = vrot.slane %v396, %v486
        %v488 = vlaneseq
        %v489 = vshrl.u32 %v488, 7
        %v490 = vsub.s32 5, %v489
        %v491 = vrot.slane %v396, %v490
        %v492 = vlaneseq
        %v493 = vshrl.u32 %v492, 7
        %v494 = vsub.s32 6, %v493
        %v495 = vrot.slane %v396, %v494
        %v496 = vlaneseq
        %v497 = vshrl.u32 %v496, 7
        %v498 = vsub.s32 7, %v497
        %v499 = vrot.slane %v396, %v498
        %v500 = vlaneseq
        %v501 = vshrl.u32 %v500, 7
        %v502 = vsub.s32 0, %v501
        %v503 = vrot.slane %v397, %v502
        %v504 = vlaneseq
        %v505 = vshrl.u32 %v504, 7
        %v506 = vsub.s32 1, %v505
        %v507 = vrot.slane %v397, %v506
        %v508 = vlaneseq
        %v509 = vshrl.u32 %v508, 7
        %v510 = vsub.s32 2, %v509
        %v511 = vrot.slane %v397, %v510
        %v512 = vlaneseq
        %v513 = vshrl.u32 %v512, 7
        %v514 = vsub.s32 3, %v513
        %v515 = vrot.slane %v397, %v514
        %v516 = vlaneseq
        %v517 = vshrl.u32 %v516, 7
        %v518 = vsub.s32 4, %v517
        %v519 = vrot.slane %v397, %v518
        %v520 = vlaneseq
        %v521 = vshrl.u32 %v520, 7
        %v522 = vsub.s32 5, %v521
        %v523 = vrot.slane %v397, %v522
        %v524 = vlaneseq
        %v525 = vshrl.u32 %v524, 7
        %v526 = vsub.s32 6, %v525
        %v527 = vrot.slane %v397, %v526
        %v528 = vlaneseq
        %v529 = vshrl.u32 %v528, 7
        %v530 = vsub.s32 7, %v529
        %v531 = vrot.slane %v397, %v530
        %v532 = vlaneseq
        %v533 = vshrl.u32 %v532, 7
        %v534 = vsub.s32 0, %v533
        %v535 = vrot.slane %v398, %v534
        %v536 = vlaneseq
        %v537 = vshrl.u32 %v536, 7
        %v538 = vsub.s32 1, %v537
        %v539 = vrot.slane %v398, %v538
        %v540 = vlaneseq
        %v541 = vshrl.u32 %v540, 7
        %v542 = vsub.s32 2, %v541
        %v543 = vrot.slane %v398, %v542
        %v544 = vlaneseq
        %v545 = vshrl.u32 %v544, 7
        %v546 = vsub.s32 3, %v545
        %v547 = vrot.slane %v398, %v546
        %v548 = vlaneseq
        %v549 = vshrl.u32 %v548, 7
        %v550 = vsub.s32 4, %v549
        %v551 = vrot.slane %v398, %v550
        %v552 = vlaneseq
        %v553 = vshrl.u32 %v552, 7
        %v554 = vsub.s32 5, %v553
        %v555 = vrot.slane %v398, %v554
        %v556 = vlaneseq
        %v557 = vshrl.u32 %v556, 7
        %v558 = vsub.s32 6, %v557
        %v559 = vrot.slane %v398, %v558
        %v560 = vlaneseq
        %v561 = vshrl.u32 %v560, 7
        %v562 = vsub.s32 7, %v561
        %v563 = vrot.slane %v398, %v562
        %v564 = vcombine.low %v407, %v411
        %v565 = vcombine.low %v415, %v419
        %v567 = vunpack.c.l.s4 1983009808
        %v568 = vunpack.c.0.s8 %v567
        %v569 = vlaneseq
        %v570 = vshrl.u32 %v569, 7
        %v571 = vsub.s32 %v568, %v570
        %v572 = vrot.slane %v564, %v571
        %v574 = vunpack.c.l.s4 1983009808
        %v575 = vunpack.c.0.s8 %v574
        %v576 = vlaneseq
        %v577 = vshrl.u32 %v576, 7
        %v578 = vsub.s32 %v575, %v577
        %v579 = vrot.slane %v565, %v578
        %v580 = vcombine.low %v572, %v579
        %v581 = vcombine.low %v423, %v427
        %v582 = vcombine.low %v431, %v435
        %v584 = vunpack.c.l.s4 1983009808
        %v585 = vunpack.c.0.s8 %v584
        %v586 = vlaneseq
        %v587 = vshrl.u32 %v586, 7
        %v588 = vsub.s32 %v585, %v587
        %v589 = vrot.slane %v581, %v588
        %v591 = vunpack.c.l.s4 1983009808
        %v592 = vunpack.c.0.s8 %v591
        %v593 = vlaneseq
        %v594 = vshrl.u32 %v593, 7
        %v595 = vsub.s32 %v592, %v594
        %v596 = vrot.slane %v582, %v595
        %v597 = vcombine.low %v589, %v596
        %v598 = vcombine.low %v439, %v443
        %v599 = vcombine.low %v447, %v451
        %v601 = vunpack.c.l.s4 1983009808
        %v602 = vunpack.c.0.s8 %v601
        %v603 = vlaneseq
        %v604 = vshrl.u32 %v603, 7
        %v605 = vsub.s32 %v602, %v604
        %v606 = vrot.slane %v598, %v605
        %v608 = vunpack.c.l.s4 1983009808
        %v609 = vunpack.c.0.s8 %v608
        %v610 = vlaneseq
        %v611 = vshrl.u32 %v610, 7
        %v612 = vsub.s32 %v609, %v611
        %v613 = vrot.slane %v599, %v612
        %v614 = vcombine.low %v606, %v613
        %v615 = vcombine.low %v455, %v459
        %v616 = vcombine.low %v463, %v467
        %v618 = vunpack.c.l.s4 1983009808
        %v619 = vunpack.c.0.s8 %v618
        %v620 = vlaneseq
        %v621 = vshrl.u32 %v620, 7
        %v622 = vsub.s32 %v619, %v621
        %v623 = vrot.slane %v615, %v622
        %v625 = vunpack.c.l.s4 1983009808
        %v626 = vunpack.c.0.s8 %v625
        %v627 = vlaneseq
        %v628 = vshrl.u32 %v627, 7
        %v629 = vsub.s32 %v626, %v628
        %v630 = vrot.slane %v616, %v629
        %v631 = vcombine.low %v623, %v630
        %v632 = vcombine.low %v471, %v475
        %v633 = vcombine.low %v479, %v483
        %v635 = vunpack.c.l.s4 1983009808
        %v636 = vunpack.c.0.s8 %v635
        %v637 = vlaneseq
        %v638 = vshrl.u32 %v637, 7
        %v639 = vsub.s32 %v636, %v638
        %v640 = vrot.slane %v632, %v639
        %v642 = vunpack.c.l.s4 1983009808
        %v643 = vunpack.c.0.s8 %v642
        %v644 = vlaneseq
        %v645 = vshrl.u32 %v644, 7
        %v646 = vsub.s32 %v643, %v645
        %v647 = vrot.slane %v633, %v646
        %v648 = vcombine.low %v640, %v647
        %v649 = vcombine.low %v487, %v491
        %v650 = vcombine.low %v495, %v499
        %v652 = vunpack.c.l.s4 1983009808
        %v653 = vunpack.c.0.s8 %v652
        %v654 = vlaneseq
        %v655 = vshrl.u32 %v654, 7
        %v656 = vsub.s32 %v653, %v655
        %v657 = vrot.slane %v649, %v656
        %v659 = vunpack.c.l.s4 1983009808
        %v660 = vunpack.c.0.s8 %v659
        %v661 = vlaneseq
        %v662 = vshrl.u32 %v661, 7
        %v663 = vsub.s32 %v660, %v662
        %v664 = vrot.slane %v650, %v663
        %v665 = vcombine.low %v657, %v664
        %v666 = vcombine.low %v503, %v507
        %v667 = vcombine.low %v511, %v515
        %v669 = vunpack.c.l.s4 1983009808
        %v670 = vunpack.c.0.s8 %v669
        %v671 = vlaneseq
        %v672 = vshrl.u32 %v671, 7
        %v673 = vsub.s32 %v670, %v672
        %v674 = vrot.slane %v666, %v673
        %v676 = vunpack.c.l.s4 1983009808
        %v677 = vunpack.c.0.s8 %v676
        %v678 = vlaneseq
        %v679 = vshrl.u32 %v678, 7
        %v680 = vsub.s32 %v677, %v679
        %v681 = vrot.slane %v667, %v680
        %v682 = vcombine.low %v674, %v681
        %v683 = vcombine.low %v519, %v523
        %v684 = vcombine.low %v527, %v531
        %v686 = vunpack.c.l.s4 1983009808
        %v687 = vunpack.c.0.s8 %v686
        %v688 = vlaneseq
        %v689 = vshrl.u32 %v688, 7
        %v690 = vsub.s32 %v687, %v689
        %v691 = vrot.slane %v683, %v690
        %v693 = vunpack.c.l.s4 1983009808
        %v694 = vunpack.c.0.s8 %v693
        %v695 = vlaneseq
        %v696 = vshrl.u32 %v695, 7
        %v697 = vsub.s32 %v694, %v696
        %v698 = vrot.slane %v684, %v697
        %v699 = vcombine.low %v691, %v698
        %v700 = vcombine.low %v535, %v539
        %v701 = vcombine.low %v543, %v547
        %v703 = vunpack.c.l.s4 1983009808
        %v704 = vunpack.c.0.s8 %v703
        %v705 = vlaneseq
        %v706 = vshrl.u32 %v705, 7
        %v707 = vsub.s32 %v704, %v706
        %v708 = vrot.slane %v700, %v707
        %v710 = vunpack.c.l.s4 1983009808
        %v711 = vunpack.c.0.s8 %v710
        %v712 = vlaneseq
        %v713 = vshrl.u32 %v712, 7
        %v714 = vsub.s32 %v711, %v713
        %v715 = vrot.slane %v701, %v714
        %v716 = vcombine.low %v708, %v715
        %v717 = vcombine.low %v551, %v555
        %v718 = vcombine.low %v559, %v563
        %v720 = vunpack.c.l.s4 1983009808
        %v721 = vunpack.c.0.s8 %v720
        %v722 = vlaneseq
        %v723 = vshrl.u32 %v722, 7
        %v724 = vsub.s32 %v721, %v723
        %v725 = vrot.slane %v717, %v724
        %v727 = vunpack.c.l.s4 1983009808
        %v728 = vunpack.c.0.s8 %v727
        %v729 = vlaneseq
        %v730 = vshrl.u32 %v729, 7
        %v731 = vsub.s32 %v728, %v730
        %v732 = vrot.slane %v718, %v731
        %v733 = vcombine.low %v725, %v732
        %v744 = vadd.f32 %v384, %v580
        %v745 = vadd.f32 %v385, %v597
        %v746 = vadd.f32 %v386, %v614
        %v747 = vadd.f32 %v387, %v631
        %v748 = vadd.f32 %v388, %v648
        %v749 = vadd.f32 %v389, %v665
        %v750 = vadd.f32 %v390, %v682
        %v751 = vadd.f32 %v391, %v699
        %v752 = vadd.f32 %v392, %v716
        %v753 = vadd.f32 %v393, %v733
        %v754 = vmax.f32 %v744, 0.0
        %v755 = vmax.f32 %v745, 0.0
        %v756 = vmax.f32 %v746, 0.0
        %v757 = vmax.f32 %v747, 0.0
        %v758 = vmax.f32 %v748, 0.0
        %v759 = vmax.f32 %v749, 0.0
        %v760 = vmax.f32 %v750, 0.0
        %v761 = vmax.f32 %v751, 0.0
        %v762 = vmax.f32 %v752, 0.0
        %v763 = vmax.f32 %v753, 0.0
        %v774 = vcombine.high %v754, %v754
        %v776 = vunpack.c.l.s4 1983009808
        %v777 = vunpack.c.0.s8 %v776
        %v778 = vlaneseq
        %v779 = vshrl.u32 %v778, 7
        %v780 = vsub.s32 %v777, %v779
        %v781 = vrot.slane %v754, %v780
        %v783 = vunpack.c.l.s4 1983009808
        %v784 = vunpack.c.0.s8 %v783
        %v785 = vlaneseq
        %v786 = vshrl.u32 %v785, 7
        %v787 = vsub.s32 %v784, %v786
        %v788 = vrot.slane %v774, %v787
        %v789 = vcombine.high %v781, %v781
        %v790 = vcombine.high %v788, %v788
        %v791 = vcombine.high %v755, %v755
        %v793 = vunpack.c.l.s4 1983009808
        %v794 = vunpack.c.0.s8 %v793
        %v795 = vlaneseq
        %v796 = vshrl.u32 %v795, 7
        %v797 = vsub.s32 %v794, %v796
        %v798 = vrot.slane %v755, %v797
        %v800 = vunpack.c.l.s4 1983009808
        %v801 = vunpack.c.0.s8 %v800
        %v802 = vlaneseq
        %v803 = vshrl.u32 %v802, 7
        %v804 = vsub.s32 %v801, %v803
        %v805 = vrot.slane %v791, %v804
        %v806 = vcombine.high %v798, %v798
        %v807 = vcombine.high %v805, %v805
        %v808 = vcombine.high %v756, %v756
        %v810 = vunpack.c.l.s4 1983009808
        %v811 = vunpack.c.0.s8 %v810
        %v812 = vlaneseq
        %v813 = vshrl.u32 %v812, 7
        %v814 = vsub.s32 %v811, %v813
        %v815 = vrot.slane %v756, %v814
        %v817 = vunpack.c.l.s4 1983009808
        %v818 = vunpack.c.0.s8 %v817
        %v819 = vlaneseq
        %v820 = vshrl.u32 %v819, 7
        %v821 = vsub.s32 %v818, %v820
        %v822 = vrot.slane %v808, %v821
        %v823 = vcombine.high %v815, %v815
        %v824 = vcombine.high %v822, %v822
        %v825 = vcombine.high %v757, %v757
        %v827 = vunpack.c.l.s4 1983009808
        %v828 = vunpack.c.0.s8 %v827
        %v829 = vlaneseq
        %v830 = vshrl.u32 %v829, 7
        %v831 = vsub.s32 %v828, %v830
        %v832 = vrot.slane %v757, %v831
        %v834 = vunpack.c.l.s4 1983009808
        %v835 = vunpack.c.0.s8 %v834
        %v836 = vlaneseq
        %v837 = vshrl.u32 %v836, 7
        %v838 = vsub.s32 %v835, %v837
        %v839 = vrot.slane %v825, %v838
        %v840 = vcombine.high %v832, %v832
        %v841 = vcombine.high %v839, %v839
        %v842 = vcombine.high %v758, %v758
        %v844 = vunpack.c.l.s4 1983009808
        %v845 = vunpack.c.0.s8 %v844
        %v846 = vlaneseq
        %v847 = vshrl.u32 %v846, 7
        %v848 = vsub.s32 %v845, %v847
        %v849 = vrot.slane %v758, %v848
        %v851 = vunpack.c.l.s4 1983009808
        %v852 = vunpack.c.0.s8 %v851
        %v853 = vlaneseq
        %v854 = vshrl.u32 %v853, 7
        %v855 = vsub.s32 %v852, %v854
        %v856 = vrot.slane %v842, %v855
        %v857 = vcombine.high %v849, %v849
        %v858 = vcombine.high %v856, %v856
        %v859 = vcombine.high %v759, %v759
        %v861 = vunpack.c.l.s4 1983009808
        %v862 = vunpack.c.0.s8 %v861
        %v863 = vlaneseq
        %v864 = vshrl.u32 %v863, 7
        %v865 = vsub.s32 %v862, %v864
        %v866 = vrot.slane %v759, %v865
        %v868 = vunpack.c.l.s4 1983009808
        %v869 = vunpack.c.0.s8 %v868
        %v870 = vlaneseq
        %v871 = vshrl.u32 %v870, 7
        %v872 = vsub.s32 %v869, %v871
        %v873 = vrot.slane %v859, %v872
        %v874 = vcombine.high %v866, %v866
        %v875 = vcombine.high %v873, %v873
        %v876 = vcombine.high %v760, %v760
        %v878 = vunpack.c.l.s4 1983009808
        %v879 = vunpack.c.0.s8 %v878
        %v880 = vlaneseq
        %v881 = vshrl.u32 %v880, 7
        %v882 = vsub.s32 %v879, %v881
        %v883 = vrot.slane %v760, %v882
        %v885 = vunpack.c.l.s4 1983009808
        %v886 = vunpack.c.0.s8 %v885
        %v887 = vlaneseq
        %v888 = vshrl.u32 %v887, 7
        %v889 = vsub.s32 %v886, %v888
        %v890 = vrot.slane %v876, %v889
        %v891 = vcombine.high %v883, %v883
        %v892 = vcombine.high %v890, %v890
        %v893 = vcombine.high %v761, %v761
        %v895 = vunpack.c.l.s4 1983009808
        %v896 = vunpack.c.0.s8 %v895
        %v897 = vlaneseq
        %v898 = vshrl.u32 %v897, 7
        %v899 = vsub.s32 %v896, %v898
        %v900 = vrot.slane %v761, %v899
        %v902 = vunpack.c.l.s4 1983009808
        %v903 = vunpack.c.0.s8 %v902
        %v904 = vlaneseq
        %v905 = vshrl.u32 %v904, 7
        %v906 = vsub.s32 %v903, %v905
        %v907 = vrot.slane %v893, %v906
        %v908 = vcombine.high %v900, %v900
        %v909 = vcombine.high %v907, %v907
        %v910 = vcombine.high %v762, %v762
        %v912 = vunpack.c.l.s4 1983009808
        %v913 = vunpack.c.0.s8 %v912
        %v914 = vlaneseq
        %v915 = vshrl.u32 %v914, 7
        %v916 = vsub.s32 %v913, %v915
        %v917 = vrot.slane %v762, %v916
        %v919 = vunpack.c.l.s4 1983009808
        %v920 = vunpack.c.0.s8 %v919
        %v921 = vlaneseq
        %v922 = vshrl.u32 %v921, 7
        %v923 = vsub.s32 %v920, %v922
        %v924 = vrot.slane %v910, %v923
        %v925 = vcombine.high %v917, %v917
        %v926 = vcombine.high %v924, %v924
        %v927 = vcombine.high %v763, %v763
        %v929 = vunpack.c.l.s4 1983009808
        %v930 = vunpack.c.0.s8 %v929
        %v931 = vlaneseq
        %v932 = vshrl.u32 %v931, 7
        %v933 = vsub.s32 %v930, %v932
        %v934 = vrot.slane %v763, %v933
        %v936 = vunpack.c.l.s4 1983009808
        %v937 = vunpack.c.0.s8 %v936
        %v938 = vlaneseq
        %v939 = vshrl.u32 %v938, 7
        %v940 = vsub.s32 %v937, %v939
        %v941 = vrot.slane %v927, %v940
        %v942 = vcombine.high %v934, %v934
        %v943 = vcombine.high %v941, %v941
        %v984 = vpack.c.bf16 %v781, %v781
        %v985 = vpack.c.bf16 %v789, %v789
        %v986 = vpack.c.bf16 %v788, %v788
        %v987 = vpack.c.bf16 %v790, %v790
        %v988 = vpack.c.bf16 %v798, %v798
        %v989 = vpack.c.bf16 %v806, %v806
        %v990 = vpack.c.bf16 %v805, %v805
        %v991 = vpack.c.bf16 %v807, %v807
        %v992 = vpack.c.bf16 %v815, %v815
        %v993 = vpack.c.bf16 %v823, %v823
        %v994 = vpack.c.bf16 %v822, %v822
        %v995 = vpack.c.bf16 %v824, %v824
        %v996 = vpack.c.bf16 %v832, %v832
        %v997 = vpack.c.bf16 %v840, %v840
        %v998 = vpack.c.bf16 %v839, %v839
        %v999 = vpack.c.bf16 %v841, %v841
        %v1000 = vpack.c.bf16 %v849, %v849
        %v1001 = vpack.c.bf16 %v857, %v857
        %v1002 = vpack.c.bf16 %v856, %v856
        %v1003 = vpack.c.bf16 %v858, %v858
        %v1004 = vpack.c.bf16 %v866, %v866
        %v1005 = vpack.c.bf16 %v874, %v874
        %v1006 = vpack.c.bf16 %v873, %v873
        %v1007 = vpack.c.bf16 %v875, %v875
        %v1008 = vpack.c.bf16 %v883, %v883
        %v1009 = vpack.c.bf16 %v891, %v891
        %v1010 = vpack.c.bf16 %v890, %v890
        %v1011 = vpack.c.bf16 %v892, %v892
        %v1012 = vpack.c.bf16 %v900, %v900
        %v1013 = vpack.c.bf16 %v908, %v908
        %v1014 = vpack.c.bf16 %v907, %v907
        %v1015 = vpack.c.bf16 %v909, %v909
        %v1016 = vpack.c.bf16 %v917, %v917
        %v1017 = vpack.c.bf16 %v925, %v925
        %v1018 = vpack.c.bf16 %v924, %v924
        %v1019 = vpack.c.bf16 %v926, %v926
        %v1020 = vpack.c.bf16 %v934, %v934
        %v1021 = vpack.c.bf16 %v942, %v942
        %v1022 = vpack.c.bf16 %v941, %v941
        %v1023 = vpack.c.bf16 %v943, %v943
        %v1024 = vld [vmem:[%s336] sm:$0xff]
        %v1025 = vld [vmem:[%s336 + $0x8] sm:$0xff]
        %v1026 = vld [vmem:[%s336 + $0x10] sm:$0xff]
        %v1027 = vld [vmem:[%s336 + $0x18] sm:$0xff]
        %v1028 = vld [vmem:[%s336 + $0x20] sm:$0xff]
        %v1029 = vld [vmem:[%s336 + $0x28] sm:$0xff]
        %v1030 = vld [vmem:[%s336 + $0x30] sm:$0xff]
        %v1031 = vld [vmem:[%s336 + $0x38] sm:$0xff]
        %v1032 = vld [vmem:[%s336 + $0x40] sm:$0xff]
        %v1033 = vld [vmem:[%s336 + $0x48] sm:$0xff]
        %v1034 = vld [vmem:[%s336 + $0x50] sm:$0xff]
        %v1035 = vld [vmem:[%s336 + $0x58] sm:$0xff]
        %v1036 = vld [vmem:[%s336 + $0x60] sm:$0xff]
        %v1037 = vld [vmem:[%s336 + $0x68] sm:$0xff]
        %v1038 = vld [vmem:[%s336 + $0x70] sm:$0xff]
        %v1039 = vld [vmem:[%s336 + $0x78] sm:$0xff]
        %v1040 = vld [vmem:[%s336 + $0x80] sm:$0xff]
        %v1041 = vld [vmem:[%s336 + $0x88] sm:$0xff]
        %v1042 = vld [vmem:[%s336 + $0x90] sm:$0xff]
        %v1043 = vld [vmem:[%s336 + $0x98] sm:$0xff]
        %v1044 = vld [vmem:[%s336 + $0xa0] sm:$0xff]
        %v1045 = vld [vmem:[%s336 + $0xa8] sm:$0xff]
        %v1046 = vld [vmem:[%s336 + $0xb0] sm:$0xff]
        %v1047 = vld [vmem:[%s336 + $0xb8] sm:$0xff]
        %v1048 = vld [vmem:[%s336 + $0xc0] sm:$0xff]
        %v1049 = vld [vmem:[%s336 + $0xc8] sm:$0xff]
        %v1050 = vld [vmem:[%s336 + $0xd0] sm:$0xff]
        %v1051 = vld [vmem:[%s336 + $0xd8] sm:$0xff]
        %v1052 = vld [vmem:[%s336 + $0xe0] sm:$0xff]
        %v1053 = vld [vmem:[%s336 + $0xe8] sm:$0xff]
        %v1054 = vld [vmem:[%s336 + $0xf0] sm:$0xff]
        %v1055 = vld [vmem:[%s336 + $0xf8] sm:$0xff]
        %v1056 = vld [vmem:[%s336 + $0x100] sm:$0xff]
        %v1057 = vld [vmem:[%s336 + $0x108] sm:$0xff]
        %v1058 = vld [vmem:[%s336 + $0x110] sm:$0xff]
        %v1059 = vld [vmem:[%s336 + $0x118] sm:$0xff]
        %v1060 = vld [vmem:[%s336 + $0x120] sm:$0xff]
        %v1061 = vld [vmem:[%s336 + $0x128] sm:$0xff]
        %v1062 = vld [vmem:[%s336 + $0x130] sm:$0xff]
        %v1063 = vld [vmem:[%s336 + $0x138] sm:$0xff]
        %v1064 = vld [vmem:[%s336 + $0x140] sm:$0xff]
        %v1065 = vld [vmem:[%s336 + $0x148] sm:$0xff]
        %v1066 = vld [vmem:[%s336 + $0x150] sm:$0xff]
        %v1067 = vld [vmem:[%s336 + $0x158] sm:$0xff]
        %v1068 = vld [vmem:[%s336 + $0x160] sm:$0xff]
        %v1069 = vld [vmem:[%s336 + $0x168] sm:$0xff]
        %v1070 = vld [vmem:[%s336 + $0x170] sm:$0xff]
        %v1071 = vld [vmem:[%s336 + $0x178] sm:$0xff]
        %v1072 = vld [vmem:[%s336 + $0x180] sm:$0xff]
        %v1073 = vld [vmem:[%s336 + $0x188] sm:$0xff]
        %v1074 = vld [vmem:[%s336 + $0x190] sm:$0xff]
        %v1075 = vld [vmem:[%s336 + $0x198] sm:$0xff]
        %v1076 = vld [vmem:[%s336 + $0x1a0] sm:$0xff]
        %v1077 = vld [vmem:[%s336 + $0x1a8] sm:$0xff]
        %v1078 = vld [vmem:[%s336 + $0x1b0] sm:$0xff]
        %v1079 = vld [vmem:[%s336 + $0x1b8] sm:$0xff]
        %v1080 = vld [vmem:[%s336 + $0x1c0] sm:$0xff]
        %v1081 = vld [vmem:[%s336 + $0x1c8] sm:$0xff]
        %v1082 = vld [vmem:[%s336 + $0x1d0] sm:$0xff]
        %v1083 = vld [vmem:[%s336 + $0x1d8] sm:$0xff]
        %v1084 = vld [vmem:[%s336 + $0x1e0] sm:$0xff]
        %v1085 = vld [vmem:[%s336 + $0x1e8] sm:$0xff]
        %v1086 = vld [vmem:[%s336 + $0x1f0] sm:$0xff]
        %v1087 = vld [vmem:[%s336 + $0x1f8] sm:$0xff]
        %v1088 = vld [vmem:[%s336 + $0x200] sm:$0xff]
        %v1089 = vld [vmem:[%s336 + $0x208] sm:$0xff]
        %v1090 = vld [vmem:[%s336 + $0x210] sm:$0xff]
        %v1091 = vld [vmem:[%s336 + $0x218] sm:$0xff]
        %v1092 = vld [vmem:[%s336 + $0x220] sm:$0xff]
        %v1093 = vld [vmem:[%s336 + $0x228] sm:$0xff]
        %v1094 = vld [vmem:[%s336 + $0x230] sm:$0xff]
        %v1095 = vld [vmem:[%s336 + $0x238] sm:$0xff]
        %v1096 = vld [vmem:[%s336 + $0x240] sm:$0xff]
        %v1097 = vld [vmem:[%s336 + $0x248] sm:$0xff]
        %v1098 = vld [vmem:[%s336 + $0x250] sm:$0xff]
        %v1099 = vld [vmem:[%s336 + $0x258] sm:$0xff]
        %v1100 = vld [vmem:[%s336 + $0x260] sm:$0xff]
        %v1101 = vld [vmem:[%s336 + $0x268] sm:$0xff]
        %v1102 = vld [vmem:[%s336 + $0x270] sm:$0xff]
        %v1103 = vld [vmem:[%s336 + $0x278] sm:$0xff]
        %v1104 = vld [vmem:[%s336 + $0x280] sm:$0xff]
        %v1105 = vld [vmem:[%s336 + $0x288] sm:$0xff]
        %v1106 = vld [vmem:[%s336 + $0x290] sm:$0xff]
        %v1107 = vld [vmem:[%s336 + $0x298] sm:$0xff]
        %v1108 = vld [vmem:[%s336 + $0x2a0] sm:$0xff]
        %v1109 = vld [vmem:[%s336 + $0x2a8] sm:$0xff]
        %v1110 = vld [vmem:[%s336 + $0x2b0] sm:$0xff]
        %v1111 = vld [vmem:[%s336 + $0x2b8] sm:$0xff]
        %v1112 = vld [vmem:[%s336 + $0x2c0] sm:$0xff]
        %v1113 = vld [vmem:[%s336 + $0x2c8] sm:$0xff]
        %v1114 = vld [vmem:[%s336 + $0x2d0] sm:$0xff]
        %v1115 = vld [vmem:[%s336 + $0x2d8] sm:$0xff]
        %v1116 = vld [vmem:[%s336 + $0x2e0] sm:$0xff]
        %v1117 = vld [vmem:[%s336 + $0x2e8] sm:$0xff]
        %v1118 = vld [vmem:[%s336 + $0x2f0] sm:$0xff]
        %v1119 = vld [vmem:[%s336 + $0x2f8] sm:$0xff]
        %v1120 = vld [vmem:[%s336 + $0x300] sm:$0xff]
        %v1121 = vld [vmem:[%s336 + $0x308] sm:$0xff]
        %v1122 = vld [vmem:[%s336 + $0x310] sm:$0xff]
        %v1123 = vld [vmem:[%s336 + $0x318] sm:$0xff]
        %v1124 = vld [vmem:[%s336 + $0x320] sm:$0xff]
        %v1125 = vld [vmem:[%s336 + $0x328] sm:$0xff]
        %v1126 = vld [vmem:[%s336 + $0x330] sm:$0xff]
        %v1127 = vld [vmem:[%s336 + $0x338] sm:$0xff]
        %v1128 = vld [vmem:[%s336 + $0x340] sm:$0xff]
        %v1129 = vld [vmem:[%s336 + $0x348] sm:$0xff]
        %v1130 = vld [vmem:[%s336 + $0x350] sm:$0xff]
        %v1131 = vld [vmem:[%s336 + $0x358] sm:$0xff]
        %v1132 = vld [vmem:[%s336 + $0x360] sm:$0xff]
        %v1133 = vld [vmem:[%s336 + $0x368] sm:$0xff]
        %v1134 = vld [vmem:[%s336 + $0x370] sm:$0xff]
        %v1135 = vld [vmem:[%s336 + $0x378] sm:$0xff]
        %v1136 = vld [vmem:[%s336 + $0x380] sm:$0xff]
        %v1137 = vld [vmem:[%s336 + $0x388] sm:$0xff]
        %v1138 = vld [vmem:[%s336 + $0x390] sm:$0xff]
        %v1139 = vld [vmem:[%s336 + $0x398] sm:$0xff]
        %v1140 = vld [vmem:[%s336 + $0x3a0] sm:$0xff]
        %v1141 = vld [vmem:[%s336 + $0x3a8] sm:$0xff]
        %v1142 = vld [vmem:[%s336 + $0x3b0] sm:$0xff]
        %v1143 = vld [vmem:[%s336 + $0x3b8] sm:$0xff]
        %v1144 = vld [vmem:[%s336 + $0x3c0] sm:$0xff]
        %v1145 = vld [vmem:[%s336 + $0x3c8] sm:$0xff]
        %v1146 = vld [vmem:[%s336 + $0x3d0] sm:$0xff]
        %v1147 = vld [vmem:[%s336 + $0x3d8] sm:$0xff]
        %v1148 = vld [vmem:[%s336 + $0x3e0] sm:$0xff]
        %v1149 = vld [vmem:[%s336 + $0x3e8] sm:$0xff]
        %v1150 = vld [vmem:[%s336 + $0x3f0] sm:$0xff]
        %v1151 = vld [vmem:[%s336 + $0x3f8] sm:$0xff]
        %v1152 = vld [vmem:[%s336 + $0x400] sm:$0xff]
        %v1153 = vld [vmem:[%s336 + $0x408] sm:$0xff]
        %v1154 = vld [vmem:[%s336 + $0x410] sm:$0xff]
        %v1155 = vld [vmem:[%s336 + $0x418] sm:$0xff]
        %v1156 = vld [vmem:[%s336 + $0x420] sm:$0xff]
        %v1157 = vld [vmem:[%s336 + $0x428] sm:$0xff]
        %v1158 = vld [vmem:[%s336 + $0x430] sm:$0xff]
        %v1159 = vld [vmem:[%s336 + $0x438] sm:$0xff]
        %v1160 = vld [vmem:[%s336 + $0x440] sm:$0xff]
        %v1161 = vld [vmem:[%s336 + $0x448] sm:$0xff]
        %v1162 = vld [vmem:[%s336 + $0x450] sm:$0xff]
        %v1163 = vld [vmem:[%s336 + $0x458] sm:$0xff]
        %v1164 = vld [vmem:[%s336 + $0x460] sm:$0xff]
        %v1165 = vld [vmem:[%s336 + $0x468] sm:$0xff]
        %v1166 = vld [vmem:[%s336 + $0x470] sm:$0xff]
        %v1167 = vld [vmem:[%s336 + $0x478] sm:$0xff]
        %v1168 = vld [vmem:[%s336 + $0x480] sm:$0xff]
        %v1169 = vld [vmem:[%s336 + $0x488] sm:$0xff]
        %v1170 = vld [vmem:[%s336 + $0x490] sm:$0xff]
        %v1171 = vld [vmem:[%s336 + $0x498] sm:$0xff]
        %v1172 = vld [vmem:[%s336 + $0x4a0] sm:$0xff]
        %v1173 = vld [vmem:[%s336 + $0x4a8] sm:$0xff]
        %v1174 = vld [vmem:[%s336 + $0x4b0] sm:$0xff]
        %v1175 = vld [vmem:[%s336 + $0x4b8] sm:$0xff]
        %v1176 = vld [vmem:[%s336 + $0x4c0] sm:$0xff]
        %v1177 = vld [vmem:[%s336 + $0x4c8] sm:$0xff]
        %v1178 = vld [vmem:[%s336 + $0x4d0] sm:$0xff]
        %v1179 = vld [vmem:[%s336 + $0x4d8] sm:$0xff]
        %v1180 = vld [vmem:[%s336 + $0x4e0] sm:$0xff]
        %v1181 = vld [vmem:[%s336 + $0x4e8] sm:$0xff]
        %v1182 = vld [vmem:[%s336 + $0x4f0] sm:$0xff]
        %v1183 = vld [vmem:[%s336 + $0x4f8] sm:$0xff]
        %v1184 = vld [vmem:[%s336 + $0x500] sm:$0xff]
        %v1185 = vld [vmem:[%s336 + $0x508] sm:$0xff]
        %v1186 = vld [vmem:[%s336 + $0x510] sm:$0xff]
        %v1187 = vld [vmem:[%s336 + $0x518] sm:$0xff]
        %v1188 = vld [vmem:[%s336 + $0x520] sm:$0xff]
        %v1189 = vld [vmem:[%s336 + $0x528] sm:$0xff]
        %v1190 = vld [vmem:[%s336 + $0x530] sm:$0xff]
        %v1191 = vld [vmem:[%s336 + $0x538] sm:$0xff]
        %v1192 = vld [vmem:[%s336 + $0x540] sm:$0xff]
        %v1193 = vld [vmem:[%s336 + $0x548] sm:$0xff]
        %v1194 = vld [vmem:[%s336 + $0x550] sm:$0xff]
        %v1195 = vld [vmem:[%s336 + $0x558] sm:$0xff]
        %v1196 = vld [vmem:[%s336 + $0x560] sm:$0xff]
        %v1197 = vld [vmem:[%s336 + $0x568] sm:$0xff]
        %v1198 = vld [vmem:[%s336 + $0x570] sm:$0xff]
        %v1199 = vld [vmem:[%s336 + $0x578] sm:$0xff]
        %v1200 = vld [vmem:[%s336 + $0x580] sm:$0xff]
        %v1201 = vld [vmem:[%s336 + $0x588] sm:$0xff]
        %v1202 = vld [vmem:[%s336 + $0x590] sm:$0xff]
        %v1203 = vld [vmem:[%s336 + $0x598] sm:$0xff]
        %v1204 = vld [vmem:[%s336 + $0x5a0] sm:$0xff]
        %v1205 = vld [vmem:[%s336 + $0x5a8] sm:$0xff]
        %v1206 = vld [vmem:[%s336 + $0x5b0] sm:$0xff]
        %v1207 = vld [vmem:[%s336 + $0x5b8] sm:$0xff]
        %v1208 = vld [vmem:[%s336 + $0x5c0] sm:$0xff]
        %v1209 = vld [vmem:[%s336 + $0x5c8] sm:$0xff]
        %v1210 = vld [vmem:[%s336 + $0x5d0] sm:$0xff]
        %v1211 = vld [vmem:[%s336 + $0x5d8] sm:$0xff]
        %v1212 = vld [vmem:[%s336 + $0x5e0] sm:$0xff]
        %v1213 = vld [vmem:[%s336 + $0x5e8] sm:$0xff]
        %v1214 = vld [vmem:[%s336 + $0x5f0] sm:$0xff]
        %v1215 = vld [vmem:[%s336 + $0x5f8] sm:$0xff]
        %v1216 = vld [vmem:[%s336 + $0x600] sm:$0xff]
        %v1217 = vld [vmem:[%s336 + $0x608] sm:$0xff]
        %v1218 = vld [vmem:[%s336 + $0x610] sm:$0xff]
        %v1219 = vld [vmem:[%s336 + $0x618] sm:$0xff]
        %v1220 = vld [vmem:[%s336 + $0x620] sm:$0xff]
        %v1221 = vld [vmem:[%s336 + $0x628] sm:$0xff]
        %v1222 = vld [vmem:[%s336 + $0x630] sm:$0xff]
        %v1223 = vld [vmem:[%s336 + $0x638] sm:$0xff]
        %v1224 = vld [vmem:[%s336 + $0x640] sm:$0xff]
        %v1225 = vld [vmem:[%s336 + $0x648] sm:$0xff]
        %v1226 = vld [vmem:[%s336 + $0x650] sm:$0xff]
        %v1227 = vld [vmem:[%s336 + $0x658] sm:$0xff]
        %v1228 = vld [vmem:[%s336 + $0x660] sm:$0xff]
        %v1229 = vld [vmem:[%s336 + $0x668] sm:$0xff]
        %v1230 = vld [vmem:[%s336 + $0x670] sm:$0xff]
        %v1231 = vld [vmem:[%s336 + $0x678] sm:$0xff]
        %v1232 = vld [vmem:[%s336 + $0x680] sm:$0xff]
        %v1233 = vld [vmem:[%s336 + $0x688] sm:$0xff]
        %v1234 = vld [vmem:[%s336 + $0x690] sm:$0xff]
        %v1235 = vld [vmem:[%s336 + $0x698] sm:$0xff]
        %v1236 = vld [vmem:[%s336 + $0x6a0] sm:$0xff]
        %v1237 = vld [vmem:[%s336 + $0x6a8] sm:$0xff]
        %v1238 = vld [vmem:[%s336 + $0x6b0] sm:$0xff]
        %v1239 = vld [vmem:[%s336 + $0x6b8] sm:$0xff]
        %v1240 = vld [vmem:[%s336 + $0x6c0] sm:$0xff]
        %v1241 = vld [vmem:[%s336 + $0x6c8] sm:$0xff]
        %v1242 = vld [vmem:[%s336 + $0x6d0] sm:$0xff]
        %v1243 = vld [vmem:[%s336 + $0x6d8] sm:$0xff]
        %v1244 = vld [vmem:[%s336 + $0x6e0] sm:$0xff]
        %v1245 = vld [vmem:[%s336 + $0x6e8] sm:$0xff]
        %v1246 = vld [vmem:[%s336 + $0x6f0] sm:$0xff]
        %v1247 = vld [vmem:[%s336 + $0x6f8] sm:$0xff]
        %v1248 = vld [vmem:[%s336 + $0x700] sm:$0xff]
        %v1249 = vld [vmem:[%s336 + $0x708] sm:$0xff]
        %v1250 = vld [vmem:[%s336 + $0x710] sm:$0xff]
        %v1251 = vld [vmem:[%s336 + $0x718] sm:$0xff]
        %v1252 = vld [vmem:[%s336 + $0x720] sm:$0xff]
        %v1253 = vld [vmem:[%s336 + $0x728] sm:$0xff]
        %v1254 = vld [vmem:[%s336 + $0x730] sm:$0xff]
        %v1255 = vld [vmem:[%s336 + $0x738] sm:$0xff]
        %v1256 = vld [vmem:[%s336 + $0x740] sm:$0xff]
        %v1257 = vld [vmem:[%s336 + $0x748] sm:$0xff]
        %v1258 = vld [vmem:[%s336 + $0x750] sm:$0xff]
        %v1259 = vld [vmem:[%s336 + $0x758] sm:$0xff]
        %v1260 = vld [vmem:[%s336 + $0x760] sm:$0xff]
        %v1261 = vld [vmem:[%s336 + $0x768] sm:$0xff]
        %v1262 = vld [vmem:[%s336 + $0x770] sm:$0xff]
        %v1263 = vld [vmem:[%s336 + $0x778] sm:$0xff]
        %v1264 = vld [vmem:[%s336 + $0x780] sm:$0xff]
        %v1265 = vld [vmem:[%s336 + $0x788] sm:$0xff]
        %v1266 = vld [vmem:[%s336 + $0x790] sm:$0xff]
        %v1267 = vld [vmem:[%s336 + $0x798] sm:$0xff]
        %v1268 = vld [vmem:[%s336 + $0x7a0] sm:$0xff]
        %v1269 = vld [vmem:[%s336 + $0x7a8] sm:$0xff]
        %v1270 = vld [vmem:[%s336 + $0x7b0] sm:$0xff]
        %v1271 = vld [vmem:[%s336 + $0x7b8] sm:$0xff]
        %v1272 = vld [vmem:[%s336 + $0x7c0] sm:$0xff]
        %v1273 = vld [vmem:[%s336 + $0x7c8] sm:$0xff]
        %v1274 = vld [vmem:[%s336 + $0x7d0] sm:$0xff]
        %v1275 = vld [vmem:[%s336 + $0x7d8] sm:$0xff]
        %v1276 = vld [vmem:[%s336 + $0x7e0] sm:$0xff]
        %v1277 = vld [vmem:[%s336 + $0x7e8] sm:$0xff]
        %v1278 = vld [vmem:[%s336 + $0x7f0] sm:$0xff]
        %v1279 = vld [vmem:[%s336 + $0x7f8] sm:$0xff]
        %v1280 = vld [vmem:[%s336 + $0x800] sm:$0xff]
        %v1281 = vld [vmem:[%s336 + $0x808] sm:$0xff]
        %v1282 = vld [vmem:[%s336 + $0x810] sm:$0xff]
        %v1283 = vld [vmem:[%s336 + $0x818] sm:$0xff]
        %v1284 = vld [vmem:[%s336 + $0x820] sm:$0xff]
        %v1285 = vld [vmem:[%s336 + $0x828] sm:$0xff]
        %v1286 = vld [vmem:[%s336 + $0x830] sm:$0xff]
        %v1287 = vld [vmem:[%s336 + $0x838] sm:$0xff]
        %v1288 = vld [vmem:[%s336 + $0x840] sm:$0xff]
        %v1289 = vld [vmem:[%s336 + $0x848] sm:$0xff]
        %v1290 = vld [vmem:[%s336 + $0x850] sm:$0xff]
        %v1291 = vld [vmem:[%s336 + $0x858] sm:$0xff]
        %v1292 = vld [vmem:[%s336 + $0x860] sm:$0xff]
        %v1293 = vld [vmem:[%s336 + $0x868] sm:$0xff]
        %v1294 = vld [vmem:[%s336 + $0x870] sm:$0xff]
        %v1295 = vld [vmem:[%s336 + $0x878] sm:$0xff]
        %v1296 = vld [vmem:[%s336 + $0x880] sm:$0xff]
        %v1297 = vld [vmem:[%s336 + $0x888] sm:$0xff]
        %v1298 = vld [vmem:[%s336 + $0x890] sm:$0xff]
        %v1299 = vld [vmem:[%s336 + $0x898] sm:$0xff]
        %v1300 = vld [vmem:[%s336 + $0x8a0] sm:$0xff]
        %v1301 = vld [vmem:[%s336 + $0x8a8] sm:$0xff]
        %v1302 = vld [vmem:[%s336 + $0x8b0] sm:$0xff]
        %v1303 = vld [vmem:[%s336 + $0x8b8] sm:$0xff]
        %v1304 = vld [vmem:[%s336 + $0x8c0] sm:$0xff]
        %v1305 = vld [vmem:[%s336 + $0x8c8] sm:$0xff]
        %v1306 = vld [vmem:[%s336 + $0x8d0] sm:$0xff]
        %v1307 = vld [vmem:[%s336 + $0x8d8] sm:$0xff]
        %v1308 = vld [vmem:[%s336 + $0x8e0] sm:$0xff]
        %v1309 = vld [vmem:[%s336 + $0x8e8] sm:$0xff]
        %v1310 = vld [vmem:[%s336 + $0x8f0] sm:$0xff]
        %v1311 = vld [vmem:[%s336 + $0x8f8] sm:$0xff]
        %v1312 = vld [vmem:[%s336 + $0x900] sm:$0xff]
        %v1313 = vld [vmem:[%s336 + $0x908] sm:$0xff]
        %v1314 = vld [vmem:[%s336 + $0x910] sm:$0xff]
        %v1315 = vld [vmem:[%s336 + $0x918] sm:$0xff]
        %v1316 = vld [vmem:[%s336 + $0x920] sm:$0xff]
        %v1317 = vld [vmem:[%s336 + $0x928] sm:$0xff]
        %v1318 = vld [vmem:[%s336 + $0x930] sm:$0xff]
        %v1319 = vld [vmem:[%s336 + $0x938] sm:$0xff]
        %v1320 = vld [vmem:[%s336 + $0x940] sm:$0xff]
        %v1321 = vld [vmem:[%s336 + $0x948] sm:$0xff]
        %v1322 = vld [vmem:[%s336 + $0x950] sm:$0xff]
        %v1323 = vld [vmem:[%s336 + $0x958] sm:$0xff]
        %v1324 = vld [vmem:[%s336 + $0x960] sm:$0xff]
        %v1325 = vld [vmem:[%s336 + $0x968] sm:$0xff]
        %v1326 = vld [vmem:[%s336 + $0x970] sm:$0xff]
        %v1327 = vld [vmem:[%s336 + $0x978] sm:$0xff]
        %v1328 = vld [vmem:[%s336 + $0x980] sm:$0xff]
        %v1329 = vld [vmem:[%s336 + $0x988] sm:$0xff]
        %v1330 = vld [vmem:[%s336 + $0x990] sm:$0xff]
        %v1331 = vld [vmem:[%s336 + $0x998] sm:$0xff]
        %v1332 = vld [vmem:[%s336 + $0x9a0] sm:$0xff]
        %v1333 = vld [vmem:[%s336 + $0x9a8] sm:$0xff]
        %v1334 = vld [vmem:[%s336 + $0x9b0] sm:$0xff]
        %v1335 = vld [vmem:[%s336 + $0x9b8] sm:$0xff]
        %v1336 = vld [vmem:[%s336 + $0x9c0] sm:$0xff]
        %v1337 = vld [vmem:[%s336 + $0x9c8] sm:$0xff]
        %v1338 = vld [vmem:[%s336 + $0x9d0] sm:$0xff]
        %v1339 = vld [vmem:[%s336 + $0x9d8] sm:$0xff]
        %v1340 = vld [vmem:[%s336 + $0x9e0] sm:$0xff]
        %v1341 = vld [vmem:[%s336 + $0x9e8] sm:$0xff]
        %v1342 = vld [vmem:[%s336 + $0x9f0] sm:$0xff]
        %v1343 = vld [vmem:[%s336 + $0x9f8] sm:$0xff]
        %v1344 = vld [vmem:[%s336 + $0xa00] sm:$0xff]
        %v1345 = vld [vmem:[%s336 + $0xa08] sm:$0xff]
        %v1346 = vld [vmem:[%s336 + $0xa10] sm:$0xff]
        %v1347 = vld [vmem:[%s336 + $0xa18] sm:$0xff]
        %v1348 = vld [vmem:[%s336 + $0xa20] sm:$0xff]
        %v1349 = vld [vmem:[%s336 + $0xa28] sm:$0xff]
        %v1350 = vld [vmem:[%s336 + $0xa30] sm:$0xff]
        %v1351 = vld [vmem:[%s336 + $0xa38] sm:$0xff]
        %v1352 = vld [vmem:[%s336 + $0xa40] sm:$0xff]
        %v1353 = vld [vmem:[%s336 + $0xa48] sm:$0xff]
        %v1354 = vld [vmem:[%s336 + $0xa50] sm:$0xff]
        %v1355 = vld [vmem:[%s336 + $0xa58] sm:$0xff]
        %v1356 = vld [vmem:[%s336 + $0xa60] sm:$0xff]
        %v1357 = vld [vmem:[%s336 + $0xa68] sm:$0xff]
        %v1358 = vld [vmem:[%s336 + $0xa70] sm:$0xff]
        %v1359 = vld [vmem:[%s336 + $0xa78] sm:$0xff]
        %v1360 = vld [vmem:[%s336 + $0xa80] sm:$0xff]
        %v1361 = vld [vmem:[%s336 + $0xa88] sm:$0xff]
        %v1362 = vld [vmem:[%s336 + $0xa90] sm:$0xff]
        %v1363 = vld [vmem:[%s336 + $0xa98] sm:$0xff]
        %v1364 = vld [vmem:[%s336 + $0xaa0] sm:$0xff]
        %v1365 = vld [vmem:[%s336 + $0xaa8] sm:$0xff]
        %v1366 = vld [vmem:[%s336 + $0xab0] sm:$0xff]
        %v1367 = vld [vmem:[%s336 + $0xab8] sm:$0xff]
        %v1368 = vld [vmem:[%s336 + $0xac0] sm:$0xff]
        %v1369 = vld [vmem:[%s336 + $0xac8] sm:$0xff]
        %v1370 = vld [vmem:[%s336 + $0xad0] sm:$0xff]
        %v1371 = vld [vmem:[%s336 + $0xad8] sm:$0xff]
        %v1372 = vld [vmem:[%s336 + $0xae0] sm:$0xff]
        %v1373 = vld [vmem:[%s336 + $0xae8] sm:$0xff]
        %v1374 = vld [vmem:[%s336 + $0xaf0] sm:$0xff]
        %v1375 = vld [vmem:[%s336 + $0xaf8] sm:$0xff]
        %v1376 = vld [vmem:[%s336 + $0xb00] sm:$0xff]
        %v1377 = vld [vmem:[%s336 + $0xb08] sm:$0xff]
        %v1378 = vld [vmem:[%s336 + $0xb10] sm:$0xff]
        %v1379 = vld [vmem:[%s336 + $0xb18] sm:$0xff]
        %v1380 = vld [vmem:[%s336 + $0xb20] sm:$0xff]
        %v1381 = vld [vmem:[%s336 + $0xb28] sm:$0xff]
        %v1382 = vld [vmem:[%s336 + $0xb30] sm:$0xff]
        %v1383 = vld [vmem:[%s336 + $0xb38] sm:$0xff]
        %v1384 = vld [vmem:[%s336 + $0xb40] sm:$0xff]
        %v1385 = vld [vmem:[%s336 + $0xb48] sm:$0xff]
        %v1386 = vld [vmem:[%s336 + $0xb50] sm:$0xff]
        %v1387 = vld [vmem:[%s336 + $0xb58] sm:$0xff]
        %v1388 = vld [vmem:[%s336 + $0xb60] sm:$0xff]
        %v1389 = vld [vmem:[%s336 + $0xb68] sm:$0xff]
        %v1390 = vld [vmem:[%s336 + $0xb70] sm:$0xff]
        %v1391 = vld [vmem:[%s336 + $0xb78] sm:$0xff]
        %v1392 = vld [vmem:[%s336 + $0xb80] sm:$0xff]
        %v1393 = vld [vmem:[%s336 + $0xb88] sm:$0xff]
        %v1394 = vld [vmem:[%s336 + $0xb90] sm:$0xff]
        %v1395 = vld [vmem:[%s336 + $0xb98] sm:$0xff]
        %v1396 = vld [vmem:[%s336 + $0xba0] sm:$0xff]
        %v1397 = vld [vmem:[%s336 + $0xba8] sm:$0xff]
        %v1398 = vld [vmem:[%s336 + $0xbb0] sm:$0xff]
        %v1399 = vld [vmem:[%s336 + $0xbb8] sm:$0xff]
        %v1400 = vld [vmem:[%s336 + $0xbc0] sm:$0xff]
        %v1401 = vld [vmem:[%s336 + $0xbc8] sm:$0xff]
        %v1402 = vld [vmem:[%s336 + $0xbd0] sm:$0xff]
        %v1403 = vld [vmem:[%s336 + $0xbd8] sm:$0xff]
        %v1404 = vld [vmem:[%s336 + $0xbe0] sm:$0xff]
        %v1405 = vld [vmem:[%s336 + $0xbe8] sm:$0xff]
        %v1406 = vld [vmem:[%s336 + $0xbf0] sm:$0xff]
        %v1407 = vld [vmem:[%s336 + $0xbf8] sm:$0xff]
        %v1408 = vld [vmem:[%s336 + $0xc00] sm:$0xff]
        %v1409 = vld [vmem:[%s336 + $0xc08] sm:$0xff]
        %v1410 = vld [vmem:[%s336 + $0xc10] sm:$0xff]
        %v1411 = vld [vmem:[%s336 + $0xc18] sm:$0xff]
        %v1412 = vld [vmem:[%s336 + $0xc20] sm:$0xff]
        %v1413 = vld [vmem:[%s336 + $0xc28] sm:$0xff]
        %v1414 = vld [vmem:[%s336 + $0xc30] sm:$0xff]
        %v1415 = vld [vmem:[%s336 + $0xc38] sm:$0xff]
        %v1416 = vld [vmem:[%s336 + $0xc40] sm:$0xff]
        %v1417 = vld [vmem:[%s336 + $0xc48] sm:$0xff]
        %v1418 = vld [vmem:[%s336 + $0xc50] sm:$0xff]
        %v1419 = vld [vmem:[%s336 + $0xc58] sm:$0xff]
        %v1420 = vld [vmem:[%s336 + $0xc60] sm:$0xff]
        %v1421 = vld [vmem:[%s336 + $0xc68] sm:$0xff]
        %v1422 = vld [vmem:[%s336 + $0xc70] sm:$0xff]
        %v1423 = vld [vmem:[%s336 + $0xc78] sm:$0xff]
        %v1424 = vld [vmem:[%s336 + $0xc80] sm:$0xff]
        %v1425 = vld [vmem:[%s336 + $0xc88] sm:$0xff]
        %v1426 = vld [vmem:[%s336 + $0xc90] sm:$0xff]
        %v1427 = vld [vmem:[%s336 + $0xc98] sm:$0xff]
        %v1428 = vld [vmem:[%s336 + $0xca0] sm:$0xff]
        %v1429 = vld [vmem:[%s336 + $0xca8] sm:$0xff]
        %v1430 = vld [vmem:[%s336 + $0xcb0] sm:$0xff]
        %v1431 = vld [vmem:[%s336 + $0xcb8] sm:$0xff]
        %v1432 = vld [vmem:[%s336 + $0xcc0] sm:$0xff]
        %v1433 = vld [vmem:[%s336 + $0xcc8] sm:$0xff]
        %v1434 = vld [vmem:[%s336 + $0xcd0] sm:$0xff]
        %v1435 = vld [vmem:[%s336 + $0xcd8] sm:$0xff]
        %v1436 = vld [vmem:[%s336 + $0xce0] sm:$0xff]
        %v1437 = vld [vmem:[%s336 + $0xce8] sm:$0xff]
        %v1438 = vld [vmem:[%s336 + $0xcf0] sm:$0xff]
        %v1439 = vld [vmem:[%s336 + $0xcf8] sm:$0xff]
        %v1440 = vld [vmem:[%s336 + $0xd00] sm:$0xff]
        %v1441 = vld [vmem:[%s336 + $0xd08] sm:$0xff]
        %v1442 = vld [vmem:[%s336 + $0xd10] sm:$0xff]
        %v1443 = vld [vmem:[%s336 + $0xd18] sm:$0xff]
        %v1444 = vld [vmem:[%s336 + $0xd20] sm:$0xff]
        %v1445 = vld [vmem:[%s336 + $0xd28] sm:$0xff]
        %v1446 = vld [vmem:[%s336 + $0xd30] sm:$0xff]
        %v1447 = vld [vmem:[%s336 + $0xd38] sm:$0xff]
        %v1448 = vld [vmem:[%s336 + $0xd40] sm:$0xff]
        %v1449 = vld [vmem:[%s336 + $0xd48] sm:$0xff]
        %v1450 = vld [vmem:[%s336 + $0xd50] sm:$0xff]
        %v1451 = vld [vmem:[%s336 + $0xd58] sm:$0xff]
        %v1452 = vld [vmem:[%s336 + $0xd60] sm:$0xff]
        %v1453 = vld [vmem:[%s336 + $0xd68] sm:$0xff]
        %v1454 = vld [vmem:[%s336 + $0xd70] sm:$0xff]
        %v1455 = vld [vmem:[%s336 + $0xd78] sm:$0xff]
        %v1456 = vld [vmem:[%s336 + $0xd80] sm:$0xff]
        %v1457 = vld [vmem:[%s336 + $0xd88] sm:$0xff]
        %v1458 = vld [vmem:[%s336 + $0xd90] sm:$0xff]
        %v1459 = vld [vmem:[%s336 + $0xd98] sm:$0xff]
        %v1460 = vld [vmem:[%s336 + $0xda0] sm:$0xff]
        %v1461 = vld [vmem:[%s336 + $0xda8] sm:$0xff]
        %v1462 = vld [vmem:[%s336 + $0xdb0] sm:$0xff]
        %v1463 = vld [vmem:[%s336 + $0xdb8] sm:$0xff]
        %v1464 = vld [vmem:[%s336 + $0xdc0] sm:$0xff]
        %v1465 = vld [vmem:[%s336 + $0xdc8] sm:$0xff]
        %v1466 = vld [vmem:[%s336 + $0xdd0] sm:$0xff]
        %v1467 = vld [vmem:[%s336 + $0xdd8] sm:$0xff]
        %v1468 = vld [vmem:[%s336 + $0xde0] sm:$0xff]
        %v1469 = vld [vmem:[%s336 + $0xde8] sm:$0xff]
        %v1470 = vld [vmem:[%s336 + $0xdf0] sm:$0xff]
        %v1471 = vld [vmem:[%s336 + $0xdf8] sm:$0xff]
        %v1472 = vld [vmem:[%s336 + $0xe00] sm:$0xff]
        %v1473 = vld [vmem:[%s336 + $0xe08] sm:$0xff]
        %v1474 = vld [vmem:[%s336 + $0xe10] sm:$0xff]
        %v1475 = vld [vmem:[%s336 + $0xe18] sm:$0xff]
        %v1476 = vld [vmem:[%s336 + $0xe20] sm:$0xff]
        %v1477 = vld [vmem:[%s336 + $0xe28] sm:$0xff]
        %v1478 = vld [vmem:[%s336 + $0xe30] sm:$0xff]
        %v1479 = vld [vmem:[%s336 + $0xe38] sm:$0xff]
        %v1480 = vld [vmem:[%s336 + $0xe40] sm:$0xff]
        %v1481 = vld [vmem:[%s336 + $0xe48] sm:$0xff]
        %v1482 = vld [vmem:[%s336 + $0xe50] sm:$0xff]
        %v1483 = vld [vmem:[%s336 + $0xe58] sm:$0xff]
        %v1484 = vld [vmem:[%s336 + $0xe60] sm:$0xff]
        %v1485 = vld [vmem:[%s336 + $0xe68] sm:$0xff]
        %v1486 = vld [vmem:[%s336 + $0xe70] sm:$0xff]
        %v1487 = vld [vmem:[%s336 + $0xe78] sm:$0xff]
        %v1488 = vld [vmem:[%s336 + $0xe80] sm:$0xff]
        %v1489 = vld [vmem:[%s336 + $0xe88] sm:$0xff]
        %v1490 = vld [vmem:[%s336 + $0xe90] sm:$0xff]
        %v1491 = vld [vmem:[%s336 + $0xe98] sm:$0xff]
        %v1492 = vld [vmem:[%s336 + $0xea0] sm:$0xff]
        %v1493 = vld [vmem:[%s336 + $0xea8] sm:$0xff]
        %v1494 = vld [vmem:[%s336 + $0xeb0] sm:$0xff]
        %v1495 = vld [vmem:[%s336 + $0xeb8] sm:$0xff]
        %v1496 = vld [vmem:[%s336 + $0xec0] sm:$0xff]
        %v1497 = vld [vmem:[%s336 + $0xec8] sm:$0xff]
        %v1498 = vld [vmem:[%s336 + $0xed0] sm:$0xff]
        %v1499 = vld [vmem:[%s336 + $0xed8] sm:$0xff]
        %v1500 = vld [vmem:[%s336 + $0xee0] sm:$0xff]
        %v1501 = vld [vmem:[%s336 + $0xee8] sm:$0xff]
        %v1502 = vld [vmem:[%s336 + $0xef0] sm:$0xff]
        %v1503 = vld [vmem:[%s336 + $0xef8] sm:$0xff]
        %v1504 = vld [vmem:[%s336 + $0xf00] sm:$0xff]
        %v1505 = vld [vmem:[%s336 + $0xf08] sm:$0xff]
        %v1506 = vld [vmem:[%s336 + $0xf10] sm:$0xff]
        %v1507 = vld [vmem:[%s336 + $0xf18] sm:$0xff]
        %v1508 = vld [vmem:[%s336 + $0xf20] sm:$0xff]
        %v1509 = vld [vmem:[%s336 + $0xf28] sm:$0xff]
        %v1510 = vld [vmem:[%s336 + $0xf30] sm:$0xff]
        %v1511 = vld [vmem:[%s336 + $0xf38] sm:$0xff]
        %v1512 = vld [vmem:[%s336 + $0xf40] sm:$0xff]
        %v1513 = vld [vmem:[%s336 + $0xf48] sm:$0xff]
        %v1514 = vld [vmem:[%s336 + $0xf50] sm:$0xff]
        %v1515 = vld [vmem:[%s336 + $0xf58] sm:$0xff]
        %v1516 = vld [vmem:[%s336 + $0xf60] sm:$0xff]
        %v1517 = vld [vmem:[%s336 + $0xf68] sm:$0xff]
        %v1518 = vld [vmem:[%s336 + $0xf70] sm:$0xff]
        %v1519 = vld [vmem:[%s336 + $0xf78] sm:$0xff]
        %v1520 = vld [vmem:[%s336 + $0xf80] sm:$0xff]
        %v1521 = vld [vmem:[%s336 + $0xf88] sm:$0xff]
        %v1522 = vld [vmem:[%s336 + $0xf90] sm:$0xff]
        %v1523 = vld [vmem:[%s336 + $0xf98] sm:$0xff]
        %v1524 = vld [vmem:[%s336 + $0xfa0] sm:$0xff]
        %v1525 = vld [vmem:[%s336 + $0xfa8] sm:$0xff]
        %v1526 = vld [vmem:[%s336 + $0xfb0] sm:$0xff]
        %v1527 = vld [vmem:[%s336 + $0xfb8] sm:$0xff]
        %v1528 = vld [vmem:[%s336 + $0xfc0] sm:$0xff]
        %v1529 = vld [vmem:[%s336 + $0xfc8] sm:$0xff]
        %v1530 = vld [vmem:[%s336 + $0xfd0] sm:$0xff]
        %v1531 = vld [vmem:[%s336 + $0xfd8] sm:$0xff]
        %v1532 = vld [vmem:[%s336 + $0xfe0] sm:$0xff]
        %v1533 = vld [vmem:[%s336 + $0xfe8] sm:$0xff]
        %v1534 = vld [vmem:[%s336 + $0xff0] sm:$0xff]
        %v1535 = vld [vmem:[%s336 + $0xff8] sm:$0xff]
        %v1536 = vld [vmem:[%s336 + $0x1000] sm:$0xff]
        %v1537 = vld [vmem:[%s336 + $0x1008] sm:$0xff]
        %v1538 = vld [vmem:[%s336 + $0x1010] sm:$0xff]
        %v1539 = vld [vmem:[%s336 + $0x1018] sm:$0xff]
        %v1540 = vld [vmem:[%s336 + $0x1020] sm:$0xff]
        %v1541 = vld [vmem:[%s336 + $0x1028] sm:$0xff]
        %v1542 = vld [vmem:[%s336 + $0x1030] sm:$0xff]
        %v1543 = vld [vmem:[%s336 + $0x1038] sm:$0xff]
        %v1544 = vld [vmem:[%s336 + $0x1040] sm:$0xff]
        %v1545 = vld [vmem:[%s336 + $0x1048] sm:$0xff]
        %v1546 = vld [vmem:[%s336 + $0x1050] sm:$0xff]
        %v1547 = vld [vmem:[%s336 + $0x1058] sm:$0xff]
        %v1548 = vld [vmem:[%s336 + $0x1060] sm:$0xff]
        %v1549 = vld [vmem:[%s336 + $0x1068] sm:$0xff]
        %v1550 = vld [vmem:[%s336 + $0x1070] sm:$0xff]
        %v1551 = vld [vmem:[%s336 + $0x1078] sm:$0xff]
        %v1552 = vld [vmem:[%s336 + $0x1080] sm:$0xff]
        %v1553 = vld [vmem:[%s336 + $0x1088] sm:$0xff]
        %v1554 = vld [vmem:[%s336 + $0x1090] sm:$0xff]
        %v1555 = vld [vmem:[%s336 + $0x1098] sm:$0xff]
        %v1556 = vld [vmem:[%s336 + $0x10a0] sm:$0xff]
        %v1557 = vld [vmem:[%s336 + $0x10a8] sm:$0xff]
        %v1558 = vld [vmem:[%s336 + $0x10b0] sm:$0xff]
        %v1559 = vld [vmem:[%s336 + $0x10b8] sm:$0xff]
        %v1560 = vld [vmem:[%s336 + $0x10c0] sm:$0xff]
        %v1561 = vld [vmem:[%s336 + $0x10c8] sm:$0xff]
        %v1562 = vld [vmem:[%s336 + $0x10d0] sm:$0xff]
        %v1563 = vld [vmem:[%s336 + $0x10d8] sm:$0xff]
        %v1564 = vld [vmem:[%s336 + $0x10e0] sm:$0xff]
        %v1565 = vld [vmem:[%s336 + $0x10e8] sm:$0xff]
        %v1566 = vld [vmem:[%s336 + $0x10f0] sm:$0xff]
        %v1567 = vld [vmem:[%s336 + $0x10f8] sm:$0xff]
        %v1568 = vld [vmem:[%s336 + $0x1100] sm:$0xff]
        %v1569 = vld [vmem:[%s336 + $0x1108] sm:$0xff]
        %v1570 = vld [vmem:[%s336 + $0x1110] sm:$0xff]
        %v1571 = vld [vmem:[%s336 + $0x1118] sm:$0xff]
        %v1572 = vld [vmem:[%s336 + $0x1120] sm:$0xff]
        %v1573 = vld [vmem:[%s336 + $0x1128] sm:$0xff]
        %v1574 = vld [vmem:[%s336 + $0x1130] sm:$0xff]
        %v1575 = vld [vmem:[%s336 + $0x1138] sm:$0xff]
        %v1576 = vld [vmem:[%s336 + $0x1140] sm:$0xff]
        %v1577 = vld [vmem:[%s336 + $0x1148] sm:$0xff]
        %v1578 = vld [vmem:[%s336 + $0x1150] sm:$0xff]
        %v1579 = vld [vmem:[%s336 + $0x1158] sm:$0xff]
        %v1580 = vld [vmem:[%s336 + $0x1160] sm:$0xff]
        %v1581 = vld [vmem:[%s336 + $0x1168] sm:$0xff]
        %v1582 = vld [vmem:[%s336 + $0x1170] sm:$0xff]
        %v1583 = vld [vmem:[%s336 + $0x1178] sm:$0xff]
        %v1584 = vld [vmem:[%s336 + $0x1180] sm:$0xff]
        %v1585 = vld [vmem:[%s336 + $0x1188] sm:$0xff]
        %v1586 = vld [vmem:[%s336 + $0x1190] sm:$0xff]
        %v1587 = vld [vmem:[%s336 + $0x1198] sm:$0xff]
        %v1588 = vld [vmem:[%s336 + $0x11a0] sm:$0xff]
        %v1589 = vld [vmem:[%s336 + $0x11a8] sm:$0xff]
        %v1590 = vld [vmem:[%s336 + $0x11b0] sm:$0xff]
        %v1591 = vld [vmem:[%s336 + $0x11b8] sm:$0xff]
        %v1592 = vld [vmem:[%s336 + $0x11c0] sm:$0xff]
        %v1593 = vld [vmem:[%s336 + $0x11c8] sm:$0xff]
        %v1594 = vld [vmem:[%s336 + $0x11d0] sm:$0xff]
        %v1595 = vld [vmem:[%s336 + $0x11d8] sm:$0xff]
        %v1596 = vld [vmem:[%s336 + $0x11e0] sm:$0xff]
        %v1597 = vld [vmem:[%s336 + $0x11e8] sm:$0xff]
        %v1598 = vld [vmem:[%s336 + $0x11f0] sm:$0xff]
        %v1599 = vld [vmem:[%s336 + $0x11f8] sm:$0xff]
        %v1600 = vld [vmem:[%s336 + $0x1200] sm:$0xff]
        %v1601 = vld [vmem:[%s336 + $0x1208] sm:$0xff]
        %v1602 = vld [vmem:[%s336 + $0x1210] sm:$0xff]
        %v1603 = vld [vmem:[%s336 + $0x1218] sm:$0xff]
        %v1604 = vld [vmem:[%s336 + $0x1220] sm:$0xff]
        %v1605 = vld [vmem:[%s336 + $0x1228] sm:$0xff]
        %v1606 = vld [vmem:[%s336 + $0x1230] sm:$0xff]
        %v1607 = vld [vmem:[%s336 + $0x1238] sm:$0xff]
        %v1608 = vld [vmem:[%s336 + $0x1240] sm:$0xff]
        %v1609 = vld [vmem:[%s336 + $0x1248] sm:$0xff]
        %v1610 = vld [vmem:[%s336 + $0x1250] sm:$0xff]
        %v1611 = vld [vmem:[%s336 + $0x1258] sm:$0xff]
        %v1612 = vld [vmem:[%s336 + $0x1260] sm:$0xff]
        %v1613 = vld [vmem:[%s336 + $0x1268] sm:$0xff]
        %v1614 = vld [vmem:[%s336 + $0x1270] sm:$0xff]
        %v1615 = vld [vmem:[%s336 + $0x1278] sm:$0xff]
        %v1616 = vld [vmem:[%s336 + $0x1280] sm:$0xff]
        %v1617 = vld [vmem:[%s336 + $0x1288] sm:$0xff]
        %v1618 = vld [vmem:[%s336 + $0x1290] sm:$0xff]
        %v1619 = vld [vmem:[%s336 + $0x1298] sm:$0xff]
        %v1620 = vld [vmem:[%s336 + $0x12a0] sm:$0xff]
        %v1621 = vld [vmem:[%s336 + $0x12a8] sm:$0xff]
        %v1622 = vld [vmem:[%s336 + $0x12b0] sm:$0xff]
        %v1623 = vld [vmem:[%s336 + $0x12b8] sm:$0xff]
        %v1624 = vld [vmem:[%s336 + $0x12c0] sm:$0xff]
        %v1625 = vld [vmem:[%s336 + $0x12c8] sm:$0xff]
        %v1626 = vld [vmem:[%s336 + $0x12d0] sm:$0xff]
        %v1627 = vld [vmem:[%s336 + $0x12d8] sm:$0xff]
        %v1628 = vld [vmem:[%s336 + $0x12e0] sm:$0xff]
        %v1629 = vld [vmem:[%s336 + $0x12e8] sm:$0xff]
        %v1630 = vld [vmem:[%s336 + $0x12f0] sm:$0xff]
        %v1631 = vld [vmem:[%s336 + $0x12f8] sm:$0xff]
        %v1632 = vld [vmem:[%s336 + $0x1300] sm:$0xff]
        %v1633 = vld [vmem:[%s336 + $0x1308] sm:$0xff]
        %v1634 = vld [vmem:[%s336 + $0x1310] sm:$0xff]
        %v1635 = vld [vmem:[%s336 + $0x1318] sm:$0xff]
        %v1636 = vld [vmem:[%s336 + $0x1320] sm:$0xff]
        %v1637 = vld [vmem:[%s336 + $0x1328] sm:$0xff]
        %v1638 = vld [vmem:[%s336 + $0x1330] sm:$0xff]
        %v1639 = vld [vmem:[%s336 + $0x1338] sm:$0xff]
        %v1640 = vld [vmem:[%s336 + $0x1340] sm:$0xff]
        %v1641 = vld [vmem:[%s336 + $0x1348] sm:$0xff]
        %v1642 = vld [vmem:[%s336 + $0x1350] sm:$0xff]
        %v1643 = vld [vmem:[%s336 + $0x1358] sm:$0xff]
        %v1644 = vld [vmem:[%s336 + $0x1360] sm:$0xff]
        %v1645 = vld [vmem:[%s336 + $0x1368] sm:$0xff]
        %v1646 = vld [vmem:[%s336 + $0x1370] sm:$0xff]
        %v1647 = vld [vmem:[%s336 + $0x1378] sm:$0xff]
        %v1648 = vld [vmem:[%s336 + $0x1380] sm:$0xff]
        %v1649 = vld [vmem:[%s336 + $0x1388] sm:$0xff]
        %v1650 = vld [vmem:[%s336 + $0x1390] sm:$0xff]
        %v1651 = vld [vmem:[%s336 + $0x1398] sm:$0xff]
        %v1652 = vld [vmem:[%s336 + $0x13a0] sm:$0xff]
        %v1653 = vld [vmem:[%s336 + $0x13a8] sm:$0xff]
        %v1654 = vld [vmem:[%s336 + $0x13b0] sm:$0xff]
        %v1655 = vld [vmem:[%s336 + $0x13b8] sm:$0xff]
        %v1656 = vld [vmem:[%s336 + $0x13c0] sm:$0xff]
        %v1657 = vld [vmem:[%s336 + $0x13c8] sm:$0xff]
        %v1658 = vld [vmem:[%s336 + $0x13d0] sm:$0xff]
        %v1659 = vld [vmem:[%s336 + $0x13d8] sm:$0xff]
        %v1660 = vld [vmem:[%s336 + $0x13e0] sm:$0xff]
        %v1661 = vld [vmem:[%s336 + $0x13e8] sm:$0xff]
        %v1662 = vld [vmem:[%s336 + $0x13f0] sm:$0xff]
        %v1663 = vld [vmem:[%s336 + $0x13f8] sm:$0xff]
        %v1664 = vld [vmem:[%s336 + $0x1400] sm:$0xff]
        %v1665 = vld [vmem:[%s336 + $0x1408] sm:$0xff]
        %v1666 = vld [vmem:[%s336 + $0x1410] sm:$0xff]
        %v1667 = vld [vmem:[%s336 + $0x1418] sm:$0xff]
        %v1668 = vld [vmem:[%s336 + $0x1420] sm:$0xff]
        %v1669 = vld [vmem:[%s336 + $0x1428] sm:$0xff]
        %v1670 = vld [vmem:[%s336 + $0x1430] sm:$0xff]
        %v1671 = vld [vmem:[%s336 + $0x1438] sm:$0xff]
        %v1672 = vld [vmem:[%s336 + $0x1440] sm:$0xff]
        %v1673 = vld [vmem:[%s336 + $0x1448] sm:$0xff]
        %v1674 = vld [vmem:[%s336 + $0x1450] sm:$0xff]
        %v1675 = vld [vmem:[%s336 + $0x1458] sm:$0xff]
        %v1676 = vld [vmem:[%s336 + $0x1460] sm:$0xff]
        %v1677 = vld [vmem:[%s336 + $0x1468] sm:$0xff]
        %v1678 = vld [vmem:[%s336 + $0x1470] sm:$0xff]
        %v1679 = vld [vmem:[%s336 + $0x1478] sm:$0xff]
        %v1680 = vld [vmem:[%s336 + $0x1480] sm:$0xff]
        %v1681 = vld [vmem:[%s336 + $0x1488] sm:$0xff]
        %v1682 = vld [vmem:[%s336 + $0x1490] sm:$0xff]
        %v1683 = vld [vmem:[%s336 + $0x1498] sm:$0xff]
        %v1684 = vld [vmem:[%s336 + $0x14a0] sm:$0xff]
        %v1685 = vld [vmem:[%s336 + $0x14a8] sm:$0xff]
        %v1686 = vld [vmem:[%s336 + $0x14b0] sm:$0xff]
        %v1687 = vld [vmem:[%s336 + $0x14b8] sm:$0xff]
        %v1688 = vld [vmem:[%s336 + $0x14c0] sm:$0xff]
        %v1689 = vld [vmem:[%s336 + $0x14c8] sm:$0xff]
        %v1690 = vld [vmem:[%s336 + $0x14d0] sm:$0xff]
        %v1691 = vld [vmem:[%s336 + $0x14d8] sm:$0xff]
        %v1692 = vld [vmem:[%s336 + $0x14e0] sm:$0xff]
        %v1693 = vld [vmem:[%s336 + $0x14e8] sm:$0xff]
        %v1694 = vld [vmem:[%s336 + $0x14f0] sm:$0xff]
        %v1695 = vld [vmem:[%s336 + $0x14f8] sm:$0xff]
        %v1696 = vld [vmem:[%s336 + $0x1500] sm:$0xff]
        %v1697 = vld [vmem:[%s336 + $0x1508] sm:$0xff]
        %v1698 = vld [vmem:[%s336 + $0x1510] sm:$0xff]
        %v1699 = vld [vmem:[%s336 + $0x1518] sm:$0xff]
        %v1700 = vld [vmem:[%s336 + $0x1520] sm:$0xff]
        %v1701 = vld [vmem:[%s336 + $0x1528] sm:$0xff]
        %v1702 = vld [vmem:[%s336 + $0x1530] sm:$0xff]
        %v1703 = vld [vmem:[%s336 + $0x1538] sm:$0xff]
        %v1704 = vld [vmem:[%s336 + $0x1540] sm:$0xff]
        %v1705 = vld [vmem:[%s336 + $0x1548] sm:$0xff]
        %v1706 = vld [vmem:[%s336 + $0x1550] sm:$0xff]
        %v1707 = vld [vmem:[%s336 + $0x1558] sm:$0xff]
        %v1708 = vld [vmem:[%s336 + $0x1560] sm:$0xff]
        %v1709 = vld [vmem:[%s336 + $0x1568] sm:$0xff]
        %v1710 = vld [vmem:[%s336 + $0x1570] sm:$0xff]
        %v1711 = vld [vmem:[%s336 + $0x1578] sm:$0xff]
        %v1712 = vld [vmem:[%s336 + $0x1580] sm:$0xff]
        %v1713 = vld [vmem:[%s336 + $0x1588] sm:$0xff]
        %v1714 = vld [vmem:[%s336 + $0x1590] sm:$0xff]
        %v1715 = vld [vmem:[%s336 + $0x1598] sm:$0xff]
        %v1716 = vld [vmem:[%s336 + $0x15a0] sm:$0xff]
        %v1717 = vld [vmem:[%s336 + $0x15a8] sm:$0xff]
        %v1718 = vld [vmem:[%s336 + $0x15b0] sm:$0xff]
        %v1719 = vld [vmem:[%s336 + $0x15b8] sm:$0xff]
        %v1720 = vld [vmem:[%s336 + $0x15c0] sm:$0xff]
        %v1721 = vld [vmem:[%s336 + $0x15c8] sm:$0xff]
        %v1722 = vld [vmem:[%s336 + $0x15d0] sm:$0xff]
        %v1723 = vld [vmem:[%s336 + $0x15d8] sm:$0xff]
        %v1724 = vld [vmem:[%s336 + $0x15e0] sm:$0xff]
        %v1725 = vld [vmem:[%s336 + $0x15e8] sm:$0xff]
        %v1726 = vld [vmem:[%s336 + $0x15f0] sm:$0xff]
        %v1727 = vld [vmem:[%s336 + $0x15f8] sm:$0xff]
        %v1728 = vld [vmem:[%s336 + $0x1600] sm:$0xff]
        %v1729 = vld [vmem:[%s336 + $0x1608] sm:$0xff]
        %v1730 = vld [vmem:[%s336 + $0x1610] sm:$0xff]
        %v1731 = vld [vmem:[%s336 + $0x1618] sm:$0xff]
        %v1732 = vld [vmem:[%s336 + $0x1620] sm:$0xff]
        %v1733 = vld [vmem:[%s336 + $0x1628] sm:$0xff]
        %v1734 = vld [vmem:[%s336 + $0x1630] sm:$0xff]
        %v1735 = vld [vmem:[%s336 + $0x1638] sm:$0xff]
        %v1736 = vld [vmem:[%s336 + $0x1640] sm:$0xff]
        %v1737 = vld [vmem:[%s336 + $0x1648] sm:$0xff]
        %v1738 = vld [vmem:[%s336 + $0x1650] sm:$0xff]
        %v1739 = vld [vmem:[%s336 + $0x1658] sm:$0xff]
        %v1740 = vld [vmem:[%s336 + $0x1660] sm:$0xff]
        %v1741 = vld [vmem:[%s336 + $0x1668] sm:$0xff]
        %v1742 = vld [vmem:[%s336 + $0x1670] sm:$0xff]
        %v1743 = vld [vmem:[%s336 + $0x1678] sm:$0xff]
        %v1744 = vld [vmem:[%s336 + $0x1680] sm:$0xff]
        %v1745 = vld [vmem:[%s336 + $0x1688] sm:$0xff]
        %v1746 = vld [vmem:[%s336 + $0x1690] sm:$0xff]
        %v1747 = vld [vmem:[%s336 + $0x1698] sm:$0xff]
        %v1748 = vld [vmem:[%s336 + $0x16a0] sm:$0xff]
        %v1749 = vld [vmem:[%s336 + $0x16a8] sm:$0xff]
        %v1750 = vld [vmem:[%s336 + $0x16b0] sm:$0xff]
        %v1751 = vld [vmem:[%s336 + $0x16b8] sm:$0xff]
        %v1752 = vld [vmem:[%s336 + $0x16c0] sm:$0xff]
        %v1753 = vld [vmem:[%s336 + $0x16c8] sm:$0xff]
        %v1754 = vld [vmem:[%s336 + $0x16d0] sm:$0xff]
        %v1755 = vld [vmem:[%s336 + $0x16d8] sm:$0xff]
        %v1756 = vld [vmem:[%s336 + $0x16e0] sm:$0xff]
        %v1757 = vld [vmem:[%s336 + $0x16e8] sm:$0xff]
        %v1758 = vld [vmem:[%s336 + $0x16f0] sm:$0xff]
        %v1759 = vld [vmem:[%s336 + $0x16f8] sm:$0xff]
        %v1760 = vld [vmem:[%s336 + $0x1700] sm:$0xff]
        %v1761 = vld [vmem:[%s336 + $0x1708] sm:$0xff]
        %v1762 = vld [vmem:[%s336 + $0x1710] sm:$0xff]
        %v1763 = vld [vmem:[%s336 + $0x1718] sm:$0xff]
        %v1764 = vld [vmem:[%s336 + $0x1720] sm:$0xff]
        %v1765 = vld [vmem:[%s336 + $0x1728] sm:$0xff]
        %v1766 = vld [vmem:[%s336 + $0x1730] sm:$0xff]
        %v1767 = vld [vmem:[%s336 + $0x1738] sm:$0xff]
        %v1768 = vld [vmem:[%s336 + $0x1740] sm:$0xff]
        %v1769 = vld [vmem:[%s336 + $0x1748] sm:$0xff]
        %v1770 = vld [vmem:[%s336 + $0x1750] sm:$0xff]
        %v1771 = vld [vmem:[%s336 + $0x1758] sm:$0xff]
        %v1772 = vld [vmem:[%s336 + $0x1760] sm:$0xff]
        %v1773 = vld [vmem:[%s336 + $0x1768] sm:$0xff]
        %v1774 = vld [vmem:[%s336 + $0x1770] sm:$0xff]
        %v1775 = vld [vmem:[%s336 + $0x1778] sm:$0xff]
        %v1776 = vld [vmem:[%s336 + $0x1780] sm:$0xff]
        %v1777 = vld [vmem:[%s336 + $0x1788] sm:$0xff]
        %v1778 = vld [vmem:[%s336 + $0x1790] sm:$0xff]
        %v1779 = vld [vmem:[%s336 + $0x1798] sm:$0xff]
        %v1780 = vld [vmem:[%s336 + $0x17a0] sm:$0xff]
        %v1781 = vld [vmem:[%s336 + $0x17a8] sm:$0xff]
        %v1782 = vld [vmem:[%s336 + $0x17b0] sm:$0xff]
        %v1783 = vld [vmem:[%s336 + $0x17b8] sm:$0xff]
        %v1784 = vld [vmem:[%s336 + $0x17c0] sm:$0xff]
        %v1785 = vld [vmem:[%s336 + $0x17c8] sm:$0xff]
        %v1786 = vld [vmem:[%s336 + $0x17d0] sm:$0xff]
        %v1787 = vld [vmem:[%s336 + $0x17d8] sm:$0xff]
        %v1788 = vld [vmem:[%s336 + $0x17e0] sm:$0xff]
        %v1789 = vld [vmem:[%s336 + $0x17e8] sm:$0xff]
        %v1790 = vld [vmem:[%s336 + $0x17f0] sm:$0xff]
        %v1791 = vld [vmem:[%s336 + $0x17f8] sm:$0xff]
        %v1792 = vld [vmem:[%s336 + $0x1800] sm:$0xff]
        %v1793 = vld [vmem:[%s336 + $0x1808] sm:$0xff]
        %v1794 = vld [vmem:[%s336 + $0x1810] sm:$0xff]
        %v1795 = vld [vmem:[%s336 + $0x1818] sm:$0xff]
        %v1796 = vld [vmem:[%s336 + $0x1820] sm:$0xff]
        %v1797 = vld [vmem:[%s336 + $0x1828] sm:$0xff]
        %v1798 = vld [vmem:[%s336 + $0x1830] sm:$0xff]
        %v1799 = vld [vmem:[%s336 + $0x1838] sm:$0xff]
        %v1800 = vld [vmem:[%s336 + $0x1840] sm:$0xff]
        %v1801 = vld [vmem:[%s336 + $0x1848] sm:$0xff]
        %v1802 = vld [vmem:[%s336 + $0x1850] sm:$0xff]
        %v1803 = vld [vmem:[%s336 + $0x1858] sm:$0xff]
        %v1804 = vld [vmem:[%s336 + $0x1860] sm:$0xff]
        %v1805 = vld [vmem:[%s336 + $0x1868] sm:$0xff]
        %v1806 = vld [vmem:[%s336 + $0x1870] sm:$0xff]
        %v1807 = vld [vmem:[%s336 + $0x1878] sm:$0xff]
        %v1808 = vld [vmem:[%s336 + $0x1880] sm:$0xff]
        %v1809 = vld [vmem:[%s336 + $0x1888] sm:$0xff]
        %v1810 = vld [vmem:[%s336 + $0x1890] sm:$0xff]
        %v1811 = vld [vmem:[%s336 + $0x1898] sm:$0xff]
        %v1812 = vld [vmem:[%s336 + $0x18a0] sm:$0xff]
        %v1813 = vld [vmem:[%s336 + $0x18a8] sm:$0xff]
        %v1814 = vld [vmem:[%s336 + $0x18b0] sm:$0xff]
        %v1815 = vld [vmem:[%s336 + $0x18b8] sm:$0xff]
        %v1816 = vld [vmem:[%s336 + $0x18c0] sm:$0xff]
        %v1817 = vld [vmem:[%s336 + $0x18c8] sm:$0xff]
        %v1818 = vld [vmem:[%s336 + $0x18d0] sm:$0xff]
        %v1819 = vld [vmem:[%s336 + $0x18d8] sm:$0xff]
        %v1820 = vld [vmem:[%s336 + $0x18e0] sm:$0xff]
        %v1821 = vld [vmem:[%s336 + $0x18e8] sm:$0xff]
        %v1822 = vld [vmem:[%s336 + $0x18f0] sm:$0xff]
        %v1823 = vld [vmem:[%s336 + $0x18f8] sm:$0xff]
        %v1824 = vld [vmem:[%s336 + $0x1900] sm:$0xff]
        %v1825 = vld [vmem:[%s336 + $0x1908] sm:$0xff]
        %v1826 = vld [vmem:[%s336 + $0x1910] sm:$0xff]
        %v1827 = vld [vmem:[%s336 + $0x1918] sm:$0xff]
        %v1828 = vld [vmem:[%s336 + $0x1920] sm:$0xff]
        %v1829 = vld [vmem:[%s336 + $0x1928] sm:$0xff]
        %v1830 = vld [vmem:[%s336 + $0x1930] sm:$0xff]
        %v1831 = vld [vmem:[%s336 + $0x1938] sm:$0xff]
        %v1832 = vld [vmem:[%s336 + $0x1940] sm:$0xff]
        %v1833 = vld [vmem:[%s336 + $0x1948] sm:$0xff]
        %v1834 = vld [vmem:[%s336 + $0x1950] sm:$0xff]
        %v1835 = vld [vmem:[%s336 + $0x1958] sm:$0xff]
        %v1836 = vld [vmem:[%s336 + $0x1960] sm:$0xff]
        %v1837 = vld [vmem:[%s336 + $0x1968] sm:$0xff]
        %v1838 = vld [vmem:[%s336 + $0x1970] sm:$0xff]
        %v1839 = vld [vmem:[%s336 + $0x1978] sm:$0xff]
        %v1840 = vld [vmem:[%s336 + $0x1980] sm:$0xff]
        %v1841 = vld [vmem:[%s336 + $0x1988] sm:$0xff]
        %v1842 = vld [vmem:[%s336 + $0x1990] sm:$0xff]
        %v1843 = vld [vmem:[%s336 + $0x1998] sm:$0xff]
        %v1844 = vld [vmem:[%s336 + $0x19a0] sm:$0xff]
        %v1845 = vld [vmem:[%s336 + $0x19a8] sm:$0xff]
        %v1846 = vld [vmem:[%s336 + $0x19b0] sm:$0xff]
        %v1847 = vld [vmem:[%s336 + $0x19b8] sm:$0xff]
        %v1848 = vld [vmem:[%s336 + $0x19c0] sm:$0xff]
        %v1849 = vld [vmem:[%s336 + $0x19c8] sm:$0xff]
        %v1850 = vld [vmem:[%s336 + $0x19d0] sm:$0xff]
        %v1851 = vld [vmem:[%s336 + $0x19d8] sm:$0xff]
        %v1852 = vld [vmem:[%s336 + $0x19e0] sm:$0xff]
        %v1853 = vld [vmem:[%s336 + $0x19e8] sm:$0xff]
        %v1854 = vld [vmem:[%s336 + $0x19f0] sm:$0xff]
        %v1855 = vld [vmem:[%s336 + $0x19f8] sm:$0xff]
        %v1856 = vld [vmem:[%s336 + $0x1a00] sm:$0xff]
        %v1857 = vld [vmem:[%s336 + $0x1a08] sm:$0xff]
        %v1858 = vld [vmem:[%s336 + $0x1a10] sm:$0xff]
        %v1859 = vld [vmem:[%s336 + $0x1a18] sm:$0xff]
        %v1860 = vld [vmem:[%s336 + $0x1a20] sm:$0xff]
        %v1861 = vld [vmem:[%s336 + $0x1a28] sm:$0xff]
        %v1862 = vld [vmem:[%s336 + $0x1a30] sm:$0xff]
        %v1863 = vld [vmem:[%s336 + $0x1a38] sm:$0xff]
        %v1864 = vld [vmem:[%s336 + $0x1a40] sm:$0xff]
        %v1865 = vld [vmem:[%s336 + $0x1a48] sm:$0xff]
        %v1866 = vld [vmem:[%s336 + $0x1a50] sm:$0xff]
        %v1867 = vld [vmem:[%s336 + $0x1a58] sm:$0xff]
        %v1868 = vld [vmem:[%s336 + $0x1a60] sm:$0xff]
        %v1869 = vld [vmem:[%s336 + $0x1a68] sm:$0xff]
        %v1870 = vld [vmem:[%s336 + $0x1a70] sm:$0xff]
        %v1871 = vld [vmem:[%s336 + $0x1a78] sm:$0xff]
        %v1872 = vld [vmem:[%s336 + $0x1a80] sm:$0xff]
        %v1873 = vld [vmem:[%s336 + $0x1a88] sm:$0xff]
        %v1874 = vld [vmem:[%s336 + $0x1a90] sm:$0xff]
        %v1875 = vld [vmem:[%s336 + $0x1a98] sm:$0xff]
        %v1876 = vld [vmem:[%s336 + $0x1aa0] sm:$0xff]
        %v1877 = vld [vmem:[%s336 + $0x1aa8] sm:$0xff]
        %v1878 = vld [vmem:[%s336 + $0x1ab0] sm:$0xff]
        %v1879 = vld [vmem:[%s336 + $0x1ab8] sm:$0xff]
        %v1880 = vld [vmem:[%s336 + $0x1ac0] sm:$0xff]
        %v1881 = vld [vmem:[%s336 + $0x1ac8] sm:$0xff]
        %v1882 = vld [vmem:[%s336 + $0x1ad0] sm:$0xff]
        %v1883 = vld [vmem:[%s336 + $0x1ad8] sm:$0xff]
        %v1884 = vld [vmem:[%s336 + $0x1ae0] sm:$0xff]
        %v1885 = vld [vmem:[%s336 + $0x1ae8] sm:$0xff]
        %v1886 = vld [vmem:[%s336 + $0x1af0] sm:$0xff]
        %v1887 = vld [vmem:[%s336 + $0x1af8] sm:$0xff]
        %v1888 = vld [vmem:[%s336 + $0x1b00] sm:$0xff]
        %v1889 = vld [vmem:[%s336 + $0x1b08] sm:$0xff]
        %v1890 = vld [vmem:[%s336 + $0x1b10] sm:$0xff]
        %v1891 = vld [vmem:[%s336 + $0x1b18] sm:$0xff]
        %v1892 = vld [vmem:[%s336 + $0x1b20] sm:$0xff]
        %v1893 = vld [vmem:[%s336 + $0x1b28] sm:$0xff]
        %v1894 = vld [vmem:[%s336 + $0x1b30] sm:$0xff]
        %v1895 = vld [vmem:[%s336 + $0x1b38] sm:$0xff]
        %v1896 = vld [vmem:[%s336 + $0x1b40] sm:$0xff]
        %v1897 = vld [vmem:[%s336 + $0x1b48] sm:$0xff]
        %v1898 = vld [vmem:[%s336 + $0x1b50] sm:$0xff]
        %v1899 = vld [vmem:[%s336 + $0x1b58] sm:$0xff]
        %v1900 = vld [vmem:[%s336 + $0x1b60] sm:$0xff]
        %v1901 = vld [vmem:[%s336 + $0x1b68] sm:$0xff]
        %v1902 = vld [vmem:[%s336 + $0x1b70] sm:$0xff]
        %v1903 = vld [vmem:[%s336 + $0x1b78] sm:$0xff]
        %v1904 = vld [vmem:[%s336 + $0x1b80] sm:$0xff]
        %v1905 = vld [vmem:[%s336 + $0x1b88] sm:$0xff]
        %v1906 = vld [vmem:[%s336 + $0x1b90] sm:$0xff]
        %v1907 = vld [vmem:[%s336 + $0x1b98] sm:$0xff]
        %v1908 = vld [vmem:[%s336 + $0x1ba0] sm:$0xff]
        %v1909 = vld [vmem:[%s336 + $0x1ba8] sm:$0xff]
        %v1910 = vld [vmem:[%s336 + $0x1bb0] sm:$0xff]
        %v1911 = vld [vmem:[%s336 + $0x1bb8] sm:$0xff]
        %v1912 = vld [vmem:[%s336 + $0x1bc0] sm:$0xff]
        %v1913 = vld [vmem:[%s336 + $0x1bc8] sm:$0xff]
        %v1914 = vld [vmem:[%s336 + $0x1bd0] sm:$0xff]
        %v1915 = vld [vmem:[%s336 + $0x1bd8] sm:$0xff]
        %v1916 = vld [vmem:[%s336 + $0x1be0] sm:$0xff]
        %v1917 = vld [vmem:[%s336 + $0x1be8] sm:$0xff]
        %v1918 = vld [vmem:[%s336 + $0x1bf0] sm:$0xff]
        %v1919 = vld [vmem:[%s336 + $0x1bf8] sm:$0xff]
        %v1920 = vld [vmem:[%s336 + $0x1c00] sm:$0xff]
        %v1921 = vld [vmem:[%s336 + $0x1c08] sm:$0xff]
        %v1922 = vld [vmem:[%s336 + $0x1c10] sm:$0xff]
        %v1923 = vld [vmem:[%s336 + $0x1c18] sm:$0xff]
        %v1924 = vld [vmem:[%s336 + $0x1c20] sm:$0xff]
        %v1925 = vld [vmem:[%s336 + $0x1c28] sm:$0xff]
        %v1926 = vld [vmem:[%s336 + $0x1c30] sm:$0xff]
        %v1927 = vld [vmem:[%s336 + $0x1c38] sm:$0xff]
        %v1928 = vld [vmem:[%s336 + $0x1c40] sm:$0xff]
        %v1929 = vld [vmem:[%s336 + $0x1c48] sm:$0xff]
        %v1930 = vld [vmem:[%s336 + $0x1c50] sm:$0xff]
        %v1931 = vld [vmem:[%s336 + $0x1c58] sm:$0xff]
        %v1932 = vld [vmem:[%s336 + $0x1c60] sm:$0xff]
        %v1933 = vld [vmem:[%s336 + $0x1c68] sm:$0xff]
        %v1934 = vld [vmem:[%s336 + $0x1c70] sm:$0xff]
        %v1935 = vld [vmem:[%s336 + $0x1c78] sm:$0xff]
        %v1936 = vld [vmem:[%s336 + $0x1c80] sm:$0xff]
        %v1937 = vld [vmem:[%s336 + $0x1c88] sm:$0xff]
        %v1938 = vld [vmem:[%s336 + $0x1c90] sm:$0xff]
        %v1939 = vld [vmem:[%s336 + $0x1c98] sm:$0xff]
        %v1940 = vld [vmem:[%s336 + $0x1ca0] sm:$0xff]
        %v1941 = vld [vmem:[%s336 + $0x1ca8] sm:$0xff]
        %v1942 = vld [vmem:[%s336 + $0x1cb0] sm:$0xff]
        %v1943 = vld [vmem:[%s336 + $0x1cb8] sm:$0xff]
        %v1944 = vld [vmem:[%s336 + $0x1cc0] sm:$0xff]
        %v1945 = vld [vmem:[%s336 + $0x1cc8] sm:$0xff]
        %v1946 = vld [vmem:[%s336 + $0x1cd0] sm:$0xff]
        %v1947 = vld [vmem:[%s336 + $0x1cd8] sm:$0xff]
        %v1948 = vld [vmem:[%s336 + $0x1ce0] sm:$0xff]
        %v1949 = vld [vmem:[%s336 + $0x1ce8] sm:$0xff]
        %v1950 = vld [vmem:[%s336 + $0x1cf0] sm:$0xff]
        %v1951 = vld [vmem:[%s336 + $0x1cf8] sm:$0xff]
        %v1952 = vld [vmem:[%s336 + $0x1d00] sm:$0xff]
        %v1953 = vld [vmem:[%s336 + $0x1d08] sm:$0xff]
        %v1954 = vld [vmem:[%s336 + $0x1d10] sm:$0xff]
        %v1955 = vld [vmem:[%s336 + $0x1d18] sm:$0xff]
        %v1956 = vld [vmem:[%s336 + $0x1d20] sm:$0xff]
        %v1957 = vld [vmem:[%s336 + $0x1d28] sm:$0xff]
        %v1958 = vld [vmem:[%s336 + $0x1d30] sm:$0xff]
        %v1959 = vld [vmem:[%s336 + $0x1d38] sm:$0xff]
        %v1960 = vld [vmem:[%s336 + $0x1d40] sm:$0xff]
        %v1961 = vld [vmem:[%s336 + $0x1d48] sm:$0xff]
        %v1962 = vld [vmem:[%s336 + $0x1d50] sm:$0xff]
        %v1963 = vld [vmem:[%s336 + $0x1d58] sm:$0xff]
        %v1964 = vld [vmem:[%s336 + $0x1d60] sm:$0xff]
        %v1965 = vld [vmem:[%s336 + $0x1d68] sm:$0xff]
        %v1966 = vld [vmem:[%s336 + $0x1d70] sm:$0xff]
        %v1967 = vld [vmem:[%s336 + $0x1d78] sm:$0xff]
        %v1968 = vld [vmem:[%s336 + $0x1d80] sm:$0xff]
        %v1969 = vld [vmem:[%s336 + $0x1d88] sm:$0xff]
        %v1970 = vld [vmem:[%s336 + $0x1d90] sm:$0xff]
        %v1971 = vld [vmem:[%s336 + $0x1d98] sm:$0xff]
        %v1972 = vld [vmem:[%s336 + $0x1da0] sm:$0xff]
        %v1973 = vld [vmem:[%s336 + $0x1da8] sm:$0xff]
        %v1974 = vld [vmem:[%s336 + $0x1db0] sm:$0xff]
        %v1975 = vld [vmem:[%s336 + $0x1db8] sm:$0xff]
        %v1976 = vld [vmem:[%s336 + $0x1dc0] sm:$0xff]
        %v1977 = vld [vmem:[%s336 + $0x1dc8] sm:$0xff]
        %v1978 = vld [vmem:[%s336 + $0x1dd0] sm:$0xff]
        %v1979 = vld [vmem:[%s336 + $0x1dd8] sm:$0xff]
        %v1980 = vld [vmem:[%s336 + $0x1de0] sm:$0xff]
        %v1981 = vld [vmem:[%s336 + $0x1de8] sm:$0xff]
        %v1982 = vld [vmem:[%s336 + $0x1df0] sm:$0xff]
        %v1983 = vld [vmem:[%s336 + $0x1df8] sm:$0xff]
        %v1984 = vld [vmem:[%s336 + $0x1e00] sm:$0xff]
        %v1985 = vld [vmem:[%s336 + $0x1e08] sm:$0xff]
        %v1986 = vld [vmem:[%s336 + $0x1e10] sm:$0xff]
        %v1987 = vld [vmem:[%s336 + $0x1e18] sm:$0xff]
        %v1988 = vld [vmem:[%s336 + $0x1e20] sm:$0xff]
        %v1989 = vld [vmem:[%s336 + $0x1e28] sm:$0xff]
        %v1990 = vld [vmem:[%s336 + $0x1e30] sm:$0xff]
        %v1991 = vld [vmem:[%s336 + $0x1e38] sm:$0xff]
        %v1992 = vld [vmem:[%s336 + $0x1e40] sm:$0xff]
        %v1993 = vld [vmem:[%s336 + $0x1e48] sm:$0xff]
        %v1994 = vld [vmem:[%s336 + $0x1e50] sm:$0xff]
        %v1995 = vld [vmem:[%s336 + $0x1e58] sm:$0xff]
        %v1996 = vld [vmem:[%s336 + $0x1e60] sm:$0xff]
        %v1997 = vld [vmem:[%s336 + $0x1e68] sm:$0xff]
        %v1998 = vld [vmem:[%s336 + $0x1e70] sm:$0xff]
        %v1999 = vld [vmem:[%s336 + $0x1e78] sm:$0xff]
        %v2000 = vld [vmem:[%s336 + $0x1e80] sm:$0xff]
        %v2001 = vld [vmem:[%s336 + $0x1e88] sm:$0xff]
        %v2002 = vld [vmem:[%s336 + $0x1e90] sm:$0xff]
        %v2003 = vld [vmem:[%s336 + $0x1e98] sm:$0xff]
        %v2004 = vld [vmem:[%s336 + $0x1ea0] sm:$0xff]
        %v2005 = vld [vmem:[%s336 + $0x1ea8] sm:$0xff]
        %v2006 = vld [vmem:[%s336 + $0x1eb0] sm:$0xff]
        %v2007 = vld [vmem:[%s336 + $0x1eb8] sm:$0xff]
        %v2008 = vld [vmem:[%s336 + $0x1ec0] sm:$0xff]
        %v2009 = vld [vmem:[%s336 + $0x1ec8] sm:$0xff]
        %v2010 = vld [vmem:[%s336 + $0x1ed0] sm:$0xff]
        %v2011 = vld [vmem:[%s336 + $0x1ed8] sm:$0xff]
        %v2012 = vld [vmem:[%s336 + $0x1ee0] sm:$0xff]
        %v2013 = vld [vmem:[%s336 + $0x1ee8] sm:$0xff]
        %v2014 = vld [vmem:[%s336 + $0x1ef0] sm:$0xff]
        %v2015 = vld [vmem:[%s336 + $0x1ef8] sm:$0xff]
        %v2016 = vld [vmem:[%s336 + $0x1f00] sm:$0xff]
        %v2017 = vld [vmem:[%s336 + $0x1f08] sm:$0xff]
        %v2018 = vld [vmem:[%s336 + $0x1f10] sm:$0xff]
        %v2019 = vld [vmem:[%s336 + $0x1f18] sm:$0xff]
        %v2020 = vld [vmem:[%s336 + $0x1f20] sm:$0xff]
        %v2021 = vld [vmem:[%s336 + $0x1f28] sm:$0xff]
        %v2022 = vld [vmem:[%s336 + $0x1f30] sm:$0xff]
        %v2023 = vld [vmem:[%s336 + $0x1f38] sm:$0xff]
        %v2024 = vld [vmem:[%s336 + $0x1f40] sm:$0xff]
        %v2025 = vld [vmem:[%s336 + $0x1f48] sm:$0xff]
        %v2026 = vld [vmem:[%s336 + $0x1f50] sm:$0xff]
        %v2027 = vld [vmem:[%s336 + $0x1f58] sm:$0xff]
        %v2028 = vld [vmem:[%s336 + $0x1f60] sm:$0xff]
        %v2029 = vld [vmem:[%s336 + $0x1f68] sm:$0xff]
        %v2030 = vld [vmem:[%s336 + $0x1f70] sm:$0xff]
        %v2031 = vld [vmem:[%s336 + $0x1f78] sm:$0xff]
        %v2032 = vld [vmem:[%s336 + $0x1f80] sm:$0xff]
        %v2033 = vld [vmem:[%s336 + $0x1f88] sm:$0xff]
        %v2034 = vld [vmem:[%s336 + $0x1f90] sm:$0xff]
        %v2035 = vld [vmem:[%s336 + $0x1f98] sm:$0xff]
        %v2036 = vld [vmem:[%s336 + $0x1fa0] sm:$0xff]
        %v2037 = vld [vmem:[%s336 + $0x1fa8] sm:$0xff]
        %v2038 = vld [vmem:[%s336 + $0x1fb0] sm:$0xff]
        %v2039 = vld [vmem:[%s336 + $0x1fb8] sm:$0xff]
        %v2040 = vld [vmem:[%s336 + $0x1fc0] sm:$0xff]
        %v2041 = vld [vmem:[%s336 + $0x1fc8] sm:$0xff]
        %v2042 = vld [vmem:[%s336 + $0x1fd0] sm:$0xff]
        %v2043 = vld [vmem:[%s336 + $0x1fd8] sm:$0xff]
        %v2044 = vld [vmem:[%s336 + $0x1fe0] sm:$0xff]
        %v2045 = vld [vmem:[%s336 + $0x1fe8] sm:$0xff]
        %v2046 = vld [vmem:[%s336 + $0x1ff0] sm:$0xff]
        %v2047 = vld [vmem:[%s336 + $0x1ff8] sm:$0xff]
        %v2048 = vld [vmem:[%s336 + $0x2000] sm:$0xff]
        %v2049 = vld [vmem:[%s336 + $0x2008] sm:$0xff]
        %v2050 = vld [vmem:[%s336 + $0x2010] sm:$0xff]
        %v2051 = vld [vmem:[%s336 + $0x2018] sm:$0xff]
        %v2052 = vld [vmem:[%s336 + $0x2020] sm:$0xff]
        %v2053 = vld [vmem:[%s336 + $0x2028] sm:$0xff]
        %v2054 = vld [vmem:[%s336 + $0x2030] sm:$0xff]
        %v2055 = vld [vmem:[%s336 + $0x2038] sm:$0xff]
        %v2056 = vld [vmem:[%s336 + $0x2040] sm:$0xff]
        %v2057 = vld [vmem:[%s336 + $0x2048] sm:$0xff]
        %v2058 = vld [vmem:[%s336 + $0x2050] sm:$0xff]
        %v2059 = vld [vmem:[%s336 + $0x2058] sm:$0xff]
        %v2060 = vld [vmem:[%s336 + $0x2060] sm:$0xff]
        %v2061 = vld [vmem:[%s336 + $0x2068] sm:$0xff]
        %v2062 = vld [vmem:[%s336 + $0x2070] sm:$0xff]
        %v2063 = vld [vmem:[%s336 + $0x2078] sm:$0xff]
        %v2064 = vld [vmem:[%s336 + $0x2080] sm:$0xff]
        %v2065 = vld [vmem:[%s336 + $0x2088] sm:$0xff]
        %v2066 = vld [vmem:[%s336 + $0x2090] sm:$0xff]
        %v2067 = vld [vmem:[%s336 + $0x2098] sm:$0xff]
        %v2068 = vld [vmem:[%s336 + $0x20a0] sm:$0xff]
        %v2069 = vld [vmem:[%s336 + $0x20a8] sm:$0xff]
        %v2070 = vld [vmem:[%s336 + $0x20b0] sm:$0xff]
        %v2071 = vld [vmem:[%s336 + $0x20b8] sm:$0xff]
        %v2072 = vld [vmem:[%s336 + $0x20c0] sm:$0xff]
        %v2073 = vld [vmem:[%s336 + $0x20c8] sm:$0xff]
        %v2074 = vld [vmem:[%s336 + $0x20d0] sm:$0xff]
        %v2075 = vld [vmem:[%s336 + $0x20d8] sm:$0xff]
        %v2076 = vld [vmem:[%s336 + $0x20e0] sm:$0xff]
        %v2077 = vld [vmem:[%s336 + $0x20e8] sm:$0xff]
        %v2078 = vld [vmem:[%s336 + $0x20f0] sm:$0xff]
        %v2079 = vld [vmem:[%s336 + $0x20f8] sm:$0xff]
        %v2080 = vld [vmem:[%s336 + $0x2100] sm:$0xff]
        %v2081 = vld [vmem:[%s336 + $0x2108] sm:$0xff]
        %v2082 = vld [vmem:[%s336 + $0x2110] sm:$0xff]
        %v2083 = vld [vmem:[%s336 + $0x2118] sm:$0xff]
        %v2084 = vld [vmem:[%s336 + $0x2120] sm:$0xff]
        %v2085 = vld [vmem:[%s336 + $0x2128] sm:$0xff]
        %v2086 = vld [vmem:[%s336 + $0x2130] sm:$0xff]
        %v2087 = vld [vmem:[%s336 + $0x2138] sm:$0xff]
        %v2088 = vld [vmem:[%s336 + $0x2140] sm:$0xff]
        %v2089 = vld [vmem:[%s336 + $0x2148] sm:$0xff]
        %v2090 = vld [vmem:[%s336 + $0x2150] sm:$0xff]
        %v2091 = vld [vmem:[%s336 + $0x2158] sm:$0xff]
        %v2092 = vld [vmem:[%s336 + $0x2160] sm:$0xff]
        %v2093 = vld [vmem:[%s336 + $0x2168] sm:$0xff]
        %v2094 = vld [vmem:[%s336 + $0x2170] sm:$0xff]
        %v2095 = vld [vmem:[%s336 + $0x2178] sm:$0xff]
        %v2096 = vld [vmem:[%s336 + $0x2180] sm:$0xff]
        %v2097 = vld [vmem:[%s336 + $0x2188] sm:$0xff]
        %v2098 = vld [vmem:[%s336 + $0x2190] sm:$0xff]
        %v2099 = vld [vmem:[%s336 + $0x2198] sm:$0xff]
        %v2100 = vld [vmem:[%s336 + $0x21a0] sm:$0xff]
        %v2101 = vld [vmem:[%s336 + $0x21a8] sm:$0xff]
        %v2102 = vld [vmem:[%s336 + $0x21b0] sm:$0xff]
        %v2103 = vld [vmem:[%s336 + $0x21b8] sm:$0xff]
        %v2104 = vld [vmem:[%s336 + $0x21c0] sm:$0xff]
        %v2105 = vld [vmem:[%s336 + $0x21c8] sm:$0xff]
        %v2106 = vld [vmem:[%s336 + $0x21d0] sm:$0xff]
        %v2107 = vld [vmem:[%s336 + $0x21d8] sm:$0xff]
        %v2108 = vld [vmem:[%s336 + $0x21e0] sm:$0xff]
        %v2109 = vld [vmem:[%s336 + $0x21e8] sm:$0xff]
        %v2110 = vld [vmem:[%s336 + $0x21f0] sm:$0xff]
        %v2111 = vld [vmem:[%s336 + $0x21f8] sm:$0xff]
        %v2112 = vld [vmem:[%s336 + $0x2200] sm:$0xff]
        %v2113 = vld [vmem:[%s336 + $0x2208] sm:$0xff]
        %v2114 = vld [vmem:[%s336 + $0x2210] sm:$0xff]
        %v2115 = vld [vmem:[%s336 + $0x2218] sm:$0xff]
        %v2116 = vld [vmem:[%s336 + $0x2220] sm:$0xff]
        %v2117 = vld [vmem:[%s336 + $0x2228] sm:$0xff]
        %v2118 = vld [vmem:[%s336 + $0x2230] sm:$0xff]
        %v2119 = vld [vmem:[%s336 + $0x2238] sm:$0xff]
        %v2120 = vld [vmem:[%s336 + $0x2240] sm:$0xff]
        %v2121 = vld [vmem:[%s336 + $0x2248] sm:$0xff]
        %v2122 = vld [vmem:[%s336 + $0x2250] sm:$0xff]
        %v2123 = vld [vmem:[%s336 + $0x2258] sm:$0xff]
        %v2124 = vld [vmem:[%s336 + $0x2260] sm:$0xff]
        %v2125 = vld [vmem:[%s336 + $0x2268] sm:$0xff]
        %v2126 = vld [vmem:[%s336 + $0x2270] sm:$0xff]
        %v2127 = vld [vmem:[%s336 + $0x2278] sm:$0xff]
        %v2128 = vld [vmem:[%s336 + $0x2280] sm:$0xff]
        %v2129 = vld [vmem:[%s336 + $0x2288] sm:$0xff]
        %v2130 = vld [vmem:[%s336 + $0x2290] sm:$0xff]
        %v2131 = vld [vmem:[%s336 + $0x2298] sm:$0xff]
        %v2132 = vld [vmem:[%s336 + $0x22a0] sm:$0xff]
        %v2133 = vld [vmem:[%s336 + $0x22a8] sm:$0xff]
        %v2134 = vld [vmem:[%s336 + $0x22b0] sm:$0xff]
        %v2135 = vld [vmem:[%s336 + $0x22b8] sm:$0xff]
        %v2136 = vld [vmem:[%s336 + $0x22c0] sm:$0xff]
        %v2137 = vld [vmem:[%s336 + $0x22c8] sm:$0xff]
        %v2138 = vld [vmem:[%s336 + $0x22d0] sm:$0xff]
        %v2139 = vld [vmem:[%s336 + $0x22d8] sm:$0xff]
        %v2140 = vld [vmem:[%s336 + $0x22e0] sm:$0xff]
        %v2141 = vld [vmem:[%s336 + $0x22e8] sm:$0xff]
        %v2142 = vld [vmem:[%s336 + $0x22f0] sm:$0xff]
        %v2143 = vld [vmem:[%s336 + $0x22f8] sm:$0xff]
        %v2144 = vld [vmem:[%s336 + $0x2300] sm:$0xff]
        %v2145 = vld [vmem:[%s336 + $0x2308] sm:$0xff]
        %v2146 = vld [vmem:[%s336 + $0x2310] sm:$0xff]
        %v2147 = vld [vmem:[%s336 + $0x2318] sm:$0xff]
        %v2148 = vld [vmem:[%s336 + $0x2320] sm:$0xff]
        %v2149 = vld [vmem:[%s336 + $0x2328] sm:$0xff]
        %v2150 = vld [vmem:[%s336 + $0x2330] sm:$0xff]
        %v2151 = vld [vmem:[%s336 + $0x2338] sm:$0xff]
        %v2152 = vld [vmem:[%s336 + $0x2340] sm:$0xff]
        %v2153 = vld [vmem:[%s336 + $0x2348] sm:$0xff]
        %v2154 = vld [vmem:[%s336 + $0x2350] sm:$0xff]
        %v2155 = vld [vmem:[%s336 + $0x2358] sm:$0xff]
        %v2156 = vld [vmem:[%s336 + $0x2360] sm:$0xff]
        %v2157 = vld [vmem:[%s336 + $0x2368] sm:$0xff]
        %v2158 = vld [vmem:[%s336 + $0x2370] sm:$0xff]
        %v2159 = vld [vmem:[%s336 + $0x2378] sm:$0xff]
        %v2160 = vld [vmem:[%s336 + $0x2380] sm:$0xff]
        %v2161 = vld [vmem:[%s336 + $0x2388] sm:$0xff]
        %v2162 = vld [vmem:[%s336 + $0x2390] sm:$0xff]
        %v2163 = vld [vmem:[%s336 + $0x2398] sm:$0xff]
        %v2164 = vld [vmem:[%s336 + $0x23a0] sm:$0xff]
        %v2165 = vld [vmem:[%s336 + $0x23a8] sm:$0xff]
        %v2166 = vld [vmem:[%s336 + $0x23b0] sm:$0xff]
        %v2167 = vld [vmem:[%s336 + $0x23b8] sm:$0xff]
        %v2168 = vld [vmem:[%s336 + $0x23c0] sm:$0xff]
        %v2169 = vld [vmem:[%s336 + $0x23c8] sm:$0xff]
        %v2170 = vld [vmem:[%s336 + $0x23d0] sm:$0xff]
        %v2171 = vld [vmem:[%s336 + $0x23d8] sm:$0xff]
        %v2172 = vld [vmem:[%s336 + $0x23e0] sm:$0xff]
        %v2173 = vld [vmem:[%s336 + $0x23e8] sm:$0xff]
        %v2174 = vld [vmem:[%s336 + $0x23f0] sm:$0xff]
        %v2175 = vld [vmem:[%s336 + $0x23f8] sm:$0xff]
        %v2176 = vld [vmem:[%s336 + $0x2400] sm:$0xff]
        %v2177 = vld [vmem:[%s336 + $0x2408] sm:$0xff]
        %v2178 = vld [vmem:[%s336 + $0x2410] sm:$0xff]
        %v2179 = vld [vmem:[%s336 + $0x2418] sm:$0xff]
        %v2180 = vld [vmem:[%s336 + $0x2420] sm:$0xff]
        %v2181 = vld [vmem:[%s336 + $0x2428] sm:$0xff]
        %v2182 = vld [vmem:[%s336 + $0x2430] sm:$0xff]
        %v2183 = vld [vmem:[%s336 + $0x2438] sm:$0xff]
        %v2184 = vld [vmem:[%s336 + $0x2440] sm:$0xff]
        %v2185 = vld [vmem:[%s336 + $0x2448] sm:$0xff]
        %v2186 = vld [vmem:[%s336 + $0x2450] sm:$0xff]
        %v2187 = vld [vmem:[%s336 + $0x2458] sm:$0xff]
        %v2188 = vld [vmem:[%s336 + $0x2460] sm:$0xff]
        %v2189 = vld [vmem:[%s336 + $0x2468] sm:$0xff]
        %v2190 = vld [vmem:[%s336 + $0x2470] sm:$0xff]
        %v2191 = vld [vmem:[%s336 + $0x2478] sm:$0xff]
        %v2192 = vld [vmem:[%s336 + $0x2480] sm:$0xff]
        %v2193 = vld [vmem:[%s336 + $0x2488] sm:$0xff]
        %v2194 = vld [vmem:[%s336 + $0x2490] sm:$0xff]
        %v2195 = vld [vmem:[%s336 + $0x2498] sm:$0xff]
        %v2196 = vld [vmem:[%s336 + $0x24a0] sm:$0xff]
        %v2197 = vld [vmem:[%s336 + $0x24a8] sm:$0xff]
        %v2198 = vld [vmem:[%s336 + $0x24b0] sm:$0xff]
        %v2199 = vld [vmem:[%s336 + $0x24b8] sm:$0xff]
        %v2200 = vld [vmem:[%s336 + $0x24c0] sm:$0xff]
        %v2201 = vld [vmem:[%s336 + $0x24c8] sm:$0xff]
        %v2202 = vld [vmem:[%s336 + $0x24d0] sm:$0xff]
        %v2203 = vld [vmem:[%s336 + $0x24d8] sm:$0xff]
        %v2204 = vld [vmem:[%s336 + $0x24e0] sm:$0xff]
        %v2205 = vld [vmem:[%s336 + $0x24e8] sm:$0xff]
        %v2206 = vld [vmem:[%s336 + $0x24f0] sm:$0xff]
        %v2207 = vld [vmem:[%s336 + $0x24f8] sm:$0xff]
        %v2208 = vld [vmem:[%s336 + $0x2500] sm:$0xff]
        %v2209 = vld [vmem:[%s336 + $0x2508] sm:$0xff]
        %v2210 = vld [vmem:[%s336 + $0x2510] sm:$0xff]
        %v2211 = vld [vmem:[%s336 + $0x2518] sm:$0xff]
        %v2212 = vld [vmem:[%s336 + $0x2520] sm:$0xff]
        %v2213 = vld [vmem:[%s336 + $0x2528] sm:$0xff]
        %v2214 = vld [vmem:[%s336 + $0x2530] sm:$0xff]
        %v2215 = vld [vmem:[%s336 + $0x2538] sm:$0xff]
        %v2216 = vld [vmem:[%s336 + $0x2540] sm:$0xff]
        %v2217 = vld [vmem:[%s336 + $0x2548] sm:$0xff]
        %v2218 = vld [vmem:[%s336 + $0x2550] sm:$0xff]
        %v2219 = vld [vmem:[%s336 + $0x2558] sm:$0xff]
        %v2220 = vld [vmem:[%s336 + $0x2560] sm:$0xff]
        %v2221 = vld [vmem:[%s336 + $0x2568] sm:$0xff]
        %v2222 = vld [vmem:[%s336 + $0x2570] sm:$0xff]
        %v2223 = vld [vmem:[%s336 + $0x2578] sm:$0xff]
        %v2224 = vld [vmem:[%s336 + $0x2580] sm:$0xff]
        %v2225 = vld [vmem:[%s336 + $0x2588] sm:$0xff]
        %v2226 = vld [vmem:[%s336 + $0x2590] sm:$0xff]
        %v2227 = vld [vmem:[%s336 + $0x2598] sm:$0xff]
        %v2228 = vld [vmem:[%s336 + $0x25a0] sm:$0xff]
        %v2229 = vld [vmem:[%s336 + $0x25a8] sm:$0xff]
        %v2230 = vld [vmem:[%s336 + $0x25b0] sm:$0xff]
        %v2231 = vld [vmem:[%s336 + $0x25b8] sm:$0xff]
        %v2232 = vld [vmem:[%s336 + $0x25c0] sm:$0xff]
        %v2233 = vld [vmem:[%s336 + $0x25c8] sm:$0xff]
        %v2234 = vld [vmem:[%s336 + $0x25d0] sm:$0xff]
        %v2235 = vld [vmem:[%s336 + $0x25d8] sm:$0xff]
        %v2236 = vld [vmem:[%s336 + $0x25e0] sm:$0xff]
        %v2237 = vld [vmem:[%s336 + $0x25e8] sm:$0xff]
        %v2238 = vld [vmem:[%s336 + $0x25f0] sm:$0xff]
        %v2239 = vld [vmem:[%s336 + $0x25f8] sm:$0xff]
        %v2240 = vld [vmem:[%s336 + $0x2600] sm:$0xff]
        %v2241 = vld [vmem:[%s336 + $0x2608] sm:$0xff]
        %v2242 = vld [vmem:[%s336 + $0x2610] sm:$0xff]
        %v2243 = vld [vmem:[%s336 + $0x2618] sm:$0xff]
        %v2244 = vld [vmem:[%s336 + $0x2620] sm:$0xff]
        %v2245 = vld [vmem:[%s336 + $0x2628] sm:$0xff]
        %v2246 = vld [vmem:[%s336 + $0x2630] sm:$0xff]
        %v2247 = vld [vmem:[%s336 + $0x2638] sm:$0xff]
        %v2248 = vld [vmem:[%s336 + $0x2640] sm:$0xff]
        %v2249 = vld [vmem:[%s336 + $0x2648] sm:$0xff]
        %v2250 = vld [vmem:[%s336 + $0x2650] sm:$0xff]
        %v2251 = vld [vmem:[%s336 + $0x2658] sm:$0xff]
        %v2252 = vld [vmem:[%s336 + $0x2660] sm:$0xff]
        %v2253 = vld [vmem:[%s336 + $0x2668] sm:$0xff]
        %v2254 = vld [vmem:[%s336 + $0x2670] sm:$0xff]
        %v2255 = vld [vmem:[%s336 + $0x2678] sm:$0xff]
        %v2256 = vld [vmem:[%s336 + $0x2680] sm:$0xff]
        %v2257 = vld [vmem:[%s336 + $0x2688] sm:$0xff]
        %v2258 = vld [vmem:[%s336 + $0x2690] sm:$0xff]
        %v2259 = vld [vmem:[%s336 + $0x2698] sm:$0xff]
        %v2260 = vld [vmem:[%s336 + $0x26a0] sm:$0xff]
        %v2261 = vld [vmem:[%s336 + $0x26a8] sm:$0xff]
        %v2262 = vld [vmem:[%s336 + $0x26b0] sm:$0xff]
        %v2263 = vld [vmem:[%s336 + $0x26b8] sm:$0xff]
        %v2264 = vld [vmem:[%s336 + $0x26c0] sm:$0xff]
        %v2265 = vld [vmem:[%s336 + $0x26c8] sm:$0xff]
        %v2266 = vld [vmem:[%s336 + $0x26d0] sm:$0xff]
        %v2267 = vld [vmem:[%s336 + $0x26d8] sm:$0xff]
        %v2268 = vld [vmem:[%s336 + $0x26e0] sm:$0xff]
        %v2269 = vld [vmem:[%s336 + $0x26e8] sm:$0xff]
        %v2270 = vld [vmem:[%s336 + $0x26f0] sm:$0xff]
        %v2271 = vld [vmem:[%s336 + $0x26f8] sm:$0xff]
        %v2272 = vld [vmem:[%s336 + $0x2700] sm:$0xff]
        %v2273 = vld [vmem:[%s336 + $0x2708] sm:$0xff]
        %v2274 = vld [vmem:[%s336 + $0x2710] sm:$0xff]
        %v2275 = vld [vmem:[%s336 + $0x2718] sm:$0xff]
        %v2276 = vld [vmem:[%s336 + $0x2720] sm:$0xff]
        %v2277 = vld [vmem:[%s336 + $0x2728] sm:$0xff]
        %v2278 = vld [vmem:[%s336 + $0x2730] sm:$0xff]
        %v2279 = vld [vmem:[%s336 + $0x2738] sm:$0xff]
        %v2280 = vld [vmem:[%s336 + $0x2740] sm:$0xff]
        %v2281 = vld [vmem:[%s336 + $0x2748] sm:$0xff]
        %v2282 = vld [vmem:[%s336 + $0x2750] sm:$0xff]
        %v2283 = vld [vmem:[%s336 + $0x2758] sm:$0xff]
        %v2284 = vld [vmem:[%s336 + $0x2760] sm:$0xff]
        %v2285 = vld [vmem:[%s336 + $0x2768] sm:$0xff]
        %v2286 = vld [vmem:[%s336 + $0x2770] sm:$0xff]
        %v2287 = vld [vmem:[%s336 + $0x2778] sm:$0xff]
        %v2288 = vld [vmem:[%s336 + $0x2780] sm:$0xff]
        %v2289 = vld [vmem:[%s336 + $0x2788] sm:$0xff]
        %v2290 = vld [vmem:[%s336 + $0x2790] sm:$0xff]
        %v2291 = vld [vmem:[%s336 + $0x2798] sm:$0xff]
        %v2292 = vld [vmem:[%s336 + $0x27a0] sm:$0xff]
        %v2293 = vld [vmem:[%s336 + $0x27a8] sm:$0xff]
        %v2294 = vld [vmem:[%s336 + $0x27b0] sm:$0xff]
        %v2295 = vld [vmem:[%s336 + $0x27b8] sm:$0xff]
        %v2296 = vld [vmem:[%s336 + $0x27c0] sm:$0xff]
        %v2297 = vld [vmem:[%s336 + $0x27c8] sm:$0xff]
        %v2298 = vld [vmem:[%s336 + $0x27d0] sm:$0xff]
        %v2299 = vld [vmem:[%s336 + $0x27d8] sm:$0xff]
        %v2300 = vld [vmem:[%s336 + $0x27e0] sm:$0xff]
        %v2301 = vld [vmem:[%s336 + $0x27e8] sm:$0xff]
        %v2302 = vld [vmem:[%s336 + $0x27f0] sm:$0xff]
        %v2303 = vld [vmem:[%s336 + $0x27f8] sm:$0xff]
        %s2304 = smul.u32 %s22, 512
        %s2305 = sshra.s32 %s2304, 7
        %s2306 = sand.u32 %s2304, 127
        %s2307 = scalar_lea.vmem [#allocation7], %s2305
        %v2308 = vld [vmem:[%s2307] sm:$0xf]
        %v2310 = vlaneseq
        %v2311 = vshrl.u32 %v2310, 7
        %v2312 = vsub.s32 0, %v2311
        %v2313 = vrot.slane %v2308, %v2312
        %v2314 = vlaneseq
        %v2315 = vshrl.u32 %v2314, 7
        %v2316 = vsub.s32 1, %v2315
        %v2317 = vrot.slane %v2308, %v2316
        %v2318 = vlaneseq
        %v2319 = vshrl.u32 %v2318, 7
        %v2320 = vsub.s32 2, %v2319
        %v2321 = vrot.slane %v2308, %v2320
        %v2322 = vlaneseq
        %v2323 = vshrl.u32 %v2322, 7
        %v2324 = vsub.s32 3, %v2323
        %v2325 = vrot.slane %v2308, %v2324
        %v3610 = vunpack.c.l.b16 %v1024
        %v3611 = vunpack.c.h.b16 %v1024
        %v3612 = vunpack.c.l.b16 %v1025
        %v3613 = vunpack.c.h.b16 %v1025
        %v3614 = vunpack.c.l.b16 %v1026
        %v3615 = vunpack.c.h.b16 %v1026
        %v3616 = vunpack.c.l.b16 %v1027
        %v3617 = vunpack.c.h.b16 %v1027
        %v3618 = vunpack.c.l.b16 %v1028
        %v3619 = vunpack.c.h.b16 %v1028
        %v3620 = vunpack.c.l.b16 %v1029
        %v3621 = vunpack.c.h.b16 %v1029
        %v3622 = vunpack.c.l.b16 %v1030
        %v3623 = vunpack.c.h.b16 %v1030
        %v3624 = vunpack.c.l.b16 %v1031
        %v3625 = vunpack.c.h.b16 %v1031
        %v3626 = vunpack.c.l.b16 %v1032
        %v3627 = vunpack.c.h.b16 %v1032
        %v3628 = vunpack.c.l.b16 %v1033
        %v3629 = vunpack.c.h.b16 %v1033
        %v3630 = vunpack.c.l.b16 %v1034
        %v3631 = vunpack.c.h.b16 %v1034
        %v3632 = vunpack.c.l.b16 %v1035
        %v3633 = vunpack.c.h.b16 %v1035
        %v3634 = vunpack.c.l.b16 %v1036
        %v3635 = vunpack.c.h.b16 %v1036
        %v3636 = vunpack.c.l.b16 %v1037
        %v3637 = vunpack.c.h.b16 %v1037
        %v3638 = vunpack.c.l.b16 %v1038
        %v3639 = vunpack.c.h.b16 %v1038
        %v3640 = vunpack.c.l.b16 %v1039
        %v3641 = vunpack.c.h.b16 %v1039
        %v3642 = vunpack.c.l.b16 %v1040
        %v3643 = vunpack.c.h.b16 %v1040
        %v3644 = vunpack.c.l.b16 %v1041
        %v3645 = vunpack.c.h.b16 %v1041
        %v3646 = vunpack.c.l.b16 %v1042
        %v3647 = vunpack.c.h.b16 %v1042
        %v3648 = vunpack.c.l.b16 %v1043
        %v3649 = vunpack.c.h.b16 %v1043
        %v3650 = vunpack.c.l.b16 %v1044
        %v3651 = vunpack.c.h.b16 %v1044
        %v3652 = vunpack.c.l.b16 %v1045
        %v3653 = vunpack.c.h.b16 %v1045
        %v3654 = vunpack.c.l.b16 %v1046
        %v3655 = vunpack.c.h.b16 %v1046
        %v3656 = vunpack.c.l.b16 %v1047
        %v3657 = vunpack.c.h.b16 %v1047
        %v3658 = vunpack.c.l.b16 %v1048
        %v3659 = vunpack.c.h.b16 %v1048
        %v3660 = vunpack.c.l.b16 %v1049
        %v3661 = vunpack.c.h.b16 %v1049
        %v3662 = vunpack.c.l.b16 %v1050
        %v3663 = vunpack.c.h.b16 %v1050
        %v3664 = vunpack.c.l.b16 %v1051
        %v3665 = vunpack.c.h.b16 %v1051
        %v3666 = vunpack.c.l.b16 %v1052
        %v3667 = vunpack.c.h.b16 %v1052
        %v3668 = vunpack.c.l.b16 %v1053
        %v3669 = vunpack.c.h.b16 %v1053
        %v3670 = vunpack.c.l.b16 %v1054
        %v3671 = vunpack.c.h.b16 %v1054
        %v3672 = vunpack.c.l.b16 %v1055
        %v3673 = vunpack.c.h.b16 %v1055
        %v3674 = vunpack.c.l.b16 %v1056
        %v3675 = vunpack.c.h.b16 %v1056
        %v3676 = vunpack.c.l.b16 %v1057
        %v3677 = vunpack.c.h.b16 %v1057
        %v3678 = vunpack.c.l.b16 %v1058
        %v3679 = vunpack.c.h.b16 %v1058
        %v3680 = vunpack.c.l.b16 %v1059
        %v3681 = vunpack.c.h.b16 %v1059
        %v3682 = vunpack.c.l.b16 %v1060
        %v3683 = vunpack.c.h.b16 %v1060
        %v3684 = vunpack.c.l.b16 %v1061
        %v3685 = vunpack.c.h.b16 %v1061
        %v3686 = vunpack.c.l.b16 %v1062
        %v3687 = vunpack.c.h.b16 %v1062
        %v3688 = vunpack.c.l.b16 %v1063
        %v3689 = vunpack.c.h.b16 %v1063
        %v3690 = vunpack.c.l.b16 %v1064
        %v3691 = vunpack.c.h.b16 %v1064
        %v3692 = vunpack.c.l.b16 %v1065
        %v3693 = vunpack.c.h.b16 %v1065
        %v3694 = vunpack.c.l.b16 %v1066
        %v3695 = vunpack.c.h.b16 %v1066
        %v3696 = vunpack.c.l.b16 %v1067
        %v3697 = vunpack.c.h.b16 %v1067
        %v3698 = vunpack.c.l.b16 %v1068
        %v3699 = vunpack.c.h.b16 %v1068
        %v3700 = vunpack.c.l.b16 %v1069
        %v3701 = vunpack.c.h.b16 %v1069
        %v3702 = vunpack.c.l.b16 %v1070
        %v3703 = vunpack.c.h.b16 %v1070
        %v3704 = vunpack.c.l.b16 %v1071
        %v3705 = vunpack.c.h.b16 %v1071
        %v3706 = vunpack.c.l.b16 %v1072
        %v3707 = vunpack.c.h.b16 %v1072
        %v3708 = vunpack.c.l.b16 %v1073
        %v3709 = vunpack.c.h.b16 %v1073
        %v3710 = vunpack.c.l.b16 %v1074
        %v3711 = vunpack.c.h.b16 %v1074
        %v3712 = vunpack.c.l.b16 %v1075
        %v3713 = vunpack.c.h.b16 %v1075
        %v3714 = vunpack.c.l.b16 %v1076
        %v3715 = vunpack.c.h.b16 %v1076
        %v3716 = vunpack.c.l.b16 %v1077
        %v3717 = vunpack.c.h.b16 %v1077
        %v3718 = vunpack.c.l.b16 %v1078
        %v3719 = vunpack.c.h.b16 %v1078
        %v3720 = vunpack.c.l.b16 %v1079
        %v3721 = vunpack.c.h.b16 %v1079
        %v3722 = vunpack.c.l.b16 %v1080
        %v3723 = vunpack.c.h.b16 %v1080
        %v3724 = vunpack.c.l.b16 %v1081
        %v3725 = vunpack.c.h.b16 %v1081
        %v3726 = vunpack.c.l.b16 %v1082
        %v3727 = vunpack.c.h.b16 %v1082
        %v3728 = vunpack.c.l.b16 %v1083
        %v3729 = vunpack.c.h.b16 %v1083
        %v3730 = vunpack.c.l.b16 %v1084
        %v3731 = vunpack.c.h.b16 %v1084
        %v3732 = vunpack.c.l.b16 %v1085
        %v3733 = vunpack.c.h.b16 %v1085
        %v3734 = vunpack.c.l.b16 %v1086
        %v3735 = vunpack.c.h.b16 %v1086
        %v3736 = vunpack.c.l.b16 %v1087
        %v3737 = vunpack.c.h.b16 %v1087
        %v3738 = vunpack.c.l.b16 %v1088
        %v3739 = vunpack.c.h.b16 %v1088
        %v3740 = vunpack.c.l.b16 %v1089
        %v3741 = vunpack.c.h.b16 %v1089
        %v3742 = vunpack.c.l.b16 %v1090
        %v3743 = vunpack.c.h.b16 %v1090
        %v3744 = vunpack.c.l.b16 %v1091
        %v3745 = vunpack.c.h.b16 %v1091
        %v3746 = vunpack.c.l.b16 %v1092
        %v3747 = vunpack.c.h.b16 %v1092
        %v3748 = vunpack.c.l.b16 %v1093
        %v3749 = vunpack.c.h.b16 %v1093
        %v3750 = vunpack.c.l.b16 %v1094
        %v3751 = vunpack.c.h.b16 %v1094
        %v3752 = vunpack.c.l.b16 %v1095
        %v3753 = vunpack.c.h.b16 %v1095
        %v3754 = vunpack.c.l.b16 %v1096
        %v3755 = vunpack.c.h.b16 %v1096
        %v3756 = vunpack.c.l.b16 %v1097
        %v3757 = vunpack.c.h.b16 %v1097
        %v3758 = vunpack.c.l.b16 %v1098
        %v3759 = vunpack.c.h.b16 %v1098
        %v3760 = vunpack.c.l.b16 %v1099
        %v3761 = vunpack.c.h.b16 %v1099
        %v3762 = vunpack.c.l.b16 %v1100
        %v3763 = vunpack.c.h.b16 %v1100
        %v3764 = vunpack.c.l.b16 %v1101
        %v3765 = vunpack.c.h.b16 %v1101
        %v3766 = vunpack.c.l.b16 %v1102
        %v3767 = vunpack.c.h.b16 %v1102
        %v3768 = vunpack.c.l.b16 %v1103
        %v3769 = vunpack.c.h.b16 %v1103
        %v3770 = vunpack.c.l.b16 %v1104
        %v3771 = vunpack.c.h.b16 %v1104
        %v3772 = vunpack.c.l.b16 %v1105
        %v3773 = vunpack.c.h.b16 %v1105
        %v3774 = vunpack.c.l.b16 %v1106
        %v3775 = vunpack.c.h.b16 %v1106
        %v3776 = vunpack.c.l.b16 %v1107
        %v3777 = vunpack.c.h.b16 %v1107
        %v3778 = vunpack.c.l.b16 %v1108
        %v3779 = vunpack.c.h.b16 %v1108
        %v3780 = vunpack.c.l.b16 %v1109
        %v3781 = vunpack.c.h.b16 %v1109
        %v3782 = vunpack.c.l.b16 %v1110
        %v3783 = vunpack.c.h.b16 %v1110
        %v3784 = vunpack.c.l.b16 %v1111
        %v3785 = vunpack.c.h.b16 %v1111
        %v3786 = vunpack.c.l.b16 %v1112
        %v3787 = vunpack.c.h.b16 %v1112
        %v3788 = vunpack.c.l.b16 %v1113
        %v3789 = vunpack.c.h.b16 %v1113
        %v3790 = vunpack.c.l.b16 %v1114
        %v3791 = vunpack.c.h.b16 %v1114
        %v3792 = vunpack.c.l.b16 %v1115
        %v3793 = vunpack.c.h.b16 %v1115
        %v3794 = vunpack.c.l.b16 %v1116
        %v3795 = vunpack.c.h.b16 %v1116
        %v3796 = vunpack.c.l.b16 %v1117
        %v3797 = vunpack.c.h.b16 %v1117
        %v3798 = vunpack.c.l.b16 %v1118
        %v3799 = vunpack.c.h.b16 %v1118
        %v3800 = vunpack.c.l.b16 %v1119
        %v3801 = vunpack.c.h.b16 %v1119
        %v3802 = vunpack.c.l.b16 %v1120
        %v3803 = vunpack.c.h.b16 %v1120
        %v3804 = vunpack.c.l.b16 %v1121
        %v3805 = vunpack.c.h.b16 %v1121
        %v3806 = vunpack.c.l.b16 %v1122
        %v3807 = vunpack.c.h.b16 %v1122
        %v3808 = vunpack.c.l.b16 %v1123
        %v3809 = vunpack.c.h.b16 %v1123
        %v3810 = vunpack.c.l.b16 %v1124
        %v3811 = vunpack.c.h.b16 %v1124
        %v3812 = vunpack.c.l.b16 %v1125
        %v3813 = vunpack.c.h.b16 %v1125
        %v3814 = vunpack.c.l.b16 %v1126
        %v3815 = vunpack.c.h.b16 %v1126
        %v3816 = vunpack.c.l.b16 %v1127
        %v3817 = vunpack.c.h.b16 %v1127
        %v3818 = vunpack.c.l.b16 %v1128
        %v3819 = vunpack.c.h.b16 %v1128
        %v3820 = vunpack.c.l.b16 %v1129
        %v3821 = vunpack.c.h.b16 %v1129
        %v3822 = vunpack.c.l.b16 %v1130
        %v3823 = vunpack.c.h.b16 %v1130
        %v3824 = vunpack.c.l.b16 %v1131
        %v3825 = vunpack.c.h.b16 %v1131
        %v3826 = vunpack.c.l.b16 %v1132
        %v3827 = vunpack.c.h.b16 %v1132
        %v3828 = vunpack.c.l.b16 %v1133
        %v3829 = vunpack.c.h.b16 %v1133
        %v3830 = vunpack.c.l.b16 %v1134
        %v3831 = vunpack.c.h.b16 %v1134
        %v3832 = vunpack.c.l.b16 %v1135
        %v3833 = vunpack.c.h.b16 %v1135
        %v3834 = vunpack.c.l.b16 %v1136
        %v3835 = vunpack.c.h.b16 %v1136
        %v3836 = vunpack.c.l.b16 %v1137
        %v3837 = vunpack.c.h.b16 %v1137
        %v3838 = vunpack.c.l.b16 %v1138
        %v3839 = vunpack.c.h.b16 %v1138
        %v3840 = vunpack.c.l.b16 %v1139
        %v3841 = vunpack.c.h.b16 %v1139
        %v3842 = vunpack.c.l.b16 %v1140
        %v3843 = vunpack.c.h.b16 %v1140
        %v3844 = vunpack.c.l.b16 %v1141
        %v3845 = vunpack.c.h.b16 %v1141
        %v3846 = vunpack.c.l.b16 %v1142
        %v3847 = vunpack.c.h.b16 %v1142
        %v3848 = vunpack.c.l.b16 %v1143
        %v3849 = vunpack.c.h.b16 %v1143
        %v3850 = vunpack.c.l.b16 %v1144
        %v3851 = vunpack.c.h.b16 %v1144
        %v3852 = vunpack.c.l.b16 %v1145
        %v3853 = vunpack.c.h.b16 %v1145
        %v3854 = vunpack.c.l.b16 %v1146
        %v3855 = vunpack.c.h.b16 %v1146
        %v3856 = vunpack.c.l.b16 %v1147
        %v3857 = vunpack.c.h.b16 %v1147
        %v3858 = vunpack.c.l.b16 %v1148
        %v3859 = vunpack.c.h.b16 %v1148
        %v3860 = vunpack.c.l.b16 %v1149
        %v3861 = vunpack.c.h.b16 %v1149
        %v3862 = vunpack.c.l.b16 %v1150
        %v3863 = vunpack.c.h.b16 %v1150
        %v3864 = vunpack.c.l.b16 %v1151
        %v3865 = vunpack.c.h.b16 %v1151
        %v3866 = vunpack.c.l.b16 %v1152
        %v3867 = vunpack.c.h.b16 %v1152
        %v3868 = vunpack.c.l.b16 %v1153
        %v3869 = vunpack.c.h.b16 %v1153
        %v3870 = vunpack.c.l.b16 %v1154
        %v3871 = vunpack.c.h.b16 %v1154
        %v3872 = vunpack.c.l.b16 %v1155
        %v3873 = vunpack.c.h.b16 %v1155
        %v3874 = vunpack.c.l.b16 %v1156
        %v3875 = vunpack.c.h.b16 %v1156
        %v3876 = vunpack.c.l.b16 %v1157
        %v3877 = vunpack.c.h.b16 %v1157
        %v3878 = vunpack.c.l.b16 %v1158
        %v3879 = vunpack.c.h.b16 %v1158
        %v3880 = vunpack.c.l.b16 %v1159
        %v3881 = vunpack.c.h.b16 %v1159
        %v3882 = vunpack.c.l.b16 %v1160
        %v3883 = vunpack.c.h.b16 %v1160
        %v3884 = vunpack.c.l.b16 %v1161
        %v3885 = vunpack.c.h.b16 %v1161
        %v3886 = vunpack.c.l.b16 %v1162
        %v3887 = vunpack.c.h.b16 %v1162
        %v3888 = vunpack.c.l.b16 %v1163
        %v3889 = vunpack.c.h.b16 %v1163
        %v3890 = vunpack.c.l.b16 %v1164
        %v3891 = vunpack.c.h.b16 %v1164
        %v3892 = vunpack.c.l.b16 %v1165
        %v3893 = vunpack.c.h.b16 %v1165
        %v3894 = vunpack.c.l.b16 %v1166
        %v3895 = vunpack.c.h.b16 %v1166
        %v3896 = vunpack.c.l.b16 %v1167
        %v3897 = vunpack.c.h.b16 %v1167
        %v3898 = vunpack.c.l.b16 %v1168
        %v3899 = vunpack.c.h.b16 %v1168
        %v3900 = vunpack.c.l.b16 %v1169
        %v3901 = vunpack.c.h.b16 %v1169
        %v3902 = vunpack.c.l.b16 %v1170
        %v3903 = vunpack.c.h.b16 %v1170
        %v3904 = vunpack.c.l.b16 %v1171
        %v3905 = vunpack.c.h.b16 %v1171
        %v3906 = vunpack.c.l.b16 %v1172
        %v3907 = vunpack.c.h.b16 %v1172
        %v3908 = vunpack.c.l.b16 %v1173
        %v3909 = vunpack.c.h.b16 %v1173
        %v3910 = vunpack.c.l.b16 %v1174
        %v3911 = vunpack.c.h.b16 %v1174
        %v3912 = vunpack.c.l.b16 %v1175
        %v3913 = vunpack.c.h.b16 %v1175
        %v3914 = vunpack.c.l.b16 %v1176
        %v3915 = vunpack.c.h.b16 %v1176
        %v3916 = vunpack.c.l.b16 %v1177
        %v3917 = vunpack.c.h.b16 %v1177
        %v3918 = vunpack.c.l.b16 %v1178
        %v3919 = vunpack.c.h.b16 %v1178
        %v3920 = vunpack.c.l.b16 %v1179
        %v3921 = vunpack.c.h.b16 %v1179
        %v3922 = vunpack.c.l.b16 %v1180
        %v3923 = vunpack.c.h.b16 %v1180
        %v3924 = vunpack.c.l.b16 %v1181
        %v3925 = vunpack.c.h.b16 %v1181
        %v3926 = vunpack.c.l.b16 %v1182
        %v3927 = vunpack.c.h.b16 %v1182
        %v3928 = vunpack.c.l.b16 %v1183
        %v3929 = vunpack.c.h.b16 %v1183
        %v3930 = vunpack.c.l.b16 %v1184
        %v3931 = vunpack.c.h.b16 %v1184
        %v3932 = vunpack.c.l.b16 %v1185
        %v3933 = vunpack.c.h.b16 %v1185
        %v3934 = vunpack.c.l.b16 %v1186
        %v3935 = vunpack.c.h.b16 %v1186
        %v3936 = vunpack.c.l.b16 %v1187
        %v3937 = vunpack.c.h.b16 %v1187
        %v3938 = vunpack.c.l.b16 %v1188
        %v3939 = vunpack.c.h.b16 %v1188
        %v3940 = vunpack.c.l.b16 %v1189
        %v3941 = vunpack.c.h.b16 %v1189
        %v3942 = vunpack.c.l.b16 %v1190
        %v3943 = vunpack.c.h.b16 %v1190
        %v3944 = vunpack.c.l.b16 %v1191
        %v3945 = vunpack.c.h.b16 %v1191
        %v3946 = vunpack.c.l.b16 %v1192
        %v3947 = vunpack.c.h.b16 %v1192
        %v3948 = vunpack.c.l.b16 %v1193
        %v3949 = vunpack.c.h.b16 %v1193
        %v3950 = vunpack.c.l.b16 %v1194
        %v3951 = vunpack.c.h.b16 %v1194
        %v3952 = vunpack.c.l.b16 %v1195
        %v3953 = vunpack.c.h.b16 %v1195
        %v3954 = vunpack.c.l.b16 %v1196
        %v3955 = vunpack.c.h.b16 %v1196
        %v3956 = vunpack.c.l.b16 %v1197
        %v3957 = vunpack.c.h.b16 %v1197
        %v3958 = vunpack.c.l.b16 %v1198
        %v3959 = vunpack.c.h.b16 %v1198
        %v3960 = vunpack.c.l.b16 %v1199
        %v3961 = vunpack.c.h.b16 %v1199
        %v3962 = vunpack.c.l.b16 %v1200
        %v3963 = vunpack.c.h.b16 %v1200
        %v3964 = vunpack.c.l.b16 %v1201
        %v3965 = vunpack.c.h.b16 %v1201
        %v3966 = vunpack.c.l.b16 %v1202
        %v3967 = vunpack.c.h.b16 %v1202
        %v3968 = vunpack.c.l.b16 %v1203
        %v3969 = vunpack.c.h.b16 %v1203
        %v3970 = vunpack.c.l.b16 %v1204
        %v3971 = vunpack.c.h.b16 %v1204
        %v3972 = vunpack.c.l.b16 %v1205
        %v3973 = vunpack.c.h.b16 %v1205
        %v3974 = vunpack.c.l.b16 %v1206
        %v3975 = vunpack.c.h.b16 %v1206
        %v3976 = vunpack.c.l.b16 %v1207
        %v3977 = vunpack.c.h.b16 %v1207
        %v3978 = vunpack.c.l.b16 %v1208
        %v3979 = vunpack.c.h.b16 %v1208
        %v3980 = vunpack.c.l.b16 %v1209
        %v3981 = vunpack.c.h.b16 %v1209
        %v3982 = vunpack.c.l.b16 %v1210
        %v3983 = vunpack.c.h.b16 %v1210
        %v3984 = vunpack.c.l.b16 %v1211
        %v3985 = vunpack.c.h.b16 %v1211
        %v3986 = vunpack.c.l.b16 %v1212
        %v3987 = vunpack.c.h.b16 %v1212
        %v3988 = vunpack.c.l.b16 %v1213
        %v3989 = vunpack.c.h.b16 %v1213
        %v3990 = vunpack.c.l.b16 %v1214
        %v3991 = vunpack.c.h.b16 %v1214
        %v3992 = vunpack.c.l.b16 %v1215
        %v3993 = vunpack.c.h.b16 %v1215
        %v3994 = vunpack.c.l.b16 %v1216
        %v3995 = vunpack.c.h.b16 %v1216
        %v3996 = vunpack.c.l.b16 %v1217
        %v3997 = vunpack.c.h.b16 %v1217
        %v3998 = vunpack.c.l.b16 %v1218
        %v3999 = vunpack.c.h.b16 %v1218
        %v4000 = vunpack.c.l.b16 %v1219
        %v4001 = vunpack.c.h.b16 %v1219
        %v4002 = vunpack.c.l.b16 %v1220
        %v4003 = vunpack.c.h.b16 %v1220
        %v4004 = vunpack.c.l.b16 %v1221
        %v4005 = vunpack.c.h.b16 %v1221
        %v4006 = vunpack.c.l.b16 %v1222
        %v4007 = vunpack.c.h.b16 %v1222
        %v4008 = vunpack.c.l.b16 %v1223
        %v4009 = vunpack.c.h.b16 %v1223
        %v4010 = vunpack.c.l.b16 %v1224
        %v4011 = vunpack.c.h.b16 %v1224
        %v4012 = vunpack.c.l.b16 %v1225
        %v4013 = vunpack.c.h.b16 %v1225
        %v4014 = vunpack.c.l.b16 %v1226
        %v4015 = vunpack.c.h.b16 %v1226
        %v4016 = vunpack.c.l.b16 %v1227
        %v4017 = vunpack.c.h.b16 %v1227
        %v4018 = vunpack.c.l.b16 %v1228
        %v4019 = vunpack.c.h.b16 %v1228
        %v4020 = vunpack.c.l.b16 %v1229
        %v4021 = vunpack.c.h.b16 %v1229
        %v4022 = vunpack.c.l.b16 %v1230
        %v4023 = vunpack.c.h.b16 %v1230
        %v4024 = vunpack.c.l.b16 %v1231
        %v4025 = vunpack.c.h.b16 %v1231
        %v4026 = vunpack.c.l.b16 %v1232
        %v4027 = vunpack.c.h.b16 %v1232
        %v4028 = vunpack.c.l.b16 %v1233
        %v4029 = vunpack.c.h.b16 %v1233
        %v4030 = vunpack.c.l.b16 %v1234
        %v4031 = vunpack.c.h.b16 %v1234
        %v4032 = vunpack.c.l.b16 %v1235
        %v4033 = vunpack.c.h.b16 %v1235
        %v4034 = vunpack.c.l.b16 %v1236
        %v4035 = vunpack.c.h.b16 %v1236
        %v4036 = vunpack.c.l.b16 %v1237
        %v4037 = vunpack.c.h.b16 %v1237
        %v4038 = vunpack.c.l.b16 %v1238
        %v4039 = vunpack.c.h.b16 %v1238
        %v4040 = vunpack.c.l.b16 %v1239
        %v4041 = vunpack.c.h.b16 %v1239
        %v4042 = vunpack.c.l.b16 %v1240
        %v4043 = vunpack.c.h.b16 %v1240
        %v4044 = vunpack.c.l.b16 %v1241
        %v4045 = vunpack.c.h.b16 %v1241
        %v4046 = vunpack.c.l.b16 %v1242
        %v4047 = vunpack.c.h.b16 %v1242
        %v4048 = vunpack.c.l.b16 %v1243
        %v4049 = vunpack.c.h.b16 %v1243
        %v4050 = vunpack.c.l.b16 %v1244
        %v4051 = vunpack.c.h.b16 %v1244
        %v4052 = vunpack.c.l.b16 %v1245
        %v4053 = vunpack.c.h.b16 %v1245
        %v4054 = vunpack.c.l.b16 %v1246
        %v4055 = vunpack.c.h.b16 %v1246
        %v4056 = vunpack.c.l.b16 %v1247
        %v4057 = vunpack.c.h.b16 %v1247
        %v4058 = vunpack.c.l.b16 %v1248
        %v4059 = vunpack.c.h.b16 %v1248
        %v4060 = vunpack.c.l.b16 %v1249
        %v4061 = vunpack.c.h.b16 %v1249
        %v4062 = vunpack.c.l.b16 %v1250
        %v4063 = vunpack.c.h.b16 %v1250
        %v4064 = vunpack.c.l.b16 %v1251
        %v4065 = vunpack.c.h.b16 %v1251
        %v4066 = vunpack.c.l.b16 %v1252
        %v4067 = vunpack.c.h.b16 %v1252
        %v4068 = vunpack.c.l.b16 %v1253
        %v4069 = vunpack.c.h.b16 %v1253
        %v4070 = vunpack.c.l.b16 %v1254
        %v4071 = vunpack.c.h.b16 %v1254
        %v4072 = vunpack.c.l.b16 %v1255
        %v4073 = vunpack.c.h.b16 %v1255
        %v4074 = vunpack.c.l.b16 %v1256
        %v4075 = vunpack.c.h.b16 %v1256
        %v4076 = vunpack.c.l.b16 %v1257
        %v4077 = vunpack.c.h.b16 %v1257
        %v4078 = vunpack.c.l.b16 %v1258
        %v4079 = vunpack.c.h.b16 %v1258
        %v4080 = vunpack.c.l.b16 %v1259
        %v4081 = vunpack.c.h.b16 %v1259
        %v4082 = vunpack.c.l.b16 %v1260
        %v4083 = vunpack.c.h.b16 %v1260
        %v4084 = vunpack.c.l.b16 %v1261
        %v4085 = vunpack.c.h.b16 %v1261
        %v4086 = vunpack.c.l.b16 %v1262
        %v4087 = vunpack.c.h.b16 %v1262
        %v4088 = vunpack.c.l.b16 %v1263
        %v4089 = vunpack.c.h.b16 %v1263
        %v4090 = vunpack.c.l.b16 %v1264
        %v4091 = vunpack.c.h.b16 %v1264
        %v4092 = vunpack.c.l.b16 %v1265
        %v4093 = vunpack.c.h.b16 %v1265
        %v4094 = vunpack.c.l.b16 %v1266
        %v4095 = vunpack.c.h.b16 %v1266
        %v4096 = vunpack.c.l.b16 %v1267
        %v4097 = vunpack.c.h.b16 %v1267
        %v4098 = vunpack.c.l.b16 %v1268
        %v4099 = vunpack.c.h.b16 %v1268
        %v4100 = vunpack.c.l.b16 %v1269
        %v4101 = vunpack.c.h.b16 %v1269
        %v4102 = vunpack.c.l.b16 %v1270
        %v4103 = vunpack.c.h.b16 %v1270
        %v4104 = vunpack.c.l.b16 %v1271
        %v4105 = vunpack.c.h.b16 %v1271
        %v4106 = vunpack.c.l.b16 %v1272
        %v4107 = vunpack.c.h.b16 %v1272
        %v4108 = vunpack.c.l.b16 %v1273
        %v4109 = vunpack.c.h.b16 %v1273
        %v4110 = vunpack.c.l.b16 %v1274
        %v4111 = vunpack.c.h.b16 %v1274
        %v4112 = vunpack.c.l.b16 %v1275
        %v4113 = vunpack.c.h.b16 %v1275
        %v4114 = vunpack.c.l.b16 %v1276
        %v4115 = vunpack.c.h.b16 %v1276
        %v4116 = vunpack.c.l.b16 %v1277
        %v4117 = vunpack.c.h.b16 %v1277
        %v4118 = vunpack.c.l.b16 %v1278
        %v4119 = vunpack.c.h.b16 %v1278
        %v4120 = vunpack.c.l.b16 %v1279
        %v4121 = vunpack.c.h.b16 %v1279
        %v4122 = vunpack.c.l.b16 %v1280
        %v4123 = vunpack.c.h.b16 %v1280
        %v4124 = vunpack.c.l.b16 %v1281
        %v4125 = vunpack.c.h.b16 %v1281
        %v4126 = vunpack.c.l.b16 %v1282
        %v4127 = vunpack.c.h.b16 %v1282
        %v4128 = vunpack.c.l.b16 %v1283
        %v4129 = vunpack.c.h.b16 %v1283
        %v4130 = vunpack.c.l.b16 %v1284
        %v4131 = vunpack.c.h.b16 %v1284
        %v4132 = vunpack.c.l.b16 %v1285
        %v4133 = vunpack.c.h.b16 %v1285
        %v4134 = vunpack.c.l.b16 %v1286
        %v4135 = vunpack.c.h.b16 %v1286
        %v4136 = vunpack.c.l.b16 %v1287
        %v4137 = vunpack.c.h.b16 %v1287
        %v4138 = vunpack.c.l.b16 %v1288
        %v4139 = vunpack.c.h.b16 %v1288
        %v4140 = vunpack.c.l.b16 %v1289
        %v4141 = vunpack.c.h.b16 %v1289
        %v4142 = vunpack.c.l.b16 %v1290
        %v4143 = vunpack.c.h.b16 %v1290
        %v4144 = vunpack.c.l.b16 %v1291
        %v4145 = vunpack.c.h.b16 %v1291
        %v4146 = vunpack.c.l.b16 %v1292
        %v4147 = vunpack.c.h.b16 %v1292
        %v4148 = vunpack.c.l.b16 %v1293
        %v4149 = vunpack.c.h.b16 %v1293
        %v4150 = vunpack.c.l.b16 %v1294
        %v4151 = vunpack.c.h.b16 %v1294
        %v4152 = vunpack.c.l.b16 %v1295
        %v4153 = vunpack.c.h.b16 %v1295
        %v4154 = vunpack.c.l.b16 %v1296
        %v4155 = vunpack.c.h.b16 %v1296
        %v4156 = vunpack.c.l.b16 %v1297
        %v4157 = vunpack.c.h.b16 %v1297
        %v4158 = vunpack.c.l.b16 %v1298
        %v4159 = vunpack.c.h.b16 %v1298
        %v4160 = vunpack.c.l.b16 %v1299
        %v4161 = vunpack.c.h.b16 %v1299
        %v4162 = vunpack.c.l.b16 %v1300
        %v4163 = vunpack.c.h.b16 %v1300
        %v4164 = vunpack.c.l.b16 %v1301
        %v4165 = vunpack.c.h.b16 %v1301
        %v4166 = vunpack.c.l.b16 %v1302
        %v4167 = vunpack.c.h.b16 %v1302
        %v4168 = vunpack.c.l.b16 %v1303
        %v4169 = vunpack.c.h.b16 %v1303
        %v4170 = vunpack.c.l.b16 %v1304
        %v4171 = vunpack.c.h.b16 %v1304
        %v4172 = vunpack.c.l.b16 %v1305
        %v4173 = vunpack.c.h.b16 %v1305
        %v4174 = vunpack.c.l.b16 %v1306
        %v4175 = vunpack.c.h.b16 %v1306
        %v4176 = vunpack.c.l.b16 %v1307
        %v4177 = vunpack.c.h.b16 %v1307
        %v4178 = vunpack.c.l.b16 %v1308
        %v4179 = vunpack.c.h.b16 %v1308
        %v4180 = vunpack.c.l.b16 %v1309
        %v4181 = vunpack.c.h.b16 %v1309
        %v4182 = vunpack.c.l.b16 %v1310
        %v4183 = vunpack.c.h.b16 %v1310
        %v4184 = vunpack.c.l.b16 %v1311
        %v4185 = vunpack.c.h.b16 %v1311
        %v4186 = vunpack.c.l.b16 %v1312
        %v4187 = vunpack.c.h.b16 %v1312
        %v4188 = vunpack.c.l.b16 %v1313
        %v4189 = vunpack.c.h.b16 %v1313
        %v4190 = vunpack.c.l.b16 %v1314
        %v4191 = vunpack.c.h.b16 %v1314
        %v4192 = vunpack.c.l.b16 %v1315
        %v4193 = vunpack.c.h.b16 %v1315
        %v4194 = vunpack.c.l.b16 %v1316
        %v4195 = vunpack.c.h.b16 %v1316
        %v4196 = vunpack.c.l.b16 %v1317
        %v4197 = vunpack.c.h.b16 %v1317
        %v4198 = vunpack.c.l.b16 %v1318
        %v4199 = vunpack.c.h.b16 %v1318
        %v4200 = vunpack.c.l.b16 %v1319
        %v4201 = vunpack.c.h.b16 %v1319
        %v4202 = vunpack.c.l.b16 %v1320
        %v4203 = vunpack.c.h.b16 %v1320
        %v4204 = vunpack.c.l.b16 %v1321
        %v4205 = vunpack.c.h.b16 %v1321
        %v4206 = vunpack.c.l.b16 %v1322
        %v4207 = vunpack.c.h.b16 %v1322
        %v4208 = vunpack.c.l.b16 %v1323
        %v4209 = vunpack.c.h.b16 %v1323
        %v4210 = vunpack.c.l.b16 %v1324
        %v4211 = vunpack.c.h.b16 %v1324
        %v4212 = vunpack.c.l.b16 %v1325
        %v4213 = vunpack.c.h.b16 %v1325
        %v4214 = vunpack.c.l.b16 %v1326
        %v4215 = vunpack.c.h.b16 %v1326
        %v4216 = vunpack.c.l.b16 %v1327
        %v4217 = vunpack.c.h.b16 %v1327
        %v4218 = vunpack.c.l.b16 %v1328
        %v4219 = vunpack.c.h.b16 %v1328
        %v4220 = vunpack.c.l.b16 %v1329
        %v4221 = vunpack.c.h.b16 %v1329
        %v4222 = vunpack.c.l.b16 %v1330
        %v4223 = vunpack.c.h.b16 %v1330
        %v4224 = vunpack.c.l.b16 %v1331
        %v4225 = vunpack.c.h.b16 %v1331
        %v4226 = vunpack.c.l.b16 %v1332
        %v4227 = vunpack.c.h.b16 %v1332
        %v4228 = vunpack.c.l.b16 %v1333
        %v4229 = vunpack.c.h.b16 %v1333
        %v4230 = vunpack.c.l.b16 %v1334
        %v4231 = vunpack.c.h.b16 %v1334
        %v4232 = vunpack.c.l.b16 %v1335
        %v4233 = vunpack.c.h.b16 %v1335
        %v4234 = vunpack.c.l.b16 %v1336
        %v4235 = vunpack.c.h.b16 %v1336
        %v4236 = vunpack.c.l.b16 %v1337
        %v4237 = vunpack.c.h.b16 %v1337
        %v4238 = vunpack.c.l.b16 %v1338
        %v4239 = vunpack.c.h.b16 %v1338
        %v4240 = vunpack.c.l.b16 %v1339
        %v4241 = vunpack.c.h.b16 %v1339
        %v4242 = vunpack.c.l.b16 %v1340
        %v4243 = vunpack.c.h.b16 %v1340
        %v4244 = vunpack.c.l.b16 %v1341
        %v4245 = vunpack.c.h.b16 %v1341
        %v4246 = vunpack.c.l.b16 %v1342
        %v4247 = vunpack.c.h.b16 %v1342
        %v4248 = vunpack.c.l.b16 %v1343
        %v4249 = vunpack.c.h.b16 %v1343
        %v4250 = vunpack.c.l.b16 %v1344
        %v4251 = vunpack.c.h.b16 %v1344
        %v4252 = vunpack.c.l.b16 %v1345
        %v4253 = vunpack.c.h.b16 %v1345
        %v4254 = vunpack.c.l.b16 %v1346
        %v4255 = vunpack.c.h.b16 %v1346
        %v4256 = vunpack.c.l.b16 %v1347
        %v4257 = vunpack.c.h.b16 %v1347
        %v4258 = vunpack.c.l.b16 %v1348
        %v4259 = vunpack.c.h.b16 %v1348
        %v4260 = vunpack.c.l.b16 %v1349
        %v4261 = vunpack.c.h.b16 %v1349
        %v4262 = vunpack.c.l.b16 %v1350
        %v4263 = vunpack.c.h.b16 %v1350
        %v4264 = vunpack.c.l.b16 %v1351
        %v4265 = vunpack.c.h.b16 %v1351
        %v4266 = vunpack.c.l.b16 %v1352
        %v4267 = vunpack.c.h.b16 %v1352
        %v4268 = vunpack.c.l.b16 %v1353
        %v4269 = vunpack.c.h.b16 %v1353
        %v4270 = vunpack.c.l.b16 %v1354
        %v4271 = vunpack.c.h.b16 %v1354
        %v4272 = vunpack.c.l.b16 %v1355
        %v4273 = vunpack.c.h.b16 %v1355
        %v4274 = vunpack.c.l.b16 %v1356
        %v4275 = vunpack.c.h.b16 %v1356
        %v4276 = vunpack.c.l.b16 %v1357
        %v4277 = vunpack.c.h.b16 %v1357
        %v4278 = vunpack.c.l.b16 %v1358
        %v4279 = vunpack.c.h.b16 %v1358
        %v4280 = vunpack.c.l.b16 %v1359
        %v4281 = vunpack.c.h.b16 %v1359
        %v4282 = vunpack.c.l.b16 %v1360
        %v4283 = vunpack.c.h.b16 %v1360
        %v4284 = vunpack.c.l.b16 %v1361
        %v4285 = vunpack.c.h.b16 %v1361
        %v4286 = vunpack.c.l.b16 %v1362
        %v4287 = vunpack.c.h.b16 %v1362
        %v4288 = vunpack.c.l.b16 %v1363
        %v4289 = vunpack.c.h.b16 %v1363
        %v4290 = vunpack.c.l.b16 %v1364
        %v4291 = vunpack.c.h.b16 %v1364
        %v4292 = vunpack.c.l.b16 %v1365
        %v4293 = vunpack.c.h.b16 %v1365
        %v4294 = vunpack.c.l.b16 %v1366
        %v4295 = vunpack.c.h.b16 %v1366
        %v4296 = vunpack.c.l.b16 %v1367
        %v4297 = vunpack.c.h.b16 %v1367
        %v4298 = vunpack.c.l.b16 %v1368
        %v4299 = vunpack.c.h.b16 %v1368
        %v4300 = vunpack.c.l.b16 %v1369
        %v4301 = vunpack.c.h.b16 %v1369
        %v4302 = vunpack.c.l.b16 %v1370
        %v4303 = vunpack.c.h.b16 %v1370
        %v4304 = vunpack.c.l.b16 %v1371
        %v4305 = vunpack.c.h.b16 %v1371
        %v4306 = vunpack.c.l.b16 %v1372
        %v4307 = vunpack.c.h.b16 %v1372
        %v4308 = vunpack.c.l.b16 %v1373
        %v4309 = vunpack.c.h.b16 %v1373
        %v4310 = vunpack.c.l.b16 %v1374
        %v4311 = vunpack.c.h.b16 %v1374
        %v4312 = vunpack.c.l.b16 %v1375
        %v4313 = vunpack.c.h.b16 %v1375
        %v4314 = vunpack.c.l.b16 %v1376
        %v4315 = vunpack.c.h.b16 %v1376
        %v4316 = vunpack.c.l.b16 %v1377
        %v4317 = vunpack.c.h.b16 %v1377
        %v4318 = vunpack.c.l.b16 %v1378
        %v4319 = vunpack.c.h.b16 %v1378
        %v4320 = vunpack.c.l.b16 %v1379
        %v4321 = vunpack.c.h.b16 %v1379
        %v4322 = vunpack.c.l.b16 %v1380
        %v4323 = vunpack.c.h.b16 %v1380
        %v4324 = vunpack.c.l.b16 %v1381
        %v4325 = vunpack.c.h.b16 %v1381
        %v4326 = vunpack.c.l.b16 %v1382
        %v4327 = vunpack.c.h.b16 %v1382
        %v4328 = vunpack.c.l.b16 %v1383
        %v4329 = vunpack.c.h.b16 %v1383
        %v4330 = vunpack.c.l.b16 %v1384
        %v4331 = vunpack.c.h.b16 %v1384
        %v4332 = vunpack.c.l.b16 %v1385
        %v4333 = vunpack.c.h.b16 %v1385
        %v4334 = vunpack.c.l.b16 %v1386
        %v4335 = vunpack.c.h.b16 %v1386
        %v4336 = vunpack.c.l.b16 %v1387
        %v4337 = vunpack.c.h.b16 %v1387
        %v4338 = vunpack.c.l.b16 %v1388
        %v4339 = vunpack.c.h.b16 %v1388
        %v4340 = vunpack.c.l.b16 %v1389
        %v4341 = vunpack.c.h.b16 %v1389
        %v4342 = vunpack.c.l.b16 %v1390
        %v4343 = vunpack.c.h.b16 %v1390
        %v4344 = vunpack.c.l.b16 %v1391
        %v4345 = vunpack.c.h.b16 %v1391
        %v4346 = vunpack.c.l.b16 %v1392
        %v4347 = vunpack.c.h.b16 %v1392
        %v4348 = vunpack.c.l.b16 %v1393
        %v4349 = vunpack.c.h.b16 %v1393
        %v4350 = vunpack.c.l.b16 %v1394
        %v4351 = vunpack.c.h.b16 %v1394
        %v4352 = vunpack.c.l.b16 %v1395
        %v4353 = vunpack.c.h.b16 %v1395
        %v4354 = vunpack.c.l.b16 %v1396
        %v4355 = vunpack.c.h.b16 %v1396
        %v4356 = vunpack.c.l.b16 %v1397
        %v4357 = vunpack.c.h.b16 %v1397
        %v4358 = vunpack.c.l.b16 %v1398
        %v4359 = vunpack.c.h.b16 %v1398
        %v4360 = vunpack.c.l.b16 %v1399
        %v4361 = vunpack.c.h.b16 %v1399
        %v4362 = vunpack.c.l.b16 %v1400
        %v4363 = vunpack.c.h.b16 %v1400
        %v4364 = vunpack.c.l.b16 %v1401
        %v4365 = vunpack.c.h.b16 %v1401
        %v4366 = vunpack.c.l.b16 %v1402
        %v4367 = vunpack.c.h.b16 %v1402
        %v4368 = vunpack.c.l.b16 %v1403
        %v4369 = vunpack.c.h.b16 %v1403
        %v4370 = vunpack.c.l.b16 %v1404
        %v4371 = vunpack.c.h.b16 %v1404
        %v4372 = vunpack.c.l.b16 %v1405
        %v4373 = vunpack.c.h.b16 %v1405
        %v4374 = vunpack.c.l.b16 %v1406
        %v4375 = vunpack.c.h.b16 %v1406
        %v4376 = vunpack.c.l.b16 %v1407
        %v4377 = vunpack.c.h.b16 %v1407
        %v4378 = vunpack.c.l.b16 %v1408
        %v4379 = vunpack.c.h.b16 %v1408
        %v4380 = vunpack.c.l.b16 %v1409
        %v4381 = vunpack.c.h.b16 %v1409
        %v4382 = vunpack.c.l.b16 %v1410
        %v4383 = vunpack.c.h.b16 %v1410
        %v4384 = vunpack.c.l.b16 %v1411
        %v4385 = vunpack.c.h.b16 %v1411
        %v4386 = vunpack.c.l.b16 %v1412
        %v4387 = vunpack.c.h.b16 %v1412
        %v4388 = vunpack.c.l.b16 %v1413
        %v4389 = vunpack.c.h.b16 %v1413
        %v4390 = vunpack.c.l.b16 %v1414
        %v4391 = vunpack.c.h.b16 %v1414
        %v4392 = vunpack.c.l.b16 %v1415
        %v4393 = vunpack.c.h.b16 %v1415
        %v4394 = vunpack.c.l.b16 %v1416
        %v4395 = vunpack.c.h.b16 %v1416
        %v4396 = vunpack.c.l.b16 %v1417
        %v4397 = vunpack.c.h.b16 %v1417
        %v4398 = vunpack.c.l.b16 %v1418
        %v4399 = vunpack.c.h.b16 %v1418
        %v4400 = vunpack.c.l.b16 %v1419
        %v4401 = vunpack.c.h.b16 %v1419
        %v4402 = vunpack.c.l.b16 %v1420
        %v4403 = vunpack.c.h.b16 %v1420
        %v4404 = vunpack.c.l.b16 %v1421
        %v4405 = vunpack.c.h.b16 %v1421
        %v4406 = vunpack.c.l.b16 %v1422
        %v4407 = vunpack.c.h.b16 %v1422
        %v4408 = vunpack.c.l.b16 %v1423
        %v4409 = vunpack.c.h.b16 %v1423
        %v4410 = vunpack.c.l.b16 %v1424
        %v4411 = vunpack.c.h.b16 %v1424
        %v4412 = vunpack.c.l.b16 %v1425
        %v4413 = vunpack.c.h.b16 %v1425
        %v4414 = vunpack.c.l.b16 %v1426
        %v4415 = vunpack.c.h.b16 %v1426
        %v4416 = vunpack.c.l.b16 %v1427
        %v4417 = vunpack.c.h.b16 %v1427
        %v4418 = vunpack.c.l.b16 %v1428
        %v4419 = vunpack.c.h.b16 %v1428
        %v4420 = vunpack.c.l.b16 %v1429
        %v4421 = vunpack.c.h.b16 %v1429
        %v4422 = vunpack.c.l.b16 %v1430
        %v4423 = vunpack.c.h.b16 %v1430
        %v4424 = vunpack.c.l.b16 %v1431
        %v4425 = vunpack.c.h.b16 %v1431
        %v4426 = vunpack.c.l.b16 %v1432
        %v4427 = vunpack.c.h.b16 %v1432
        %v4428 = vunpack.c.l.b16 %v1433
        %v4429 = vunpack.c.h.b16 %v1433
        %v4430 = vunpack.c.l.b16 %v1434
        %v4431 = vunpack.c.h.b16 %v1434
        %v4432 = vunpack.c.l.b16 %v1435
        %v4433 = vunpack.c.h.b16 %v1435
        %v4434 = vunpack.c.l.b16 %v1436
        %v4435 = vunpack.c.h.b16 %v1436
        %v4436 = vunpack.c.l.b16 %v1437
        %v4437 = vunpack.c.h.b16 %v1437
        %v4438 = vunpack.c.l.b16 %v1438
        %v4439 = vunpack.c.h.b16 %v1438
        %v4440 = vunpack.c.l.b16 %v1439
        %v4441 = vunpack.c.h.b16 %v1439
        %v4442 = vunpack.c.l.b16 %v1440
        %v4443 = vunpack.c.h.b16 %v1440
        %v4444 = vunpack.c.l.b16 %v1441
        %v4445 = vunpack.c.h.b16 %v1441
        %v4446 = vunpack.c.l.b16 %v1442
        %v4447 = vunpack.c.h.b16 %v1442
        %v4448 = vunpack.c.l.b16 %v1443
        %v4449 = vunpack.c.h.b16 %v1443
        %v4450 = vunpack.c.l.b16 %v1444
        %v4451 = vunpack.c.h.b16 %v1444
        %v4452 = vunpack.c.l.b16 %v1445
        %v4453 = vunpack.c.h.b16 %v1445
        %v4454 = vunpack.c.l.b16 %v1446
        %v4455 = vunpack.c.h.b16 %v1446
        %v4456 = vunpack.c.l.b16 %v1447
        %v4457 = vunpack.c.h.b16 %v1447
        %v4458 = vunpack.c.l.b16 %v1448
        %v4459 = vunpack.c.h.b16 %v1448
        %v4460 = vunpack.c.l.b16 %v1449
        %v4461 = vunpack.c.h.b16 %v1449
        %v4462 = vunpack.c.l.b16 %v1450
        %v4463 = vunpack.c.h.b16 %v1450
        %v4464 = vunpack.c.l.b16 %v1451
        %v4465 = vunpack.c.h.b16 %v1451
        %v4466 = vunpack.c.l.b16 %v1452
        %v4467 = vunpack.c.h.b16 %v1452
        %v4468 = vunpack.c.l.b16 %v1453
        %v4469 = vunpack.c.h.b16 %v1453
        %v4470 = vunpack.c.l.b16 %v1454
        %v4471 = vunpack.c.h.b16 %v1454
        %v4472 = vunpack.c.l.b16 %v1455
        %v4473 = vunpack.c.h.b16 %v1455
        %v4474 = vunpack.c.l.b16 %v1456
        %v4475 = vunpack.c.h.b16 %v1456
        %v4476 = vunpack.c.l.b16 %v1457
        %v4477 = vunpack.c.h.b16 %v1457
        %v4478 = vunpack.c.l.b16 %v1458
        %v4479 = vunpack.c.h.b16 %v1458
        %v4480 = vunpack.c.l.b16 %v1459
        %v4481 = vunpack.c.h.b16 %v1459
        %v4482 = vunpack.c.l.b16 %v1460
        %v4483 = vunpack.c.h.b16 %v1460
        %v4484 = vunpack.c.l.b16 %v1461
        %v4485 = vunpack.c.h.b16 %v1461
        %v4486 = vunpack.c.l.b16 %v1462
        %v4487 = vunpack.c.h.b16 %v1462
        %v4488 = vunpack.c.l.b16 %v1463
        %v4489 = vunpack.c.h.b16 %v1463
        %v4490 = vunpack.c.l.b16 %v1464
        %v4491 = vunpack.c.h.b16 %v1464
        %v4492 = vunpack.c.l.b16 %v1465
        %v4493 = vunpack.c.h.b16 %v1465
        %v4494 = vunpack.c.l.b16 %v1466
        %v4495 = vunpack.c.h.b16 %v1466
        %v4496 = vunpack.c.l.b16 %v1467
        %v4497 = vunpack.c.h.b16 %v1467
        %v4498 = vunpack.c.l.b16 %v1468
        %v4499 = vunpack.c.h.b16 %v1468
        %v4500 = vunpack.c.l.b16 %v1469
        %v4501 = vunpack.c.h.b16 %v1469
        %v4502 = vunpack.c.l.b16 %v1470
        %v4503 = vunpack.c.h.b16 %v1470
        %v4504 = vunpack.c.l.b16 %v1471
        %v4505 = vunpack.c.h.b16 %v1471
        %v4506 = vunpack.c.l.b16 %v1472
        %v4507 = vunpack.c.h.b16 %v1472
        %v4508 = vunpack.c.l.b16 %v1473
        %v4509 = vunpack.c.h.b16 %v1473
        %v4510 = vunpack.c.l.b16 %v1474
        %v4511 = vunpack.c.h.b16 %v1474
        %v4512 = vunpack.c.l.b16 %v1475
        %v4513 = vunpack.c.h.b16 %v1475
        %v4514 = vunpack.c.l.b16 %v1476
        %v4515 = vunpack.c.h.b16 %v1476
        %v4516 = vunpack.c.l.b16 %v1477
        %v4517 = vunpack.c.h.b16 %v1477
        %v4518 = vunpack.c.l.b16 %v1478
        %v4519 = vunpack.c.h.b16 %v1478
        %v4520 = vunpack.c.l.b16 %v1479
        %v4521 = vunpack.c.h.b16 %v1479
        %v4522 = vunpack.c.l.b16 %v1480
        %v4523 = vunpack.c.h.b16 %v1480
        %v4524 = vunpack.c.l.b16 %v1481
        %v4525 = vunpack.c.h.b16 %v1481
        %v4526 = vunpack.c.l.b16 %v1482
        %v4527 = vunpack.c.h.b16 %v1482
        %v4528 = vunpack.c.l.b16 %v1483
        %v4529 = vunpack.c.h.b16 %v1483
        %v4530 = vunpack.c.l.b16 %v1484
        %v4531 = vunpack.c.h.b16 %v1484
        %v4532 = vunpack.c.l.b16 %v1485
        %v4533 = vunpack.c.h.b16 %v1485
        %v4534 = vunpack.c.l.b16 %v1486
        %v4535 = vunpack.c.h.b16 %v1486
        %v4536 = vunpack.c.l.b16 %v1487
        %v4537 = vunpack.c.h.b16 %v1487
        %v4538 = vunpack.c.l.b16 %v1488
        %v4539 = vunpack.c.h.b16 %v1488
        %v4540 = vunpack.c.l.b16 %v1489
        %v4541 = vunpack.c.h.b16 %v1489
        %v4542 = vunpack.c.l.b16 %v1490
        %v4543 = vunpack.c.h.b16 %v1490
        %v4544 = vunpack.c.l.b16 %v1491
        %v4545 = vunpack.c.h.b16 %v1491
        %v4546 = vunpack.c.l.b16 %v1492
        %v4547 = vunpack.c.h.b16 %v1492
        %v4548 = vunpack.c.l.b16 %v1493
        %v4549 = vunpack.c.h.b16 %v1493
        %v4550 = vunpack.c.l.b16 %v1494
        %v4551 = vunpack.c.h.b16 %v1494
        %v4552 = vunpack.c.l.b16 %v1495
        %v4553 = vunpack.c.h.b16 %v1495
        %v4554 = vunpack.c.l.b16 %v1496
        %v4555 = vunpack.c.h.b16 %v1496
        %v4556 = vunpack.c.l.b16 %v1497
        %v4557 = vunpack.c.h.b16 %v1497
        %v4558 = vunpack.c.l.b16 %v1498
        %v4559 = vunpack.c.h.b16 %v1498
        %v4560 = vunpack.c.l.b16 %v1499
        %v4561 = vunpack.c.h.b16 %v1499
        %v4562 = vunpack.c.l.b16 %v1500
        %v4563 = vunpack.c.h.b16 %v1500
        %v4564 = vunpack.c.l.b16 %v1501
        %v4565 = vunpack.c.h.b16 %v1501
        %v4566 = vunpack.c.l.b16 %v1502
        %v4567 = vunpack.c.h.b16 %v1502
        %v4568 = vunpack.c.l.b16 %v1503
        %v4569 = vunpack.c.h.b16 %v1503
        %v4570 = vunpack.c.l.b16 %v1504
        %v4571 = vunpack.c.h.b16 %v1504
        %v4572 = vunpack.c.l.b16 %v1505
        %v4573 = vunpack.c.h.b16 %v1505
        %v4574 = vunpack.c.l.b16 %v1506
        %v4575 = vunpack.c.h.b16 %v1506
        %v4576 = vunpack.c.l.b16 %v1507
        %v4577 = vunpack.c.h.b16 %v1507
        %v4578 = vunpack.c.l.b16 %v1508
        %v4579 = vunpack.c.h.b16 %v1508
        %v4580 = vunpack.c.l.b16 %v1509
        %v4581 = vunpack.c.h.b16 %v1509
        %v4582 = vunpack.c.l.b16 %v1510
        %v4583 = vunpack.c.h.b16 %v1510
        %v4584 = vunpack.c.l.b16 %v1511
        %v4585 = vunpack.c.h.b16 %v1511
        %v4586 = vunpack.c.l.b16 %v1512
        %v4587 = vunpack.c.h.b16 %v1512
        %v4588 = vunpack.c.l.b16 %v1513
        %v4589 = vunpack.c.h.b16 %v1513
        %v4590 = vunpack.c.l.b16 %v1514
        %v4591 = vunpack.c.h.b16 %v1514
        %v4592 = vunpack.c.l.b16 %v1515
        %v4593 = vunpack.c.h.b16 %v1515
        %v4594 = vunpack.c.l.b16 %v1516
        %v4595 = vunpack.c.h.b16 %v1516
        %v4596 = vunpack.c.l.b16 %v1517
        %v4597 = vunpack.c.h.b16 %v1517
        %v4598 = vunpack.c.l.b16 %v1518
        %v4599 = vunpack.c.h.b16 %v1518
        %v4600 = vunpack.c.l.b16 %v1519
        %v4601 = vunpack.c.h.b16 %v1519
        %v4602 = vunpack.c.l.b16 %v1520
        %v4603 = vunpack.c.h.b16 %v1520
        %v4604 = vunpack.c.l.b16 %v1521
        %v4605 = vunpack.c.h.b16 %v1521
        %v4606 = vunpack.c.l.b16 %v1522
        %v4607 = vunpack.c.h.b16 %v1522
        %v4608 = vunpack.c.l.b16 %v1523
        %v4609 = vunpack.c.h.b16 %v1523
        %v4610 = vunpack.c.l.b16 %v1524
        %v4611 = vunpack.c.h.b16 %v1524
        %v4612 = vunpack.c.l.b16 %v1525
        %v4613 = vunpack.c.h.b16 %v1525
        %v4614 = vunpack.c.l.b16 %v1526
        %v4615 = vunpack.c.h.b16 %v1526
        %v4616 = vunpack.c.l.b16 %v1527
        %v4617 = vunpack.c.h.b16 %v1527
        %v4618 = vunpack.c.l.b16 %v1528
        %v4619 = vunpack.c.h.b16 %v1528
        %v4620 = vunpack.c.l.b16 %v1529
        %v4621 = vunpack.c.h.b16 %v1529
        %v4622 = vunpack.c.l.b16 %v1530
        %v4623 = vunpack.c.h.b16 %v1530
        %v4624 = vunpack.c.l.b16 %v1531
        %v4625 = vunpack.c.h.b16 %v1531
        %v4626 = vunpack.c.l.b16 %v1532
        %v4627 = vunpack.c.h.b16 %v1532
        %v4628 = vunpack.c.l.b16 %v1533
        %v4629 = vunpack.c.h.b16 %v1533
        %v4630 = vunpack.c.l.b16 %v1534
        %v4631 = vunpack.c.h.b16 %v1534
        %v4632 = vunpack.c.l.b16 %v1535
        %v4633 = vunpack.c.h.b16 %v1535
        %v4634 = vunpack.c.l.b16 %v1536
        %v4635 = vunpack.c.h.b16 %v1536
        %v4636 = vunpack.c.l.b16 %v1537
        %v4637 = vunpack.c.h.b16 %v1537
        %v4638 = vunpack.c.l.b16 %v1538
        %v4639 = vunpack.c.h.b16 %v1538
        %v4640 = vunpack.c.l.b16 %v1539
        %v4641 = vunpack.c.h.b16 %v1539
        %v4642 = vunpack.c.l.b16 %v1540
        %v4643 = vunpack.c.h.b16 %v1540
        %v4644 = vunpack.c.l.b16 %v1541
        %v4645 = vunpack.c.h.b16 %v1541
        %v4646 = vunpack.c.l.b16 %v1542
        %v4647 = vunpack.c.h.b16 %v1542
        %v4648 = vunpack.c.l.b16 %v1543
        %v4649 = vunpack.c.h.b16 %v1543
        %v4650 = vunpack.c.l.b16 %v1544
        %v4651 = vunpack.c.h.b16 %v1544
        %v4652 = vunpack.c.l.b16 %v1545
        %v4653 = vunpack.c.h.b16 %v1545
        %v4654 = vunpack.c.l.b16 %v1546
        %v4655 = vunpack.c.h.b16 %v1546
        %v4656 = vunpack.c.l.b16 %v1547
        %v4657 = vunpack.c.h.b16 %v1547
        %v4658 = vunpack.c.l.b16 %v1548
        %v4659 = vunpack.c.h.b16 %v1548
        %v4660 = vunpack.c.l.b16 %v1549
        %v4661 = vunpack.c.h.b16 %v1549
        %v4662 = vunpack.c.l.b16 %v1550
        %v4663 = vunpack.c.h.b16 %v1550
        %v4664 = vunpack.c.l.b16 %v1551
        %v4665 = vunpack.c.h.b16 %v1551
        %v4666 = vunpack.c.l.b16 %v1552
        %v4667 = vunpack.c.h.b16 %v1552
        %v4668 = vunpack.c.l.b16 %v1553
        %v4669 = vunpack.c.h.b16 %v1553
        %v4670 = vunpack.c.l.b16 %v1554
        %v4671 = vunpack.c.h.b16 %v1554
        %v4672 = vunpack.c.l.b16 %v1555
        %v4673 = vunpack.c.h.b16 %v1555
        %v4674 = vunpack.c.l.b16 %v1556
        %v4675 = vunpack.c.h.b16 %v1556
        %v4676 = vunpack.c.l.b16 %v1557
        %v4677 = vunpack.c.h.b16 %v1557
        %v4678 = vunpack.c.l.b16 %v1558
        %v4679 = vunpack.c.h.b16 %v1558
        %v4680 = vunpack.c.l.b16 %v1559
        %v4681 = vunpack.c.h.b16 %v1559
        %v4682 = vunpack.c.l.b16 %v1560
        %v4683 = vunpack.c.h.b16 %v1560
        %v4684 = vunpack.c.l.b16 %v1561
        %v4685 = vunpack.c.h.b16 %v1561
        %v4686 = vunpack.c.l.b16 %v1562
        %v4687 = vunpack.c.h.b16 %v1562
        %v4688 = vunpack.c.l.b16 %v1563
        %v4689 = vunpack.c.h.b16 %v1563
        %v4690 = vunpack.c.l.b16 %v1564
        %v4691 = vunpack.c.h.b16 %v1564
        %v4692 = vunpack.c.l.b16 %v1565
        %v4693 = vunpack.c.h.b16 %v1565
        %v4694 = vunpack.c.l.b16 %v1566
        %v4695 = vunpack.c.h.b16 %v1566
        %v4696 = vunpack.c.l.b16 %v1567
        %v4697 = vunpack.c.h.b16 %v1567
        %v4698 = vunpack.c.l.b16 %v1568
        %v4699 = vunpack.c.h.b16 %v1568
        %v4700 = vunpack.c.l.b16 %v1569
        %v4701 = vunpack.c.h.b16 %v1569
        %v4702 = vunpack.c.l.b16 %v1570
        %v4703 = vunpack.c.h.b16 %v1570
        %v4704 = vunpack.c.l.b16 %v1571
        %v4705 = vunpack.c.h.b16 %v1571
        %v4706 = vunpack.c.l.b16 %v1572
        %v4707 = vunpack.c.h.b16 %v1572
        %v4708 = vunpack.c.l.b16 %v1573
        %v4709 = vunpack.c.h.b16 %v1573
        %v4710 = vunpack.c.l.b16 %v1574
        %v4711 = vunpack.c.h.b16 %v1574
        %v4712 = vunpack.c.l.b16 %v1575
        %v4713 = vunpack.c.h.b16 %v1575
        %v4714 = vunpack.c.l.b16 %v1576
        %v4715 = vunpack.c.h.b16 %v1576
        %v4716 = vunpack.c.l.b16 %v1577
        %v4717 = vunpack.c.h.b16 %v1577
        %v4718 = vunpack.c.l.b16 %v1578
        %v4719 = vunpack.c.h.b16 %v1578
        %v4720 = vunpack.c.l.b16 %v1579
        %v4721 = vunpack.c.h.b16 %v1579
        %v4722 = vunpack.c.l.b16 %v1580
        %v4723 = vunpack.c.h.b16 %v1580
        %v4724 = vunpack.c.l.b16 %v1581
        %v4725 = vunpack.c.h.b16 %v1581
        %v4726 = vunpack.c.l.b16 %v1582
        %v4727 = vunpack.c.h.b16 %v1582
        %v4728 = vunpack.c.l.b16 %v1583
        %v4729 = vunpack.c.h.b16 %v1583
        %v4730 = vunpack.c.l.b16 %v1584
        %v4731 = vunpack.c.h.b16 %v1584
        %v4732 = vunpack.c.l.b16 %v1585
        %v4733 = vunpack.c.h.b16 %v1585
        %v4734 = vunpack.c.l.b16 %v1586
        %v4735 = vunpack.c.h.b16 %v1586
        %v4736 = vunpack.c.l.b16 %v1587
        %v4737 = vunpack.c.h.b16 %v1587
        %v4738 = vunpack.c.l.b16 %v1588
        %v4739 = vunpack.c.h.b16 %v1588
        %v4740 = vunpack.c.l.b16 %v1589
        %v4741 = vunpack.c.h.b16 %v1589
        %v4742 = vunpack.c.l.b16 %v1590
        %v4743 = vunpack.c.h.b16 %v1590
        %v4744 = vunpack.c.l.b16 %v1591
        %v4745 = vunpack.c.h.b16 %v1591
        %v4746 = vunpack.c.l.b16 %v1592
        %v4747 = vunpack.c.h.b16 %v1592
        %v4748 = vunpack.c.l.b16 %v1593
        %v4749 = vunpack.c.h.b16 %v1593
        %v4750 = vunpack.c.l.b16 %v1594
        %v4751 = vunpack.c.h.b16 %v1594
        %v4752 = vunpack.c.l.b16 %v1595
        %v4753 = vunpack.c.h.b16 %v1595
        %v4754 = vunpack.c.l.b16 %v1596
        %v4755 = vunpack.c.h.b16 %v1596
        %v4756 = vunpack.c.l.b16 %v1597
        %v4757 = vunpack.c.h.b16 %v1597
        %v4758 = vunpack.c.l.b16 %v1598
        %v4759 = vunpack.c.h.b16 %v1598
        %v4760 = vunpack.c.l.b16 %v1599
        %v4761 = vunpack.c.h.b16 %v1599
        %v4762 = vunpack.c.l.b16 %v1600
        %v4763 = vunpack.c.h.b16 %v1600
        %v4764 = vunpack.c.l.b16 %v1601
        %v4765 = vunpack.c.h.b16 %v1601
        %v4766 = vunpack.c.l.b16 %v1602
        %v4767 = vunpack.c.h.b16 %v1602
        %v4768 = vunpack.c.l.b16 %v1603
        %v4769 = vunpack.c.h.b16 %v1603
        %v4770 = vunpack.c.l.b16 %v1604
        %v4771 = vunpack.c.h.b16 %v1604
        %v4772 = vunpack.c.l.b16 %v1605
        %v4773 = vunpack.c.h.b16 %v1605
        %v4774 = vunpack.c.l.b16 %v1606
        %v4775 = vunpack.c.h.b16 %v1606
        %v4776 = vunpack.c.l.b16 %v1607
        %v4777 = vunpack.c.h.b16 %v1607
        %v4778 = vunpack.c.l.b16 %v1608
        %v4779 = vunpack.c.h.b16 %v1608
        %v4780 = vunpack.c.l.b16 %v1609
        %v4781 = vunpack.c.h.b16 %v1609
        %v4782 = vunpack.c.l.b16 %v1610
        %v4783 = vunpack.c.h.b16 %v1610
        %v4784 = vunpack.c.l.b16 %v1611
        %v4785 = vunpack.c.h.b16 %v1611
        %v4786 = vunpack.c.l.b16 %v1612
        %v4787 = vunpack.c.h.b16 %v1612
        %v4788 = vunpack.c.l.b16 %v1613
        %v4789 = vunpack.c.h.b16 %v1613
        %v4790 = vunpack.c.l.b16 %v1614
        %v4791 = vunpack.c.h.b16 %v1614
        %v4792 = vunpack.c.l.b16 %v1615
        %v4793 = vunpack.c.h.b16 %v1615
        %v4794 = vunpack.c.l.b16 %v1616
        %v4795 = vunpack.c.h.b16 %v1616
        %v4796 = vunpack.c.l.b16 %v1617
        %v4797 = vunpack.c.h.b16 %v1617
        %v4798 = vunpack.c.l.b16 %v1618
        %v4799 = vunpack.c.h.b16 %v1618
        %v4800 = vunpack.c.l.b16 %v1619
        %v4801 = vunpack.c.h.b16 %v1619
        %v4802 = vunpack.c.l.b16 %v1620
        %v4803 = vunpack.c.h.b16 %v1620
        %v4804 = vunpack.c.l.b16 %v1621
        %v4805 = vunpack.c.h.b16 %v1621
        %v4806 = vunpack.c.l.b16 %v1622
        %v4807 = vunpack.c.h.b16 %v1622
        %v4808 = vunpack.c.l.b16 %v1623
        %v4809 = vunpack.c.h.b16 %v1623
        %v4810 = vunpack.c.l.b16 %v1624
        %v4811 = vunpack.c.h.b16 %v1624
        %v4812 = vunpack.c.l.b16 %v1625
        %v4813 = vunpack.c.h.b16 %v1625
        %v4814 = vunpack.c.l.b16 %v1626
        %v4815 = vunpack.c.h.b16 %v1626
        %v4816 = vunpack.c.l.b16 %v1627
        %v4817 = vunpack.c.h.b16 %v1627
        %v4818 = vunpack.c.l.b16 %v1628
        %v4819 = vunpack.c.h.b16 %v1628
        %v4820 = vunpack.c.l.b16 %v1629
        %v4821 = vunpack.c.h.b16 %v1629
        %v4822 = vunpack.c.l.b16 %v1630
        %v4823 = vunpack.c.h.b16 %v1630
        %v4824 = vunpack.c.l.b16 %v1631
        %v4825 = vunpack.c.h.b16 %v1631
        %v4826 = vunpack.c.l.b16 %v1632
        %v4827 = vunpack.c.h.b16 %v1632
        %v4828 = vunpack.c.l.b16 %v1633
        %v4829 = vunpack.c.h.b16 %v1633
        %v4830 = vunpack.c.l.b16 %v1634
        %v4831 = vunpack.c.h.b16 %v1634
        %v4832 = vunpack.c.l.b16 %v1635
        %v4833 = vunpack.c.h.b16 %v1635
        %v4834 = vunpack.c.l.b16 %v1636
        %v4835 = vunpack.c.h.b16 %v1636
        %v4836 = vunpack.c.l.b16 %v1637
        %v4837 = vunpack.c.h.b16 %v1637
        %v4838 = vunpack.c.l.b16 %v1638
        %v4839 = vunpack.c.h.b16 %v1638
        %v4840 = vunpack.c.l.b16 %v1639
        %v4841 = vunpack.c.h.b16 %v1639
        %v4842 = vunpack.c.l.b16 %v1640
        %v4843 = vunpack.c.h.b16 %v1640
        %v4844 = vunpack.c.l.b16 %v1641
        %v4845 = vunpack.c.h.b16 %v1641
        %v4846 = vunpack.c.l.b16 %v1642
        %v4847 = vunpack.c.h.b16 %v1642
        %v4848 = vunpack.c.l.b16 %v1643
        %v4849 = vunpack.c.h.b16 %v1643
        %v4850 = vunpack.c.l.b16 %v1644
        %v4851 = vunpack.c.h.b16 %v1644
        %v4852 = vunpack.c.l.b16 %v1645
        %v4853 = vunpack.c.h.b16 %v1645
        %v4854 = vunpack.c.l.b16 %v1646
        %v4855 = vunpack.c.h.b16 %v1646
        %v4856 = vunpack.c.l.b16 %v1647
        %v4857 = vunpack.c.h.b16 %v1647
        %v4858 = vunpack.c.l.b16 %v1648
        %v4859 = vunpack.c.h.b16 %v1648
        %v4860 = vunpack.c.l.b16 %v1649
        %v4861 = vunpack.c.h.b16 %v1649
        %v4862 = vunpack.c.l.b16 %v1650
        %v4863 = vunpack.c.h.b16 %v1650
        %v4864 = vunpack.c.l.b16 %v1651
        %v4865 = vunpack.c.h.b16 %v1651
        %v4866 = vunpack.c.l.b16 %v1652
        %v4867 = vunpack.c.h.b16 %v1652
        %v4868 = vunpack.c.l.b16 %v1653
        %v4869 = vunpack.c.h.b16 %v1653
        %v4870 = vunpack.c.l.b16 %v1654
        %v4871 = vunpack.c.h.b16 %v1654
        %v4872 = vunpack.c.l.b16 %v1655
        %v4873 = vunpack.c.h.b16 %v1655
        %v4874 = vunpack.c.l.b16 %v1656
        %v4875 = vunpack.c.h.b16 %v1656
        %v4876 = vunpack.c.l.b16 %v1657
        %v4877 = vunpack.c.h.b16 %v1657
        %v4878 = vunpack.c.l.b16 %v1658
        %v4879 = vunpack.c.h.b16 %v1658
        %v4880 = vunpack.c.l.b16 %v1659
        %v4881 = vunpack.c.h.b16 %v1659
        %v4882 = vunpack.c.l.b16 %v1660
        %v4883 = vunpack.c.h.b16 %v1660
        %v4884 = vunpack.c.l.b16 %v1661
        %v4885 = vunpack.c.h.b16 %v1661
        %v4886 = vunpack.c.l.b16 %v1662
        %v4887 = vunpack.c.h.b16 %v1662
        %v4888 = vunpack.c.l.b16 %v1663
        %v4889 = vunpack.c.h.b16 %v1663
        %v4890 = vunpack.c.l.b16 %v1664
        %v4891 = vunpack.c.h.b16 %v1664
        %v4892 = vunpack.c.l.b16 %v1665
        %v4893 = vunpack.c.h.b16 %v1665
        %v4894 = vunpack.c.l.b16 %v1666
        %v4895 = vunpack.c.h.b16 %v1666
        %v4896 = vunpack.c.l.b16 %v1667
        %v4897 = vunpack.c.h.b16 %v1667
        %v4898 = vunpack.c.l.b16 %v1668
        %v4899 = vunpack.c.h.b16 %v1668
        %v4900 = vunpack.c.l.b16 %v1669
        %v4901 = vunpack.c.h.b16 %v1669
        %v4902 = vunpack.c.l.b16 %v1670
        %v4903 = vunpack.c.h.b16 %v1670
        %v4904 = vunpack.c.l.b16 %v1671
        %v4905 = vunpack.c.h.b16 %v1671
        %v4906 = vunpack.c.l.b16 %v1672
        %v4907 = vunpack.c.h.b16 %v1672
        %v4908 = vunpack.c.l.b16 %v1673
        %v4909 = vunpack.c.h.b16 %v1673
        %v4910 = vunpack.c.l.b16 %v1674
        %v4911 = vunpack.c.h.b16 %v1674
        %v4912 = vunpack.c.l.b16 %v1675
        %v4913 = vunpack.c.h.b16 %v1675
        %v4914 = vunpack.c.l.b16 %v1676
        %v4915 = vunpack.c.h.b16 %v1676
        %v4916 = vunpack.c.l.b16 %v1677
        %v4917 = vunpack.c.h.b16 %v1677
        %v4918 = vunpack.c.l.b16 %v1678
        %v4919 = vunpack.c.h.b16 %v1678
        %v4920 = vunpack.c.l.b16 %v1679
        %v4921 = vunpack.c.h.b16 %v1679
        %v4922 = vunpack.c.l.b16 %v1680
        %v4923 = vunpack.c.h.b16 %v1680
        %v4924 = vunpack.c.l.b16 %v1681
        %v4925 = vunpack.c.h.b16 %v1681
        %v4926 = vunpack.c.l.b16 %v1682
        %v4927 = vunpack.c.h.b16 %v1682
        %v4928 = vunpack.c.l.b16 %v1683
        %v4929 = vunpack.c.h.b16 %v1683
        %v4930 = vunpack.c.l.b16 %v1684
        %v4931 = vunpack.c.h.b16 %v1684
        %v4932 = vunpack.c.l.b16 %v1685
        %v4933 = vunpack.c.h.b16 %v1685
        %v4934 = vunpack.c.l.b16 %v1686
        %v4935 = vunpack.c.h.b16 %v1686
        %v4936 = vunpack.c.l.b16 %v1687
        %v4937 = vunpack.c.h.b16 %v1687
        %v4938 = vunpack.c.l.b16 %v1688
        %v4939 = vunpack.c.h.b16 %v1688
        %v4940 = vunpack.c.l.b16 %v1689
        %v4941 = vunpack.c.h.b16 %v1689
        %v4942 = vunpack.c.l.b16 %v1690
        %v4943 = vunpack.c.h.b16 %v1690
        %v4944 = vunpack.c.l.b16 %v1691
        %v4945 = vunpack.c.h.b16 %v1691
        %v4946 = vunpack.c.l.b16 %v1692
        %v4947 = vunpack.c.h.b16 %v1692
        %v4948 = vunpack.c.l.b16 %v1693
        %v4949 = vunpack.c.h.b16 %v1693
        %v4950 = vunpack.c.l.b16 %v1694
        %v4951 = vunpack.c.h.b16 %v1694
        %v4952 = vunpack.c.l.b16 %v1695
        %v4953 = vunpack.c.h.b16 %v1695
        %v4954 = vunpack.c.l.b16 %v1696
        %v4955 = vunpack.c.h.b16 %v1696
        %v4956 = vunpack.c.l.b16 %v1697
        %v4957 = vunpack.c.h.b16 %v1697
        %v4958 = vunpack.c.l.b16 %v1698
        %v4959 = vunpack.c.h.b16 %v1698
        %v4960 = vunpack.c.l.b16 %v1699
        %v4961 = vunpack.c.h.b16 %v1699
        %v4962 = vunpack.c.l.b16 %v1700
        %v4963 = vunpack.c.h.b16 %v1700
        %v4964 = vunpack.c.l.b16 %v1701
        %v4965 = vunpack.c.h.b16 %v1701
        %v4966 = vunpack.c.l.b16 %v1702
        %v4967 = vunpack.c.h.b16 %v1702
        %v4968 = vunpack.c.l.b16 %v1703
        %v4969 = vunpack.c.h.b16 %v1703
        %v4970 = vunpack.c.l.b16 %v1704
        %v4971 = vunpack.c.h.b16 %v1704
        %v4972 = vunpack.c.l.b16 %v1705
        %v4973 = vunpack.c.h.b16 %v1705
        %v4974 = vunpack.c.l.b16 %v1706
        %v4975 = vunpack.c.h.b16 %v1706
        %v4976 = vunpack.c.l.b16 %v1707
        %v4977 = vunpack.c.h.b16 %v1707
        %v4978 = vunpack.c.l.b16 %v1708
        %v4979 = vunpack.c.h.b16 %v1708
        %v4980 = vunpack.c.l.b16 %v1709
        %v4981 = vunpack.c.h.b16 %v1709
        %v4982 = vunpack.c.l.b16 %v1710
        %v4983 = vunpack.c.h.b16 %v1710
        %v4984 = vunpack.c.l.b16 %v1711
        %v4985 = vunpack.c.h.b16 %v1711
        %v4986 = vunpack.c.l.b16 %v1712
        %v4987 = vunpack.c.h.b16 %v1712
        %v4988 = vunpack.c.l.b16 %v1713
        %v4989 = vunpack.c.h.b16 %v1713
        %v4990 = vunpack.c.l.b16 %v1714
        %v4991 = vunpack.c.h.b16 %v1714
        %v4992 = vunpack.c.l.b16 %v1715
        %v4993 = vunpack.c.h.b16 %v1715
        %v4994 = vunpack.c.l.b16 %v1716
        %v4995 = vunpack.c.h.b16 %v1716
        %v4996 = vunpack.c.l.b16 %v1717
        %v4997 = vunpack.c.h.b16 %v1717
        %v4998 = vunpack.c.l.b16 %v1718
        %v4999 = vunpack.c.h.b16 %v1718
        %v5000 = vunpack.c.l.b16 %v1719
        %v5001 = vunpack.c.h.b16 %v1719
        %v5002 = vunpack.c.l.b16 %v1720
        %v5003 = vunpack.c.h.b16 %v1720
        %v5004 = vunpack.c.l.b16 %v1721
        %v5005 = vunpack.c.h.b16 %v1721
        %v5006 = vunpack.c.l.b16 %v1722
        %v5007 = vunpack.c.h.b16 %v1722
        %v5008 = vunpack.c.l.b16 %v1723
        %v5009 = vunpack.c.h.b16 %v1723
        %v5010 = vunpack.c.l.b16 %v1724
        %v5011 = vunpack.c.h.b16 %v1724
        %v5012 = vunpack.c.l.b16 %v1725
        %v5013 = vunpack.c.h.b16 %v1725
        %v5014 = vunpack.c.l.b16 %v1726
        %v5015 = vunpack.c.h.b16 %v1726
        %v5016 = vunpack.c.l.b16 %v1727
        %v5017 = vunpack.c.h.b16 %v1727
        %v5018 = vunpack.c.l.b16 %v1728
        %v5019 = vunpack.c.h.b16 %v1728
        %v5020 = vunpack.c.l.b16 %v1729
        %v5021 = vunpack.c.h.b16 %v1729
        %v5022 = vunpack.c.l.b16 %v1730
        %v5023 = vunpack.c.h.b16 %v1730
        %v5024 = vunpack.c.l.b16 %v1731
        %v5025 = vunpack.c.h.b16 %v1731
        %v5026 = vunpack.c.l.b16 %v1732
        %v5027 = vunpack.c.h.b16 %v1732
        %v5028 = vunpack.c.l.b16 %v1733
        %v5029 = vunpack.c.h.b16 %v1733
        %v5030 = vunpack.c.l.b16 %v1734
        %v5031 = vunpack.c.h.b16 %v1734
        %v5032 = vunpack.c.l.b16 %v1735
        %v5033 = vunpack.c.h.b16 %v1735
        %v5034 = vunpack.c.l.b16 %v1736
        %v5035 = vunpack.c.h.b16 %v1736
        %v5036 = vunpack.c.l.b16 %v1737
        %v5037 = vunpack.c.h.b16 %v1737
        %v5038 = vunpack.c.l.b16 %v1738
        %v5039 = vunpack.c.h.b16 %v1738
        %v5040 = vunpack.c.l.b16 %v1739
        %v5041 = vunpack.c.h.b16 %v1739
        %v5042 = vunpack.c.l.b16 %v1740
        %v5043 = vunpack.c.h.b16 %v1740
        %v5044 = vunpack.c.l.b16 %v1741
        %v5045 = vunpack.c.h.b16 %v1741
        %v5046 = vunpack.c.l.b16 %v1742
        %v5047 = vunpack.c.h.b16 %v1742
        %v5048 = vunpack.c.l.b16 %v1743
        %v5049 = vunpack.c.h.b16 %v1743
        %v5050 = vunpack.c.l.b16 %v1744
        %v5051 = vunpack.c.h.b16 %v1744
        %v5052 = vunpack.c.l.b16 %v1745
        %v5053 = vunpack.c.h.b16 %v1745
        %v5054 = vunpack.c.l.b16 %v1746
        %v5055 = vunpack.c.h.b16 %v1746
        %v5056 = vunpack.c.l.b16 %v1747
        %v5057 = vunpack.c.h.b16 %v1747
        %v5058 = vunpack.c.l.b16 %v1748
        %v5059 = vunpack.c.h.b16 %v1748
        %v5060 = vunpack.c.l.b16 %v1749
        %v5061 = vunpack.c.h.b16 %v1749
        %v5062 = vunpack.c.l.b16 %v1750
        %v5063 = vunpack.c.h.b16 %v1750
        %v5064 = vunpack.c.l.b16 %v1751
        %v5065 = vunpack.c.h.b16 %v1751
        %v5066 = vunpack.c.l.b16 %v1752
        %v5067 = vunpack.c.h.b16 %v1752
        %v5068 = vunpack.c.l.b16 %v1753
        %v5069 = vunpack.c.h.b16 %v1753
        %v5070 = vunpack.c.l.b16 %v1754
        %v5071 = vunpack.c.h.b16 %v1754
        %v5072 = vunpack.c.l.b16 %v1755
        %v5073 = vunpack.c.h.b16 %v1755
        %v5074 = vunpack.c.l.b16 %v1756
        %v5075 = vunpack.c.h.b16 %v1756
        %v5076 = vunpack.c.l.b16 %v1757
        %v5077 = vunpack.c.h.b16 %v1757
        %v5078 = vunpack.c.l.b16 %v1758
        %v5079 = vunpack.c.h.b16 %v1758
        %v5080 = vunpack.c.l.b16 %v1759
        %v5081 = vunpack.c.h.b16 %v1759
        %v5082 = vunpack.c.l.b16 %v1760
        %v5083 = vunpack.c.h.b16 %v1760
        %v5084 = vunpack.c.l.b16 %v1761
        %v5085 = vunpack.c.h.b16 %v1761
        %v5086 = vunpack.c.l.b16 %v1762
        %v5087 = vunpack.c.h.b16 %v1762
        %v5088 = vunpack.c.l.b16 %v1763
        %v5089 = vunpack.c.h.b16 %v1763
        %v5090 = vunpack.c.l.b16 %v1764
        %v5091 = vunpack.c.h.b16 %v1764
        %v5092 = vunpack.c.l.b16 %v1765
        %v5093 = vunpack.c.h.b16 %v1765
        %v5094 = vunpack.c.l.b16 %v1766
        %v5095 = vunpack.c.h.b16 %v1766
        %v5096 = vunpack.c.l.b16 %v1767
        %v5097 = vunpack.c.h.b16 %v1767
        %v5098 = vunpack.c.l.b16 %v1768
        %v5099 = vunpack.c.h.b16 %v1768
        %v5100 = vunpack.c.l.b16 %v1769
        %v5101 = vunpack.c.h.b16 %v1769
        %v5102 = vunpack.c.l.b16 %v1770
        %v5103 = vunpack.c.h.b16 %v1770
        %v5104 = vunpack.c.l.b16 %v1771
        %v5105 = vunpack.c.h.b16 %v1771
        %v5106 = vunpack.c.l.b16 %v1772
        %v5107 = vunpack.c.h.b16 %v1772
        %v5108 = vunpack.c.l.b16 %v1773
        %v5109 = vunpack.c.h.b16 %v1773
        %v5110 = vunpack.c.l.b16 %v1774
        %v5111 = vunpack.c.h.b16 %v1774
        %v5112 = vunpack.c.l.b16 %v1775
        %v5113 = vunpack.c.h.b16 %v1775
        %v5114 = vunpack.c.l.b16 %v1776
        %v5115 = vunpack.c.h.b16 %v1776
        %v5116 = vunpack.c.l.b16 %v1777
        %v5117 = vunpack.c.h.b16 %v1777
        %v5118 = vunpack.c.l.b16 %v1778
        %v5119 = vunpack.c.h.b16 %v1778
        %v5120 = vunpack.c.l.b16 %v1779
        %v5121 = vunpack.c.h.b16 %v1779
        %v5122 = vunpack.c.l.b16 %v1780
        %v5123 = vunpack.c.h.b16 %v1780
        %v5124 = vunpack.c.l.b16 %v1781
        %v5125 = vunpack.c.h.b16 %v1781
        %v5126 = vunpack.c.l.b16 %v1782
        %v5127 = vunpack.c.h.b16 %v1782
        %v5128 = vunpack.c.l.b16 %v1783
        %v5129 = vunpack.c.h.b16 %v1783
        %v5130 = vunpack.c.l.b16 %v1784
        %v5131 = vunpack.c.h.b16 %v1784
        %v5132 = vunpack.c.l.b16 %v1785
        %v5133 = vunpack.c.h.b16 %v1785
        %v5134 = vunpack.c.l.b16 %v1786
        %v5135 = vunpack.c.h.b16 %v1786
        %v5136 = vunpack.c.l.b16 %v1787
        %v5137 = vunpack.c.h.b16 %v1787
        %v5138 = vunpack.c.l.b16 %v1788
        %v5139 = vunpack.c.h.b16 %v1788
        %v5140 = vunpack.c.l.b16 %v1789
        %v5141 = vunpack.c.h.b16 %v1789
        %v5142 = vunpack.c.l.b16 %v1790
        %v5143 = vunpack.c.h.b16 %v1790
        %v5144 = vunpack.c.l.b16 %v1791
        %v5145 = vunpack.c.h.b16 %v1791
        %v5146 = vunpack.c.l.b16 %v1792
        %v5147 = vunpack.c.h.b16 %v1792
        %v5148 = vunpack.c.l.b16 %v1793
        %v5149 = vunpack.c.h.b16 %v1793
        %v5150 = vunpack.c.l.b16 %v1794
        %v5151 = vunpack.c.h.b16 %v1794
        %v5152 = vunpack.c.l.b16 %v1795
        %v5153 = vunpack.c.h.b16 %v1795
        %v5154 = vunpack.c.l.b16 %v1796
        %v5155 = vunpack.c.h.b16 %v1796
        %v5156 = vunpack.c.l.b16 %v1797
        %v5157 = vunpack.c.h.b16 %v1797
        %v5158 = vunpack.c.l.b16 %v1798
        %v5159 = vunpack.c.h.b16 %v1798
        %v5160 = vunpack.c.l.b16 %v1799
        %v5161 = vunpack.c.h.b16 %v1799
        %v5162 = vunpack.c.l.b16 %v1800
        %v5163 = vunpack.c.h.b16 %v1800
        %v5164 = vunpack.c.l.b16 %v1801
        %v5165 = vunpack.c.h.b16 %v1801
        %v5166 = vunpack.c.l.b16 %v1802
        %v5167 = vunpack.c.h.b16 %v1802
        %v5168 = vunpack.c.l.b16 %v1803
        %v5169 = vunpack.c.h.b16 %v1803
        %v5170 = vunpack.c.l.b16 %v1804
        %v5171 = vunpack.c.h.b16 %v1804
        %v5172 = vunpack.c.l.b16 %v1805
        %v5173 = vunpack.c.h.b16 %v1805
        %v5174 = vunpack.c.l.b16 %v1806
        %v5175 = vunpack.c.h.b16 %v1806
        %v5176 = vunpack.c.l.b16 %v1807
        %v5177 = vunpack.c.h.b16 %v1807
        %v5178 = vunpack.c.l.b16 %v1808
        %v5179 = vunpack.c.h.b16 %v1808
        %v5180 = vunpack.c.l.b16 %v1809
        %v5181 = vunpack.c.h.b16 %v1809
        %v5182 = vunpack.c.l.b16 %v1810
        %v5183 = vunpack.c.h.b16 %v1810
        %v5184 = vunpack.c.l.b16 %v1811
        %v5185 = vunpack.c.h.b16 %v1811
        %v5186 = vunpack.c.l.b16 %v1812
        %v5187 = vunpack.c.h.b16 %v1812
        %v5188 = vunpack.c.l.b16 %v1813
        %v5189 = vunpack.c.h.b16 %v1813
        %v5190 = vunpack.c.l.b16 %v1814
        %v5191 = vunpack.c.h.b16 %v1814
        %v5192 = vunpack.c.l.b16 %v1815
        %v5193 = vunpack.c.h.b16 %v1815
        %v5194 = vunpack.c.l.b16 %v1816
        %v5195 = vunpack.c.h.b16 %v1816
        %v5196 = vunpack.c.l.b16 %v1817
        %v5197 = vunpack.c.h.b16 %v1817
        %v5198 = vunpack.c.l.b16 %v1818
        %v5199 = vunpack.c.h.b16 %v1818
        %v5200 = vunpack.c.l.b16 %v1819
        %v5201 = vunpack.c.h.b16 %v1819
        %v5202 = vunpack.c.l.b16 %v1820
        %v5203 = vunpack.c.h.b16 %v1820
        %v5204 = vunpack.c.l.b16 %v1821
        %v5205 = vunpack.c.h.b16 %v1821
        %v5206 = vunpack.c.l.b16 %v1822
        %v5207 = vunpack.c.h.b16 %v1822
        %v5208 = vunpack.c.l.b16 %v1823
        %v5209 = vunpack.c.h.b16 %v1823
        %v5210 = vunpack.c.l.b16 %v1824
        %v5211 = vunpack.c.h.b16 %v1824
        %v5212 = vunpack.c.l.b16 %v1825
        %v5213 = vunpack.c.h.b16 %v1825
        %v5214 = vunpack.c.l.b16 %v1826
        %v5215 = vunpack.c.h.b16 %v1826
        %v5216 = vunpack.c.l.b16 %v1827
        %v5217 = vunpack.c.h.b16 %v1827
        %v5218 = vunpack.c.l.b16 %v1828
        %v5219 = vunpack.c.h.b16 %v1828
        %v5220 = vunpack.c.l.b16 %v1829
        %v5221 = vunpack.c.h.b16 %v1829
        %v5222 = vunpack.c.l.b16 %v1830
        %v5223 = vunpack.c.h.b16 %v1830
        %v5224 = vunpack.c.l.b16 %v1831
        %v5225 = vunpack.c.h.b16 %v1831
        %v5226 = vunpack.c.l.b16 %v1832
        %v5227 = vunpack.c.h.b16 %v1832
        %v5228 = vunpack.c.l.b16 %v1833
        %v5229 = vunpack.c.h.b16 %v1833
        %v5230 = vunpack.c.l.b16 %v1834
        %v5231 = vunpack.c.h.b16 %v1834
        %v5232 = vunpack.c.l.b16 %v1835
        %v5233 = vunpack.c.h.b16 %v1835
        %v5234 = vunpack.c.l.b16 %v1836
        %v5235 = vunpack.c.h.b16 %v1836
        %v5236 = vunpack.c.l.b16 %v1837
        %v5237 = vunpack.c.h.b16 %v1837
        %v5238 = vunpack.c.l.b16 %v1838
        %v5239 = vunpack.c.h.b16 %v1838
        %v5240 = vunpack.c.l.b16 %v1839
        %v5241 = vunpack.c.h.b16 %v1839
        %v5242 = vunpack.c.l.b16 %v1840
        %v5243 = vunpack.c.h.b16 %v1840
        %v5244 = vunpack.c.l.b16 %v1841
        %v5245 = vunpack.c.h.b16 %v1841
        %v5246 = vunpack.c.l.b16 %v1842
        %v5247 = vunpack.c.h.b16 %v1842
        %v5248 = vunpack.c.l.b16 %v1843
        %v5249 = vunpack.c.h.b16 %v1843
        %v5250 = vunpack.c.l.b16 %v1844
        %v5251 = vunpack.c.h.b16 %v1844
        %v5252 = vunpack.c.l.b16 %v1845
        %v5253 = vunpack.c.h.b16 %v1845
        %v5254 = vunpack.c.l.b16 %v1846
        %v5255 = vunpack.c.h.b16 %v1846
        %v5256 = vunpack.c.l.b16 %v1847
        %v5257 = vunpack.c.h.b16 %v1847
        %v5258 = vunpack.c.l.b16 %v1848
        %v5259 = vunpack.c.h.b16 %v1848
        %v5260 = vunpack.c.l.b16 %v1849
        %v5261 = vunpack.c.h.b16 %v1849
        %v5262 = vunpack.c.l.b16 %v1850
        %v5263 = vunpack.c.h.b16 %v1850
        %v5264 = vunpack.c.l.b16 %v1851
        %v5265 = vunpack.c.h.b16 %v1851
        %v5266 = vunpack.c.l.b16 %v1852
        %v5267 = vunpack.c.h.b16 %v1852
        %v5268 = vunpack.c.l.b16 %v1853
        %v5269 = vunpack.c.h.b16 %v1853
        %v5270 = vunpack.c.l.b16 %v1854
        %v5271 = vunpack.c.h.b16 %v1854
        %v5272 = vunpack.c.l.b16 %v1855
        %v5273 = vunpack.c.h.b16 %v1855
        %v5274 = vunpack.c.l.b16 %v1856
        %v5275 = vunpack.c.h.b16 %v1856
        %v5276 = vunpack.c.l.b16 %v1857
        %v5277 = vunpack.c.h.b16 %v1857
        %v5278 = vunpack.c.l.b16 %v1858
        %v5279 = vunpack.c.h.b16 %v1858
        %v5280 = vunpack.c.l.b16 %v1859
        %v5281 = vunpack.c.h.b16 %v1859
        %v5282 = vunpack.c.l.b16 %v1860
        %v5283 = vunpack.c.h.b16 %v1860
        %v5284 = vunpack.c.l.b16 %v1861
        %v5285 = vunpack.c.h.b16 %v1861
        %v5286 = vunpack.c.l.b16 %v1862
        %v5287 = vunpack.c.h.b16 %v1862
        %v5288 = vunpack.c.l.b16 %v1863
        %v5289 = vunpack.c.h.b16 %v1863
        %v5290 = vunpack.c.l.b16 %v1864
        %v5291 = vunpack.c.h.b16 %v1864
        %v5292 = vunpack.c.l.b16 %v1865
        %v5293 = vunpack.c.h.b16 %v1865
        %v5294 = vunpack.c.l.b16 %v1866
        %v5295 = vunpack.c.h.b16 %v1866
        %v5296 = vunpack.c.l.b16 %v1867
        %v5297 = vunpack.c.h.b16 %v1867
        %v5298 = vunpack.c.l.b16 %v1868
        %v5299 = vunpack.c.h.b16 %v1868
        %v5300 = vunpack.c.l.b16 %v1869
        %v5301 = vunpack.c.h.b16 %v1869
        %v5302 = vunpack.c.l.b16 %v1870
        %v5303 = vunpack.c.h.b16 %v1870
        %v5304 = vunpack.c.l.b16 %v1871
        %v5305 = vunpack.c.h.b16 %v1871
        %v5306 = vunpack.c.l.b16 %v1872
        %v5307 = vunpack.c.h.b16 %v1872
        %v5308 = vunpack.c.l.b16 %v1873
        %v5309 = vunpack.c.h.b16 %v1873
        %v5310 = vunpack.c.l.b16 %v1874
        %v5311 = vunpack.c.h.b16 %v1874
        %v5312 = vunpack.c.l.b16 %v1875
        %v5313 = vunpack.c.h.b16 %v1875
        %v5314 = vunpack.c.l.b16 %v1876
        %v5315 = vunpack.c.h.b16 %v1876
        %v5316 = vunpack.c.l.b16 %v1877
        %v5317 = vunpack.c.h.b16 %v1877
        %v5318 = vunpack.c.l.b16 %v1878
        %v5319 = vunpack.c.h.b16 %v1878
        %v5320 = vunpack.c.l.b16 %v1879
        %v5321 = vunpack.c.h.b16 %v1879
        %v5322 = vunpack.c.l.b16 %v1880
        %v5323 = vunpack.c.h.b16 %v1880
        %v5324 = vunpack.c.l.b16 %v1881
        %v5325 = vunpack.c.h.b16 %v1881
        %v5326 = vunpack.c.l.b16 %v1882
        %v5327 = vunpack.c.h.b16 %v1882
        %v5328 = vunpack.c.l.b16 %v1883
        %v5329 = vunpack.c.h.b16 %v1883
        %v5330 = vunpack.c.l.b16 %v1884
        %v5331 = vunpack.c.h.b16 %v1884
        %v5332 = vunpack.c.l.b16 %v1885
        %v5333 = vunpack.c.h.b16 %v1885
        %v5334 = vunpack.c.l.b16 %v1886
        %v5335 = vunpack.c.h.b16 %v1886
        %v5336 = vunpack.c.l.b16 %v1887
        %v5337 = vunpack.c.h.b16 %v1887
        %v5338 = vunpack.c.l.b16 %v1888
        %v5339 = vunpack.c.h.b16 %v1888
        %v5340 = vunpack.c.l.b16 %v1889
        %v5341 = vunpack.c.h.b16 %v1889
        %v5342 = vunpack.c.l.b16 %v1890
        %v5343 = vunpack.c.h.b16 %v1890
        %v5344 = vunpack.c.l.b16 %v1891
        %v5345 = vunpack.c.h.b16 %v1891
        %v5346 = vunpack.c.l.b16 %v1892
        %v5347 = vunpack.c.h.b16 %v1892
        %v5348 = vunpack.c.l.b16 %v1893
        %v5349 = vunpack.c.h.b16 %v1893
        %v5350 = vunpack.c.l.b16 %v1894
        %v5351 = vunpack.c.h.b16 %v1894
        %v5352 = vunpack.c.l.b16 %v1895
        %v5353 = vunpack.c.h.b16 %v1895
        %v5354 = vunpack.c.l.b16 %v1896
        %v5355 = vunpack.c.h.b16 %v1896
        %v5356 = vunpack.c.l.b16 %v1897
        %v5357 = vunpack.c.h.b16 %v1897
        %v5358 = vunpack.c.l.b16 %v1898
        %v5359 = vunpack.c.h.b16 %v1898
        %v5360 = vunpack.c.l.b16 %v1899
        %v5361 = vunpack.c.h.b16 %v1899
        %v5362 = vunpack.c.l.b16 %v1900
        %v5363 = vunpack.c.h.b16 %v1900
        %v5364 = vunpack.c.l.b16 %v1901
        %v5365 = vunpack.c.h.b16 %v1901
        %v5366 = vunpack.c.l.b16 %v1902
        %v5367 = vunpack.c.h.b16 %v1902
        %v5368 = vunpack.c.l.b16 %v1903
        %v5369 = vunpack.c.h.b16 %v1903
        %v5370 = vunpack.c.l.b16 %v1904
        %v5371 = vunpack.c.h.b16 %v1904
        %v5372 = vunpack.c.l.b16 %v1905
        %v5373 = vunpack.c.h.b16 %v1905
        %v5374 = vunpack.c.l.b16 %v1906
        %v5375 = vunpack.c.h.b16 %v1906
        %v5376 = vunpack.c.l.b16 %v1907
        %v5377 = vunpack.c.h.b16 %v1907
        %v5378 = vunpack.c.l.b16 %v1908
        %v5379 = vunpack.c.h.b16 %v1908
        %v5380 = vunpack.c.l.b16 %v1909
        %v5381 = vunpack.c.h.b16 %v1909
        %v5382 = vunpack.c.l.b16 %v1910
        %v5383 = vunpack.c.h.b16 %v1910
        %v5384 = vunpack.c.l.b16 %v1911
        %v5385 = vunpack.c.h.b16 %v1911
        %v5386 = vunpack.c.l.b16 %v1912
        %v5387 = vunpack.c.h.b16 %v1912
        %v5388 = vunpack.c.l.b16 %v1913
        %v5389 = vunpack.c.h.b16 %v1913
        %v5390 = vunpack.c.l.b16 %v1914
        %v5391 = vunpack.c.h.b16 %v1914
        %v5392 = vunpack.c.l.b16 %v1915
        %v5393 = vunpack.c.h.b16 %v1915
        %v5394 = vunpack.c.l.b16 %v1916
        %v5395 = vunpack.c.h.b16 %v1916
        %v5396 = vunpack.c.l.b16 %v1917
        %v5397 = vunpack.c.h.b16 %v1917
        %v5398 = vunpack.c.l.b16 %v1918
        %v5399 = vunpack.c.h.b16 %v1918
        %v5400 = vunpack.c.l.b16 %v1919
        %v5401 = vunpack.c.h.b16 %v1919
        %v5402 = vunpack.c.l.b16 %v1920
        %v5403 = vunpack.c.h.b16 %v1920
        %v5404 = vunpack.c.l.b16 %v1921
        %v5405 = vunpack.c.h.b16 %v1921
        %v5406 = vunpack.c.l.b16 %v1922
        %v5407 = vunpack.c.h.b16 %v1922
        %v5408 = vunpack.c.l.b16 %v1923
        %v5409 = vunpack.c.h.b16 %v1923
        %v5410 = vunpack.c.l.b16 %v1924
        %v5411 = vunpack.c.h.b16 %v1924
        %v5412 = vunpack.c.l.b16 %v1925
        %v5413 = vunpack.c.h.b16 %v1925
        %v5414 = vunpack.c.l.b16 %v1926
        %v5415 = vunpack.c.h.b16 %v1926
        %v5416 = vunpack.c.l.b16 %v1927
        %v5417 = vunpack.c.h.b16 %v1927
        %v5418 = vunpack.c.l.b16 %v1928
        %v5419 = vunpack.c.h.b16 %v1928
        %v5420 = vunpack.c.l.b16 %v1929
        %v5421 = vunpack.c.h.b16 %v1929
        %v5422 = vunpack.c.l.b16 %v1930
        %v5423 = vunpack.c.h.b16 %v1930
        %v5424 = vunpack.c.l.b16 %v1931
        %v5425 = vunpack.c.h.b16 %v1931
        %v5426 = vunpack.c.l.b16 %v1932
        %v5427 = vunpack.c.h.b16 %v1932
        %v5428 = vunpack.c.l.b16 %v1933
        %v5429 = vunpack.c.h.b16 %v1933
        %v5430 = vunpack.c.l.b16 %v1934
        %v5431 = vunpack.c.h.b16 %v1934
        %v5432 = vunpack.c.l.b16 %v1935
        %v5433 = vunpack.c.h.b16 %v1935
        %v5434 = vunpack.c.l.b16 %v1936
        %v5435 = vunpack.c.h.b16 %v1936
        %v5436 = vunpack.c.l.b16 %v1937
        %v5437 = vunpack.c.h.b16 %v1937
        %v5438 = vunpack.c.l.b16 %v1938
        %v5439 = vunpack.c.h.b16 %v1938
        %v5440 = vunpack.c.l.b16 %v1939
        %v5441 = vunpack.c.h.b16 %v1939
        %v5442 = vunpack.c.l.b16 %v1940
        %v5443 = vunpack.c.h.b16 %v1940
        %v5444 = vunpack.c.l.b16 %v1941
        %v5445 = vunpack.c.h.b16 %v1941
        %v5446 = vunpack.c.l.b16 %v1942
        %v5447 = vunpack.c.h.b16 %v1942
        %v5448 = vunpack.c.l.b16 %v1943
        %v5449 = vunpack.c.h.b16 %v1943
        %v5450 = vunpack.c.l.b16 %v1944
        %v5451 = vunpack.c.h.b16 %v1944
        %v5452 = vunpack.c.l.b16 %v1945
        %v5453 = vunpack.c.h.b16 %v1945
        %v5454 = vunpack.c.l.b16 %v1946
        %v5455 = vunpack.c.h.b16 %v1946
        %v5456 = vunpack.c.l.b16 %v1947
        %v5457 = vunpack.c.h.b16 %v1947
        %v5458 = vunpack.c.l.b16 %v1948
        %v5459 = vunpack.c.h.b16 %v1948
        %v5460 = vunpack.c.l.b16 %v1949
        %v5461 = vunpack.c.h.b16 %v1949
        %v5462 = vunpack.c.l.b16 %v1950
        %v5463 = vunpack.c.h.b16 %v1950
        %v5464 = vunpack.c.l.b16 %v1951
        %v5465 = vunpack.c.h.b16 %v1951
        %v5466 = vunpack.c.l.b16 %v1952
        %v5467 = vunpack.c.h.b16 %v1952
        %v5468 = vunpack.c.l.b16 %v1953
        %v5469 = vunpack.c.h.b16 %v1953
        %v5470 = vunpack.c.l.b16 %v1954
        %v5471 = vunpack.c.h.b16 %v1954
        %v5472 = vunpack.c.l.b16 %v1955
        %v5473 = vunpack.c.h.b16 %v1955
        %v5474 = vunpack.c.l.b16 %v1956
        %v5475 = vunpack.c.h.b16 %v1956
        %v5476 = vunpack.c.l.b16 %v1957
        %v5477 = vunpack.c.h.b16 %v1957
        %v5478 = vunpack.c.l.b16 %v1958
        %v5479 = vunpack.c.h.b16 %v1958
        %v5480 = vunpack.c.l.b16 %v1959
        %v5481 = vunpack.c.h.b16 %v1959
        %v5482 = vunpack.c.l.b16 %v1960
        %v5483 = vunpack.c.h.b16 %v1960
        %v5484 = vunpack.c.l.b16 %v1961
        %v5485 = vunpack.c.h.b16 %v1961
        %v5486 = vunpack.c.l.b16 %v1962
        %v5487 = vunpack.c.h.b16 %v1962
        %v5488 = vunpack.c.l.b16 %v1963
        %v5489 = vunpack.c.h.b16 %v1963
        %v5490 = vunpack.c.l.b16 %v1964
        %v5491 = vunpack.c.h.b16 %v1964
        %v5492 = vunpack.c.l.b16 %v1965
        %v5493 = vunpack.c.h.b16 %v1965
        %v5494 = vunpack.c.l.b16 %v1966
        %v5495 = vunpack.c.h.b16 %v1966
        %v5496 = vunpack.c.l.b16 %v1967
        %v5497 = vunpack.c.h.b16 %v1967
        %v5498 = vunpack.c.l.b16 %v1968
        %v5499 = vunpack.c.h.b16 %v1968
        %v5500 = vunpack.c.l.b16 %v1969
        %v5501 = vunpack.c.h.b16 %v1969
        %v5502 = vunpack.c.l.b16 %v1970
        %v5503 = vunpack.c.h.b16 %v1970
        %v5504 = vunpack.c.l.b16 %v1971
        %v5505 = vunpack.c.h.b16 %v1971
        %v5506 = vunpack.c.l.b16 %v1972
        %v5507 = vunpack.c.h.b16 %v1972
        %v5508 = vunpack.c.l.b16 %v1973
        %v5509 = vunpack.c.h.b16 %v1973
        %v5510 = vunpack.c.l.b16 %v1974
        %v5511 = vunpack.c.h.b16 %v1974
        %v5512 = vunpack.c.l.b16 %v1975
        %v5513 = vunpack.c.h.b16 %v1975
        %v5514 = vunpack.c.l.b16 %v1976
        %v5515 = vunpack.c.h.b16 %v1976
        %v5516 = vunpack.c.l.b16 %v1977
        %v5517 = vunpack.c.h.b16 %v1977
        %v5518 = vunpack.c.l.b16 %v1978
        %v5519 = vunpack.c.h.b16 %v1978
        %v5520 = vunpack.c.l.b16 %v1979
        %v5521 = vunpack.c.h.b16 %v1979
        %v5522 = vunpack.c.l.b16 %v1980
        %v5523 = vunpack.c.h.b16 %v1980
        %v5524 = vunpack.c.l.b16 %v1981
        %v5525 = vunpack.c.h.b16 %v1981
        %v5526 = vunpack.c.l.b16 %v1982
        %v5527 = vunpack.c.h.b16 %v1982
        %v5528 = vunpack.c.l.b16 %v1983
        %v5529 = vunpack.c.h.b16 %v1983
        %v5530 = vunpack.c.l.b16 %v1984
        %v5531 = vunpack.c.h.b16 %v1984
        %v5532 = vunpack.c.l.b16 %v1985
        %v5533 = vunpack.c.h.b16 %v1985
        %v5534 = vunpack.c.l.b16 %v1986
        %v5535 = vunpack.c.h.b16 %v1986
        %v5536 = vunpack.c.l.b16 %v1987
        %v5537 = vunpack.c.h.b16 %v1987
        %v5538 = vunpack.c.l.b16 %v1988
        %v5539 = vunpack.c.h.b16 %v1988
        %v5540 = vunpack.c.l.b16 %v1989
        %v5541 = vunpack.c.h.b16 %v1989
        %v5542 = vunpack.c.l.b16 %v1990
        %v5543 = vunpack.c.h.b16 %v1990
        %v5544 = vunpack.c.l.b16 %v1991
        %v5545 = vunpack.c.h.b16 %v1991
        %v5546 = vunpack.c.l.b16 %v1992
        %v5547 = vunpack.c.h.b16 %v1992
        %v5548 = vunpack.c.l.b16 %v1993
        %v5549 = vunpack.c.h.b16 %v1993
        %v5550 = vunpack.c.l.b16 %v1994
        %v5551 = vunpack.c.h.b16 %v1994
        %v5552 = vunpack.c.l.b16 %v1995
        %v5553 = vunpack.c.h.b16 %v1995
        %v5554 = vunpack.c.l.b16 %v1996
        %v5555 = vunpack.c.h.b16 %v1996
        %v5556 = vunpack.c.l.b16 %v1997
        %v5557 = vunpack.c.h.b16 %v1997
        %v5558 = vunpack.c.l.b16 %v1998
        %v5559 = vunpack.c.h.b16 %v1998
        %v5560 = vunpack.c.l.b16 %v1999
        %v5561 = vunpack.c.h.b16 %v1999
        %v5562 = vunpack.c.l.b16 %v2000
        %v5563 = vunpack.c.h.b16 %v2000
        %v5564 = vunpack.c.l.b16 %v2001
        %v5565 = vunpack.c.h.b16 %v2001
        %v5566 = vunpack.c.l.b16 %v2002
        %v5567 = vunpack.c.h.b16 %v2002
        %v5568 = vunpack.c.l.b16 %v2003
        %v5569 = vunpack.c.h.b16 %v2003
        %v5570 = vunpack.c.l.b16 %v2004
        %v5571 = vunpack.c.h.b16 %v2004
        %v5572 = vunpack.c.l.b16 %v2005
        %v5573 = vunpack.c.h.b16 %v2005
        %v5574 = vunpack.c.l.b16 %v2006
        %v5575 = vunpack.c.h.b16 %v2006
        %v5576 = vunpack.c.l.b16 %v2007
        %v5577 = vunpack.c.h.b16 %v2007
        %v5578 = vunpack.c.l.b16 %v2008
        %v5579 = vunpack.c.h.b16 %v2008
        %v5580 = vunpack.c.l.b16 %v2009
        %v5581 = vunpack.c.h.b16 %v2009
        %v5582 = vunpack.c.l.b16 %v2010
        %v5583 = vunpack.c.h.b16 %v2010
        %v5584 = vunpack.c.l.b16 %v2011
        %v5585 = vunpack.c.h.b16 %v2011
        %v5586 = vunpack.c.l.b16 %v2012
        %v5587 = vunpack.c.h.b16 %v2012
        %v5588 = vunpack.c.l.b16 %v2013
        %v5589 = vunpack.c.h.b16 %v2013
        %v5590 = vunpack.c.l.b16 %v2014
        %v5591 = vunpack.c.h.b16 %v2014
        %v5592 = vunpack.c.l.b16 %v2015
        %v5593 = vunpack.c.h.b16 %v2015
        %v5594 = vunpack.c.l.b16 %v2016
        %v5595 = vunpack.c.h.b16 %v2016
        %v5596 = vunpack.c.l.b16 %v2017
        %v5597 = vunpack.c.h.b16 %v2017
        %v5598 = vunpack.c.l.b16 %v2018
        %v5599 = vunpack.c.h.b16 %v2018
        %v5600 = vunpack.c.l.b16 %v2019
        %v5601 = vunpack.c.h.b16 %v2019
        %v5602 = vunpack.c.l.b16 %v2020
        %v5603 = vunpack.c.h.b16 %v2020
        %v5604 = vunpack.c.l.b16 %v2021
        %v5605 = vunpack.c.h.b16 %v2021
        %v5606 = vunpack.c.l.b16 %v2022
        %v5607 = vunpack.c.h.b16 %v2022
        %v5608 = vunpack.c.l.b16 %v2023
        %v5609 = vunpack.c.h.b16 %v2023
        %v5610 = vunpack.c.l.b16 %v2024
        %v5611 = vunpack.c.h.b16 %v2024
        %v5612 = vunpack.c.l.b16 %v2025
        %v5613 = vunpack.c.h.b16 %v2025
        %v5614 = vunpack.c.l.b16 %v2026
        %v5615 = vunpack.c.h.b16 %v2026
        %v5616 = vunpack.c.l.b16 %v2027
        %v5617 = vunpack.c.h.b16 %v2027
        %v5618 = vunpack.c.l.b16 %v2028
        %v5619 = vunpack.c.h.b16 %v2028
        %v5620 = vunpack.c.l.b16 %v2029
        %v5621 = vunpack.c.h.b16 %v2029
        %v5622 = vunpack.c.l.b16 %v2030
        %v5623 = vunpack.c.h.b16 %v2030
        %v5624 = vunpack.c.l.b16 %v2031
        %v5625 = vunpack.c.h.b16 %v2031
        %v5626 = vunpack.c.l.b16 %v2032
        %v5627 = vunpack.c.h.b16 %v2032
        %v5628 = vunpack.c.l.b16 %v2033
        %v5629 = vunpack.c.h.b16 %v2033
        %v5630 = vunpack.c.l.b16 %v2034
        %v5631 = vunpack.c.h.b16 %v2034
        %v5632 = vunpack.c.l.b16 %v2035
        %v5633 = vunpack.c.h.b16 %v2035
        %v5634 = vunpack.c.l.b16 %v2036
        %v5635 = vunpack.c.h.b16 %v2036
        %v5636 = vunpack.c.l.b16 %v2037
        %v5637 = vunpack.c.h.b16 %v2037
        %v5638 = vunpack.c.l.b16 %v2038
        %v5639 = vunpack.c.h.b16 %v2038
        %v5640 = vunpack.c.l.b16 %v2039
        %v5641 = vunpack.c.h.b16 %v2039
        %v5642 = vunpack.c.l.b16 %v2040
        %v5643 = vunpack.c.h.b16 %v2040
        %v5644 = vunpack.c.l.b16 %v2041
        %v5645 = vunpack.c.h.b16 %v2041
        %v5646 = vunpack.c.l.b16 %v2042
        %v5647 = vunpack.c.h.b16 %v2042
        %v5648 = vunpack.c.l.b16 %v2043
        %v5649 = vunpack.c.h.b16 %v2043
        %v5650 = vunpack.c.l.b16 %v2044
        %v5651 = vunpack.c.h.b16 %v2044
        %v5652 = vunpack.c.l.b16 %v2045
        %v5653 = vunpack.c.h.b16 %v2045
        %v5654 = vunpack.c.l.b16 %v2046
        %v5655 = vunpack.c.h.b16 %v2046
        %v5656 = vunpack.c.l.b16 %v2047
        %v5657 = vunpack.c.h.b16 %v2047
        %v5658 = vunpack.c.l.b16 %v2048
        %v5659 = vunpack.c.h.b16 %v2048
        %v5660 = vunpack.c.l.b16 %v2049
        %v5661 = vunpack.c.h.b16 %v2049
        %v5662 = vunpack.c.l.b16 %v2050
        %v5663 = vunpack.c.h.b16 %v2050
        %v5664 = vunpack.c.l.b16 %v2051
        %v5665 = vunpack.c.h.b16 %v2051
        %v5666 = vunpack.c.l.b16 %v2052
        %v5667 = vunpack.c.h.b16 %v2052
        %v5668 = vunpack.c.l.b16 %v2053
        %v5669 = vunpack.c.h.b16 %v2053
        %v5670 = vunpack.c.l.b16 %v2054
        %v5671 = vunpack.c.h.b16 %v2054
        %v5672 = vunpack.c.l.b16 %v2055
        %v5673 = vunpack.c.h.b16 %v2055
        %v5674 = vunpack.c.l.b16 %v2056
        %v5675 = vunpack.c.h.b16 %v2056
        %v5676 = vunpack.c.l.b16 %v2057
        %v5677 = vunpack.c.h.b16 %v2057
        %v5678 = vunpack.c.l.b16 %v2058
        %v5679 = vunpack.c.h.b16 %v2058
        %v5680 = vunpack.c.l.b16 %v2059
        %v5681 = vunpack.c.h.b16 %v2059
        %v5682 = vunpack.c.l.b16 %v2060
        %v5683 = vunpack.c.h.b16 %v2060
        %v5684 = vunpack.c.l.b16 %v2061
        %v5685 = vunpack.c.h.b16 %v2061
        %v5686 = vunpack.c.l.b16 %v2062
        %v5687 = vunpack.c.h.b16 %v2062
        %v5688 = vunpack.c.l.b16 %v2063
        %v5689 = vunpack.c.h.b16 %v2063
        %v5690 = vunpack.c.l.b16 %v2064
        %v5691 = vunpack.c.h.b16 %v2064
        %v5692 = vunpack.c.l.b16 %v2065
        %v5693 = vunpack.c.h.b16 %v2065
        %v5694 = vunpack.c.l.b16 %v2066
        %v5695 = vunpack.c.h.b16 %v2066
        %v5696 = vunpack.c.l.b16 %v2067
        %v5697 = vunpack.c.h.b16 %v2067
        %v5698 = vunpack.c.l.b16 %v2068
        %v5699 = vunpack.c.h.b16 %v2068
        %v5700 = vunpack.c.l.b16 %v2069
        %v5701 = vunpack.c.h.b16 %v2069
        %v5702 = vunpack.c.l.b16 %v2070
        %v5703 = vunpack.c.h.b16 %v2070
        %v5704 = vunpack.c.l.b16 %v2071
        %v5705 = vunpack.c.h.b16 %v2071
        %v5706 = vunpack.c.l.b16 %v2072
        %v5707 = vunpack.c.h.b16 %v2072
        %v5708 = vunpack.c.l.b16 %v2073
        %v5709 = vunpack.c.h.b16 %v2073
        %v5710 = vunpack.c.l.b16 %v2074
        %v5711 = vunpack.c.h.b16 %v2074
        %v5712 = vunpack.c.l.b16 %v2075
        %v5713 = vunpack.c.h.b16 %v2075
        %v5714 = vunpack.c.l.b16 %v2076
        %v5715 = vunpack.c.h.b16 %v2076
        %v5716 = vunpack.c.l.b16 %v2077
        %v5717 = vunpack.c.h.b16 %v2077
        %v5718 = vunpack.c.l.b16 %v2078
        %v5719 = vunpack.c.h.b16 %v2078
        %v5720 = vunpack.c.l.b16 %v2079
        %v5721 = vunpack.c.h.b16 %v2079
        %v5722 = vunpack.c.l.b16 %v2080
        %v5723 = vunpack.c.h.b16 %v2080
        %v5724 = vunpack.c.l.b16 %v2081
        %v5725 = vunpack.c.h.b16 %v2081
        %v5726 = vunpack.c.l.b16 %v2082
        %v5727 = vunpack.c.h.b16 %v2082
        %v5728 = vunpack.c.l.b16 %v2083
        %v5729 = vunpack.c.h.b16 %v2083
        %v5730 = vunpack.c.l.b16 %v2084
        %v5731 = vunpack.c.h.b16 %v2084
        %v5732 = vunpack.c.l.b16 %v2085
        %v5733 = vunpack.c.h.b16 %v2085
        %v5734 = vunpack.c.l.b16 %v2086
        %v5735 = vunpack.c.h.b16 %v2086
        %v5736 = vunpack.c.l.b16 %v2087
        %v5737 = vunpack.c.h.b16 %v2087
        %v5738 = vunpack.c.l.b16 %v2088
        %v5739 = vunpack.c.h.b16 %v2088
        %v5740 = vunpack.c.l.b16 %v2089
        %v5741 = vunpack.c.h.b16 %v2089
        %v5742 = vunpack.c.l.b16 %v2090
        %v5743 = vunpack.c.h.b16 %v2090
        %v5744 = vunpack.c.l.b16 %v2091
        %v5745 = vunpack.c.h.b16 %v2091
        %v5746 = vunpack.c.l.b16 %v2092
        %v5747 = vunpack.c.h.b16 %v2092
        %v5748 = vunpack.c.l.b16 %v2093
        %v5749 = vunpack.c.h.b16 %v2093
        %v5750 = vunpack.c.l.b16 %v2094
        %v5751 = vunpack.c.h.b16 %v2094
        %v5752 = vunpack.c.l.b16 %v2095
        %v5753 = vunpack.c.h.b16 %v2095
        %v5754 = vunpack.c.l.b16 %v2096
        %v5755 = vunpack.c.h.b16 %v2096
        %v5756 = vunpack.c.l.b16 %v2097
        %v5757 = vunpack.c.h.b16 %v2097
        %v5758 = vunpack.c.l.b16 %v2098
        %v5759 = vunpack.c.h.b16 %v2098
        %v5760 = vunpack.c.l.b16 %v2099
        %v5761 = vunpack.c.h.b16 %v2099
        %v5762 = vunpack.c.l.b16 %v2100
        %v5763 = vunpack.c.h.b16 %v2100
        %v5764 = vunpack.c.l.b16 %v2101
        %v5765 = vunpack.c.h.b16 %v2101
        %v5766 = vunpack.c.l.b16 %v2102
        %v5767 = vunpack.c.h.b16 %v2102
        %v5768 = vunpack.c.l.b16 %v2103
        %v5769 = vunpack.c.h.b16 %v2103
        %v5770 = vunpack.c.l.b16 %v2104
        %v5771 = vunpack.c.h.b16 %v2104
        %v5772 = vunpack.c.l.b16 %v2105
        %v5773 = vunpack.c.h.b16 %v2105
        %v5774 = vunpack.c.l.b16 %v2106
        %v5775 = vunpack.c.h.b16 %v2106
        %v5776 = vunpack.c.l.b16 %v2107
        %v5777 = vunpack.c.h.b16 %v2107
        %v5778 = vunpack.c.l.b16 %v2108
        %v5779 = vunpack.c.h.b16 %v2108
        %v5780 = vunpack.c.l.b16 %v2109
        %v5781 = vunpack.c.h.b16 %v2109
        %v5782 = vunpack.c.l.b16 %v2110
        %v5783 = vunpack.c.h.b16 %v2110
        %v5784 = vunpack.c.l.b16 %v2111
        %v5785 = vunpack.c.h.b16 %v2111
        %v5786 = vunpack.c.l.b16 %v2112
        %v5787 = vunpack.c.h.b16 %v2112
        %v5788 = vunpack.c.l.b16 %v2113
        %v5789 = vunpack.c.h.b16 %v2113
        %v5790 = vunpack.c.l.b16 %v2114
        %v5791 = vunpack.c.h.b16 %v2114
        %v5792 = vunpack.c.l.b16 %v2115
        %v5793 = vunpack.c.h.b16 %v2115
        %v5794 = vunpack.c.l.b16 %v2116
        %v5795 = vunpack.c.h.b16 %v2116
        %v5796 = vunpack.c.l.b16 %v2117
        %v5797 = vunpack.c.h.b16 %v2117
        %v5798 = vunpack.c.l.b16 %v2118
        %v5799 = vunpack.c.h.b16 %v2118
        %v5800 = vunpack.c.l.b16 %v2119
        %v5801 = vunpack.c.h.b16 %v2119
        %v5802 = vunpack.c.l.b16 %v2120
        %v5803 = vunpack.c.h.b16 %v2120
        %v5804 = vunpack.c.l.b16 %v2121
        %v5805 = vunpack.c.h.b16 %v2121
        %v5806 = vunpack.c.l.b16 %v2122
        %v5807 = vunpack.c.h.b16 %v2122
        %v5808 = vunpack.c.l.b16 %v2123
        %v5809 = vunpack.c.h.b16 %v2123
        %v5810 = vunpack.c.l.b16 %v2124
        %v5811 = vunpack.c.h.b16 %v2124
        %v5812 = vunpack.c.l.b16 %v2125
        %v5813 = vunpack.c.h.b16 %v2125
        %v5814 = vunpack.c.l.b16 %v2126
        %v5815 = vunpack.c.h.b16 %v2126
        %v5816 = vunpack.c.l.b16 %v2127
        %v5817 = vunpack.c.h.b16 %v2127
        %v5818 = vunpack.c.l.b16 %v2128
        %v5819 = vunpack.c.h.b16 %v2128
        %v5820 = vunpack.c.l.b16 %v2129
        %v5821 = vunpack.c.h.b16 %v2129
        %v5822 = vunpack.c.l.b16 %v2130
        %v5823 = vunpack.c.h.b16 %v2130
        %v5824 = vunpack.c.l.b16 %v2131
        %v5825 = vunpack.c.h.b16 %v2131
        %v5826 = vunpack.c.l.b16 %v2132
        %v5827 = vunpack.c.h.b16 %v2132
        %v5828 = vunpack.c.l.b16 %v2133
        %v5829 = vunpack.c.h.b16 %v2133
        %v5830 = vunpack.c.l.b16 %v2134
        %v5831 = vunpack.c.h.b16 %v2134
        %v5832 = vunpack.c.l.b16 %v2135
        %v5833 = vunpack.c.h.b16 %v2135
        %v5834 = vunpack.c.l.b16 %v2136
        %v5835 = vunpack.c.h.b16 %v2136
        %v5836 = vunpack.c.l.b16 %v2137
        %v5837 = vunpack.c.h.b16 %v2137
        %v5838 = vunpack.c.l.b16 %v2138
        %v5839 = vunpack.c.h.b16 %v2138
        %v5840 = vunpack.c.l.b16 %v2139
        %v5841 = vunpack.c.h.b16 %v2139
        %v5842 = vunpack.c.l.b16 %v2140
        %v5843 = vunpack.c.h.b16 %v2140
        %v5844 = vunpack.c.l.b16 %v2141
        %v5845 = vunpack.c.h.b16 %v2141
        %v5846 = vunpack.c.l.b16 %v2142
        %v5847 = vunpack.c.h.b16 %v2142
        %v5848 = vunpack.c.l.b16 %v2143
        %v5849 = vunpack.c.h.b16 %v2143
        %v5850 = vunpack.c.l.b16 %v2144
        %v5851 = vunpack.c.h.b16 %v2144
        %v5852 = vunpack.c.l.b16 %v2145
        %v5853 = vunpack.c.h.b16 %v2145
        %v5854 = vunpack.c.l.b16 %v2146
        %v5855 = vunpack.c.h.b16 %v2146
        %v5856 = vunpack.c.l.b16 %v2147
        %v5857 = vunpack.c.h.b16 %v2147
        %v5858 = vunpack.c.l.b16 %v2148
        %v5859 = vunpack.c.h.b16 %v2148
        %v5860 = vunpack.c.l.b16 %v2149
        %v5861 = vunpack.c.h.b16 %v2149
        %v5862 = vunpack.c.l.b16 %v2150
        %v5863 = vunpack.c.h.b16 %v2150
        %v5864 = vunpack.c.l.b16 %v2151
        %v5865 = vunpack.c.h.b16 %v2151
        %v5866 = vunpack.c.l.b16 %v2152
        %v5867 = vunpack.c.h.b16 %v2152
        %v5868 = vunpack.c.l.b16 %v2153
        %v5869 = vunpack.c.h.b16 %v2153
        %v5870 = vunpack.c.l.b16 %v2154
        %v5871 = vunpack.c.h.b16 %v2154
        %v5872 = vunpack.c.l.b16 %v2155
        %v5873 = vunpack.c.h.b16 %v2155
        %v5874 = vunpack.c.l.b16 %v2156
        %v5875 = vunpack.c.h.b16 %v2156
        %v5876 = vunpack.c.l.b16 %v2157
        %v5877 = vunpack.c.h.b16 %v2157
        %v5878 = vunpack.c.l.b16 %v2158
        %v5879 = vunpack.c.h.b16 %v2158
        %v5880 = vunpack.c.l.b16 %v2159
        %v5881 = vunpack.c.h.b16 %v2159
        %v5882 = vunpack.c.l.b16 %v2160
        %v5883 = vunpack.c.h.b16 %v2160
        %v5884 = vunpack.c.l.b16 %v2161
        %v5885 = vunpack.c.h.b16 %v2161
        %v5886 = vunpack.c.l.b16 %v2162
        %v5887 = vunpack.c.h.b16 %v2162
        %v5888 = vunpack.c.l.b16 %v2163
        %v5889 = vunpack.c.h.b16 %v2163
        %v5890 = vunpack.c.l.b16 %v2164
        %v5891 = vunpack.c.h.b16 %v2164
        %v5892 = vunpack.c.l.b16 %v2165
        %v5893 = vunpack.c.h.b16 %v2165
        %v5894 = vunpack.c.l.b16 %v2166
        %v5895 = vunpack.c.h.b16 %v2166
        %v5896 = vunpack.c.l.b16 %v2167
        %v5897 = vunpack.c.h.b16 %v2167
        %v5898 = vunpack.c.l.b16 %v2168
        %v5899 = vunpack.c.h.b16 %v2168
        %v5900 = vunpack.c.l.b16 %v2169
        %v5901 = vunpack.c.h.b16 %v2169
        %v5902 = vunpack.c.l.b16 %v2170
        %v5903 = vunpack.c.h.b16 %v2170
        %v5904 = vunpack.c.l.b16 %v2171
        %v5905 = vunpack.c.h.b16 %v2171
        %v5906 = vunpack.c.l.b16 %v2172
        %v5907 = vunpack.c.h.b16 %v2172
        %v5908 = vunpack.c.l.b16 %v2173
        %v5909 = vunpack.c.h.b16 %v2173
        %v5910 = vunpack.c.l.b16 %v2174
        %v5911 = vunpack.c.h.b16 %v2174
        %v5912 = vunpack.c.l.b16 %v2175
        %v5913 = vunpack.c.h.b16 %v2175
        %v5914 = vunpack.c.l.b16 %v2176
        %v5915 = vunpack.c.h.b16 %v2176
        %v5916 = vunpack.c.l.b16 %v2177
        %v5917 = vunpack.c.h.b16 %v2177
        %v5918 = vunpack.c.l.b16 %v2178
        %v5919 = vunpack.c.h.b16 %v2178
        %v5920 = vunpack.c.l.b16 %v2179
        %v5921 = vunpack.c.h.b16 %v2179
        %v5922 = vunpack.c.l.b16 %v2180
        %v5923 = vunpack.c.h.b16 %v2180
        %v5924 = vunpack.c.l.b16 %v2181
        %v5925 = vunpack.c.h.b16 %v2181
        %v5926 = vunpack.c.l.b16 %v2182
        %v5927 = vunpack.c.h.b16 %v2182
        %v5928 = vunpack.c.l.b16 %v2183
        %v5929 = vunpack.c.h.b16 %v2183
        %v5930 = vunpack.c.l.b16 %v2184
        %v5931 = vunpack.c.h.b16 %v2184
        %v5932 = vunpack.c.l.b16 %v2185
        %v5933 = vunpack.c.h.b16 %v2185
        %v5934 = vunpack.c.l.b16 %v2186
        %v5935 = vunpack.c.h.b16 %v2186
        %v5936 = vunpack.c.l.b16 %v2187
        %v5937 = vunpack.c.h.b16 %v2187
        %v5938 = vunpack.c.l.b16 %v2188
        %v5939 = vunpack.c.h.b16 %v2188
        %v5940 = vunpack.c.l.b16 %v2189
        %v5941 = vunpack.c.h.b16 %v2189
        %v5942 = vunpack.c.l.b16 %v2190
        %v5943 = vunpack.c.h.b16 %v2190
        %v5944 = vunpack.c.l.b16 %v2191
        %v5945 = vunpack.c.h.b16 %v2191
        %v5946 = vunpack.c.l.b16 %v2192
        %v5947 = vunpack.c.h.b16 %v2192
        %v5948 = vunpack.c.l.b16 %v2193
        %v5949 = vunpack.c.h.b16 %v2193
        %v5950 = vunpack.c.l.b16 %v2194
        %v5951 = vunpack.c.h.b16 %v2194
        %v5952 = vunpack.c.l.b16 %v2195
        %v5953 = vunpack.c.h.b16 %v2195
        %v5954 = vunpack.c.l.b16 %v2196
        %v5955 = vunpack.c.h.b16 %v2196
        %v5956 = vunpack.c.l.b16 %v2197
        %v5957 = vunpack.c.h.b16 %v2197
        %v5958 = vunpack.c.l.b16 %v2198
        %v5959 = vunpack.c.h.b16 %v2198
        %v5960 = vunpack.c.l.b16 %v2199
        %v5961 = vunpack.c.h.b16 %v2199
        %v5962 = vunpack.c.l.b16 %v2200
        %v5963 = vunpack.c.h.b16 %v2200
        %v5964 = vunpack.c.l.b16 %v2201
        %v5965 = vunpack.c.h.b16 %v2201
        %v5966 = vunpack.c.l.b16 %v2202
        %v5967 = vunpack.c.h.b16 %v2202
        %v5968 = vunpack.c.l.b16 %v2203
        %v5969 = vunpack.c.h.b16 %v2203
        %v5970 = vunpack.c.l.b16 %v2204
        %v5971 = vunpack.c.h.b16 %v2204
        %v5972 = vunpack.c.l.b16 %v2205
        %v5973 = vunpack.c.h.b16 %v2205
        %v5974 = vunpack.c.l.b16 %v2206
        %v5975 = vunpack.c.h.b16 %v2206
        %v5976 = vunpack.c.l.b16 %v2207
        %v5977 = vunpack.c.h.b16 %v2207
        %v5978 = vunpack.c.l.b16 %v2208
        %v5979 = vunpack.c.h.b16 %v2208
        %v5980 = vunpack.c.l.b16 %v2209
        %v5981 = vunpack.c.h.b16 %v2209
        %v5982 = vunpack.c.l.b16 %v2210
        %v5983 = vunpack.c.h.b16 %v2210
        %v5984 = vunpack.c.l.b16 %v2211
        %v5985 = vunpack.c.h.b16 %v2211
        %v5986 = vunpack.c.l.b16 %v2212
        %v5987 = vunpack.c.h.b16 %v2212
        %v5988 = vunpack.c.l.b16 %v2213
        %v5989 = vunpack.c.h.b16 %v2213
        %v5990 = vunpack.c.l.b16 %v2214
        %v5991 = vunpack.c.h.b16 %v2214
        %v5992 = vunpack.c.l.b16 %v2215
        %v5993 = vunpack.c.h.b16 %v2215
        %v5994 = vunpack.c.l.b16 %v2216
        %v5995 = vunpack.c.h.b16 %v2216
        %v5996 = vunpack.c.l.b16 %v2217
        %v5997 = vunpack.c.h.b16 %v2217
        %v5998 = vunpack.c.l.b16 %v2218
        %v5999 = vunpack.c.h.b16 %v2218
        %v6000 = vunpack.c.l.b16 %v2219
        %v6001 = vunpack.c.h.b16 %v2219
        %v6002 = vunpack.c.l.b16 %v2220
        %v6003 = vunpack.c.h.b16 %v2220
        %v6004 = vunpack.c.l.b16 %v2221
        %v6005 = vunpack.c.h.b16 %v2221
        %v6006 = vunpack.c.l.b16 %v2222
        %v6007 = vunpack.c.h.b16 %v2222
        %v6008 = vunpack.c.l.b16 %v2223
        %v6009 = vunpack.c.h.b16 %v2223
        %v6010 = vunpack.c.l.b16 %v2224
        %v6011 = vunpack.c.h.b16 %v2224
        %v6012 = vunpack.c.l.b16 %v2225
        %v6013 = vunpack.c.h.b16 %v2225
        %v6014 = vunpack.c.l.b16 %v2226
        %v6015 = vunpack.c.h.b16 %v2226
        %v6016 = vunpack.c.l.b16 %v2227
        %v6017 = vunpack.c.h.b16 %v2227
        %v6018 = vunpack.c.l.b16 %v2228
        %v6019 = vunpack.c.h.b16 %v2228
        %v6020 = vunpack.c.l.b16 %v2229
        %v6021 = vunpack.c.h.b16 %v2229
        %v6022 = vunpack.c.l.b16 %v2230
        %v6023 = vunpack.c.h.b16 %v2230
        %v6024 = vunpack.c.l.b16 %v2231
        %v6025 = vunpack.c.h.b16 %v2231
        %v6026 = vunpack.c.l.b16 %v2232
        %v6027 = vunpack.c.h.b16 %v2232
        %v6028 = vunpack.c.l.b16 %v2233
        %v6029 = vunpack.c.h.b16 %v2233
        %v6030 = vunpack.c.l.b16 %v2234
        %v6031 = vunpack.c.h.b16 %v2234
        %v6032 = vunpack.c.l.b16 %v2235
        %v6033 = vunpack.c.h.b16 %v2235
        %v6034 = vunpack.c.l.b16 %v2236
        %v6035 = vunpack.c.h.b16 %v2236
        %v6036 = vunpack.c.l.b16 %v2237
        %v6037 = vunpack.c.h.b16 %v2237
        %v6038 = vunpack.c.l.b16 %v2238
        %v6039 = vunpack.c.h.b16 %v2238
        %v6040 = vunpack.c.l.b16 %v2239
        %v6041 = vunpack.c.h.b16 %v2239
        %v6042 = vunpack.c.l.b16 %v2240
        %v6043 = vunpack.c.h.b16 %v2240
        %v6044 = vunpack.c.l.b16 %v2241
        %v6045 = vunpack.c.h.b16 %v2241
        %v6046 = vunpack.c.l.b16 %v2242
        %v6047 = vunpack.c.h.b16 %v2242
        %v6048 = vunpack.c.l.b16 %v2243
        %v6049 = vunpack.c.h.b16 %v2243
        %v6050 = vunpack.c.l.b16 %v2244
        %v6051 = vunpack.c.h.b16 %v2244
        %v6052 = vunpack.c.l.b16 %v2245
        %v6053 = vunpack.c.h.b16 %v2245
        %v6054 = vunpack.c.l.b16 %v2246
        %v6055 = vunpack.c.h.b16 %v2246
        %v6056 = vunpack.c.l.b16 %v2247
        %v6057 = vunpack.c.h.b16 %v2247
        %v6058 = vunpack.c.l.b16 %v2248
        %v6059 = vunpack.c.h.b16 %v2248
        %v6060 = vunpack.c.l.b16 %v2249
        %v6061 = vunpack.c.h.b16 %v2249
        %v6062 = vunpack.c.l.b16 %v2250
        %v6063 = vunpack.c.h.b16 %v2250
        %v6064 = vunpack.c.l.b16 %v2251
        %v6065 = vunpack.c.h.b16 %v2251
        %v6066 = vunpack.c.l.b16 %v2252
        %v6067 = vunpack.c.h.b16 %v2252
        %v6068 = vunpack.c.l.b16 %v2253
        %v6069 = vunpack.c.h.b16 %v2253
        %v6070 = vunpack.c.l.b16 %v2254
        %v6071 = vunpack.c.h.b16 %v2254
        %v6072 = vunpack.c.l.b16 %v2255
        %v6073 = vunpack.c.h.b16 %v2255
        %v6074 = vunpack.c.l.b16 %v2256
        %v6075 = vunpack.c.h.b16 %v2256
        %v6076 = vunpack.c.l.b16 %v2257
        %v6077 = vunpack.c.h.b16 %v2257
        %v6078 = vunpack.c.l.b16 %v2258
        %v6079 = vunpack.c.h.b16 %v2258
        %v6080 = vunpack.c.l.b16 %v2259
        %v6081 = vunpack.c.h.b16 %v2259
        %v6082 = vunpack.c.l.b16 %v2260
        %v6083 = vunpack.c.h.b16 %v2260
        %v6084 = vunpack.c.l.b16 %v2261
        %v6085 = vunpack.c.h.b16 %v2261
        %v6086 = vunpack.c.l.b16 %v2262
        %v6087 = vunpack.c.h.b16 %v2262
        %v6088 = vunpack.c.l.b16 %v2263
        %v6089 = vunpack.c.h.b16 %v2263
        %v6090 = vunpack.c.l.b16 %v2264
        %v6091 = vunpack.c.h.b16 %v2264
        %v6092 = vunpack.c.l.b16 %v2265
        %v6093 = vunpack.c.h.b16 %v2265
        %v6094 = vunpack.c.l.b16 %v2266
        %v6095 = vunpack.c.h.b16 %v2266
        %v6096 = vunpack.c.l.b16 %v2267
        %v6097 = vunpack.c.h.b16 %v2267
        %v6098 = vunpack.c.l.b16 %v2268
        %v6099 = vunpack.c.h.b16 %v2268
        %v6100 = vunpack.c.l.b16 %v2269
        %v6101 = vunpack.c.h.b16 %v2269
        %v6102 = vunpack.c.l.b16 %v2270
        %v6103 = vunpack.c.h.b16 %v2270
        %v6104 = vunpack.c.l.b16 %v2271
        %v6105 = vunpack.c.h.b16 %v2271
        %v6106 = vunpack.c.l.b16 %v2272
        %v6107 = vunpack.c.h.b16 %v2272
        %v6108 = vunpack.c.l.b16 %v2273
        %v6109 = vunpack.c.h.b16 %v2273
        %v6110 = vunpack.c.l.b16 %v2274
        %v6111 = vunpack.c.h.b16 %v2274
        %v6112 = vunpack.c.l.b16 %v2275
        %v6113 = vunpack.c.h.b16 %v2275
        %v6114 = vunpack.c.l.b16 %v2276
        %v6115 = vunpack.c.h.b16 %v2276
        %v6116 = vunpack.c.l.b16 %v2277
        %v6117 = vunpack.c.h.b16 %v2277
        %v6118 = vunpack.c.l.b16 %v2278
        %v6119 = vunpack.c.h.b16 %v2278
        %v6120 = vunpack.c.l.b16 %v2279
        %v6121 = vunpack.c.h.b16 %v2279
        %v6122 = vunpack.c.l.b16 %v2280
        %v6123 = vunpack.c.h.b16 %v2280
        %v6124 = vunpack.c.l.b16 %v2281
        %v6125 = vunpack.c.h.b16 %v2281
        %v6126 = vunpack.c.l.b16 %v2282
        %v6127 = vunpack.c.h.b16 %v2282
        %v6128 = vunpack.c.l.b16 %v2283
        %v6129 = vunpack.c.h.b16 %v2283
        %v6130 = vunpack.c.l.b16 %v2284
        %v6131 = vunpack.c.h.b16 %v2284
        %v6132 = vunpack.c.l.b16 %v2285
        %v6133 = vunpack.c.h.b16 %v2285
        %v6134 = vunpack.c.l.b16 %v2286
        %v6135 = vunpack.c.h.b16 %v2286
        %v6136 = vunpack.c.l.b16 %v2287
        %v6137 = vunpack.c.h.b16 %v2287
        %v6138 = vunpack.c.l.b16 %v2288
        %v6139 = vunpack.c.h.b16 %v2288
        %v6140 = vunpack.c.l.b16 %v2289
        %v6141 = vunpack.c.h.b16 %v2289
        %v6142 = vunpack.c.l.b16 %v2290
        %v6143 = vunpack.c.h.b16 %v2290
        %v6144 = vunpack.c.l.b16 %v2291
        %v6145 = vunpack.c.h.b16 %v2291
        %v6146 = vunpack.c.l.b16 %v2292
        %v6147 = vunpack.c.h.b16 %v2292
        %v6148 = vunpack.c.l.b16 %v2293
        %v6149 = vunpack.c.h.b16 %v2293
        %v6150 = vunpack.c.l.b16 %v2294
        %v6151 = vunpack.c.h.b16 %v2294
        %v6152 = vunpack.c.l.b16 %v2295
        %v6153 = vunpack.c.h.b16 %v2295
        %v6154 = vunpack.c.l.b16 %v2296
        %v6155 = vunpack.c.h.b16 %v2296
        %v6156 = vunpack.c.l.b16 %v2297
        %v6157 = vunpack.c.h.b16 %v2297
        %v6158 = vunpack.c.l.b16 %v2298
        %v6159 = vunpack.c.h.b16 %v2298
        %v6160 = vunpack.c.l.b16 %v2299
        %v6161 = vunpack.c.h.b16 %v2299
        %v6162 = vunpack.c.l.b16 %v2300
        %v6163 = vunpack.c.h.b16 %v2300
        %v6164 = vunpack.c.l.b16 %v2301
        %v6165 = vunpack.c.h.b16 %v2301
        %v6166 = vunpack.c.l.b16 %v2302
        %v6167 = vunpack.c.h.b16 %v2302
        %v6168 = vunpack.c.l.b16 %v2303
        %v6169 = vunpack.c.h.b16 %v2303
        %v6170 = vpack.c.b16 %v3614, %v3610
        %v6171 = vpack.c.b16 %v3615, %v3611
        %v6172 = vpack.c.b16 %v3616, %v3612
        %v6173 = vpack.c.b16 %v3617, %v3613
        %v6174 = vpack.c.b16 %v3622, %v3618
        %v6175 = vpack.c.b16 %v3623, %v3619
        %v6176 = vpack.c.b16 %v3624, %v3620
        %v6177 = vpack.c.b16 %v3625, %v3621
        %v6178 = vpack.c.b16 %v3630, %v3626
        %v6179 = vpack.c.b16 %v3631, %v3627
        %v6180 = vpack.c.b16 %v3632, %v3628
        %v6181 = vpack.c.b16 %v3633, %v3629
        %v6182 = vpack.c.b16 %v3638, %v3634
        %v6183 = vpack.c.b16 %v3639, %v3635
        %v6184 = vpack.c.b16 %v3640, %v3636
        %v6185 = vpack.c.b16 %v3641, %v3637
        %v6186 = vpack.c.b16 %v3646, %v3642
        %v6187 = vpack.c.b16 %v3647, %v3643
        %v6188 = vpack.c.b16 %v3648, %v3644
        %v6189 = vpack.c.b16 %v3649, %v3645
        %v6190 = vpack.c.b16 %v3654, %v3650
        %v6191 = vpack.c.b16 %v3655, %v3651
        %v6192 = vpack.c.b16 %v3656, %v3652
        %v6193 = vpack.c.b16 %v3657, %v3653
        %v6194 = vpack.c.b16 %v3662, %v3658
        %v6195 = vpack.c.b16 %v3663, %v3659
        %v6196 = vpack.c.b16 %v3664, %v3660
        %v6197 = vpack.c.b16 %v3665, %v3661
        %v6198 = vpack.c.b16 %v3670, %v3666
        %v6199 = vpack.c.b16 %v3671, %v3667
        %v6200 = vpack.c.b16 %v3672, %v3668
        %v6201 = vpack.c.b16 %v3673, %v3669
        %v6202 = vpack.c.b16 %v3678, %v3674
        %v6203 = vpack.c.b16 %v3679, %v3675
        %v6204 = vpack.c.b16 %v3680, %v3676
        %v6205 = vpack.c.b16 %v3681, %v3677
        %v6206 = vpack.c.b16 %v3686, %v3682
        %v6207 = vpack.c.b16 %v3687, %v3683
        %v6208 = vpack.c.b16 %v3688, %v3684
        %v6209 = vpack.c.b16 %v3689, %v3685
        %v6210 = vpack.c.b16 %v3694, %v3690
        %v6211 = vpack.c.b16 %v3695, %v3691
        %v6212 = vpack.c.b16 %v3696, %v3692
        %v6213 = vpack.c.b16 %v3697, %v3693
        %v6214 = vpack.c.b16 %v3702, %v3698
        %v6215 = vpack.c.b16 %v3703, %v3699
        %v6216 = vpack.c.b16 %v3704, %v3700
        %v6217 = vpack.c.b16 %v3705, %v3701
        %v6218 = vpack.c.b16 %v3710, %v3706
        %v6219 = vpack.c.b16 %v3711, %v3707
        %v6220 = vpack.c.b16 %v3712, %v3708
        %v6221 = vpack.c.b16 %v3713, %v3709
        %v6222 = vpack.c.b16 %v3718, %v3714
        %v6223 = vpack.c.b16 %v3719, %v3715
        %v6224 = vpack.c.b16 %v3720, %v3716
        %v6225 = vpack.c.b16 %v3721, %v3717
        %v6226 = vpack.c.b16 %v3726, %v3722
        %v6227 = vpack.c.b16 %v3727, %v3723
        %v6228 = vpack.c.b16 %v3728, %v3724
        %v6229 = vpack.c.b16 %v3729, %v3725
        %v6230 = vpack.c.b16 %v3734, %v3730
        %v6231 = vpack.c.b16 %v3735, %v3731
        %v6232 = vpack.c.b16 %v3736, %v3732
        %v6233 = vpack.c.b16 %v3737, %v3733
        %v6234 = vpack.c.b16 %v3742, %v3738
        %v6235 = vpack.c.b16 %v3743, %v3739
        %v6236 = vpack.c.b16 %v3744, %v3740
        %v6237 = vpack.c.b16 %v3745, %v3741
        %v6238 = vpack.c.b16 %v3750, %v3746
        %v6239 = vpack.c.b16 %v3751, %v3747
        %v6240 = vpack.c.b16 %v3752, %v3748
        %v6241 = vpack.c.b16 %v3753, %v3749
        %v6242 = vpack.c.b16 %v3758, %v3754
        %v6243 = vpack.c.b16 %v3759, %v3755
        %v6244 = vpack.c.b16 %v3760, %v3756
        %v6245 = vpack.c.b16 %v3761, %v3757
        %v6246 = vpack.c.b16 %v3766, %v3762
        %v6247 = vpack.c.b16 %v3767, %v3763
        %v6248 = vpack.c.b16 %v3768, %v3764
        %v6249 = vpack.c.b16 %v3769, %v3765
        %v6250 = vpack.c.b16 %v3774, %v3770
        %v6251 = vpack.c.b16 %v3775, %v3771
        %v6252 = vpack.c.b16 %v3776, %v3772
        %v6253 = vpack.c.b16 %v3777, %v3773
        %v6254 = vpack.c.b16 %v3782, %v3778
        %v6255 = vpack.c.b16 %v3783, %v3779
        %v6256 = vpack.c.b16 %v3784, %v3780
        %v6257 = vpack.c.b16 %v3785, %v3781
        %v6258 = vpack.c.b16 %v3790, %v3786
        %v6259 = vpack.c.b16 %v3791, %v3787
        %v6260 = vpack.c.b16 %v3792, %v3788
        %v6261 = vpack.c.b16 %v3793, %v3789
        %v6262 = vpack.c.b16 %v3798, %v3794
        %v6263 = vpack.c.b16 %v3799, %v3795
        %v6264 = vpack.c.b16 %v3800, %v3796
        %v6265 = vpack.c.b16 %v3801, %v3797
        %v6266 = vpack.c.b16 %v3806, %v3802
        %v6267 = vpack.c.b16 %v3807, %v3803
        %v6268 = vpack.c.b16 %v3808, %v3804
        %v6269 = vpack.c.b16 %v3809, %v3805
        %v6270 = vpack.c.b16 %v3814, %v3810
        %v6271 = vpack.c.b16 %v3815, %v3811
        %v6272 = vpack.c.b16 %v3816, %v3812
        %v6273 = vpack.c.b16 %v3817, %v3813
        %v6274 = vpack.c.b16 %v3822, %v3818
        %v6275 = vpack.c.b16 %v3823, %v3819
        %v6276 = vpack.c.b16 %v3824, %v3820
        %v6277 = vpack.c.b16 %v3825, %v3821
        %v6278 = vpack.c.b16 %v3830, %v3826
        %v6279 = vpack.c.b16 %v3831, %v3827
        %v6280 = vpack.c.b16 %v3832, %v3828
        %v6281 = vpack.c.b16 %v3833, %v3829
        %v6282 = vpack.c.b16 %v3838, %v3834
        %v6283 = vpack.c.b16 %v3839, %v3835
        %v6284 = vpack.c.b16 %v3840, %v3836
        %v6285 = vpack.c.b16 %v3841, %v3837
        %v6286 = vpack.c.b16 %v3846, %v3842
        %v6287 = vpack.c.b16 %v3847, %v3843
        %v6288 = vpack.c.b16 %v3848, %v3844
        %v6289 = vpack.c.b16 %v3849, %v3845
        %v6290 = vpack.c.b16 %v3854, %v3850
        %v6291 = vpack.c.b16 %v3855, %v3851
        %v6292 = vpack.c.b16 %v3856, %v3852
        %v6293 = vpack.c.b16 %v3857, %v3853
        %v6294 = vpack.c.b16 %v3862, %v3858
        %v6295 = vpack.c.b16 %v3863, %v3859
        %v6296 = vpack.c.b16 %v3864, %v3860
        %v6297 = vpack.c.b16 %v3865, %v3861
        %v6298 = vpack.c.b16 %v3870, %v3866
        %v6299 = vpack.c.b16 %v3871, %v3867
        %v6300 = vpack.c.b16 %v3872, %v3868
        %v6301 = vpack.c.b16 %v3873, %v3869
        %v6302 = vpack.c.b16 %v3878, %v3874
        %v6303 = vpack.c.b16 %v3879, %v3875
        %v6304 = vpack.c.b16 %v3880, %v3876
        %v6305 = vpack.c.b16 %v3881, %v3877
        %v6306 = vpack.c.b16 %v3886, %v3882
        %v6307 = vpack.c.b16 %v3887, %v3883
        %v6308 = vpack.c.b16 %v3888, %v3884
        %v6309 = vpack.c.b16 %v3889, %v3885
        %v6310 = vpack.c.b16 %v3894, %v3890
        %v6311 = vpack.c.b16 %v3895, %v3891
        %v6312 = vpack.c.b16 %v3896, %v3892
        %v6313 = vpack.c.b16 %v3897, %v3893
        %v6314 = vpack.c.b16 %v3902, %v3898
        %v6315 = vpack.c.b16 %v3903, %v3899
        %v6316 = vpack.c.b16 %v3904, %v3900
        %v6317 = vpack.c.b16 %v3905, %v3901
        %v6318 = vpack.c.b16 %v3910, %v3906
        %v6319 = vpack.c.b16 %v3911, %v3907
        %v6320 = vpack.c.b16 %v3912, %v3908
        %v6321 = vpack.c.b16 %v3913, %v3909
        %v6322 = vpack.c.b16 %v3918, %v3914
        %v6323 = vpack.c.b16 %v3919, %v3915
        %v6324 = vpack.c.b16 %v3920, %v3916
        %v6325 = vpack.c.b16 %v3921, %v3917
        %v6326 = vpack.c.b16 %v3926, %v3922
        %v6327 = vpack.c.b16 %v3927, %v3923
        %v6328 = vpack.c.b16 %v3928, %v3924
        %v6329 = vpack.c.b16 %v3929, %v3925
        %v6330 = vpack.c.b16 %v3934, %v3930
        %v6331 = vpack.c.b16 %v3935, %v3931
        %v6332 = vpack.c.b16 %v3936, %v3932
        %v6333 = vpack.c.b16 %v3937, %v3933
        %v6334 = vpack.c.b16 %v3942, %v3938
        %v6335 = vpack.c.b16 %v3943, %v3939
        %v6336 = vpack.c.b16 %v3944, %v3940
        %v6337 = vpack.c.b16 %v3945, %v3941
        %v6338 = vpack.c.b16 %v3950, %v3946
        %v6339 = vpack.c.b16 %v3951, %v3947
        %v6340 = vpack.c.b16 %v3952, %v3948
        %v6341 = vpack.c.b16 %v3953, %v3949
        %v6342 = vpack.c.b16 %v3958, %v3954
        %v6343 = vpack.c.b16 %v3959, %v3955
        %v6344 = vpack.c.b16 %v3960, %v3956
        %v6345 = vpack.c.b16 %v3961, %v3957
        %v6346 = vpack.c.b16 %v3966, %v3962
        %v6347 = vpack.c.b16 %v3967, %v3963
        %v6348 = vpack.c.b16 %v3968, %v3964
        %v6349 = vpack.c.b16 %v3969, %v3965
        %v6350 = vpack.c.b16 %v3974, %v3970
        %v6351 = vpack.c.b16 %v3975, %v3971
        %v6352 = vpack.c.b16 %v3976, %v3972
        %v6353 = vpack.c.b16 %v3977, %v3973
        %v6354 = vpack.c.b16 %v3982, %v3978
        %v6355 = vpack.c.b16 %v3983, %v3979
        %v6356 = vpack.c.b16 %v3984, %v3980
        %v6357 = vpack.c.b16 %v3985, %v3981
        %v6358 = vpack.c.b16 %v3990, %v3986
        %v6359 = vpack.c.b16 %v3991, %v3987
        %v6360 = vpack.c.b16 %v3992, %v3988
        %v6361 = vpack.c.b16 %v3993, %v3989
        %v6362 = vpack.c.b16 %v3998, %v3994
        %v6363 = vpack.c.b16 %v3999, %v3995
        %v6364 = vpack.c.b16 %v4000, %v3996
        %v6365 = vpack.c.b16 %v4001, %v3997
        %v6366 = vpack.c.b16 %v4006, %v4002
        %v6367 = vpack.c.b16 %v4007, %v4003
        %v6368 = vpack.c.b16 %v4008, %v4004
        %v6369 = vpack.c.b16 %v4009, %v4005
        %v6370 = vpack.c.b16 %v4014, %v4010
        %v6371 = vpack.c.b16 %v4015, %v4011
        %v6372 = vpack.c.b16 %v4016, %v4012
        %v6373 = vpack.c.b16 %v4017, %v4013
        %v6374 = vpack.c.b16 %v4022, %v4018
        %v6375 = vpack.c.b16 %v4023, %v4019
        %v6376 = vpack.c.b16 %v4024, %v4020
        %v6377 = vpack.c.b16 %v4025, %v4021
        %v6378 = vpack.c.b16 %v4030, %v4026
        %v6379 = vpack.c.b16 %v4031, %v4027
        %v6380 = vpack.c.b16 %v4032, %v4028
        %v6381 = vpack.c.b16 %v4033, %v4029
        %v6382 = vpack.c.b16 %v4038, %v4034
        %v6383 = vpack.c.b16 %v4039, %v4035
        %v6384 = vpack.c.b16 %v4040, %v4036
        %v6385 = vpack.c.b16 %v4041, %v4037
        %v6386 = vpack.c.b16 %v4046, %v4042
        %v6387 = vpack.c.b16 %v4047, %v4043
        %v6388 = vpack.c.b16 %v4048, %v4044
        %v6389 = vpack.c.b16 %v4049, %v4045
        %v6390 = vpack.c.b16 %v4054, %v4050
        %v6391 = vpack.c.b16 %v4055, %v4051
        %v6392 = vpack.c.b16 %v4056, %v4052
        %v6393 = vpack.c.b16 %v4057, %v4053
        %v6394 = vpack.c.b16 %v4062, %v4058
        %v6395 = vpack.c.b16 %v4063, %v4059
        %v6396 = vpack.c.b16 %v4064, %v4060
        %v6397 = vpack.c.b16 %v4065, %v4061
        %v6398 = vpack.c.b16 %v4070, %v4066
        %v6399 = vpack.c.b16 %v4071, %v4067
        %v6400 = vpack.c.b16 %v4072, %v4068
        %v6401 = vpack.c.b16 %v4073, %v4069
        %v6402 = vpack.c.b16 %v4078, %v4074
        %v6403 = vpack.c.b16 %v4079, %v4075
        %v6404 = vpack.c.b16 %v4080, %v4076
        %v6405 = vpack.c.b16 %v4081, %v4077
        %v6406 = vpack.c.b16 %v4086, %v4082
        %v6407 = vpack.c.b16 %v4087, %v4083
        %v6408 = vpack.c.b16 %v4088, %v4084
        %v6409 = vpack.c.b16 %v4089, %v4085
        %v6410 = vpack.c.b16 %v4094, %v4090
        %v6411 = vpack.c.b16 %v4095, %v4091
        %v6412 = vpack.c.b16 %v4096, %v4092
        %v6413 = vpack.c.b16 %v4097, %v4093
        %v6414 = vpack.c.b16 %v4102, %v4098
        %v6415 = vpack.c.b16 %v4103, %v4099
        %v6416 = vpack.c.b16 %v4104, %v4100
        %v6417 = vpack.c.b16 %v4105, %v4101
        %v6418 = vpack.c.b16 %v4110, %v4106
        %v6419 = vpack.c.b16 %v4111, %v4107
        %v6420 = vpack.c.b16 %v4112, %v4108
        %v6421 = vpack.c.b16 %v4113, %v4109
        %v6422 = vpack.c.b16 %v4118, %v4114
        %v6423 = vpack.c.b16 %v4119, %v4115
        %v6424 = vpack.c.b16 %v4120, %v4116
        %v6425 = vpack.c.b16 %v4121, %v4117
        %v6426 = vpack.c.b16 %v4126, %v4122
        %v6427 = vpack.c.b16 %v4127, %v4123
        %v6428 = vpack.c.b16 %v4128, %v4124
        %v6429 = vpack.c.b16 %v4129, %v4125
        %v6430 = vpack.c.b16 %v4134, %v4130
        %v6431 = vpack.c.b16 %v4135, %v4131
        %v6432 = vpack.c.b16 %v4136, %v4132
        %v6433 = vpack.c.b16 %v4137, %v4133
        %v6434 = vpack.c.b16 %v4142, %v4138
        %v6435 = vpack.c.b16 %v4143, %v4139
        %v6436 = vpack.c.b16 %v4144, %v4140
        %v6437 = vpack.c.b16 %v4145, %v4141
        %v6438 = vpack.c.b16 %v4150, %v4146
        %v6439 = vpack.c.b16 %v4151, %v4147
        %v6440 = vpack.c.b16 %v4152, %v4148
        %v6441 = vpack.c.b16 %v4153, %v4149
        %v6442 = vpack.c.b16 %v4158, %v4154
        %v6443 = vpack.c.b16 %v4159, %v4155
        %v6444 = vpack.c.b16 %v4160, %v4156
        %v6445 = vpack.c.b16 %v4161, %v4157
        %v6446 = vpack.c.b16 %v4166, %v4162
        %v6447 = vpack.c.b16 %v4167, %v4163
        %v6448 = vpack.c.b16 %v4168, %v4164
        %v6449 = vpack.c.b16 %v4169, %v4165
        %v6450 = vpack.c.b16 %v4174, %v4170
        %v6451 = vpack.c.b16 %v4175, %v4171
        %v6452 = vpack.c.b16 %v4176, %v4172
        %v6453 = vpack.c.b16 %v4177, %v4173
        %v6454 = vpack.c.b16 %v4182, %v4178
        %v6455 = vpack.c.b16 %v4183, %v4179
        %v6456 = vpack.c.b16 %v4184, %v4180
        %v6457 = vpack.c.b16 %v4185, %v4181
        %v6458 = vpack.c.b16 %v4190, %v4186
        %v6459 = vpack.c.b16 %v4191, %v4187
        %v6460 = vpack.c.b16 %v4192, %v4188
        %v6461 = vpack.c.b16 %v4193, %v4189
        %v6462 = vpack.c.b16 %v4198, %v4194
        %v6463 = vpack.c.b16 %v4199, %v4195
        %v6464 = vpack.c.b16 %v4200, %v4196
        %v6465 = vpack.c.b16 %v4201, %v4197
        %v6466 = vpack.c.b16 %v4206, %v4202
        %v6467 = vpack.c.b16 %v4207, %v4203
        %v6468 = vpack.c.b16 %v4208, %v4204
        %v6469 = vpack.c.b16 %v4209, %v4205
        %v6470 = vpack.c.b16 %v4214, %v4210
        %v6471 = vpack.c.b16 %v4215, %v4211
        %v6472 = vpack.c.b16 %v4216, %v4212
        %v6473 = vpack.c.b16 %v4217, %v4213
        %v6474 = vpack.c.b16 %v4222, %v4218
        %v6475 = vpack.c.b16 %v4223, %v4219
        %v6476 = vpack.c.b16 %v4224, %v4220
        %v6477 = vpack.c.b16 %v4225, %v4221
        %v6478 = vpack.c.b16 %v4230, %v4226
        %v6479 = vpack.c.b16 %v4231, %v4227
        %v6480 = vpack.c.b16 %v4232, %v4228
        %v6481 = vpack.c.b16 %v4233, %v4229
        %v6482 = vpack.c.b16 %v4238, %v4234
        %v6483 = vpack.c.b16 %v4239, %v4235
        %v6484 = vpack.c.b16 %v4240, %v4236
        %v6485 = vpack.c.b16 %v4241, %v4237
        %v6486 = vpack.c.b16 %v4246, %v4242
        %v6487 = vpack.c.b16 %v4247, %v4243
        %v6488 = vpack.c.b16 %v4248, %v4244
        %v6489 = vpack.c.b16 %v4249, %v4245
        %v6490 = vpack.c.b16 %v4254, %v4250
        %v6491 = vpack.c.b16 %v4255, %v4251
        %v6492 = vpack.c.b16 %v4256, %v4252
        %v6493 = vpack.c.b16 %v4257, %v4253
        %v6494 = vpack.c.b16 %v4262, %v4258
        %v6495 = vpack.c.b16 %v4263, %v4259
        %v6496 = vpack.c.b16 %v4264, %v4260
        %v6497 = vpack.c.b16 %v4265, %v4261
        %v6498 = vpack.c.b16 %v4270, %v4266
        %v6499 = vpack.c.b16 %v4271, %v4267
        %v6500 = vpack.c.b16 %v4272, %v4268
        %v6501 = vpack.c.b16 %v4273, %v4269
        %v6502 = vpack.c.b16 %v4278, %v4274
        %v6503 = vpack.c.b16 %v4279, %v4275
        %v6504 = vpack.c.b16 %v4280, %v4276
        %v6505 = vpack.c.b16 %v4281, %v4277
        %v6506 = vpack.c.b16 %v4286, %v4282
        %v6507 = vpack.c.b16 %v4287, %v4283
        %v6508 = vpack.c.b16 %v4288, %v4284
        %v6509 = vpack.c.b16 %v4289, %v4285
        %v6510 = vpack.c.b16 %v4294, %v4290
        %v6511 = vpack.c.b16 %v4295, %v4291
        %v6512 = vpack.c.b16 %v4296, %v4292
        %v6513 = vpack.c.b16 %v4297, %v4293
        %v6514 = vpack.c.b16 %v4302, %v4298
        %v6515 = vpack.c.b16 %v4303, %v4299
        %v6516 = vpack.c.b16 %v4304, %v4300
        %v6517 = vpack.c.b16 %v4305, %v4301
        %v6518 = vpack.c.b16 %v4310, %v4306
        %v6519 = vpack.c.b16 %v4311, %v4307
        %v6520 = vpack.c.b16 %v4312, %v4308
        %v6521 = vpack.c.b16 %v4313, %v4309
        %v6522 = vpack.c.b16 %v4318, %v4314
        %v6523 = vpack.c.b16 %v4319, %v4315
        %v6524 = vpack.c.b16 %v4320, %v4316
        %v6525 = vpack.c.b16 %v4321, %v4317
        %v6526 = vpack.c.b16 %v4326, %v4322
        %v6527 = vpack.c.b16 %v4327, %v4323
        %v6528 = vpack.c.b16 %v4328, %v4324
        %v6529 = vpack.c.b16 %v4329, %v4325
        %v6530 = vpack.c.b16 %v4334, %v4330
        %v6531 = vpack.c.b16 %v4335, %v4331
        %v6532 = vpack.c.b16 %v4336, %v4332
        %v6533 = vpack.c.b16 %v4337, %v4333
        %v6534 = vpack.c.b16 %v4342, %v4338
        %v6535 = vpack.c.b16 %v4343, %v4339
        %v6536 = vpack.c.b16 %v4344, %v4340
        %v6537 = vpack.c.b16 %v4345, %v4341
        %v6538 = vpack.c.b16 %v4350, %v4346
        %v6539 = vpack.c.b16 %v4351, %v4347
        %v6540 = vpack.c.b16 %v4352, %v4348
        %v6541 = vpack.c.b16 %v4353, %v4349
        %v6542 = vpack.c.b16 %v4358, %v4354
        %v6543 = vpack.c.b16 %v4359, %v4355
        %v6544 = vpack.c.b16 %v4360, %v4356
        %v6545 = vpack.c.b16 %v4361, %v4357
        %v6546 = vpack.c.b16 %v4366, %v4362
        %v6547 = vpack.c.b16 %v4367, %v4363
        %v6548 = vpack.c.b16 %v4368, %v4364
        %v6549 = vpack.c.b16 %v4369, %v4365
        %v6550 = vpack.c.b16 %v4374, %v4370
        %v6551 = vpack.c.b16 %v4375, %v4371
        %v6552 = vpack.c.b16 %v4376, %v4372
        %v6553 = vpack.c.b16 %v4377, %v4373
        %v6554 = vpack.c.b16 %v4382, %v4378
        %v6555 = vpack.c.b16 %v4383, %v4379
        %v6556 = vpack.c.b16 %v4384, %v4380
        %v6557 = vpack.c.b16 %v4385, %v4381
        %v6558 = vpack.c.b16 %v4390, %v4386
        %v6559 = vpack.c.b16 %v4391, %v4387
        %v6560 = vpack.c.b16 %v4392, %v4388
        %v6561 = vpack.c.b16 %v4393, %v4389
        %v6562 = vpack.c.b16 %v4398, %v4394
        %v6563 = vpack.c.b16 %v4399, %v4395
        %v6564 = vpack.c.b16 %v4400, %v4396
        %v6565 = vpack.c.b16 %v4401, %v4397
        %v6566 = vpack.c.b16 %v4406, %v4402
        %v6567 = vpack.c.b16 %v4407, %v4403
        %v6568 = vpack.c.b16 %v4408, %v4404
        %v6569 = vpack.c.b16 %v4409, %v4405
        %v6570 = vpack.c.b16 %v4414, %v4410
        %v6571 = vpack.c.b16 %v4415, %v4411
        %v6572 = vpack.c.b16 %v4416, %v4412
        %v6573 = vpack.c.b16 %v4417, %v4413
        %v6574 = vpack.c.b16 %v4422, %v4418
        %v6575 = vpack.c.b16 %v4423, %v4419
        %v6576 = vpack.c.b16 %v4424, %v4420
        %v6577 = vpack.c.b16 %v4425, %v4421
        %v6578 = vpack.c.b16 %v4430, %v4426
        %v6579 = vpack.c.b16 %v4431, %v4427
        %v6580 = vpack.c.b16 %v4432, %v4428
        %v6581 = vpack.c.b16 %v4433, %v4429
        %v6582 = vpack.c.b16 %v4438, %v4434
        %v6583 = vpack.c.b16 %v4439, %v4435
        %v6584 = vpack.c.b16 %v4440, %v4436
        %v6585 = vpack.c.b16 %v4441, %v4437
        %v6586 = vpack.c.b16 %v4446, %v4442
        %v6587 = vpack.c.b16 %v4447, %v4443
        %v6588 = vpack.c.b16 %v4448, %v4444
        %v6589 = vpack.c.b16 %v4449, %v4445
        %v6590 = vpack.c.b16 %v4454, %v4450
        %v6591 = vpack.c.b16 %v4455, %v4451
        %v6592 = vpack.c.b16 %v4456, %v4452
        %v6593 = vpack.c.b16 %v4457, %v4453
        %v6594 = vpack.c.b16 %v4462, %v4458
        %v6595 = vpack.c.b16 %v4463, %v4459
        %v6596 = vpack.c.b16 %v4464, %v4460
        %v6597 = vpack.c.b16 %v4465, %v4461
        %v6598 = vpack.c.b16 %v4470, %v4466
        %v6599 = vpack.c.b16 %v4471, %v4467
        %v6600 = vpack.c.b16 %v4472, %v4468
        %v6601 = vpack.c.b16 %v4473, %v4469
        %v6602 = vpack.c.b16 %v4478, %v4474
        %v6603 = vpack.c.b16 %v4479, %v4475
        %v6604 = vpack.c.b16 %v4480, %v4476
        %v6605 = vpack.c.b16 %v4481, %v4477
        %v6606 = vpack.c.b16 %v4486, %v4482
        %v6607 = vpack.c.b16 %v4487, %v4483
        %v6608 = vpack.c.b16 %v4488, %v4484
        %v6609 = vpack.c.b16 %v4489, %v4485
        %v6610 = vpack.c.b16 %v4494, %v4490
        %v6611 = vpack.c.b16 %v4495, %v4491
        %v6612 = vpack.c.b16 %v4496, %v4492
        %v6613 = vpack.c.b16 %v4497, %v4493
        %v6614 = vpack.c.b16 %v4502, %v4498
        %v6615 = vpack.c.b16 %v4503, %v4499
        %v6616 = vpack.c.b16 %v4504, %v4500
        %v6617 = vpack.c.b16 %v4505, %v4501
        %v6618 = vpack.c.b16 %v4510, %v4506
        %v6619 = vpack.c.b16 %v4511, %v4507
        %v6620 = vpack.c.b16 %v4512, %v4508
        %v6621 = vpack.c.b16 %v4513, %v4509
        %v6622 = vpack.c.b16 %v4518, %v4514
        %v6623 = vpack.c.b16 %v4519, %v4515
        %v6624 = vpack.c.b16 %v4520, %v4516
        %v6625 = vpack.c.b16 %v4521, %v4517
        %v6626 = vpack.c.b16 %v4526, %v4522
        %v6627 = vpack.c.b16 %v4527, %v4523
        %v6628 = vpack.c.b16 %v4528, %v4524
        %v6629 = vpack.c.b16 %v4529, %v4525
        %v6630 = vpack.c.b16 %v4534, %v4530
        %v6631 = vpack.c.b16 %v4535, %v4531
        %v6632 = vpack.c.b16 %v4536, %v4532
        %v6633 = vpack.c.b16 %v4537, %v4533
        %v6634 = vpack.c.b16 %v4542, %v4538
        %v6635 = vpack.c.b16 %v4543, %v4539
        %v6636 = vpack.c.b16 %v4544, %v4540
        %v6637 = vpack.c.b16 %v4545, %v4541
        %v6638 = vpack.c.b16 %v4550, %v4546
        %v6639 = vpack.c.b16 %v4551, %v4547
        %v6640 = vpack.c.b16 %v4552, %v4548
        %v6641 = vpack.c.b16 %v4553, %v4549
        %v6642 = vpack.c.b16 %v4558, %v4554
        %v6643 = vpack.c.b16 %v4559, %v4555
        %v6644 = vpack.c.b16 %v4560, %v4556
        %v6645 = vpack.c.b16 %v4561, %v4557
        %v6646 = vpack.c.b16 %v4566, %v4562
        %v6647 = vpack.c.b16 %v4567, %v4563
        %v6648 = vpack.c.b16 %v4568, %v4564
        %v6649 = vpack.c.b16 %v4569, %v4565
        %v6650 = vpack.c.b16 %v4574, %v4570
        %v6651 = vpack.c.b16 %v4575, %v4571
        %v6652 = vpack.c.b16 %v4576, %v4572
        %v6653 = vpack.c.b16 %v4577, %v4573
        %v6654 = vpack.c.b16 %v4582, %v4578
        %v6655 = vpack.c.b16 %v4583, %v4579
        %v6656 = vpack.c.b16 %v4584, %v4580
        %v6657 = vpack.c.b16 %v4585, %v4581
        %v6658 = vpack.c.b16 %v4590, %v4586
        %v6659 = vpack.c.b16 %v4591, %v4587
        %v6660 = vpack.c.b16 %v4592, %v4588
        %v6661 = vpack.c.b16 %v4593, %v4589
        %v6662 = vpack.c.b16 %v4598, %v4594
        %v6663 = vpack.c.b16 %v4599, %v4595
        %v6664 = vpack.c.b16 %v4600, %v4596
        %v6665 = vpack.c.b16 %v4601, %v4597
        %v6666 = vpack.c.b16 %v4606, %v4602
        %v6667 = vpack.c.b16 %v4607, %v4603
        %v6668 = vpack.c.b16 %v4608, %v4604
        %v6669 = vpack.c.b16 %v4609, %v4605
        %v6670 = vpack.c.b16 %v4614, %v4610
        %v6671 = vpack.c.b16 %v4615, %v4611
        %v6672 = vpack.c.b16 %v4616, %v4612
        %v6673 = vpack.c.b16 %v4617, %v4613
        %v6674 = vpack.c.b16 %v4622, %v4618
        %v6675 = vpack.c.b16 %v4623, %v4619
        %v6676 = vpack.c.b16 %v4624, %v4620
        %v6677 = vpack.c.b16 %v4625, %v4621
        %v6678 = vpack.c.b16 %v4630, %v4626
        %v6679 = vpack.c.b16 %v4631, %v4627
        %v6680 = vpack.c.b16 %v4632, %v4628
        %v6681 = vpack.c.b16 %v4633, %v4629
        %v6682 = vpack.c.b16 %v4638, %v4634
        %v6683 = vpack.c.b16 %v4639, %v4635
        %v6684 = vpack.c.b16 %v4640, %v4636
        %v6685 = vpack.c.b16 %v4641, %v4637
        %v6686 = vpack.c.b16 %v4646, %v4642
        %v6687 = vpack.c.b16 %v4647, %v4643
        %v6688 = vpack.c.b16 %v4648, %v4644
        %v6689 = vpack.c.b16 %v4649, %v4645
        %v6690 = vpack.c.b16 %v4654, %v4650
        %v6691 = vpack.c.b16 %v4655, %v4651
        %v6692 = vpack.c.b16 %v4656, %v4652
        %v6693 = vpack.c.b16 %v4657, %v4653
        %v6694 = vpack.c.b16 %v4662, %v4658
        %v6695 = vpack.c.b16 %v4663, %v4659
        %v6696 = vpack.c.b16 %v4664, %v4660
        %v6697 = vpack.c.b16 %v4665, %v4661
        %v6698 = vpack.c.b16 %v4670, %v4666
        %v6699 = vpack.c.b16 %v4671, %v4667
        %v6700 = vpack.c.b16 %v4672, %v4668
        %v6701 = vpack.c.b16 %v4673, %v4669
        %v6702 = vpack.c.b16 %v4678, %v4674
        %v6703 = vpack.c.b16 %v4679, %v4675
        %v6704 = vpack.c.b16 %v4680, %v4676
        %v6705 = vpack.c.b16 %v4681, %v4677
        %v6706 = vpack.c.b16 %v4686, %v4682
        %v6707 = vpack.c.b16 %v4687, %v4683
        %v6708 = vpack.c.b16 %v4688, %v4684
        %v6709 = vpack.c.b16 %v4689, %v4685
        %v6710 = vpack.c.b16 %v4694, %v4690
        %v6711 = vpack.c.b16 %v4695, %v4691
        %v6712 = vpack.c.b16 %v4696, %v4692
        %v6713 = vpack.c.b16 %v4697, %v4693
        %v6714 = vpack.c.b16 %v4702, %v4698
        %v6715 = vpack.c.b16 %v4703, %v4699
        %v6716 = vpack.c.b16 %v4704, %v4700
        %v6717 = vpack.c.b16 %v4705, %v4701
        %v6718 = vpack.c.b16 %v4710, %v4706
        %v6719 = vpack.c.b16 %v4711, %v4707
        %v6720 = vpack.c.b16 %v4712, %v4708
        %v6721 = vpack.c.b16 %v4713, %v4709
        %v6722 = vpack.c.b16 %v4718, %v4714
        %v6723 = vpack.c.b16 %v4719, %v4715
        %v6724 = vpack.c.b16 %v4720, %v4716
        %v6725 = vpack.c.b16 %v4721, %v4717
        %v6726 = vpack.c.b16 %v4726, %v4722
        %v6727 = vpack.c.b16 %v4727, %v4723
        %v6728 = vpack.c.b16 %v4728, %v4724
        %v6729 = vpack.c.b16 %v4729, %v4725
        %v6730 = vpack.c.b16 %v4734, %v4730
        %v6731 = vpack.c.b16 %v4735, %v4731
        %v6732 = vpack.c.b16 %v4736, %v4732
        %v6733 = vpack.c.b16 %v4737, %v4733
        %v6734 = vpack.c.b16 %v4742, %v4738
        %v6735 = vpack.c.b16 %v4743, %v4739
        %v6736 = vpack.c.b16 %v4744, %v4740
        %v6737 = vpack.c.b16 %v4745, %v4741
        %v6738 = vpack.c.b16 %v4750, %v4746
        %v6739 = vpack.c.b16 %v4751, %v4747
        %v6740 = vpack.c.b16 %v4752, %v4748
        %v6741 = vpack.c.b16 %v4753, %v4749
        %v6742 = vpack.c.b16 %v4758, %v4754
        %v6743 = vpack.c.b16 %v4759, %v4755
        %v6744 = vpack.c.b16 %v4760, %v4756
        %v6745 = vpack.c.b16 %v4761, %v4757
        %v6746 = vpack.c.b16 %v4766, %v4762
        %v6747 = vpack.c.b16 %v4767, %v4763
        %v6748 = vpack.c.b16 %v4768, %v4764
        %v6749 = vpack.c.b16 %v4769, %v4765
        %v6750 = vpack.c.b16 %v4774, %v4770
        %v6751 = vpack.c.b16 %v4775, %v4771
        %v6752 = vpack.c.b16 %v4776, %v4772
        %v6753 = vpack.c.b16 %v4777, %v4773
        %v6754 = vpack.c.b16 %v4782, %v4778
        %v6755 = vpack.c.b16 %v4783, %v4779
        %v6756 = vpack.c.b16 %v4784, %v4780
        %v6757 = vpack.c.b16 %v4785, %v4781
        %v6758 = vpack.c.b16 %v4790, %v4786
        %v6759 = vpack.c.b16 %v4791, %v4787
        %v6760 = vpack.c.b16 %v4792, %v4788
        %v6761 = vpack.c.b16 %v4793, %v4789
        %v6762 = vpack.c.b16 %v4798, %v4794
        %v6763 = vpack.c.b16 %v4799, %v4795
        %v6764 = vpack.c.b16 %v4800, %v4796
        %v6765 = vpack.c.b16 %v4801, %v4797
        %v6766 = vpack.c.b16 %v4806, %v4802
        %v6767 = vpack.c.b16 %v4807, %v4803
        %v6768 = vpack.c.b16 %v4808, %v4804
        %v6769 = vpack.c.b16 %v4809, %v4805
        %v6770 = vpack.c.b16 %v4814, %v4810
        %v6771 = vpack.c.b16 %v4815, %v4811
        %v6772 = vpack.c.b16 %v4816, %v4812
        %v6773 = vpack.c.b16 %v4817, %v4813
        %v6774 = vpack.c.b16 %v4822, %v4818
        %v6775 = vpack.c.b16 %v4823, %v4819
        %v6776 = vpack.c.b16 %v4824, %v4820
        %v6777 = vpack.c.b16 %v4825, %v4821
        %v6778 = vpack.c.b16 %v4830, %v4826
        %v6779 = vpack.c.b16 %v4831, %v4827
        %v6780 = vpack.c.b16 %v4832, %v4828
        %v6781 = vpack.c.b16 %v4833, %v4829
        %v6782 = vpack.c.b16 %v4838, %v4834
        %v6783 = vpack.c.b16 %v4839, %v4835
        %v6784 = vpack.c.b16 %v4840, %v4836
        %v6785 = vpack.c.b16 %v4841, %v4837
        %v6786 = vpack.c.b16 %v4846, %v4842
        %v6787 = vpack.c.b16 %v4847, %v4843
        %v6788 = vpack.c.b16 %v4848, %v4844
        %v6789 = vpack.c.b16 %v4849, %v4845
        %v6790 = vpack.c.b16 %v4854, %v4850
        %v6791 = vpack.c.b16 %v4855, %v4851
        %v6792 = vpack.c.b16 %v4856, %v4852
        %v6793 = vpack.c.b16 %v4857, %v4853
        %v6794 = vpack.c.b16 %v4862, %v4858
        %v6795 = vpack.c.b16 %v4863, %v4859
        %v6796 = vpack.c.b16 %v4864, %v4860
        %v6797 = vpack.c.b16 %v4865, %v4861
        %v6798 = vpack.c.b16 %v4870, %v4866
        %v6799 = vpack.c.b16 %v4871, %v4867
        %v6800 = vpack.c.b16 %v4872, %v4868
        %v6801 = vpack.c.b16 %v4873, %v4869
        %v6802 = vpack.c.b16 %v4878, %v4874
        %v6803 = vpack.c.b16 %v4879, %v4875
        %v6804 = vpack.c.b16 %v4880, %v4876
        %v6805 = vpack.c.b16 %v4881, %v4877
        %v6806 = vpack.c.b16 %v4886, %v4882
        %v6807 = vpack.c.b16 %v4887, %v4883
        %v6808 = vpack.c.b16 %v4888, %v4884
        %v6809 = vpack.c.b16 %v4889, %v4885
        %v6810 = vpack.c.b16 %v4894, %v4890
        %v6811 = vpack.c.b16 %v4895, %v4891
        %v6812 = vpack.c.b16 %v4896, %v4892
        %v6813 = vpack.c.b16 %v4897, %v4893
        %v6814 = vpack.c.b16 %v4902, %v4898
        %v6815 = vpack.c.b16 %v4903, %v4899
        %v6816 = vpack.c.b16 %v4904, %v4900
        %v6817 = vpack.c.b16 %v4905, %v4901
        %v6818 = vpack.c.b16 %v4910, %v4906
        %v6819 = vpack.c.b16 %v4911, %v4907
        %v6820 = vpack.c.b16 %v4912, %v4908
        %v6821 = vpack.c.b16 %v4913, %v4909
        %v6822 = vpack.c.b16 %v4918, %v4914
        %v6823 = vpack.c.b16 %v4919, %v4915
        %v6824 = vpack.c.b16 %v4920, %v4916
        %v6825 = vpack.c.b16 %v4921, %v4917
        %v6826 = vpack.c.b16 %v4926, %v4922
        %v6827 = vpack.c.b16 %v4927, %v4923
        %v6828 = vpack.c.b16 %v4928, %v4924
        %v6829 = vpack.c.b16 %v4929, %v4925
        %v6830 = vpack.c.b16 %v4934, %v4930
        %v6831 = vpack.c.b16 %v4935, %v4931
        %v6832 = vpack.c.b16 %v4936, %v4932
        %v6833 = vpack.c.b16 %v4937, %v4933
        %v6834 = vpack.c.b16 %v4942, %v4938
        %v6835 = vpack.c.b16 %v4943, %v4939
        %v6836 = vpack.c.b16 %v4944, %v4940
        %v6837 = vpack.c.b16 %v4945, %v4941
        %v6838 = vpack.c.b16 %v4950, %v4946
        %v6839 = vpack.c.b16 %v4951, %v4947
        %v6840 = vpack.c.b16 %v4952, %v4948
        %v6841 = vpack.c.b16 %v4953, %v4949
        %v6842 = vpack.c.b16 %v4958, %v4954
        %v6843 = vpack.c.b16 %v4959, %v4955
        %v6844 = vpack.c.b16 %v4960, %v4956
        %v6845 = vpack.c.b16 %v4961, %v4957
        %v6846 = vpack.c.b16 %v4966, %v4962
        %v6847 = vpack.c.b16 %v4967, %v4963
        %v6848 = vpack.c.b16 %v4968, %v4964
        %v6849 = vpack.c.b16 %v4969, %v4965
        %v6850 = vpack.c.b16 %v4974, %v4970
        %v6851 = vpack.c.b16 %v4975, %v4971
        %v6852 = vpack.c.b16 %v4976, %v4972
        %v6853 = vpack.c.b16 %v4977, %v4973
        %v6854 = vpack.c.b16 %v4982, %v4978
        %v6855 = vpack.c.b16 %v4983, %v4979
        %v6856 = vpack.c.b16 %v4984, %v4980
        %v6857 = vpack.c.b16 %v4985, %v4981
        %v6858 = vpack.c.b16 %v4990, %v4986
        %v6859 = vpack.c.b16 %v4991, %v4987
        %v6860 = vpack.c.b16 %v4992, %v4988
        %v6861 = vpack.c.b16 %v4993, %v4989
        %v6862 = vpack.c.b16 %v4998, %v4994
        %v6863 = vpack.c.b16 %v4999, %v4995
        %v6864 = vpack.c.b16 %v5000, %v4996
        %v6865 = vpack.c.b16 %v5001, %v4997
        %v6866 = vpack.c.b16 %v5006, %v5002
        %v6867 = vpack.c.b16 %v5007, %v5003
        %v6868 = vpack.c.b16 %v5008, %v5004
        %v6869 = vpack.c.b16 %v5009, %v5005
        %v6870 = vpack.c.b16 %v5014, %v5010
        %v6871 = vpack.c.b16 %v5015, %v5011
        %v6872 = vpack.c.b16 %v5016, %v5012
        %v6873 = vpack.c.b16 %v5017, %v5013
        %v6874 = vpack.c.b16 %v5022, %v5018
        %v6875 = vpack.c.b16 %v5023, %v5019
        %v6876 = vpack.c.b16 %v5024, %v5020
        %v6877 = vpack.c.b16 %v5025, %v5021
        %v6878 = vpack.c.b16 %v5030, %v5026
        %v6879 = vpack.c.b16 %v5031, %v5027
        %v6880 = vpack.c.b16 %v5032, %v5028
        %v6881 = vpack.c.b16 %v5033, %v5029
        %v6882 = vpack.c.b16 %v5038, %v5034
        %v6883 = vpack.c.b16 %v5039, %v5035
        %v6884 = vpack.c.b16 %v5040, %v5036
        %v6885 = vpack.c.b16 %v5041, %v5037
        %v6886 = vpack.c.b16 %v5046, %v5042
        %v6887 = vpack.c.b16 %v5047, %v5043
        %v6888 = vpack.c.b16 %v5048, %v5044
        %v6889 = vpack.c.b16 %v5049, %v5045
        %v6890 = vpack.c.b16 %v5054, %v5050
        %v6891 = vpack.c.b16 %v5055, %v5051
        %v6892 = vpack.c.b16 %v5056, %v5052
        %v6893 = vpack.c.b16 %v5057, %v5053
        %v6894 = vpack.c.b16 %v5062, %v5058
        %v6895 = vpack.c.b16 %v5063, %v5059
        %v6896 = vpack.c.b16 %v5064, %v5060
        %v6897 = vpack.c.b16 %v5065, %v5061
        %v6898 = vpack.c.b16 %v5070, %v5066
        %v6899 = vpack.c.b16 %v5071, %v5067
        %v6900 = vpack.c.b16 %v5072, %v5068
        %v6901 = vpack.c.b16 %v5073, %v5069
        %v6902 = vpack.c.b16 %v5078, %v5074
        %v6903 = vpack.c.b16 %v5079, %v5075
        %v6904 = vpack.c.b16 %v5080, %v5076
        %v6905 = vpack.c.b16 %v5081, %v5077
        %v6906 = vpack.c.b16 %v5086, %v5082
        %v6907 = vpack.c.b16 %v5087, %v5083
        %v6908 = vpack.c.b16 %v5088, %v5084
        %v6909 = vpack.c.b16 %v5089, %v5085
        %v6910 = vpack.c.b16 %v5094, %v5090
        %v6911 = vpack.c.b16 %v5095, %v5091
        %v6912 = vpack.c.b16 %v5096, %v5092
        %v6913 = vpack.c.b16 %v5097, %v5093
        %v6914 = vpack.c.b16 %v5102, %v5098
        %v6915 = vpack.c.b16 %v5103, %v5099
        %v6916 = vpack.c.b16 %v5104, %v5100
        %v6917 = vpack.c.b16 %v5105, %v5101
        %v6918 = vpack.c.b16 %v5110, %v5106
        %v6919 = vpack.c.b16 %v5111, %v5107
        %v6920 = vpack.c.b16 %v5112, %v5108
        %v6921 = vpack.c.b16 %v5113, %v5109
        %v6922 = vpack.c.b16 %v5118, %v5114
        %v6923 = vpack.c.b16 %v5119, %v5115
        %v6924 = vpack.c.b16 %v5120, %v5116
        %v6925 = vpack.c.b16 %v5121, %v5117
        %v6926 = vpack.c.b16 %v5126, %v5122
        %v6927 = vpack.c.b16 %v5127, %v5123
        %v6928 = vpack.c.b16 %v5128, %v5124
        %v6929 = vpack.c.b16 %v5129, %v5125
        %v6930 = vpack.c.b16 %v5134, %v5130
        %v6931 = vpack.c.b16 %v5135, %v5131
        %v6932 = vpack.c.b16 %v5136, %v5132
        %v6933 = vpack.c.b16 %v5137, %v5133
        %v6934 = vpack.c.b16 %v5142, %v5138
        %v6935 = vpack.c.b16 %v5143, %v5139
        %v6936 = vpack.c.b16 %v5144, %v5140
        %v6937 = vpack.c.b16 %v5145, %v5141
        %v6938 = vpack.c.b16 %v5150, %v5146
        %v6939 = vpack.c.b16 %v5151, %v5147
        %v6940 = vpack.c.b16 %v5152, %v5148
        %v6941 = vpack.c.b16 %v5153, %v5149
        %v6942 = vpack.c.b16 %v5158, %v5154
        %v6943 = vpack.c.b16 %v5159, %v5155
        %v6944 = vpack.c.b16 %v5160, %v5156
        %v6945 = vpack.c.b16 %v5161, %v5157
        %v6946 = vpack.c.b16 %v5166, %v5162
        %v6947 = vpack.c.b16 %v5167, %v5163
        %v6948 = vpack.c.b16 %v5168, %v5164
        %v6949 = vpack.c.b16 %v5169, %v5165
        %v6950 = vpack.c.b16 %v5174, %v5170
        %v6951 = vpack.c.b16 %v5175, %v5171
        %v6952 = vpack.c.b16 %v5176, %v5172
        %v6953 = vpack.c.b16 %v5177, %v5173
        %v6954 = vpack.c.b16 %v5182, %v5178
        %v6955 = vpack.c.b16 %v5183, %v5179
        %v6956 = vpack.c.b16 %v5184, %v5180
        %v6957 = vpack.c.b16 %v5185, %v5181
        %v6958 = vpack.c.b16 %v5190, %v5186
        %v6959 = vpack.c.b16 %v5191, %v5187
        %v6960 = vpack.c.b16 %v5192, %v5188
        %v6961 = vpack.c.b16 %v5193, %v5189
        %v6962 = vpack.c.b16 %v5198, %v5194
        %v6963 = vpack.c.b16 %v5199, %v5195
        %v6964 = vpack.c.b16 %v5200, %v5196
        %v6965 = vpack.c.b16 %v5201, %v5197
        %v6966 = vpack.c.b16 %v5206, %v5202
        %v6967 = vpack.c.b16 %v5207, %v5203
        %v6968 = vpack.c.b16 %v5208, %v5204
        %v6969 = vpack.c.b16 %v5209, %v5205
        %v6970 = vpack.c.b16 %v5214, %v5210
        %v6971 = vpack.c.b16 %v5215, %v5211
        %v6972 = vpack.c.b16 %v5216, %v5212
        %v6973 = vpack.c.b16 %v5217, %v5213
        %v6974 = vpack.c.b16 %v5222, %v5218
        %v6975 = vpack.c.b16 %v5223, %v5219
        %v6976 = vpack.c.b16 %v5224, %v5220
        %v6977 = vpack.c.b16 %v5225, %v5221
        %v6978 = vpack.c.b16 %v5230, %v5226
        %v6979 = vpack.c.b16 %v5231, %v5227
        %v6980 = vpack.c.b16 %v5232, %v5228
        %v6981 = vpack.c.b16 %v5233, %v5229
        %v6982 = vpack.c.b16 %v5238, %v5234
        %v6983 = vpack.c.b16 %v5239, %v5235
        %v6984 = vpack.c.b16 %v5240, %v5236
        %v6985 = vpack.c.b16 %v5241, %v5237
        %v6986 = vpack.c.b16 %v5246, %v5242
        %v6987 = vpack.c.b16 %v5247, %v5243
        %v6988 = vpack.c.b16 %v5248, %v5244
        %v6989 = vpack.c.b16 %v5249, %v5245
        %v6990 = vpack.c.b16 %v5254, %v5250
        %v6991 = vpack.c.b16 %v5255, %v5251
        %v6992 = vpack.c.b16 %v5256, %v5252
        %v6993 = vpack.c.b16 %v5257, %v5253
        %v6994 = vpack.c.b16 %v5262, %v5258
        %v6995 = vpack.c.b16 %v5263, %v5259
        %v6996 = vpack.c.b16 %v5264, %v5260
        %v6997 = vpack.c.b16 %v5265, %v5261
        %v6998 = vpack.c.b16 %v5270, %v5266
        %v6999 = vpack.c.b16 %v5271, %v5267
        %v7000 = vpack.c.b16 %v5272, %v5268
        %v7001 = vpack.c.b16 %v5273, %v5269
        %v7002 = vpack.c.b16 %v5278, %v5274
        %v7003 = vpack.c.b16 %v5279, %v5275
        %v7004 = vpack.c.b16 %v5280, %v5276
        %v7005 = vpack.c.b16 %v5281, %v5277
        %v7006 = vpack.c.b16 %v5286, %v5282
        %v7007 = vpack.c.b16 %v5287, %v5283
        %v7008 = vpack.c.b16 %v5288, %v5284
        %v7009 = vpack.c.b16 %v5289, %v5285
        %v7010 = vpack.c.b16 %v5294, %v5290
        %v7011 = vpack.c.b16 %v5295, %v5291
        %v7012 = vpack.c.b16 %v5296, %v5292
        %v7013 = vpack.c.b16 %v5297, %v5293
        %v7014 = vpack.c.b16 %v5302, %v5298
        %v7015 = vpack.c.b16 %v5303, %v5299
        %v7016 = vpack.c.b16 %v5304, %v5300
        %v7017 = vpack.c.b16 %v5305, %v5301
        %v7018 = vpack.c.b16 %v5310, %v5306
        %v7019 = vpack.c.b16 %v5311, %v5307
        %v7020 = vpack.c.b16 %v5312, %v5308
        %v7021 = vpack.c.b16 %v5313, %v5309
        %v7022 = vpack.c.b16 %v5318, %v5314
        %v7023 = vpack.c.b16 %v5319, %v5315
        %v7024 = vpack.c.b16 %v5320, %v5316
        %v7025 = vpack.c.b16 %v5321, %v5317
        %v7026 = vpack.c.b16 %v5326, %v5322
        %v7027 = vpack.c.b16 %v5327, %v5323
        %v7028 = vpack.c.b16 %v5328, %v5324
        %v7029 = vpack.c.b16 %v5329, %v5325
        %v7030 = vpack.c.b16 %v5334, %v5330
        %v7031 = vpack.c.b16 %v5335, %v5331
        %v7032 = vpack.c.b16 %v5336, %v5332
        %v7033 = vpack.c.b16 %v5337, %v5333
        %v7034 = vpack.c.b16 %v5342, %v5338
        %v7035 = vpack.c.b16 %v5343, %v5339
        %v7036 = vpack.c.b16 %v5344, %v5340
        %v7037 = vpack.c.b16 %v5345, %v5341
        %v7038 = vpack.c.b16 %v5350, %v5346
        %v7039 = vpack.c.b16 %v5351, %v5347
        %v7040 = vpack.c.b16 %v5352, %v5348
        %v7041 = vpack.c.b16 %v5353, %v5349
        %v7042 = vpack.c.b16 %v5358, %v5354
        %v7043 = vpack.c.b16 %v5359, %v5355
        %v7044 = vpack.c.b16 %v5360, %v5356
        %v7045 = vpack.c.b16 %v5361, %v5357
        %v7046 = vpack.c.b16 %v5366, %v5362
        %v7047 = vpack.c.b16 %v5367, %v5363
        %v7048 = vpack.c.b16 %v5368, %v5364
        %v7049 = vpack.c.b16 %v5369, %v5365
        %v7050 = vpack.c.b16 %v5374, %v5370
        %v7051 = vpack.c.b16 %v5375, %v5371
        %v7052 = vpack.c.b16 %v5376, %v5372
        %v7053 = vpack.c.b16 %v5377, %v5373
        %v7054 = vpack.c.b16 %v5382, %v5378
        %v7055 = vpack.c.b16 %v5383, %v5379
        %v7056 = vpack.c.b16 %v5384, %v5380
        %v7057 = vpack.c.b16 %v5385, %v5381
        %v7058 = vpack.c.b16 %v5390, %v5386
        %v7059 = vpack.c.b16 %v5391, %v5387
        %v7060 = vpack.c.b16 %v5392, %v5388
        %v7061 = vpack.c.b16 %v5393, %v5389
        %v7062 = vpack.c.b16 %v5398, %v5394
        %v7063 = vpack.c.b16 %v5399, %v5395
        %v7064 = vpack.c.b16 %v5400, %v5396
        %v7065 = vpack.c.b16 %v5401, %v5397
        %v7066 = vpack.c.b16 %v5406, %v5402
        %v7067 = vpack.c.b16 %v5407, %v5403
        %v7068 = vpack.c.b16 %v5408, %v5404
        %v7069 = vpack.c.b16 %v5409, %v5405
        %v7070 = vpack.c.b16 %v5414, %v5410
        %v7071 = vpack.c.b16 %v5415, %v5411
        %v7072 = vpack.c.b16 %v5416, %v5412
        %v7073 = vpack.c.b16 %v5417, %v5413
        %v7074 = vpack.c.b16 %v5422, %v5418
        %v7075 = vpack.c.b16 %v5423, %v5419
        %v7076 = vpack.c.b16 %v5424, %v5420
        %v7077 = vpack.c.b16 %v5425, %v5421
        %v7078 = vpack.c.b16 %v5430, %v5426
        %v7079 = vpack.c.b16 %v5431, %v5427
        %v7080 = vpack.c.b16 %v5432, %v5428
        %v7081 = vpack.c.b16 %v5433, %v5429
        %v7082 = vpack.c.b16 %v5438, %v5434
        %v7083 = vpack.c.b16 %v5439, %v5435
        %v7084 = vpack.c.b16 %v5440, %v5436
        %v7085 = vpack.c.b16 %v5441, %v5437
        %v7086 = vpack.c.b16 %v5446, %v5442
        %v7087 = vpack.c.b16 %v5447, %v5443
        %v7088 = vpack.c.b16 %v5448, %v5444
        %v7089 = vpack.c.b16 %v5449, %v5445
        %v7090 = vpack.c.b16 %v5454, %v5450
        %v7091 = vpack.c.b16 %v5455, %v5451
        %v7092 = vpack.c.b16 %v5456, %v5452
        %v7093 = vpack.c.b16 %v5457, %v5453
        %v7094 = vpack.c.b16 %v5462, %v5458
        %v7095 = vpack.c.b16 %v5463, %v5459
        %v7096 = vpack.c.b16 %v5464, %v5460
        %v7097 = vpack.c.b16 %v5465, %v5461
        %v7098 = vpack.c.b16 %v5470, %v5466
        %v7099 = vpack.c.b16 %v5471, %v5467
        %v7100 = vpack.c.b16 %v5472, %v5468
        %v7101 = vpack.c.b16 %v5473, %v5469
        %v7102 = vpack.c.b16 %v5478, %v5474
        %v7103 = vpack.c.b16 %v5479, %v5475
        %v7104 = vpack.c.b16 %v5480, %v5476
        %v7105 = vpack.c.b16 %v5481, %v5477
        %v7106 = vpack.c.b16 %v5486, %v5482
        %v7107 = vpack.c.b16 %v5487, %v5483
        %v7108 = vpack.c.b16 %v5488, %v5484
        %v7109 = vpack.c.b16 %v5489, %v5485
        %v7110 = vpack.c.b16 %v5494, %v5490
        %v7111 = vpack.c.b16 %v5495, %v5491
        %v7112 = vpack.c.b16 %v5496, %v5492
        %v7113 = vpack.c.b16 %v5497, %v5493
        %v7114 = vpack.c.b16 %v5502, %v5498
        %v7115 = vpack.c.b16 %v5503, %v5499
        %v7116 = vpack.c.b16 %v5504, %v5500
        %v7117 = vpack.c.b16 %v5505, %v5501
        %v7118 = vpack.c.b16 %v5510, %v5506
        %v7119 = vpack.c.b16 %v5511, %v5507
        %v7120 = vpack.c.b16 %v5512, %v5508
        %v7121 = vpack.c.b16 %v5513, %v5509
        %v7122 = vpack.c.b16 %v5518, %v5514
        %v7123 = vpack.c.b16 %v5519, %v5515
        %v7124 = vpack.c.b16 %v5520, %v5516
        %v7125 = vpack.c.b16 %v5521, %v5517
        %v7126 = vpack.c.b16 %v5526, %v5522
        %v7127 = vpack.c.b16 %v5527, %v5523
        %v7128 = vpack.c.b16 %v5528, %v5524
        %v7129 = vpack.c.b16 %v5529, %v5525
        %v7130 = vpack.c.b16 %v5534, %v5530
        %v7131 = vpack.c.b16 %v5535, %v5531
        %v7132 = vpack.c.b16 %v5536, %v5532
        %v7133 = vpack.c.b16 %v5537, %v5533
        %v7134 = vpack.c.b16 %v5542, %v5538
        %v7135 = vpack.c.b16 %v5543, %v5539
        %v7136 = vpack.c.b16 %v5544, %v5540
        %v7137 = vpack.c.b16 %v5545, %v5541
        %v7138 = vpack.c.b16 %v5550, %v5546
        %v7139 = vpack.c.b16 %v5551, %v5547
        %v7140 = vpack.c.b16 %v5552, %v5548
        %v7141 = vpack.c.b16 %v5553, %v5549
        %v7142 = vpack.c.b16 %v5558, %v5554
        %v7143 = vpack.c.b16 %v5559, %v5555
        %v7144 = vpack.c.b16 %v5560, %v5556
        %v7145 = vpack.c.b16 %v5561, %v5557
        %v7146 = vpack.c.b16 %v5566, %v5562
        %v7147 = vpack.c.b16 %v5567, %v5563
        %v7148 = vpack.c.b16 %v5568, %v5564
        %v7149 = vpack.c.b16 %v5569, %v5565
        %v7150 = vpack.c.b16 %v5574, %v5570
        %v7151 = vpack.c.b16 %v5575, %v5571
        %v7152 = vpack.c.b16 %v5576, %v5572
        %v7153 = vpack.c.b16 %v5577, %v5573
        %v7154 = vpack.c.b16 %v5582, %v5578
        %v7155 = vpack.c.b16 %v5583, %v5579
        %v7156 = vpack.c.b16 %v5584, %v5580
        %v7157 = vpack.c.b16 %v5585, %v5581
        %v7158 = vpack.c.b16 %v5590, %v5586
        %v7159 = vpack.c.b16 %v5591, %v5587
        %v7160 = vpack.c.b16 %v5592, %v5588
        %v7161 = vpack.c.b16 %v5593, %v5589
        %v7162 = vpack.c.b16 %v5598, %v5594
        %v7163 = vpack.c.b16 %v5599, %v5595
        %v7164 = vpack.c.b16 %v5600, %v5596
        %v7165 = vpack.c.b16 %v5601, %v5597
        %v7166 = vpack.c.b16 %v5606, %v5602
        %v7167 = vpack.c.b16 %v5607, %v5603
        %v7168 = vpack.c.b16 %v5608, %v5604
        %v7169 = vpack.c.b16 %v5609, %v5605
        %v7170 = vpack.c.b16 %v5614, %v5610
        %v7171 = vpack.c.b16 %v5615, %v5611
        %v7172 = vpack.c.b16 %v5616, %v5612
        %v7173 = vpack.c.b16 %v5617, %v5613
        %v7174 = vpack.c.b16 %v5622, %v5618
        %v7175 = vpack.c.b16 %v5623, %v5619
        %v7176 = vpack.c.b16 %v5624, %v5620
        %v7177 = vpack.c.b16 %v5625, %v5621
        %v7178 = vpack.c.b16 %v5630, %v5626
        %v7179 = vpack.c.b16 %v5631, %v5627
        %v7180 = vpack.c.b16 %v5632, %v5628
        %v7181 = vpack.c.b16 %v5633, %v5629
        %v7182 = vpack.c.b16 %v5638, %v5634
        %v7183 = vpack.c.b16 %v5639, %v5635
        %v7184 = vpack.c.b16 %v5640, %v5636
        %v7185 = vpack.c.b16 %v5641, %v5637
        %v7186 = vpack.c.b16 %v5646, %v5642
        %v7187 = vpack.c.b16 %v5647, %v5643
        %v7188 = vpack.c.b16 %v5648, %v5644
        %v7189 = vpack.c.b16 %v5649, %v5645
        %v7190 = vpack.c.b16 %v5654, %v5650
        %v7191 = vpack.c.b16 %v5655, %v5651
        %v7192 = vpack.c.b16 %v5656, %v5652
        %v7193 = vpack.c.b16 %v5657, %v5653
        %v7194 = vpack.c.b16 %v5662, %v5658
        %v7195 = vpack.c.b16 %v5663, %v5659
        %v7196 = vpack.c.b16 %v5664, %v5660
        %v7197 = vpack.c.b16 %v5665, %v5661
        %v7198 = vpack.c.b16 %v5670, %v5666
        %v7199 = vpack.c.b16 %v5671, %v5667
        %v7200 = vpack.c.b16 %v5672, %v5668
        %v7201 = vpack.c.b16 %v5673, %v5669
        %v7202 = vpack.c.b16 %v5678, %v5674
        %v7203 = vpack.c.b16 %v5679, %v5675
        %v7204 = vpack.c.b16 %v5680, %v5676
        %v7205 = vpack.c.b16 %v5681, %v5677
        %v7206 = vpack.c.b16 %v5686, %v5682
        %v7207 = vpack.c.b16 %v5687, %v5683
        %v7208 = vpack.c.b16 %v5688, %v5684
        %v7209 = vpack.c.b16 %v5689, %v5685
        %v7210 = vpack.c.b16 %v5694, %v5690
        %v7211 = vpack.c.b16 %v5695, %v5691
        %v7212 = vpack.c.b16 %v5696, %v5692
        %v7213 = vpack.c.b16 %v5697, %v5693
        %v7214 = vpack.c.b16 %v5702, %v5698
        %v7215 = vpack.c.b16 %v5703, %v5699
        %v7216 = vpack.c.b16 %v5704, %v5700
        %v7217 = vpack.c.b16 %v5705, %v5701
        %v7218 = vpack.c.b16 %v5710, %v5706
        %v7219 = vpack.c.b16 %v5711, %v5707
        %v7220 = vpack.c.b16 %v5712, %v5708
        %v7221 = vpack.c.b16 %v5713, %v5709
        %v7222 = vpack.c.b16 %v5718, %v5714
        %v7223 = vpack.c.b16 %v5719, %v5715
        %v7224 = vpack.c.b16 %v5720, %v5716
        %v7225 = vpack.c.b16 %v5721, %v5717
        %v7226 = vpack.c.b16 %v5726, %v5722
        %v7227 = vpack.c.b16 %v5727, %v5723
        %v7228 = vpack.c.b16 %v5728, %v5724
        %v7229 = vpack.c.b16 %v5729, %v5725
        %v7230 = vpack.c.b16 %v5734, %v5730
        %v7231 = vpack.c.b16 %v5735, %v5731
        %v7232 = vpack.c.b16 %v5736, %v5732
        %v7233 = vpack.c.b16 %v5737, %v5733
        %v7234 = vpack.c.b16 %v5742, %v5738
        %v7235 = vpack.c.b16 %v5743, %v5739
        %v7236 = vpack.c.b16 %v5744, %v5740
        %v7237 = vpack.c.b16 %v5745, %v5741
        %v7238 = vpack.c.b16 %v5750, %v5746
        %v7239 = vpack.c.b16 %v5751, %v5747
        %v7240 = vpack.c.b16 %v5752, %v5748
        %v7241 = vpack.c.b16 %v5753, %v5749
        %v7242 = vpack.c.b16 %v5758, %v5754
        %v7243 = vpack.c.b16 %v5759, %v5755
        %v7244 = vpack.c.b16 %v5760, %v5756
        %v7245 = vpack.c.b16 %v5761, %v5757
        %v7246 = vpack.c.b16 %v5766, %v5762
        %v7247 = vpack.c.b16 %v5767, %v5763
        %v7248 = vpack.c.b16 %v5768, %v5764
        %v7249 = vpack.c.b16 %v5769, %v5765
        %v7250 = vpack.c.b16 %v5774, %v5770
        %v7251 = vpack.c.b16 %v5775, %v5771
        %v7252 = vpack.c.b16 %v5776, %v5772
        %v7253 = vpack.c.b16 %v5777, %v5773
        %v7254 = vpack.c.b16 %v5782, %v5778
        %v7255 = vpack.c.b16 %v5783, %v5779
        %v7256 = vpack.c.b16 %v5784, %v5780
        %v7257 = vpack.c.b16 %v5785, %v5781
        %v7258 = vpack.c.b16 %v5790, %v5786
        %v7259 = vpack.c.b16 %v5791, %v5787
        %v7260 = vpack.c.b16 %v5792, %v5788
        %v7261 = vpack.c.b16 %v5793, %v5789
        %v7262 = vpack.c.b16 %v5798, %v5794
        %v7263 = vpack.c.b16 %v5799, %v5795
        %v7264 = vpack.c.b16 %v5800, %v5796
        %v7265 = vpack.c.b16 %v5801, %v5797
        %v7266 = vpack.c.b16 %v5806, %v5802
        %v7267 = vpack.c.b16 %v5807, %v5803
        %v7268 = vpack.c.b16 %v5808, %v5804
        %v7269 = vpack.c.b16 %v5809, %v5805
        %v7270 = vpack.c.b16 %v5814, %v5810
        %v7271 = vpack.c.b16 %v5815, %v5811
        %v7272 = vpack.c.b16 %v5816, %v5812
        %v7273 = vpack.c.b16 %v5817, %v5813
        %v7274 = vpack.c.b16 %v5822, %v5818
        %v7275 = vpack.c.b16 %v5823, %v5819
        %v7276 = vpack.c.b16 %v5824, %v5820
        %v7277 = vpack.c.b16 %v5825, %v5821
        %v7278 = vpack.c.b16 %v5830, %v5826
        %v7279 = vpack.c.b16 %v5831, %v5827
        %v7280 = vpack.c.b16 %v5832, %v5828
        %v7281 = vpack.c.b16 %v5833, %v5829
        %v7282 = vpack.c.b16 %v5838, %v5834
        %v7283 = vpack.c.b16 %v5839, %v5835
        %v7284 = vpack.c.b16 %v5840, %v5836
        %v7285 = vpack.c.b16 %v5841, %v5837
        %v7286 = vpack.c.b16 %v5846, %v5842
        %v7287 = vpack.c.b16 %v5847, %v5843
        %v7288 = vpack.c.b16 %v5848, %v5844
        %v7289 = vpack.c.b16 %v5849, %v5845
        %v7290 = vpack.c.b16 %v5854, %v5850
        %v7291 = vpack.c.b16 %v5855, %v5851
        %v7292 = vpack.c.b16 %v5856, %v5852
        %v7293 = vpack.c.b16 %v5857, %v5853
        %v7294 = vpack.c.b16 %v5862, %v5858
        %v7295 = vpack.c.b16 %v5863, %v5859
        %v7296 = vpack.c.b16 %v5864, %v5860
        %v7297 = vpack.c.b16 %v5865, %v5861
        %v7298 = vpack.c.b16 %v5870, %v5866
        %v7299 = vpack.c.b16 %v5871, %v5867
        %v7300 = vpack.c.b16 %v5872, %v5868
        %v7301 = vpack.c.b16 %v5873, %v5869
        %v7302 = vpack.c.b16 %v5878, %v5874
        %v7303 = vpack.c.b16 %v5879, %v5875
        %v7304 = vpack.c.b16 %v5880, %v5876
        %v7305 = vpack.c.b16 %v5881, %v5877
        %v7306 = vpack.c.b16 %v5886, %v5882
        %v7307 = vpack.c.b16 %v5887, %v5883
        %v7308 = vpack.c.b16 %v5888, %v5884
        %v7309 = vpack.c.b16 %v5889, %v5885
        %v7310 = vpack.c.b16 %v5894, %v5890
        %v7311 = vpack.c.b16 %v5895, %v5891
        %v7312 = vpack.c.b16 %v5896, %v5892
        %v7313 = vpack.c.b16 %v5897, %v5893
        %v7314 = vpack.c.b16 %v5902, %v5898
        %v7315 = vpack.c.b16 %v5903, %v5899
        %v7316 = vpack.c.b16 %v5904, %v5900
        %v7317 = vpack.c.b16 %v5905, %v5901
        %v7318 = vpack.c.b16 %v5910, %v5906
        %v7319 = vpack.c.b16 %v5911, %v5907
        %v7320 = vpack.c.b16 %v5912, %v5908
        %v7321 = vpack.c.b16 %v5913, %v5909
        %v7322 = vpack.c.b16 %v5918, %v5914
        %v7323 = vpack.c.b16 %v5919, %v5915
        %v7324 = vpack.c.b16 %v5920, %v5916
        %v7325 = vpack.c.b16 %v5921, %v5917
        %v7326 = vpack.c.b16 %v5926, %v5922
        %v7327 = vpack.c.b16 %v5927, %v5923
        %v7328 = vpack.c.b16 %v5928, %v5924
        %v7329 = vpack.c.b16 %v5929, %v5925
        %v7330 = vpack.c.b16 %v5934, %v5930
        %v7331 = vpack.c.b16 %v5935, %v5931
        %v7332 = vpack.c.b16 %v5936, %v5932
        %v7333 = vpack.c.b16 %v5937, %v5933
        %v7334 = vpack.c.b16 %v5942, %v5938
        %v7335 = vpack.c.b16 %v5943, %v5939
        %v7336 = vpack.c.b16 %v5944, %v5940
        %v7337 = vpack.c.b16 %v5945, %v5941
        %v7338 = vpack.c.b16 %v5950, %v5946
        %v7339 = vpack.c.b16 %v5951, %v5947
        %v7340 = vpack.c.b16 %v5952, %v5948
        %v7341 = vpack.c.b16 %v5953, %v5949
        %v7342 = vpack.c.b16 %v5958, %v5954
        %v7343 = vpack.c.b16 %v5959, %v5955
        %v7344 = vpack.c.b16 %v5960, %v5956
        %v7345 = vpack.c.b16 %v5961, %v5957
        %v7346 = vpack.c.b16 %v5966, %v5962
        %v7347 = vpack.c.b16 %v5967, %v5963
        %v7348 = vpack.c.b16 %v5968, %v5964
        %v7349 = vpack.c.b16 %v5969, %v5965
        %v7350 = vpack.c.b16 %v5974, %v5970
        %v7351 = vpack.c.b16 %v5975, %v5971
        %v7352 = vpack.c.b16 %v5976, %v5972
        %v7353 = vpack.c.b16 %v5977, %v5973
        %v7354 = vpack.c.b16 %v5982, %v5978
        %v7355 = vpack.c.b16 %v5983, %v5979
        %v7356 = vpack.c.b16 %v5984, %v5980
        %v7357 = vpack.c.b16 %v5985, %v5981
        %v7358 = vpack.c.b16 %v5990, %v5986
        %v7359 = vpack.c.b16 %v5991, %v5987
        %v7360 = vpack.c.b16 %v5992, %v5988
        %v7361 = vpack.c.b16 %v5993, %v5989
        %v7362 = vpack.c.b16 %v5998, %v5994
        %v7363 = vpack.c.b16 %v5999, %v5995
        %v7364 = vpack.c.b16 %v6000, %v5996
        %v7365 = vpack.c.b16 %v6001, %v5997
        %v7366 = vpack.c.b16 %v6006, %v6002
        %v7367 = vpack.c.b16 %v6007, %v6003
        %v7368 = vpack.c.b16 %v6008, %v6004
        %v7369 = vpack.c.b16 %v6009, %v6005
        %v7370 = vpack.c.b16 %v6014, %v6010
        %v7371 = vpack.c.b16 %v6015, %v6011
        %v7372 = vpack.c.b16 %v6016, %v6012
        %v7373 = vpack.c.b16 %v6017, %v6013
        %v7374 = vpack.c.b16 %v6022, %v6018
        %v7375 = vpack.c.b16 %v6023, %v6019
        %v7376 = vpack.c.b16 %v6024, %v6020
        %v7377 = vpack.c.b16 %v6025, %v6021
        %v7378 = vpack.c.b16 %v6030, %v6026
        %v7379 = vpack.c.b16 %v6031, %v6027
        %v7380 = vpack.c.b16 %v6032, %v6028
        %v7381 = vpack.c.b16 %v6033, %v6029
        %v7382 = vpack.c.b16 %v6038, %v6034
        %v7383 = vpack.c.b16 %v6039, %v6035
        %v7384 = vpack.c.b16 %v6040, %v6036
        %v7385 = vpack.c.b16 %v6041, %v6037
        %v7386 = vpack.c.b16 %v6046, %v6042
        %v7387 = vpack.c.b16 %v6047, %v6043
        %v7388 = vpack.c.b16 %v6048, %v6044
        %v7389 = vpack.c.b16 %v6049, %v6045
        %v7390 = vpack.c.b16 %v6054, %v6050
        %v7391 = vpack.c.b16 %v6055, %v6051
        %v7392 = vpack.c.b16 %v6056, %v6052
        %v7393 = vpack.c.b16 %v6057, %v6053
        %v7394 = vpack.c.b16 %v6062, %v6058
        %v7395 = vpack.c.b16 %v6063, %v6059
        %v7396 = vpack.c.b16 %v6064, %v6060
        %v7397 = vpack.c.b16 %v6065, %v6061
        %v7398 = vpack.c.b16 %v6070, %v6066
        %v7399 = vpack.c.b16 %v6071, %v6067
        %v7400 = vpack.c.b16 %v6072, %v6068
        %v7401 = vpack.c.b16 %v6073, %v6069
        %v7402 = vpack.c.b16 %v6078, %v6074
        %v7403 = vpack.c.b16 %v6079, %v6075
        %v7404 = vpack.c.b16 %v6080, %v6076
        %v7405 = vpack.c.b16 %v6081, %v6077
        %v7406 = vpack.c.b16 %v6086, %v6082
        %v7407 = vpack.c.b16 %v6087, %v6083
        %v7408 = vpack.c.b16 %v6088, %v6084
        %v7409 = vpack.c.b16 %v6089, %v6085
        %v7410 = vpack.c.b16 %v6094, %v6090
        %v7411 = vpack.c.b16 %v6095, %v6091
        %v7412 = vpack.c.b16 %v6096, %v6092
        %v7413 = vpack.c.b16 %v6097, %v6093
        %v7414 = vpack.c.b16 %v6102, %v6098
        %v7415 = vpack.c.b16 %v6103, %v6099
        %v7416 = vpack.c.b16 %v6104, %v6100
        %v7417 = vpack.c.b16 %v6105, %v6101
        %v7418 = vpack.c.b16 %v6110, %v6106
        %v7419 = vpack.c.b16 %v6111, %v6107
        %v7420 = vpack.c.b16 %v6112, %v6108
        %v7421 = vpack.c.b16 %v6113, %v6109
        %v7422 = vpack.c.b16 %v6118, %v6114
        %v7423 = vpack.c.b16 %v6119, %v6115
        %v7424 = vpack.c.b16 %v6120, %v6116
        %v7425 = vpack.c.b16 %v6121, %v6117
        %v7426 = vpack.c.b16 %v6126, %v6122
        %v7427 = vpack.c.b16 %v6127, %v6123
        %v7428 = vpack.c.b16 %v6128, %v6124
        %v7429 = vpack.c.b16 %v6129, %v6125
        %v7430 = vpack.c.b16 %v6134, %v6130
        %v7431 = vpack.c.b16 %v6135, %v6131
        %v7432 = vpack.c.b16 %v6136, %v6132
        %v7433 = vpack.c.b16 %v6137, %v6133
        %v7434 = vpack.c.b16 %v6142, %v6138
        %v7435 = vpack.c.b16 %v6143, %v6139
        %v7436 = vpack.c.b16 %v6144, %v6140
        %v7437 = vpack.c.b16 %v6145, %v6141
        %v7438 = vpack.c.b16 %v6150, %v6146
        %v7439 = vpack.c.b16 %v6151, %v6147
        %v7440 = vpack.c.b16 %v6152, %v6148
        %v7441 = vpack.c.b16 %v6153, %v6149
        %v7442 = vpack.c.b16 %v6158, %v6154
        %v7443 = vpack.c.b16 %v6159, %v6155
        %v7444 = vpack.c.b16 %v6160, %v6156
        %v7445 = vpack.c.b16 %v6161, %v6157
        %v7446 = vpack.c.b16 %v6166, %v6162
        %v7447 = vpack.c.b16 %v6167, %v6163
        %v7448 = vpack.c.b16 %v6168, %v6164
        %v7449 = vpack.c.b16 %v6169, %v6165
        %8730 = vmatprep.subr.bf16.mxu0 %v6199
        %8731 = vmatpush1.bf16.msra.mxu0 %v6198
        %8732 = vmatprep.subr.bf16.mxu0 %v6195
        %8733 = vmatpush1.bf16.msra.mxu0 %v6194
        %8734 = vmatprep.subr.bf16.mxu0 %v6191
        %8735 = vmatpush1.bf16.msra.mxu0 %v6190
        %8736 = vmatprep.subr.bf16.mxu0 %v6187
        %8737 = vmatpush1.bf16.msra.mxu0 %v6186
        %8738 = vmatprep.subr.bf16.mxu0 %v6183
        %8739 = vmatpush1.bf16.msra.mxu0 %v6182
        %8740 = vmatprep.subr.bf16.mxu0 %v6179
        %8741 = vmatpush1.bf16.msra.mxu0 %v6178
        %8742 = vmatprep.subr.bf16.mxu0 %v6175
        %8743 = vmatpush1.bf16.msra.mxu0 %v6174
        %8744 = vmatprep.subr.bf16.mxu0 %v6171
        %8745 = vmatpush1.bf16.msra.mxu0 %v6170
        %8746 = vmatprep.subr.bf16.mxu0 %v6231
        %8747 = vmatpush2.bf16.msra.mxu0 %v6230
        %8748 = vmatprep.subr.bf16.mxu0 %v6227
        %8749 = vmatpush2.bf16.msra.mxu0 %v6226
        %8750 = vmatprep.subr.bf16.mxu0 %v6223
        %8751 = vmatpush2.bf16.msra.mxu0 %v6222
        %8752 = vmatprep.subr.bf16.mxu0 %v6219
        %8753 = vmatpush2.bf16.msra.mxu0 %v6218
        %8754 = vmatprep.subr.bf16.mxu0 %v6215
        %8755 = vmatpush2.bf16.msra.mxu0 %v6214
        %8756 = vmatprep.subr.bf16.mxu0 %v6211
        %8757 = vmatpush2.bf16.msra.mxu0 %v6210
        %8758 = vmatprep.subr.bf16.mxu0 %v6207
        %8759 = vmatpush2.bf16.msra.mxu0 %v6206
        %8760 = vmatprep.subr.bf16.mxu0 %v6203
        %8761 = vmatpush2.bf16.msra.mxu0 %v6202
        %8762 = vmatprep.mubr.bf16.mxu0 %v985
        %8763 = vmatmul.mubr.bf16.gmra.mxu0 %v984
        %v8764 = vpop.f32.mrf.mxu0
        %v8765 = vadd.f32 %v2313, %v8764
        %v8766 = vpop.f32.mrf.mxu0
        %v8767 = vadd.f32 %v2317, %v8766
        %v8768 = vpop.f32.mrf.mxu0
        %v8769 = vpop.f32.mrf.mxu0
        %8770 = vdwg.mxu0
        %8771 = vmatprep.subr.bf16.mxu0 %v6263
        %8772 = vmatpush1.bf16.msra.mxu0 %v6262
        %8773 = vmatprep.subr.bf16.mxu0 %v6259
        %8774 = vmatpush1.bf16.msra.mxu0 %v6258
        %8775 = vmatprep.subr.bf16.mxu0 %v6255
        %8776 = vmatpush1.bf16.msra.mxu0 %v6254
        %8777 = vmatprep.subr.bf16.mxu0 %v6251
        %8778 = vmatpush1.bf16.msra.mxu0 %v6250
        %8779 = vmatprep.subr.bf16.mxu0 %v6247
        %8780 = vmatpush1.bf16.msra.mxu0 %v6246
        %8781 = vmatprep.subr.bf16.mxu0 %v6243
        %8782 = vmatpush1.bf16.msra.mxu0 %v6242
        %8783 = vmatprep.subr.bf16.mxu0 %v6239
        %8784 = vmatpush1.bf16.msra.mxu0 %v6238
        %8785 = vmatprep.subr.bf16.mxu0 %v6235
        %8786 = vmatpush1.bf16.msra.mxu0 %v6234
        %8787 = vmatprep.subr.bf16.mxu0 %v6295
        %8788 = vmatpush2.bf16.msra.mxu0 %v6294
        %8789 = vmatprep.subr.bf16.mxu0 %v6291
        %8790 = vmatpush2.bf16.msra.mxu0 %v6290
        %8791 = vmatprep.subr.bf16.mxu0 %v6287
        %8792 = vmatpush2.bf16.msra.mxu0 %v6286
        %8793 = vmatprep.subr.bf16.mxu0 %v6283
        %8794 = vmatpush2.bf16.msra.mxu0 %v6282
        %8795 = vmatprep.subr.bf16.mxu0 %v6279
        %8796 = vmatpush2.bf16.msra.mxu0 %v6278
        %8797 = vmatprep.subr.bf16.mxu0 %v6275
        %8798 = vmatpush2.bf16.msra.mxu0 %v6274
        %8799 = vmatprep.subr.bf16.mxu0 %v6271
        %8800 = vmatpush2.bf16.msra.mxu0 %v6270
        %8801 = vmatprep.subr.bf16.mxu0 %v6267
        %8802 = vmatpush2.bf16.msra.mxu0 %v6266
        %8803 = vmatprep.mubr.bf16.mxu0 %v987
        %8804 = vmatmul.mubr.bf16.gmra.mxu0 %v986
        %v8805 = vpop.f32.mrf.mxu0
        %v8806 = vadd.f32 %v8765, %v8805
        %v8807 = vpop.f32.mrf.mxu0
        %v8808 = vadd.f32 %v8767, %v8807
        %v8809 = vpop.f32.mrf.mxu0
        %v8810 = vpop.f32.mrf.mxu0
        %8811 = vdwg.mxu0
        %8812 = vmatprep.subr.bf16.mxu0 %v6327
        %8813 = vmatpush1.bf16.msra.mxu0 %v6326
        %8814 = vmatprep.subr.bf16.mxu0 %v6323
        %8815 = vmatpush1.bf16.msra.mxu0 %v6322
        %8816 = vmatprep.subr.bf16.mxu0 %v6319
        %8817 = vmatpush1.bf16.msra.mxu0 %v6318
        %8818 = vmatprep.subr.bf16.mxu0 %v6315
        %8819 = vmatpush1.bf16.msra.mxu0 %v6314
        %8820 = vmatprep.subr.bf16.mxu0 %v6311
        %8821 = vmatpush1.bf16.msra.mxu0 %v6310
        %8822 = vmatprep.subr.bf16.mxu0 %v6307
        %8823 = vmatpush1.bf16.msra.mxu0 %v6306
        %8824 = vmatprep.subr.bf16.mxu0 %v6303
        %8825 = vmatpush1.bf16.msra.mxu0 %v6302
        %8826 = vmatprep.subr.bf16.mxu0 %v6299
        %8827 = vmatpush1.bf16.msra.mxu0 %v6298
        %8828 = vmatprep.subr.bf16.mxu0 %v6359
        %8829 = vmatpush2.bf16.msra.mxu0 %v6358
        %8830 = vmatprep.subr.bf16.mxu0 %v6355
        %8831 = vmatpush2.bf16.msra.mxu0 %v6354
        %8832 = vmatprep.subr.bf16.mxu0 %v6351
        %8833 = vmatpush2.bf16.msra.mxu0 %v6350
        %8834 = vmatprep.subr.bf16.mxu0 %v6347
        %8835 = vmatpush2.bf16.msra.mxu0 %v6346
        %8836 = vmatprep.subr.bf16.mxu0 %v6343
        %8837 = vmatpush2.bf16.msra.mxu0 %v6342
        %8838 = vmatprep.subr.bf16.mxu0 %v6339
        %8839 = vmatpush2.bf16.msra.mxu0 %v6338
        %8840 = vmatprep.subr.bf16.mxu0 %v6335
        %8841 = vmatpush2.bf16.msra.mxu0 %v6334
        %8842 = vmatprep.subr.bf16.mxu0 %v6331
        %8843 = vmatpush2.bf16.msra.mxu0 %v6330
        %8844 = vmatprep.mubr.bf16.mxu0 %v989
        %8845 = vmatmul.mubr.bf16.gmra.mxu0 %v988
        %v8846 = vpop.f32.mrf.mxu0
        %v8847 = vadd.f32 %v8806, %v8846
        %v8848 = vpop.f32.mrf.mxu0
        %v8849 = vadd.f32 %v8808, %v8848
        %v8850 = vpop.f32.mrf.mxu0
        %v8851 = vpop.f32.mrf.mxu0
        %8852 = vdwg.mxu0
        %8853 = vmatprep.subr.bf16.mxu0 %v6391
        %8854 = vmatpush1.bf16.msra.mxu0 %v6390
        %8855 = vmatprep.subr.bf16.mxu0 %v6387
        %8856 = vmatpush1.bf16.msra.mxu0 %v6386
        %8857 = vmatprep.subr.bf16.mxu0 %v6383
        %8858 = vmatpush1.bf16.msra.mxu0 %v6382
        %8859 = vmatprep.subr.bf16.mxu0 %v6379
        %8860 = vmatpush1.bf16.msra.mxu0 %v6378
        %8861 = vmatprep.subr.bf16.mxu0 %v6375
        %8862 = vmatpush1.bf16.msra.mxu0 %v6374
        %8863 = vmatprep.subr.bf16.mxu0 %v6371
        %8864 = vmatpush1.bf16.msra.mxu0 %v6370
        %8865 = vmatprep.subr.bf16.mxu0 %v6367
        %8866 = vmatpush1.bf16.msra.mxu0 %v6366
        %8867 = vmatprep.subr.bf16.mxu0 %v6363
        %8868 = vmatpush1.bf16.msra.mxu0 %v6362
        %8869 = vmatprep.subr.bf16.mxu0 %v6423
        %8870 = vmatpush2.bf16.msra.mxu0 %v6422
        %8871 = vmatprep.subr.bf16.mxu0 %v6419
        %8872 = vmatpush2.bf16.msra.mxu0 %v6418
        %8873 = vmatprep.subr.bf16.mxu0 %v6415
        %8874 = vmatpush2.bf16.msra.mxu0 %v6414
        %8875 = vmatprep.subr.bf16.mxu0 %v6411
        %8876 = vmatpush2.bf16.msra.mxu0 %v6410
        %8877 = vmatprep.subr.bf16.mxu0 %v6407
        %8878 = vmatpush2.bf16.msra.mxu0 %v6406
        %8879 = vmatprep.subr.bf16.mxu0 %v6403
        %8880 = vmatpush2.bf16.msra.mxu0 %v6402
        %8881 = vmatprep.subr.bf16.mxu0 %v6399
        %8882 = vmatpush2.bf16.msra.mxu0 %v6398
        %8883 = vmatprep.subr.bf16.mxu0 %v6395
        %8884 = vmatpush2.bf16.msra.mxu0 %v6394
        %8885 = vmatprep.mubr.bf16.mxu0 %v991
        %8886 = vmatmul.mubr.bf16.gmra.mxu0 %v990
        %v8887 = vpop.f32.mrf.mxu0
        %v8888 = vadd.f32 %v8847, %v8887
        %v8889 = vpop.f32.mrf.mxu0
        %v8890 = vadd.f32 %v8849, %v8889
        %v8891 = vpop.f32.mrf.mxu0
        %v8892 = vpop.f32.mrf.mxu0
        %8893 = vdwg.mxu0
        %8894 = vmatprep.subr.bf16.mxu0 %v6455
        %8895 = vmatpush1.bf16.msra.mxu0 %v6454
        %8896 = vmatprep.subr.bf16.mxu0 %v6451
        %8897 = vmatpush1.bf16.msra.mxu0 %v6450
        %8898 = vmatprep.subr.bf16.mxu0 %v6447
        %8899 = vmatpush1.bf16.msra.mxu0 %v6446
        %8900 = vmatprep.subr.bf16.mxu0 %v6443
        %8901 = vmatpush1.bf16.msra.mxu0 %v6442
        %8902 = vmatprep.subr.bf16.mxu0 %v6439
        %8903 = vmatpush1.bf16.msra.mxu0 %v6438
        %8904 = vmatprep.subr.bf16.mxu0 %v6435
        %8905 = vmatpush1.bf16.msra.mxu0 %v6434
        %8906 = vmatprep.subr.bf16.mxu0 %v6431
        %8907 = vmatpush1.bf16.msra.mxu0 %v6430
        %8908 = vmatprep.subr.bf16.mxu0 %v6427
        %8909 = vmatpush1.bf16.msra.mxu0 %v6426
        %8910 = vmatprep.subr.bf16.mxu0 %v6487
        %8911 = vmatpush2.bf16.msra.mxu0 %v6486
        %8912 = vmatprep.subr.bf16.mxu0 %v6483
        %8913 = vmatpush2.bf16.msra.mxu0 %v6482
        %8914 = vmatprep.subr.bf16.mxu0 %v6479
        %8915 = vmatpush2.bf16.msra.mxu0 %v6478
        %8916 = vmatprep.subr.bf16.mxu0 %v6475
        %8917 = vmatpush2.bf16.msra.mxu0 %v6474
        %8918 = vmatprep.subr.bf16.mxu0 %v6471
        %8919 = vmatpush2.bf16.msra.mxu0 %v6470
        %8920 = vmatprep.subr.bf16.mxu0 %v6467
        %8921 = vmatpush2.bf16.msra.mxu0 %v6466
        %8922 = vmatprep.subr.bf16.mxu0 %v6463
        %8923 = vmatpush2.bf16.msra.mxu0 %v6462
        %8924 = vmatprep.subr.bf16.mxu0 %v6459
        %8925 = vmatpush2.bf16.msra.mxu0 %v6458
        %8926 = vmatprep.mubr.bf16.mxu0 %v993
        %8927 = vmatmul.mubr.bf16.gmra.mxu0 %v992
        %v8928 = vpop.f32.mrf.mxu0
        %v8929 = vadd.f32 %v8888, %v8928
        %v8930 = vpop.f32.mrf.mxu0
        %v8931 = vadd.f32 %v8890, %v8930
        %v8932 = vpop.f32.mrf.mxu0
        %v8933 = vpop.f32.mrf.mxu0
        %8934 = vdwg.mxu0
        %8935 = vmatprep.subr.bf16.mxu0 %v6519
        %8936 = vmatpush1.bf16.msra.mxu0 %v6518
        %8937 = vmatprep.subr.bf16.mxu0 %v6515
        %8938 = vmatpush1.bf16.msra.mxu0 %v6514
        %8939 = vmatprep.subr.bf16.mxu0 %v6511
        %8940 = vmatpush1.bf16.msra.mxu0 %v6510
        %8941 = vmatprep.subr.bf16.mxu0 %v6507
        %8942 = vmatpush1.bf16.msra.mxu0 %v6506
        %8943 = vmatprep.subr.bf16.mxu0 %v6503
        %8944 = vmatpush1.bf16.msra.mxu0 %v6502
        %8945 = vmatprep.subr.bf16.mxu0 %v6499
        %8946 = vmatpush1.bf16.msra.mxu0 %v6498
        %8947 = vmatprep.subr.bf16.mxu0 %v6495
        %8948 = vmatpush1.bf16.msra.mxu0 %v6494
        %8949 = vmatprep.subr.bf16.mxu0 %v6491
        %8950 = vmatpush1.bf16.msra.mxu0 %v6490
        %8951 = vmatprep.subr.bf16.mxu0 %v6551
        %8952 = vmatpush2.bf16.msra.mxu0 %v6550
        %8953 = vmatprep.subr.bf16.mxu0 %v6547
        %8954 = vmatpush2.bf16.msra.mxu0 %v6546
        %8955 = vmatprep.subr.bf16.mxu0 %v6543
        %8956 = vmatpush2.bf16.msra.mxu0 %v6542
        %8957 = vmatprep.subr.bf16.mxu0 %v6539
        %8958 = vmatpush2.bf16.msra.mxu0 %v6538
        %8959 = vmatprep.subr.bf16.mxu0 %v6535
        %8960 = vmatpush2.bf16.msra.mxu0 %v6534
        %8961 = vmatprep.subr.bf16.mxu0 %v6531
        %8962 = vmatpush2.bf16.msra.mxu0 %v6530
        %8963 = vmatprep.subr.bf16.mxu0 %v6527
        %8964 = vmatpush2.bf16.msra.mxu0 %v6526
        %8965 = vmatprep.subr.bf16.mxu0 %v6523
        %8966 = vmatpush2.bf16.msra.mxu0 %v6522
        %8967 = vmatprep.mubr.bf16.mxu0 %v995
        %8968 = vmatmul.mubr.bf16.gmra.mxu0 %v994
        %v8969 = vpop.f32.mrf.mxu0
        %v8970 = vadd.f32 %v8929, %v8969
        %v8971 = vpop.f32.mrf.mxu0
        %v8972 = vadd.f32 %v8931, %v8971
        %v8973 = vpop.f32.mrf.mxu0
        %v8974 = vpop.f32.mrf.mxu0
        %8975 = vdwg.mxu0
        %8976 = vmatprep.subr.bf16.mxu0 %v6583
        %8977 = vmatpush1.bf16.msra.mxu0 %v6582
        %8978 = vmatprep.subr.bf16.mxu0 %v6579
        %8979 = vmatpush1.bf16.msra.mxu0 %v6578
        %8980 = vmatprep.subr.bf16.mxu0 %v6575
        %8981 = vmatpush1.bf16.msra.mxu0 %v6574
        %8982 = vmatprep.subr.bf16.mxu0 %v6571
        %8983 = vmatpush1.bf16.msra.mxu0 %v6570
        %8984 = vmatprep.subr.bf16.mxu0 %v6567
        %8985 = vmatpush1.bf16.msra.mxu0 %v6566
        %8986 = vmatprep.subr.bf16.mxu0 %v6563
        %8987 = vmatpush1.bf16.msra.mxu0 %v6562
        %8988 = vmatprep.subr.bf16.mxu0 %v6559
        %8989 = vmatpush1.bf16.msra.mxu0 %v6558
        %8990 = vmatprep.subr.bf16.mxu0 %v6555
        %8991 = vmatpush1.bf16.msra.mxu0 %v6554
        %8992 = vmatprep.subr.bf16.mxu0 %v6615
        %8993 = vmatpush2.bf16.msra.mxu0 %v6614
        %8994 = vmatprep.subr.bf16.mxu0 %v6611
        %8995 = vmatpush2.bf16.msra.mxu0 %v6610
        %8996 = vmatprep.subr.bf16.mxu0 %v6607
        %8997 = vmatpush2.bf16.msra.mxu0 %v6606
        %8998 = vmatprep.subr.bf16.mxu0 %v6603
        %8999 = vmatpush2.bf16.msra.mxu0 %v6602
        %9000 = vmatprep.subr.bf16.mxu0 %v6599
        %9001 = vmatpush2.bf16.msra.mxu0 %v6598
        %9002 = vmatprep.subr.bf16.mxu0 %v6595
        %9003 = vmatpush2.bf16.msra.mxu0 %v6594
        %9004 = vmatprep.subr.bf16.mxu0 %v6591
        %9005 = vmatpush2.bf16.msra.mxu0 %v6590
        %9006 = vmatprep.subr.bf16.mxu0 %v6587
        %9007 = vmatpush2.bf16.msra.mxu0 %v6586
        %9008 = vmatprep.mubr.bf16.mxu0 %v997
        %9009 = vmatmul.mubr.bf16.gmra.mxu0 %v996
        %v9010 = vpop.f32.mrf.mxu0
        %v9011 = vadd.f32 %v8970, %v9010
        %v9012 = vpop.f32.mrf.mxu0
        %v9013 = vadd.f32 %v8972, %v9012
        %v9014 = vpop.f32.mrf.mxu0
        %v9015 = vpop.f32.mrf.mxu0
        %9016 = vdwg.mxu0
        %9017 = vmatprep.subr.bf16.mxu0 %v6647
        %9018 = vmatpush1.bf16.msra.mxu0 %v6646
        %9019 = vmatprep.subr.bf16.mxu0 %v6643
        %9020 = vmatpush1.bf16.msra.mxu0 %v6642
        %9021 = vmatprep.subr.bf16.mxu0 %v6639
        %9022 = vmatpush1.bf16.msra.mxu0 %v6638
        %9023 = vmatprep.subr.bf16.mxu0 %v6635
        %9024 = vmatpush1.bf16.msra.mxu0 %v6634
        %9025 = vmatprep.subr.bf16.mxu0 %v6631
        %9026 = vmatpush1.bf16.msra.mxu0 %v6630
        %9027 = vmatprep.subr.bf16.mxu0 %v6627
        %9028 = vmatpush1.bf16.msra.mxu0 %v6626
        %9029 = vmatprep.subr.bf16.mxu0 %v6623
        %9030 = vmatpush1.bf16.msra.mxu0 %v6622
        %9031 = vmatprep.subr.bf16.mxu0 %v6619
        %9032 = vmatpush1.bf16.msra.mxu0 %v6618
        %9033 = vmatprep.subr.bf16.mxu0 %v6679
        %9034 = vmatpush2.bf16.msra.mxu0 %v6678
        %9035 = vmatprep.subr.bf16.mxu0 %v6675
        %9036 = vmatpush2.bf16.msra.mxu0 %v6674
        %9037 = vmatprep.subr.bf16.mxu0 %v6671
        %9038 = vmatpush2.bf16.msra.mxu0 %v6670
        %9039 = vmatprep.subr.bf16.mxu0 %v6667
        %9040 = vmatpush2.bf16.msra.mxu0 %v6666
        %9041 = vmatprep.subr.bf16.mxu0 %v6663
        %9042 = vmatpush2.bf16.msra.mxu0 %v6662
        %9043 = vmatprep.subr.bf16.mxu0 %v6659
        %9044 = vmatpush2.bf16.msra.mxu0 %v6658
        %9045 = vmatprep.subr.bf16.mxu0 %v6655
        %9046 = vmatpush2.bf16.msra.mxu0 %v6654
        %9047 = vmatprep.subr.bf16.mxu0 %v6651
        %9048 = vmatpush2.bf16.msra.mxu0 %v6650
        %9049 = vmatprep.mubr.bf16.mxu0 %v999
        %9050 = vmatmul.mubr.bf16.gmra.mxu0 %v998
        %v9051 = vpop.f32.mrf.mxu0
        %v9052 = vadd.f32 %v9011, %v9051
        %v9053 = vpop.f32.mrf.mxu0
        %v9054 = vadd.f32 %v9013, %v9053
        %v9055 = vpop.f32.mrf.mxu0
        %v9056 = vpop.f32.mrf.mxu0
        %9057 = vdwg.mxu0
        %9058 = vmatprep.subr.bf16.mxu0 %v6711
        %9059 = vmatpush1.bf16.msra.mxu0 %v6710
        %9060 = vmatprep.subr.bf16.mxu0 %v6707
        %9061 = vmatpush1.bf16.msra.mxu0 %v6706
        %9062 = vmatprep.subr.bf16.mxu0 %v6703
        %9063 = vmatpush1.bf16.msra.mxu0 %v6702
        %9064 = vmatprep.subr.bf16.mxu0 %v6699
        %9065 = vmatpush1.bf16.msra.mxu0 %v6698
        %9066 = vmatprep.subr.bf16.mxu0 %v6695
        %9067 = vmatpush1.bf16.msra.mxu0 %v6694
        %9068 = vmatprep.subr.bf16.mxu0 %v6691
        %9069 = vmatpush1.bf16.msra.mxu0 %v6690
        %9070 = vmatprep.subr.bf16.mxu0 %v6687
        %9071 = vmatpush1.bf16.msra.mxu0 %v6686
        %9072 = vmatprep.subr.bf16.mxu0 %v6683
        %9073 = vmatpush1.bf16.msra.mxu0 %v6682
        %9074 = vmatprep.subr.bf16.mxu0 %v6743
        %9075 = vmatpush2.bf16.msra.mxu0 %v6742
        %9076 = vmatprep.subr.bf16.mxu0 %v6739
        %9077 = vmatpush2.bf16.msra.mxu0 %v6738
        %9078 = vmatprep.subr.bf16.mxu0 %v6735
        %9079 = vmatpush2.bf16.msra.mxu0 %v6734
        %9080 = vmatprep.subr.bf16.mxu0 %v6731
        %9081 = vmatpush2.bf16.msra.mxu0 %v6730
        %9082 = vmatprep.subr.bf16.mxu0 %v6727
        %9083 = vmatpush2.bf16.msra.mxu0 %v6726
        %9084 = vmatprep.subr.bf16.mxu0 %v6723
        %9085 = vmatpush2.bf16.msra.mxu0 %v6722
        %9086 = vmatprep.subr.bf16.mxu0 %v6719
        %9087 = vmatpush2.bf16.msra.mxu0 %v6718
        %9088 = vmatprep.subr.bf16.mxu0 %v6715
        %9089 = vmatpush2.bf16.msra.mxu0 %v6714
        %9090 = vmatprep.mubr.bf16.mxu0 %v1001
        %9091 = vmatmul.mubr.bf16.gmra.mxu0 %v1000
        %v9092 = vpop.f32.mrf.mxu0
        %v9093 = vadd.f32 %v9052, %v9092
        %v9094 = vpop.f32.mrf.mxu0
        %v9095 = vadd.f32 %v9054, %v9094
        %v9096 = vpop.f32.mrf.mxu0
        %v9097 = vpop.f32.mrf.mxu0
        %9098 = vdwg.mxu0
        %9099 = vmatprep.subr.bf16.mxu0 %v6775
        %9100 = vmatpush1.bf16.msra.mxu0 %v6774
        %9101 = vmatprep.subr.bf16.mxu0 %v6771
        %9102 = vmatpush1.bf16.msra.mxu0 %v6770
        %9103 = vmatprep.subr.bf16.mxu0 %v6767
        %9104 = vmatpush1.bf16.msra.mxu0 %v6766
        %9105 = vmatprep.subr.bf16.mxu0 %v6763
        %9106 = vmatpush1.bf16.msra.mxu0 %v6762
        %9107 = vmatprep.subr.bf16.mxu0 %v6759
        %9108 = vmatpush1.bf16.msra.mxu0 %v6758
        %9109 = vmatprep.subr.bf16.mxu0 %v6755
        %9110 = vmatpush1.bf16.msra.mxu0 %v6754
        %9111 = vmatprep.subr.bf16.mxu0 %v6751
        %9112 = vmatpush1.bf16.msra.mxu0 %v6750
        %9113 = vmatprep.subr.bf16.mxu0 %v6747
        %9114 = vmatpush1.bf16.msra.mxu0 %v6746
        %9115 = vmatprep.subr.bf16.mxu0 %v6807
        %9116 = vmatpush2.bf16.msra.mxu0 %v6806
        %9117 = vmatprep.subr.bf16.mxu0 %v6803
        %9118 = vmatpush2.bf16.msra.mxu0 %v6802
        %9119 = vmatprep.subr.bf16.mxu0 %v6799
        %9120 = vmatpush2.bf16.msra.mxu0 %v6798
        %9121 = vmatprep.subr.bf16.mxu0 %v6795
        %9122 = vmatpush2.bf16.msra.mxu0 %v6794
        %9123 = vmatprep.subr.bf16.mxu0 %v6791
        %9124 = vmatpush2.bf16.msra.mxu0 %v6790
        %9125 = vmatprep.subr.bf16.mxu0 %v6787
        %9126 = vmatpush2.bf16.msra.mxu0 %v6786
        %9127 = vmatprep.subr.bf16.mxu0 %v6783
        %9128 = vmatpush2.bf16.msra.mxu0 %v6782
        %9129 = vmatprep.subr.bf16.mxu0 %v6779
        %9130 = vmatpush2.bf16.msra.mxu0 %v6778
        %9131 = vmatprep.mubr.bf16.mxu0 %v1003
        %9132 = vmatmul.mubr.bf16.gmra.mxu0 %v1002
        %v9133 = vpop.f32.mrf.mxu0
        %v9134 = vadd.f32 %v9093, %v9133
        %v9135 = vpop.f32.mrf.mxu0
        %v9136 = vadd.f32 %v9095, %v9135
        %v9137 = vpop.f32.mrf.mxu0
        %v9138 = vpop.f32.mrf.mxu0
        %9139 = vdwg.mxu0
        %9140 = vmatprep.subr.bf16.mxu0 %v6839
        %9141 = vmatpush1.bf16.msra.mxu0 %v6838
        %9142 = vmatprep.subr.bf16.mxu0 %v6835
        %9143 = vmatpush1.bf16.msra.mxu0 %v6834
        %9144 = vmatprep.subr.bf16.mxu0 %v6831
        %9145 = vmatpush1.bf16.msra.mxu0 %v6830
        %9146 = vmatprep.subr.bf16.mxu0 %v6827
        %9147 = vmatpush1.bf16.msra.mxu0 %v6826
        %9148 = vmatprep.subr.bf16.mxu0 %v6823
        %9149 = vmatpush1.bf16.msra.mxu0 %v6822
        %9150 = vmatprep.subr.bf16.mxu0 %v6819
        %9151 = vmatpush1.bf16.msra.mxu0 %v6818
        %9152 = vmatprep.subr.bf16.mxu0 %v6815
        %9153 = vmatpush1.bf16.msra.mxu0 %v6814
        %9154 = vmatprep.subr.bf16.mxu0 %v6811
        %9155 = vmatpush1.bf16.msra.mxu0 %v6810
        %9156 = vmatprep.subr.bf16.mxu0 %v6871
        %9157 = vmatpush2.bf16.msra.mxu0 %v6870
        %9158 = vmatprep.subr.bf16.mxu0 %v6867
        %9159 = vmatpush2.bf16.msra.mxu0 %v6866
        %9160 = vmatprep.subr.bf16.mxu0 %v6863
        %9161 = vmatpush2.bf16.msra.mxu0 %v6862
        %9162 = vmatprep.subr.bf16.mxu0 %v6859
        %9163 = vmatpush2.bf16.msra.mxu0 %v6858
        %9164 = vmatprep.subr.bf16.mxu0 %v6855
        %9165 = vmatpush2.bf16.msra.mxu0 %v6854
        %9166 = vmatprep.subr.bf16.mxu0 %v6851
        %9167 = vmatpush2.bf16.msra.mxu0 %v6850
        %9168 = vmatprep.subr.bf16.mxu0 %v6847
        %9169 = vmatpush2.bf16.msra.mxu0 %v6846
        %9170 = vmatprep.subr.bf16.mxu0 %v6843
        %9171 = vmatpush2.bf16.msra.mxu0 %v6842
        %9172 = vmatprep.mubr.bf16.mxu0 %v1005
        %9173 = vmatmul.mubr.bf16.gmra.mxu0 %v1004
        %v9174 = vpop.f32.mrf.mxu0
        %v9175 = vadd.f32 %v9134, %v9174
        %v9176 = vpop.f32.mrf.mxu0
        %v9177 = vadd.f32 %v9136, %v9176
        %v9178 = vpop.f32.mrf.mxu0
        %v9179 = vpop.f32.mrf.mxu0
        %9180 = vdwg.mxu0
        %9181 = vmatprep.subr.bf16.mxu0 %v6903
        %9182 = vmatpush1.bf16.msra.mxu0 %v6902
        %9183 = vmatprep.subr.bf16.mxu0 %v6899
        %9184 = vmatpush1.bf16.msra.mxu0 %v6898
        %9185 = vmatprep.subr.bf16.mxu0 %v6895
        %9186 = vmatpush1.bf16.msra.mxu0 %v6894
        %9187 = vmatprep.subr.bf16.mxu0 %v6891
        %9188 = vmatpush1.bf16.msra.mxu0 %v6890
        %9189 = vmatprep.subr.bf16.mxu0 %v6887
        %9190 = vmatpush1.bf16.msra.mxu0 %v6886
        %9191 = vmatprep.subr.bf16.mxu0 %v6883
        %9192 = vmatpush1.bf16.msra.mxu0 %v6882
        %9193 = vmatprep.subr.bf16.mxu0 %v6879
        %9194 = vmatpush1.bf16.msra.mxu0 %v6878
        %9195 = vmatprep.subr.bf16.mxu0 %v6875
        %9196 = vmatpush1.bf16.msra.mxu0 %v6874
        %9197 = vmatprep.subr.bf16.mxu0 %v6935
        %9198 = vmatpush2.bf16.msra.mxu0 %v6934
        %9199 = vmatprep.subr.bf16.mxu0 %v6931
        %9200 = vmatpush2.bf16.msra.mxu0 %v6930
        %9201 = vmatprep.subr.bf16.mxu0 %v6927
        %9202 = vmatpush2.bf16.msra.mxu0 %v6926
        %9203 = vmatprep.subr.bf16.mxu0 %v6923
        %9204 = vmatpush2.bf16.msra.mxu0 %v6922
        %9205 = vmatprep.subr.bf16.mxu0 %v6919
        %9206 = vmatpush2.bf16.msra.mxu0 %v6918
        %9207 = vmatprep.subr.bf16.mxu0 %v6915
        %9208 = vmatpush2.bf16.msra.mxu0 %v6914
        %9209 = vmatprep.subr.bf16.mxu0 %v6911
        %9210 = vmatpush2.bf16.msra.mxu0 %v6910
        %9211 = vmatprep.subr.bf16.mxu0 %v6907
        %9212 = vmatpush2.bf16.msra.mxu0 %v6906
        %9213 = vmatprep.mubr.bf16.mxu0 %v1007
        %9214 = vmatmul.mubr.bf16.gmra.mxu0 %v1006
        %v9215 = vpop.f32.mrf.mxu0
        %v9216 = vadd.f32 %v9175, %v9215
        %v9217 = vpop.f32.mrf.mxu0
        %v9218 = vadd.f32 %v9177, %v9217
        %v9219 = vpop.f32.mrf.mxu0
        %v9220 = vpop.f32.mrf.mxu0
        %9221 = vdwg.mxu0
        %9222 = vmatprep.subr.bf16.mxu0 %v6967
        %9223 = vmatpush1.bf16.msra.mxu0 %v6966
        %9224 = vmatprep.subr.bf16.mxu0 %v6963
        %9225 = vmatpush1.bf16.msra.mxu0 %v6962
        %9226 = vmatprep.subr.bf16.mxu0 %v6959
        %9227 = vmatpush1.bf16.msra.mxu0 %v6958
        %9228 = vmatprep.subr.bf16.mxu0 %v6955
        %9229 = vmatpush1.bf16.msra.mxu0 %v6954
        %9230 = vmatprep.subr.bf16.mxu0 %v6951
        %9231 = vmatpush1.bf16.msra.mxu0 %v6950
        %9232 = vmatprep.subr.bf16.mxu0 %v6947
        %9233 = vmatpush1.bf16.msra.mxu0 %v6946
        %9234 = vmatprep.subr.bf16.mxu0 %v6943
        %9235 = vmatpush1.bf16.msra.mxu0 %v6942
        %9236 = vmatprep.subr.bf16.mxu0 %v6939
        %9237 = vmatpush1.bf16.msra.mxu0 %v6938
        %9238 = vmatprep.subr.bf16.mxu0 %v6999
        %9239 = vmatpush2.bf16.msra.mxu0 %v6998
        %9240 = vmatprep.subr.bf16.mxu0 %v6995
        %9241 = vmatpush2.bf16.msra.mxu0 %v6994
        %9242 = vmatprep.subr.bf16.mxu0 %v6991
        %9243 = vmatpush2.bf16.msra.mxu0 %v6990
        %9244 = vmatprep.subr.bf16.mxu0 %v6987
        %9245 = vmatpush2.bf16.msra.mxu0 %v6986
        %9246 = vmatprep.subr.bf16.mxu0 %v6983
        %9247 = vmatpush2.bf16.msra.mxu0 %v6982
        %9248 = vmatprep.subr.bf16.mxu0 %v6979
        %9249 = vmatpush2.bf16.msra.mxu0 %v6978
        %9250 = vmatprep.subr.bf16.mxu0 %v6975
        %9251 = vmatpush2.bf16.msra.mxu0 %v6974
        %9252 = vmatprep.subr.bf16.mxu0 %v6971
        %9253 = vmatpush2.bf16.msra.mxu0 %v6970
        %9254 = vmatprep.mubr.bf16.mxu0 %v1009
        %9255 = vmatmul.mubr.bf16.gmra.mxu0 %v1008
        %v9256 = vpop.f32.mrf.mxu0
        %v9257 = vadd.f32 %v9216, %v9256
        %v9258 = vpop.f32.mrf.mxu0
        %v9259 = vadd.f32 %v9218, %v9258
        %v9260 = vpop.f32.mrf.mxu0
        %v9261 = vpop.f32.mrf.mxu0
        %9262 = vdwg.mxu0
        %9263 = vmatprep.subr.bf16.mxu0 %v7031
        %9264 = vmatpush1.bf16.msra.mxu0 %v7030
        %9265 = vmatprep.subr.bf16.mxu0 %v7027
        %9266 = vmatpush1.bf16.msra.mxu0 %v7026
        %9267 = vmatprep.subr.bf16.mxu0 %v7023
        %9268 = vmatpush1.bf16.msra.mxu0 %v7022
        %9269 = vmatprep.subr.bf16.mxu0 %v7019
        %9270 = vmatpush1.bf16.msra.mxu0 %v7018
        %9271 = vmatprep.subr.bf16.mxu0 %v7015
        %9272 = vmatpush1.bf16.msra.mxu0 %v7014
        %9273 = vmatprep.subr.bf16.mxu0 %v7011
        %9274 = vmatpush1.bf16.msra.mxu0 %v7010
        %9275 = vmatprep.subr.bf16.mxu0 %v7007
        %9276 = vmatpush1.bf16.msra.mxu0 %v7006
        %9277 = vmatprep.subr.bf16.mxu0 %v7003
        %9278 = vmatpush1.bf16.msra.mxu0 %v7002
        %9279 = vmatprep.subr.bf16.mxu0 %v7063
        %9280 = vmatpush2.bf16.msra.mxu0 %v7062
        %9281 = vmatprep.subr.bf16.mxu0 %v7059
        %9282 = vmatpush2.bf16.msra.mxu0 %v7058
        %9283 = vmatprep.subr.bf16.mxu0 %v7055
        %9284 = vmatpush2.bf16.msra.mxu0 %v7054
        %9285 = vmatprep.subr.bf16.mxu0 %v7051
        %9286 = vmatpush2.bf16.msra.mxu0 %v7050
        %9287 = vmatprep.subr.bf16.mxu0 %v7047
        %9288 = vmatpush2.bf16.msra.mxu0 %v7046
        %9289 = vmatprep.subr.bf16.mxu0 %v7043
        %9290 = vmatpush2.bf16.msra.mxu0 %v7042
        %9291 = vmatprep.subr.bf16.mxu0 %v7039
        %9292 = vmatpush2.bf16.msra.mxu0 %v7038
        %9293 = vmatprep.subr.bf16.mxu0 %v7035
        %9294 = vmatpush2.bf16.msra.mxu0 %v7034
        %9295 = vmatprep.mubr.bf16.mxu0 %v1011
        %9296 = vmatmul.mubr.bf16.gmra.mxu0 %v1010
        %v9297 = vpop.f32.mrf.mxu0
        %v9298 = vadd.f32 %v9257, %v9297
        %v9299 = vpop.f32.mrf.mxu0
        %v9300 = vadd.f32 %v9259, %v9299
        %v9301 = vpop.f32.mrf.mxu0
        %v9302 = vpop.f32.mrf.mxu0
        %9303 = vdwg.mxu0
        %9304 = vmatprep.subr.bf16.mxu0 %v7095
        %9305 = vmatpush1.bf16.msra.mxu0 %v7094
        %9306 = vmatprep.subr.bf16.mxu0 %v7091
        %9307 = vmatpush1.bf16.msra.mxu0 %v7090
        %9308 = vmatprep.subr.bf16.mxu0 %v7087
        %9309 = vmatpush1.bf16.msra.mxu0 %v7086
        %9310 = vmatprep.subr.bf16.mxu0 %v7083
        %9311 = vmatpush1.bf16.msra.mxu0 %v7082
        %9312 = vmatprep.subr.bf16.mxu0 %v7079
        %9313 = vmatpush1.bf16.msra.mxu0 %v7078
        %9314 = vmatprep.subr.bf16.mxu0 %v7075
        %9315 = vmatpush1.bf16.msra.mxu0 %v7074
        %9316 = vmatprep.subr.bf16.mxu0 %v7071
        %9317 = vmatpush1.bf16.msra.mxu0 %v7070
        %9318 = vmatprep.subr.bf16.mxu0 %v7067
        %9319 = vmatpush1.bf16.msra.mxu0 %v7066
        %9320 = vmatprep.subr.bf16.mxu0 %v7127
        %9321 = vmatpush2.bf16.msra.mxu0 %v7126
        %9322 = vmatprep.subr.bf16.mxu0 %v7123
        %9323 = vmatpush2.bf16.msra.mxu0 %v7122
        %9324 = vmatprep.subr.bf16.mxu0 %v7119
        %9325 = vmatpush2.bf16.msra.mxu0 %v7118
        %9326 = vmatprep.subr.bf16.mxu0 %v7115
        %9327 = vmatpush2.bf16.msra.mxu0 %v7114
        %9328 = vmatprep.subr.bf16.mxu0 %v7111
        %9329 = vmatpush2.bf16.msra.mxu0 %v7110
        %9330 = vmatprep.subr.bf16.mxu0 %v7107
        %9331 = vmatpush2.bf16.msra.mxu0 %v7106
        %9332 = vmatprep.subr.bf16.mxu0 %v7103
        %9333 = vmatpush2.bf16.msra.mxu0 %v7102
        %9334 = vmatprep.subr.bf16.mxu0 %v7099
        %9335 = vmatpush2.bf16.msra.mxu0 %v7098
        %9336 = vmatprep.mubr.bf16.mxu0 %v1013
        %9337 = vmatmul.mubr.bf16.gmra.mxu0 %v1012
        %v9338 = vpop.f32.mrf.mxu0
        %v9339 = vadd.f32 %v9298, %v9338
        %v9340 = vpop.f32.mrf.mxu0
        %v9341 = vadd.f32 %v9300, %v9340
        %v9342 = vpop.f32.mrf.mxu0
        %v9343 = vpop.f32.mrf.mxu0
        %9344 = vdwg.mxu0
        %9345 = vmatprep.subr.bf16.mxu0 %v7159
        %9346 = vmatpush1.bf16.msra.mxu0 %v7158
        %9347 = vmatprep.subr.bf16.mxu0 %v7155
        %9348 = vmatpush1.bf16.msra.mxu0 %v7154
        %9349 = vmatprep.subr.bf16.mxu0 %v7151
        %9350 = vmatpush1.bf16.msra.mxu0 %v7150
        %9351 = vmatprep.subr.bf16.mxu0 %v7147
        %9352 = vmatpush1.bf16.msra.mxu0 %v7146
        %9353 = vmatprep.subr.bf16.mxu0 %v7143
        %9354 = vmatpush1.bf16.msra.mxu0 %v7142
        %9355 = vmatprep.subr.bf16.mxu0 %v7139
        %9356 = vmatpush1.bf16.msra.mxu0 %v7138
        %9357 = vmatprep.subr.bf16.mxu0 %v7135
        %9358 = vmatpush1.bf16.msra.mxu0 %v7134
        %9359 = vmatprep.subr.bf16.mxu0 %v7131
        %9360 = vmatpush1.bf16.msra.mxu0 %v7130
        %9361 = vmatprep.subr.bf16.mxu0 %v7191
        %9362 = vmatpush2.bf16.msra.mxu0 %v7190
        %9363 = vmatprep.subr.bf16.mxu0 %v7187
        %9364 = vmatpush2.bf16.msra.mxu0 %v7186
        %9365 = vmatprep.subr.bf16.mxu0 %v7183
        %9366 = vmatpush2.bf16.msra.mxu0 %v7182
        %9367 = vmatprep.subr.bf16.mxu0 %v7179
        %9368 = vmatpush2.bf16.msra.mxu0 %v7178
        %9369 = vmatprep.subr.bf16.mxu0 %v7175
        %9370 = vmatpush2.bf16.msra.mxu0 %v7174
        %9371 = vmatprep.subr.bf16.mxu0 %v7171
        %9372 = vmatpush2.bf16.msra.mxu0 %v7170
        %9373 = vmatprep.subr.bf16.mxu0 %v7167
        %9374 = vmatpush2.bf16.msra.mxu0 %v7166
        %9375 = vmatprep.subr.bf16.mxu0 %v7163
        %9376 = vmatpush2.bf16.msra.mxu0 %v7162
        %9377 = vmatprep.mubr.bf16.mxu0 %v1015
        %9378 = vmatmul.mubr.bf16.gmra.mxu0 %v1014
        %v9379 = vpop.f32.mrf.mxu0
        %v9380 = vadd.f32 %v9339, %v9379
        %v9381 = vpop.f32.mrf.mxu0
        %v9382 = vadd.f32 %v9341, %v9381
        %v9383 = vpop.f32.mrf.mxu0
        %v9384 = vpop.f32.mrf.mxu0
        %9385 = vdwg.mxu0
        %9386 = vmatprep.subr.bf16.mxu0 %v7223
        %9387 = vmatpush1.bf16.msra.mxu0 %v7222
        %9388 = vmatprep.subr.bf16.mxu0 %v7219
        %9389 = vmatpush1.bf16.msra.mxu0 %v7218
        %9390 = vmatprep.subr.bf16.mxu0 %v7215
        %9391 = vmatpush1.bf16.msra.mxu0 %v7214
        %9392 = vmatprep.subr.bf16.mxu0 %v7211
        %9393 = vmatpush1.bf16.msra.mxu0 %v7210
        %9394 = vmatprep.subr.bf16.mxu0 %v7207
        %9395 = vmatpush1.bf16.msra.mxu0 %v7206
        %9396 = vmatprep.subr.bf16.mxu0 %v7203
        %9397 = vmatpush1.bf16.msra.mxu0 %v7202
        %9398 = vmatprep.subr.bf16.mxu0 %v7199
        %9399 = vmatpush1.bf16.msra.mxu0 %v7198
        %9400 = vmatprep.subr.bf16.mxu0 %v7195
        %9401 = vmatpush1.bf16.msra.mxu0 %v7194
        %9402 = vmatprep.subr.bf16.mxu0 %v7255
        %9403 = vmatpush2.bf16.msra.mxu0 %v7254
        %9404 = vmatprep.subr.bf16.mxu0 %v7251
        %9405 = vmatpush2.bf16.msra.mxu0 %v7250
        %9406 = vmatprep.subr.bf16.mxu0 %v7247
        %9407 = vmatpush2.bf16.msra.mxu0 %v7246
        %9408 = vmatprep.subr.bf16.mxu0 %v7243
        %9409 = vmatpush2.bf16.msra.mxu0 %v7242
        %9410 = vmatprep.subr.bf16.mxu0 %v7239
        %9411 = vmatpush2.bf16.msra.mxu0 %v7238
        %9412 = vmatprep.subr.bf16.mxu0 %v7235
        %9413 = vmatpush2.bf16.msra.mxu0 %v7234
        %9414 = vmatprep.subr.bf16.mxu0 %v7231
        %9415 = vmatpush2.bf16.msra.mxu0 %v7230
        %9416 = vmatprep.subr.bf16.mxu0 %v7227
        %9417 = vmatpush2.bf16.msra.mxu0 %v7226
        %9418 = vmatprep.mubr.bf16.mxu0 %v1017
        %9419 = vmatmul.mubr.bf16.gmra.mxu0 %v1016
        %v9420 = vpop.f32.mrf.mxu0
        %v9421 = vadd.f32 %v9380, %v9420
        %v9422 = vpop.f32.mrf.mxu0
        %v9423 = vadd.f32 %v9382, %v9422
        %v9424 = vpop.f32.mrf.mxu0
        %v9425 = vpop.f32.mrf.mxu0
        %9426 = vdwg.mxu0
        %9427 = vmatprep.subr.bf16.mxu0 %v7287
        %9428 = vmatpush1.bf16.msra.mxu0 %v7286
        %9429 = vmatprep.subr.bf16.mxu0 %v7283
        %9430 = vmatpush1.bf16.msra.mxu0 %v7282
        %9431 = vmatprep.subr.bf16.mxu0 %v7279
        %9432 = vmatpush1.bf16.msra.mxu0 %v7278
        %9433 = vmatprep.subr.bf16.mxu0 %v7275
        %9434 = vmatpush1.bf16.msra.mxu0 %v7274
        %9435 = vmatprep.subr.bf16.mxu0 %v7271
        %9436 = vmatpush1.bf16.msra.mxu0 %v7270
        %9437 = vmatprep.subr.bf16.mxu0 %v7267
        %9438 = vmatpush1.bf16.msra.mxu0 %v7266
        %9439 = vmatprep.subr.bf16.mxu0 %v7263
        %9440 = vmatpush1.bf16.msra.mxu0 %v7262
        %9441 = vmatprep.subr.bf16.mxu0 %v7259
        %9442 = vmatpush1.bf16.msra.mxu0 %v7258
        %9443 = vmatprep.subr.bf16.mxu0 %v7319
        %9444 = vmatpush2.bf16.msra.mxu0 %v7318
        %9445 = vmatprep.subr.bf16.mxu0 %v7315
        %9446 = vmatpush2.bf16.msra.mxu0 %v7314
        %9447 = vmatprep.subr.bf16.mxu0 %v7311
        %9448 = vmatpush2.bf16.msra.mxu0 %v7310
        %9449 = vmatprep.subr.bf16.mxu0 %v7307
        %9450 = vmatpush2.bf16.msra.mxu0 %v7306
        %9451 = vmatprep.subr.bf16.mxu0 %v7303
        %9452 = vmatpush2.bf16.msra.mxu0 %v7302
        %9453 = vmatprep.subr.bf16.mxu0 %v7299
        %9454 = vmatpush2.bf16.msra.mxu0 %v7298
        %9455 = vmatprep.subr.bf16.mxu0 %v7295
        %9456 = vmatpush2.bf16.msra.mxu0 %v7294
        %9457 = vmatprep.subr.bf16.mxu0 %v7291
        %9458 = vmatpush2.bf16.msra.mxu0 %v7290
        %9459 = vmatprep.mubr.bf16.mxu0 %v1019
        %9460 = vmatmul.mubr.bf16.gmra.mxu0 %v1018
        %v9461 = vpop.f32.mrf.mxu0
        %v9462 = vadd.f32 %v9421, %v9461
        %v9463 = vpop.f32.mrf.mxu0
        %v9464 = vadd.f32 %v9423, %v9463
        %v9465 = vpop.f32.mrf.mxu0
        %v9466 = vpop.f32.mrf.mxu0
        %9467 = vdwg.mxu0
        %9468 = vmatprep.subr.bf16.mxu0 %v7351
        %9469 = vmatpush1.bf16.msra.mxu0 %v7350
        %9470 = vmatprep.subr.bf16.mxu0 %v7347
        %9471 = vmatpush1.bf16.msra.mxu0 %v7346
        %9472 = vmatprep.subr.bf16.mxu0 %v7343
        %9473 = vmatpush1.bf16.msra.mxu0 %v7342
        %9474 = vmatprep.subr.bf16.mxu0 %v7339
        %9475 = vmatpush1.bf16.msra.mxu0 %v7338
        %9476 = vmatprep.subr.bf16.mxu0 %v7335
        %9477 = vmatpush1.bf16.msra.mxu0 %v7334
        %9478 = vmatprep.subr.bf16.mxu0 %v7331
        %9479 = vmatpush1.bf16.msra.mxu0 %v7330
        %9480 = vmatprep.subr.bf16.mxu0 %v7327
        %9481 = vmatpush1.bf16.msra.mxu0 %v7326
        %9482 = vmatprep.subr.bf16.mxu0 %v7323
        %9483 = vmatpush1.bf16.msra.mxu0 %v7322
        %9484 = vmatprep.subr.bf16.mxu0 %v7383
        %9485 = vmatpush2.bf16.msra.mxu0 %v7382
        %9486 = vmatprep.subr.bf16.mxu0 %v7379
        %9487 = vmatpush2.bf16.msra.mxu0 %v7378
        %9488 = vmatprep.subr.bf16.mxu0 %v7375
        %9489 = vmatpush2.bf16.msra.mxu0 %v7374
        %9490 = vmatprep.subr.bf16.mxu0 %v7371
        %9491 = vmatpush2.bf16.msra.mxu0 %v7370
        %9492 = vmatprep.subr.bf16.mxu0 %v7367
        %9493 = vmatpush2.bf16.msra.mxu0 %v7366
        %9494 = vmatprep.subr.bf16.mxu0 %v7363
        %9495 = vmatpush2.bf16.msra.mxu0 %v7362
        %9496 = vmatprep.subr.bf16.mxu0 %v7359
        %9497 = vmatpush2.bf16.msra.mxu0 %v7358
        %9498 = vmatprep.subr.bf16.mxu0 %v7355
        %9499 = vmatpush2.bf16.msra.mxu0 %v7354
        %9500 = vmatprep.mubr.bf16.mxu0 %v1021
        %9501 = vmatmul.mubr.bf16.gmra.mxu0 %v1020
        %v9502 = vpop.f32.mrf.mxu0
        %v9503 = vadd.f32 %v9462, %v9502
        %v9504 = vpop.f32.mrf.mxu0
        %v9505 = vadd.f32 %v9464, %v9504
        %v9506 = vpop.f32.mrf.mxu0
        %v9507 = vpop.f32.mrf.mxu0
        %9508 = vdwg.mxu0
        %9509 = vmatprep.subr.bf16.mxu0 %v7415
        %9510 = vmatpush1.bf16.msra.mxu0 %v7414
        %9511 = vmatprep.subr.bf16.mxu0 %v7411
        %9512 = vmatpush1.bf16.msra.mxu0 %v7410
        %9513 = vmatprep.subr.bf16.mxu0 %v7407
        %9514 = vmatpush1.bf16.msra.mxu0 %v7406
        %9515 = vmatprep.subr.bf16.mxu0 %v7403
        %9516 = vmatpush1.bf16.msra.mxu0 %v7402
        %9517 = vmatprep.subr.bf16.mxu0 %v7399
        %9518 = vmatpush1.bf16.msra.mxu0 %v7398
        %9519 = vmatprep.subr.bf16.mxu0 %v7395
        %9520 = vmatpush1.bf16.msra.mxu0 %v7394
        %9521 = vmatprep.subr.bf16.mxu0 %v7391
        %9522 = vmatpush1.bf16.msra.mxu0 %v7390
        %9523 = vmatprep.subr.bf16.mxu0 %v7387
        %9524 = vmatpush1.bf16.msra.mxu0 %v7386
        %9525 = vmatprep.subr.bf16.mxu0 %v7447
        %9526 = vmatpush2.bf16.msra.mxu0 %v7446
        %9527 = vmatprep.subr.bf16.mxu0 %v7443
        %9528 = vmatpush2.bf16.msra.mxu0 %v7442
        %9529 = vmatprep.subr.bf16.mxu0 %v7439
        %9530 = vmatpush2.bf16.msra.mxu0 %v7438
        %9531 = vmatprep.subr.bf16.mxu0 %v7435
        %9532 = vmatpush2.bf16.msra.mxu0 %v7434
        %9533 = vmatprep.subr.bf16.mxu0 %v7431
        %9534 = vmatpush2.bf16.msra.mxu0 %v7430
        %9535 = vmatprep.subr.bf16.mxu0 %v7427
        %9536 = vmatpush2.bf16.msra.mxu0 %v7426
        %9537 = vmatprep.subr.bf16.mxu0 %v7423
        %9538 = vmatpush2.bf16.msra.mxu0 %v7422
        %9539 = vmatprep.subr.bf16.mxu0 %v7419
        %9540 = vmatpush2.bf16.msra.mxu0 %v7418
        %9541 = vmatprep.mubr.bf16.mxu0 %v1023
        %9542 = vmatmul.mubr.bf16.gmra.mxu0 %v1022
        %v9543 = vpop.f32.mrf.mxu0
        %v9544 = vadd.f32 %v9503, %v9543
        %v9545 = vpop.f32.mrf.mxu0
        %v9546 = vadd.f32 %v9505, %v9545
        %v9547 = vpop.f32.mrf.mxu0
        %v9548 = vpop.f32.mrf.mxu0
        %9549 = vdwg.mxu0
        %9550 = vmatprep.subr.bf16.mxu0 %v6201
        %9551 = vmatpush1.bf16.msra.mxu0 %v6200
        %9552 = vmatprep.subr.bf16.mxu0 %v6197
        %9553 = vmatpush1.bf16.msra.mxu0 %v6196
        %9554 = vmatprep.subr.bf16.mxu0 %v6193
        %9555 = vmatpush1.bf16.msra.mxu0 %v6192
        %9556 = vmatprep.subr.bf16.mxu0 %v6189
        %9557 = vmatpush1.bf16.msra.mxu0 %v6188
        %9558 = vmatprep.subr.bf16.mxu0 %v6185
        %9559 = vmatpush1.bf16.msra.mxu0 %v6184
        %9560 = vmatprep.subr.bf16.mxu0 %v6181
        %9561 = vmatpush1.bf16.msra.mxu0 %v6180
        %9562 = vmatprep.subr.bf16.mxu0 %v6177
        %9563 = vmatpush1.bf16.msra.mxu0 %v6176
        %9564 = vmatprep.subr.bf16.mxu0 %v6173
        %9565 = vmatpush1.bf16.msra.mxu0 %v6172
        %9566 = vmatprep.subr.bf16.mxu0 %v6233
        %9567 = vmatpush2.bf16.msra.mxu0 %v6232
        %9568 = vmatprep.subr.bf16.mxu0 %v6229
        %9569 = vmatpush2.bf16.msra.mxu0 %v6228
        %9570 = vmatprep.subr.bf16.mxu0 %v6225
        %9571 = vmatpush2.bf16.msra.mxu0 %v6224
        %9572 = vmatprep.subr.bf16.mxu0 %v6221
        %9573 = vmatpush2.bf16.msra.mxu0 %v6220
        %9574 = vmatprep.subr.bf16.mxu0 %v6217
        %9575 = vmatpush2.bf16.msra.mxu0 %v6216
        %9576 = vmatprep.subr.bf16.mxu0 %v6213
        %9577 = vmatpush2.bf16.msra.mxu0 %v6212
        %9578 = vmatprep.subr.bf16.mxu0 %v6209
        %9579 = vmatpush2.bf16.msra.mxu0 %v6208
        %9580 = vmatprep.subr.bf16.mxu0 %v6205
        %9581 = vmatpush2.bf16.msra.mxu0 %v6204
        %9582 = vmatprep.mubr.bf16.mxu0 %v985
        %9583 = vmatmul.mubr.bf16.gmra.mxu0 %v984
        %v9584 = vpop.f32.mrf.mxu0
        %v9585 = vadd.f32 %v2321, %v9584
        %v9586 = vpop.f32.mrf.mxu0
        %v9587 = vadd.f32 %v2325, %v9586
        %v9588 = vpop.f32.mrf.mxu0
        %v9589 = vpop.f32.mrf.mxu0
        %9590 = vdwg.mxu0
        %9591 = vmatprep.subr.bf16.mxu0 %v6265
        %9592 = vmatpush1.bf16.msra.mxu0 %v6264
        %9593 = vmatprep.subr.bf16.mxu0 %v6261
        %9594 = vmatpush1.bf16.msra.mxu0 %v6260
        %9595 = vmatprep.subr.bf16.mxu0 %v6257
        %9596 = vmatpush1.bf16.msra.mxu0 %v6256
        %9597 = vmatprep.subr.bf16.mxu0 %v6253
        %9598 = vmatpush1.bf16.msra.mxu0 %v6252
        %9599 = vmatprep.subr.bf16.mxu0 %v6249
        %9600 = vmatpush1.bf16.msra.mxu0 %v6248
        %9601 = vmatprep.subr.bf16.mxu0 %v6245
        %9602 = vmatpush1.bf16.msra.mxu0 %v6244
        %9603 = vmatprep.subr.bf16.mxu0 %v6241
        %9604 = vmatpush1.bf16.msra.mxu0 %v6240
        %9605 = vmatprep.subr.bf16.mxu0 %v6237
        %9606 = vmatpush1.bf16.msra.mxu0 %v6236
        %9607 = vmatprep.subr.bf16.mxu0 %v6297
        %9608 = vmatpush2.bf16.msra.mxu0 %v6296
        %9609 = vmatprep.subr.bf16.mxu0 %v6293
        %9610 = vmatpush2.bf16.msra.mxu0 %v6292
        %9611 = vmatprep.subr.bf16.mxu0 %v6289
        %9612 = vmatpush2.bf16.msra.mxu0 %v6288
        %9613 = vmatprep.subr.bf16.mxu0 %v6285
        %9614 = vmatpush2.bf16.msra.mxu0 %v6284
        %9615 = vmatprep.subr.bf16.mxu0 %v6281
        %9616 = vmatpush2.bf16.msra.mxu0 %v6280
        %9617 = vmatprep.subr.bf16.mxu0 %v6277
        %9618 = vmatpush2.bf16.msra.mxu0 %v6276
        %9619 = vmatprep.subr.bf16.mxu0 %v6273
        %9620 = vmatpush2.bf16.msra.mxu0 %v6272
        %9621 = vmatprep.subr.bf16.mxu0 %v6269
        %9622 = vmatpush2.bf16.msra.mxu0 %v6268
        %9623 = vmatprep.mubr.bf16.mxu0 %v987
        %9624 = vmatmul.mubr.bf16.gmra.mxu0 %v986
        %v9625 = vpop.f32.mrf.mxu0
        %v9626 = vadd.f32 %v9585, %v9625
        %v9627 = vpop.f32.mrf.mxu0
        %v9628 = vadd.f32 %v9587, %v9627
        %v9629 = vpop.f32.mrf.mxu0
        %v9630 = vpop.f32.mrf.mxu0
        %9631 = vdwg.mxu0
        %9632 = vmatprep.subr.bf16.mxu0 %v6329
        %9633 = vmatpush1.bf16.msra.mxu0 %v6328
        %9634 = vmatprep.subr.bf16.mxu0 %v6325
        %9635 = vmatpush1.bf16.msra.mxu0 %v6324
        %9636 = vmatprep.subr.bf16.mxu0 %v6321
        %9637 = vmatpush1.bf16.msra.mxu0 %v6320
        %9638 = vmatprep.subr.bf16.mxu0 %v6317
        %9639 = vmatpush1.bf16.msra.mxu0 %v6316
        %9640 = vmatprep.subr.bf16.mxu0 %v6313
        %9641 = vmatpush1.bf16.msra.mxu0 %v6312
        %9642 = vmatprep.subr.bf16.mxu0 %v6309
        %9643 = vmatpush1.bf16.msra.mxu0 %v6308
        %9644 = vmatprep.subr.bf16.mxu0 %v6305
        %9645 = vmatpush1.bf16.msra.mxu0 %v6304
        %9646 = vmatprep.subr.bf16.mxu0 %v6301
        %9647 = vmatpush1.bf16.msra.mxu0 %v6300
        %9648 = vmatprep.subr.bf16.mxu0 %v6361
        %9649 = vmatpush2.bf16.msra.mxu0 %v6360
        %9650 = vmatprep.subr.bf16.mxu0 %v6357
        %9651 = vmatpush2.bf16.msra.mxu0 %v6356
        %9652 = vmatprep.subr.bf16.mxu0 %v6353
        %9653 = vmatpush2.bf16.msra.mxu0 %v6352
        %9654 = vmatprep.subr.bf16.mxu0 %v6349
        %9655 = vmatpush2.bf16.msra.mxu0 %v6348
        %9656 = vmatprep.subr.bf16.mxu0 %v6345
        %9657 = vmatpush2.bf16.msra.mxu0 %v6344
        %9658 = vmatprep.subr.bf16.mxu0 %v6341
        %9659 = vmatpush2.bf16.msra.mxu0 %v6340
        %9660 = vmatprep.subr.bf16.mxu0 %v6337
        %9661 = vmatpush2.bf16.msra.mxu0 %v6336
        %9662 = vmatprep.subr.bf16.mxu0 %v6333
        %9663 = vmatpush2.bf16.msra.mxu0 %v6332
        %9664 = vmatprep.mubr.bf16.mxu0 %v989
        %9665 = vmatmul.mubr.bf16.gmra.mxu0 %v988
        %v9666 = vpop.f32.mrf.mxu0
        %v9667 = vadd.f32 %v9626, %v9666
        %v9668 = vpop.f32.mrf.mxu0
        %v9669 = vadd.f32 %v9628, %v9668
        %v9670 = vpop.f32.mrf.mxu0
        %v9671 = vpop.f32.mrf.mxu0
        %9672 = vdwg.mxu0
        %9673 = vmatprep.subr.bf16.mxu0 %v6393
        %9674 = vmatpush1.bf16.msra.mxu0 %v6392
        %9675 = vmatprep.subr.bf16.mxu0 %v6389
        %9676 = vmatpush1.bf16.msra.mxu0 %v6388
        %9677 = vmatprep.subr.bf16.mxu0 %v6385
        %9678 = vmatpush1.bf16.msra.mxu0 %v6384
        %9679 = vmatprep.subr.bf16.mxu0 %v6381
        %9680 = vmatpush1.bf16.msra.mxu0 %v6380
        %9681 = vmatprep.subr.bf16.mxu0 %v6377
        %9682 = vmatpush1.bf16.msra.mxu0 %v6376
        %9683 = vmatprep.subr.bf16.mxu0 %v6373
        %9684 = vmatpush1.bf16.msra.mxu0 %v6372
        %9685 = vmatprep.subr.bf16.mxu0 %v6369
        %9686 = vmatpush1.bf16.msra.mxu0 %v6368
        %9687 = vmatprep.subr.bf16.mxu0 %v6365
        %9688 = vmatpush1.bf16.msra.mxu0 %v6364
        %9689 = vmatprep.subr.bf16.mxu0 %v6425
        %9690 = vmatpush2.bf16.msra.mxu0 %v6424
        %9691 = vmatprep.subr.bf16.mxu0 %v6421
        %9692 = vmatpush2.bf16.msra.mxu0 %v6420
        %9693 = vmatprep.subr.bf16.mxu0 %v6417
        %9694 = vmatpush2.bf16.msra.mxu0 %v6416
        %9695 = vmatprep.subr.bf16.mxu0 %v6413
        %9696 = vmatpush2.bf16.msra.mxu0 %v6412
        %9697 = vmatprep.subr.bf16.mxu0 %v6409
        %9698 = vmatpush2.bf16.msra.mxu0 %v6408
        %9699 = vmatprep.subr.bf16.mxu0 %v6405
        %9700 = vmatpush2.bf16.msra.mxu0 %v6404
        %9701 = vmatprep.subr.bf16.mxu0 %v6401
        %9702 = vmatpush2.bf16.msra.mxu0 %v6400
        %9703 = vmatprep.subr.bf16.mxu0 %v6397
        %9704 = vmatpush2.bf16.msra.mxu0 %v6396
        %9705 = vmatprep.mubr.bf16.mxu0 %v991
        %9706 = vmatmul.mubr.bf16.gmra.mxu0 %v990
        %v9707 = vpop.f32.mrf.mxu0
        %v9708 = vadd.f32 %v9667, %v9707
        %v9709 = vpop.f32.mrf.mxu0
        %v9710 = vadd.f32 %v9669, %v9709
        %v9711 = vpop.f32.mrf.mxu0
        %v9712 = vpop.f32.mrf.mxu0
        %9713 = vdwg.mxu0
        %9714 = vmatprep.subr.bf16.mxu0 %v6457
        %9715 = vmatpush1.bf16.msra.mxu0 %v6456
        %9716 = vmatprep.subr.bf16.mxu0 %v6453
        %9717 = vmatpush1.bf16.msra.mxu0 %v6452
        %9718 = vmatprep.subr.bf16.mxu0 %v6449
        %9719 = vmatpush1.bf16.msra.mxu0 %v6448
        %9720 = vmatprep.subr.bf16.mxu0 %v6445
        %9721 = vmatpush1.bf16.msra.mxu0 %v6444
        %9722 = vmatprep.subr.bf16.mxu0 %v6441
        %9723 = vmatpush1.bf16.msra.mxu0 %v6440
        %9724 = vmatprep.subr.bf16.mxu0 %v6437
        %9725 = vmatpush1.bf16.msra.mxu0 %v6436
        %9726 = vmatprep.subr.bf16.mxu0 %v6433
        %9727 = vmatpush1.bf16.msra.mxu0 %v6432
        %9728 = vmatprep.subr.bf16.mxu0 %v6429
        %9729 = vmatpush1.bf16.msra.mxu0 %v6428
        %9730 = vmatprep.subr.bf16.mxu0 %v6489
        %9731 = vmatpush2.bf16.msra.mxu0 %v6488
        %9732 = vmatprep.subr.bf16.mxu0 %v6485
        %9733 = vmatpush2.bf16.msra.mxu0 %v6484
        %9734 = vmatprep.subr.bf16.mxu0 %v6481
        %9735 = vmatpush2.bf16.msra.mxu0 %v6480
        %9736 = vmatprep.subr.bf16.mxu0 %v6477
        %9737 = vmatpush2.bf16.msra.mxu0 %v6476
        %9738 = vmatprep.subr.bf16.mxu0 %v6473
        %9739 = vmatpush2.bf16.msra.mxu0 %v6472
        %9740 = vmatprep.subr.bf16.mxu0 %v6469
        %9741 = vmatpush2.bf16.msra.mxu0 %v6468
        %9742 = vmatprep.subr.bf16.mxu0 %v6465
        %9743 = vmatpush2.bf16.msra.mxu0 %v6464
        %9744 = vmatprep.subr.bf16.mxu0 %v6461
        %9745 = vmatpush2.bf16.msra.mxu0 %v6460
        %9746 = vmatprep.mubr.bf16.mxu0 %v993
        %9747 = vmatmul.mubr.bf16.gmra.mxu0 %v992
        %v9748 = vpop.f32.mrf.mxu0
        %v9749 = vadd.f32 %v9708, %v9748
        %v9750 = vpop.f32.mrf.mxu0
        %v9751 = vadd.f32 %v9710, %v9750
        %v9752 = vpop.f32.mrf.mxu0
        %v9753 = vpop.f32.mrf.mxu0
        %9754 = vdwg.mxu0
        %9755 = vmatprep.subr.bf16.mxu0 %v6521
        %9756 = vmatpush1.bf16.msra.mxu0 %v6520
        %9757 = vmatprep.subr.bf16.mxu0 %v6517
        %9758 = vmatpush1.bf16.msra.mxu0 %v6516
        %9759 = vmatprep.subr.bf16.mxu0 %v6513
        %9760 = vmatpush1.bf16.msra.mxu0 %v6512
        %9761 = vmatprep.subr.bf16.mxu0 %v6509
        %9762 = vmatpush1.bf16.msra.mxu0 %v6508
        %9763 = vmatprep.subr.bf16.mxu0 %v6505
        %9764 = vmatpush1.bf16.msra.mxu0 %v6504
        %9765 = vmatprep.subr.bf16.mxu0 %v6501
        %9766 = vmatpush1.bf16.msra.mxu0 %v6500
        %9767 = vmatprep.subr.bf16.mxu0 %v6497
        %9768 = vmatpush1.bf16.msra.mxu0 %v6496
        %9769 = vmatprep.subr.bf16.mxu0 %v6493
        %9770 = vmatpush1.bf16.msra.mxu0 %v6492
        %9771 = vmatprep.subr.bf16.mxu0 %v6553
        %9772 = vmatpush2.bf16.msra.mxu0 %v6552
        %9773 = vmatprep.subr.bf16.mxu0 %v6549
        %9774 = vmatpush2.bf16.msra.mxu0 %v6548
        %9775 = vmatprep.subr.bf16.mxu0 %v6545
        %9776 = vmatpush2.bf16.msra.mxu0 %v6544
        %9777 = vmatprep.subr.bf16.mxu0 %v6541
        %9778 = vmatpush2.bf16.msra.mxu0 %v6540
        %9779 = vmatprep.subr.bf16.mxu0 %v6537
        %9780 = vmatpush2.bf16.msra.mxu0 %v6536
        %9781 = vmatprep.subr.bf16.mxu0 %v6533
        %9782 = vmatpush2.bf16.msra.mxu0 %v6532
        %9783 = vmatprep.subr.bf16.mxu0 %v6529
        %9784 = vmatpush2.bf16.msra.mxu0 %v6528
        %9785 = vmatprep.subr.bf16.mxu0 %v6525
        %9786 = vmatpush2.bf16.msra.mxu0 %v6524
        %9787 = vmatprep.mubr.bf16.mxu0 %v995
        %9788 = vmatmul.mubr.bf16.gmra.mxu0 %v994
        %v9789 = vpop.f32.mrf.mxu0
        %v9790 = vadd.f32 %v9749, %v9789
        %v9791 = vpop.f32.mrf.mxu0
        %v9792 = vadd.f32 %v9751, %v9791
        %v9793 = vpop.f32.mrf.mxu0
        %v9794 = vpop.f32.mrf.mxu0
        %9795 = vdwg.mxu0
        %9796 = vmatprep.subr.bf16.mxu0 %v6585
        %9797 = vmatpush1.bf16.msra.mxu0 %v6584
        %9798 = vmatprep.subr.bf16.mxu0 %v6581
        %9799 = vmatpush1.bf16.msra.mxu0 %v6580
        %9800 = vmatprep.subr.bf16.mxu0 %v6577
        %9801 = vmatpush1.bf16.msra.mxu0 %v6576
        %9802 = vmatprep.subr.bf16.mxu0 %v6573
        %9803 = vmatpush1.bf16.msra.mxu0 %v6572
        %9804 = vmatprep.subr.bf16.mxu0 %v6569
        %9805 = vmatpush1.bf16.msra.mxu0 %v6568
        %9806 = vmatprep.subr.bf16.mxu0 %v6565
        %9807 = vmatpush1.bf16.msra.mxu0 %v6564
        %9808 = vmatprep.subr.bf16.mxu0 %v6561
        %9809 = vmatpush1.bf16.msra.mxu0 %v6560
        %9810 = vmatprep.subr.bf16.mxu0 %v6557
        %9811 = vmatpush1.bf16.msra.mxu0 %v6556
        %9812 = vmatprep.subr.bf16.mxu0 %v6617
        %9813 = vmatpush2.bf16.msra.mxu0 %v6616
        %9814 = vmatprep.subr.bf16.mxu0 %v6613
        %9815 = vmatpush2.bf16.msra.mxu0 %v6612
        %9816 = vmatprep.subr.bf16.mxu0 %v6609
        %9817 = vmatpush2.bf16.msra.mxu0 %v6608
        %9818 = vmatprep.subr.bf16.mxu0 %v6605
        %9819 = vmatpush2.bf16.msra.mxu0 %v6604
        %9820 = vmatprep.subr.bf16.mxu0 %v6601
        %9821 = vmatpush2.bf16.msra.mxu0 %v6600
        %9822 = vmatprep.subr.bf16.mxu0 %v6597
        %9823 = vmatpush2.bf16.msra.mxu0 %v6596
        %9824 = vmatprep.subr.bf16.mxu0 %v6593
        %9825 = vmatpush2.bf16.msra.mxu0 %v6592
        %9826 = vmatprep.subr.bf16.mxu0 %v6589
        %9827 = vmatpush2.bf16.msra.mxu0 %v6588
        %9828 = vmatprep.mubr.bf16.mxu0 %v997
        %9829 = vmatmul.mubr.bf16.gmra.mxu0 %v996
        %v9830 = vpop.f32.mrf.mxu0
        %v9831 = vadd.f32 %v9790, %v9830
        %v9832 = vpop.f32.mrf.mxu0
        %v9833 = vadd.f32 %v9792, %v9832
        %v9834 = vpop.f32.mrf.mxu0
        %v9835 = vpop.f32.mrf.mxu0
        %9836 = vdwg.mxu0
        %9837 = vmatprep.subr.bf16.mxu0 %v6649
        %9838 = vmatpush1.bf16.msra.mxu0 %v6648
        %9839 = vmatprep.subr.bf16.mxu0 %v6645
        %9840 = vmatpush1.bf16.msra.mxu0 %v6644
        %9841 = vmatprep.subr.bf16.mxu0 %v6641
        %9842 = vmatpush1.bf16.msra.mxu0 %v6640
        %9843 = vmatprep.subr.bf16.mxu0 %v6637
        %9844 = vmatpush1.bf16.msra.mxu0 %v6636
        %9845 = vmatprep.subr.bf16.mxu0 %v6633
        %9846 = vmatpush1.bf16.msra.mxu0 %v6632
        %9847 = vmatprep.subr.bf16.mxu0 %v6629
        %9848 = vmatpush1.bf16.msra.mxu0 %v6628
        %9849 = vmatprep.subr.bf16.mxu0 %v6625
        %9850 = vmatpush1.bf16.msra.mxu0 %v6624
        %9851 = vmatprep.subr.bf16.mxu0 %v6621
        %9852 = vmatpush1.bf16.msra.mxu0 %v6620
        %9853 = vmatprep.subr.bf16.mxu0 %v6681
        %9854 = vmatpush2.bf16.msra.mxu0 %v6680
        %9855 = vmatprep.subr.bf16.mxu0 %v6677
        %9856 = vmatpush2.bf16.msra.mxu0 %v6676
        %9857 = vmatprep.subr.bf16.mxu0 %v6673
        %9858 = vmatpush2.bf16.msra.mxu0 %v6672
        %9859 = vmatprep.subr.bf16.mxu0 %v6669
        %9860 = vmatpush2.bf16.msra.mxu0 %v6668
        %9861 = vmatprep.subr.bf16.mxu0 %v6665
        %9862 = vmatpush2.bf16.msra.mxu0 %v6664
        %9863 = vmatprep.subr.bf16.mxu0 %v6661
        %9864 = vmatpush2.bf16.msra.mxu0 %v6660
        %9865 = vmatprep.subr.bf16.mxu0 %v6657
        %9866 = vmatpush2.bf16.msra.mxu0 %v6656
        %9867 = vmatprep.subr.bf16.mxu0 %v6653
        %9868 = vmatpush2.bf16.msra.mxu0 %v6652
        %9869 = vmatprep.mubr.bf16.mxu0 %v999
        %9870 = vmatmul.mubr.bf16.gmra.mxu0 %v998
        %v9871 = vpop.f32.mrf.mxu0
        %v9872 = vadd.f32 %v9831, %v9871
        %v9873 = vpop.f32.mrf.mxu0
        %v9874 = vadd.f32 %v9833, %v9873
        %v9875 = vpop.f32.mrf.mxu0
        %v9876 = vpop.f32.mrf.mxu0
        %9877 = vdwg.mxu0
        %9878 = vmatprep.subr.bf16.mxu0 %v6713
        %9879 = vmatpush1.bf16.msra.mxu0 %v6712
        %9880 = vmatprep.subr.bf16.mxu0 %v6709
        %9881 = vmatpush1.bf16.msra.mxu0 %v6708
        %9882 = vmatprep.subr.bf16.mxu0 %v6705
        %9883 = vmatpush1.bf16.msra.mxu0 %v6704
        %9884 = vmatprep.subr.bf16.mxu0 %v6701
        %9885 = vmatpush1.bf16.msra.mxu0 %v6700
        %9886 = vmatprep.subr.bf16.mxu0 %v6697
        %9887 = vmatpush1.bf16.msra.mxu0 %v6696
        %9888 = vmatprep.subr.bf16.mxu0 %v6693
        %9889 = vmatpush1.bf16.msra.mxu0 %v6692
        %9890 = vmatprep.subr.bf16.mxu0 %v6689
        %9891 = vmatpush1.bf16.msra.mxu0 %v6688
        %9892 = vmatprep.subr.bf16.mxu0 %v6685
        %9893 = vmatpush1.bf16.msra.mxu0 %v6684
        %9894 = vmatprep.subr.bf16.mxu0 %v6745
        %9895 = vmatpush2.bf16.msra.mxu0 %v6744
        %9896 = vmatprep.subr.bf16.mxu0 %v6741
        %9897 = vmatpush2.bf16.msra.mxu0 %v6740
        %9898 = vmatprep.subr.bf16.mxu0 %v6737
        %9899 = vmatpush2.bf16.msra.mxu0 %v6736
        %9900 = vmatprep.subr.bf16.mxu0 %v6733
        %9901 = vmatpush2.bf16.msra.mxu0 %v6732
        %9902 = vmatprep.subr.bf16.mxu0 %v6729
        %9903 = vmatpush2.bf16.msra.mxu0 %v6728
        %9904 = vmatprep.subr.bf16.mxu0 %v6725
        %9905 = vmatpush2.bf16.msra.mxu0 %v6724
        %9906 = vmatprep.subr.bf16.mxu0 %v6721
        %9907 = vmatpush2.bf16.msra.mxu0 %v6720
        %9908 = vmatprep.subr.bf16.mxu0 %v6717
        %9909 = vmatpush2.bf16.msra.mxu0 %v6716
        %9910 = vmatprep.mubr.bf16.mxu0 %v1001
        %9911 = vmatmul.mubr.bf16.gmra.mxu0 %v1000
        %v9912 = vpop.f32.mrf.mxu0
        %v9913 = vadd.f32 %v9872, %v9912
        %v9914 = vpop.f32.mrf.mxu0
        %v9915 = vadd.f32 %v9874, %v9914
        %v9916 = vpop.f32.mrf.mxu0
        %v9917 = vpop.f32.mrf.mxu0
        %9918 = vdwg.mxu0
        %9919 = vmatprep.subr.bf16.mxu0 %v6777
        %9920 = vmatpush1.bf16.msra.mxu0 %v6776
        %9921 = vmatprep.subr.bf16.mxu0 %v6773
        %9922 = vmatpush1.bf16.msra.mxu0 %v6772
        %9923 = vmatprep.subr.bf16.mxu0 %v6769
        %9924 = vmatpush1.bf16.msra.mxu0 %v6768
        %9925 = vmatprep.subr.bf16.mxu0 %v6765
        %9926 = vmatpush1.bf16.msra.mxu0 %v6764
        %9927 = vmatprep.subr.bf16.mxu0 %v6761
        %9928 = vmatpush1.bf16.msra.mxu0 %v6760
        %9929 = vmatprep.subr.bf16.mxu0 %v6757
        %9930 = vmatpush1.bf16.msra.mxu0 %v6756
        %9931 = vmatprep.subr.bf16.mxu0 %v6753
        %9932 = vmatpush1.bf16.msra.mxu0 %v6752
        %9933 = vmatprep.subr.bf16.mxu0 %v6749
        %9934 = vmatpush1.bf16.msra.mxu0 %v6748
        %9935 = vmatprep.subr.bf16.mxu0 %v6809
        %9936 = vmatpush2.bf16.msra.mxu0 %v6808
        %9937 = vmatprep.subr.bf16.mxu0 %v6805
        %9938 = vmatpush2.bf16.msra.mxu0 %v6804
        %9939 = vmatprep.subr.bf16.mxu0 %v6801
        %9940 = vmatpush2.bf16.msra.mxu0 %v6800
        %9941 = vmatprep.subr.bf16.mxu0 %v6797
        %9942 = vmatpush2.bf16.msra.mxu0 %v6796
        %9943 = vmatprep.subr.bf16.mxu0 %v6793
        %9944 = vmatpush2.bf16.msra.mxu0 %v6792
        %9945 = vmatprep.subr.bf16.mxu0 %v6789
        %9946 = vmatpush2.bf16.msra.mxu0 %v6788
        %9947 = vmatprep.subr.bf16.mxu0 %v6785
        %9948 = vmatpush2.bf16.msra.mxu0 %v6784
        %9949 = vmatprep.subr.bf16.mxu0 %v6781
        %9950 = vmatpush2.bf16.msra.mxu0 %v6780
        %9951 = vmatprep.mubr.bf16.mxu0 %v1003
        %9952 = vmatmul.mubr.bf16.gmra.mxu0 %v1002
        %v9953 = vpop.f32.mrf.mxu0
        %v9954 = vadd.f32 %v9913, %v9953
        %v9955 = vpop.f32.mrf.mxu0
        %v9956 = vadd.f32 %v9915, %v9955
        %v9957 = vpop.f32.mrf.mxu0
        %v9958 = vpop.f32.mrf.mxu0
        %9959 = vdwg.mxu0
        %9960 = vmatprep.subr.bf16.mxu0 %v6841
        %9961 = vmatpush1.bf16.msra.mxu0 %v6840
        %9962 = vmatprep.subr.bf16.mxu0 %v6837
        %9963 = vmatpush1.bf16.msra.mxu0 %v6836
        %9964 = vmatprep.subr.bf16.mxu0 %v6833
        %9965 = vmatpush1.bf16.msra.mxu0 %v6832
        %9966 = vmatprep.subr.bf16.mxu0 %v6829
        %9967 = vmatpush1.bf16.msra.mxu0 %v6828
        %9968 = vmatprep.subr.bf16.mxu0 %v6825
        %9969 = vmatpush1.bf16.msra.mxu0 %v6824
        %9970 = vmatprep.subr.bf16.mxu0 %v6821
        %9971 = vmatpush1.bf16.msra.mxu0 %v6820
        %9972 = vmatprep.subr.bf16.mxu0 %v6817
        %9973 = vmatpush1.bf16.msra.mxu0 %v6816
        %9974 = vmatprep.subr.bf16.mxu0 %v6813
        %9975 = vmatpush1.bf16.msra.mxu0 %v6812
        %9976 = vmatprep.subr.bf16.mxu0 %v6873
        %9977 = vmatpush2.bf16.msra.mxu0 %v6872
        %9978 = vmatprep.subr.bf16.mxu0 %v6869
        %9979 = vmatpush2.bf16.msra.mxu0 %v6868
        %9980 = vmatprep.subr.bf16.mxu0 %v6865
        %9981 = vmatpush2.bf16.msra.mxu0 %v6864
        %9982 = vmatprep.subr.bf16.mxu0 %v6861
        %9983 = vmatpush2.bf16.msra.mxu0 %v6860
        %9984 = vmatprep.subr.bf16.mxu0 %v6857
        %9985 = vmatpush2.bf16.msra.mxu0 %v6856
        %9986 = vmatprep.subr.bf16.mxu0 %v6853
        %9987 = vmatpush2.bf16.msra.mxu0 %v6852
        %9988 = vmatprep.subr.bf16.mxu0 %v6849
        %9989 = vmatpush2.bf16.msra.mxu0 %v6848
        %9990 = vmatprep.subr.bf16.mxu0 %v6845
        %9991 = vmatpush2.bf16.msra.mxu0 %v6844
        %9992 = vmatprep.mubr.bf16.mxu0 %v1005
        %9993 = vmatmul.mubr.bf16.gmra.mxu0 %v1004
        %v9994 = vpop.f32.mrf.mxu0
        %v9995 = vadd.f32 %v9954, %v9994
        %v9996 = vpop.f32.mrf.mxu0
        %v9997 = vadd.f32 %v9956, %v9996
        %v9998 = vpop.f32.mrf.mxu0
        %v9999 = vpop.f32.mrf.mxu0
        %10000 = vdwg.mxu0
        %10001 = vmatprep.subr.bf16.mxu0 %v6905
        %10002 = vmatpush1.bf16.msra.mxu0 %v6904
        %10003 = vmatprep.subr.bf16.mxu0 %v6901
        %10004 = vmatpush1.bf16.msra.mxu0 %v6900
        %10005 = vmatprep.subr.bf16.mxu0 %v6897
        %10006 = vmatpush1.bf16.msra.mxu0 %v6896
        %10007 = vmatprep.subr.bf16.mxu0 %v6893
        %10008 = vmatpush1.bf16.msra.mxu0 %v6892
        %10009 = vmatprep.subr.bf16.mxu0 %v6889
        %10010 = vmatpush1.bf16.msra.mxu0 %v6888
        %10011 = vmatprep.subr.bf16.mxu0 %v6885
        %10012 = vmatpush1.bf16.msra.mxu0 %v6884
        %10013 = vmatprep.subr.bf16.mxu0 %v6881
        %10014 = vmatpush1.bf16.msra.mxu0 %v6880
        %10015 = vmatprep.subr.bf16.mxu0 %v6877
        %10016 = vmatpush1.bf16.msra.mxu0 %v6876
        %10017 = vmatprep.subr.bf16.mxu0 %v6937
        %10018 = vmatpush2.bf16.msra.mxu0 %v6936
        %10019 = vmatprep.subr.bf16.mxu0 %v6933
        %10020 = vmatpush2.bf16.msra.mxu0 %v6932
        %10021 = vmatprep.subr.bf16.mxu0 %v6929
        %10022 = vmatpush2.bf16.msra.mxu0 %v6928
        %10023 = vmatprep.subr.bf16.mxu0 %v6925
        %10024 = vmatpush2.bf16.msra.mxu0 %v6924
        %10025 = vmatprep.subr.bf16.mxu0 %v6921
        %10026 = vmatpush2.bf16.msra.mxu0 %v6920
        %10027 = vmatprep.subr.bf16.mxu0 %v6917
        %10028 = vmatpush2.bf16.msra.mxu0 %v6916
        %10029 = vmatprep.subr.bf16.mxu0 %v6913
        %10030 = vmatpush2.bf16.msra.mxu0 %v6912
        %10031 = vmatprep.subr.bf16.mxu0 %v6909
        %10032 = vmatpush2.bf16.msra.mxu0 %v6908
        %10033 = vmatprep.mubr.bf16.mxu0 %v1007
        %10034 = vmatmul.mubr.bf16.gmra.mxu0 %v1006
        %v10035 = vpop.f32.mrf.mxu0
        %v10036 = vadd.f32 %v9995, %v10035
        %v10037 = vpop.f32.mrf.mxu0
        %v10038 = vadd.f32 %v9997, %v10037
        %v10039 = vpop.f32.mrf.mxu0
        %v10040 = vpop.f32.mrf.mxu0
        %10041 = vdwg.mxu0
        %10042 = vmatprep.subr.bf16.mxu0 %v6969
        %10043 = vmatpush1.bf16.msra.mxu0 %v6968
        %10044 = vmatprep.subr.bf16.mxu0 %v6965
        %10045 = vmatpush1.bf16.msra.mxu0 %v6964
        %10046 = vmatprep.subr.bf16.mxu0 %v6961
        %10047 = vmatpush1.bf16.msra.mxu0 %v6960
        %10048 = vmatprep.subr.bf16.mxu0 %v6957
        %10049 = vmatpush1.bf16.msra.mxu0 %v6956
        %10050 = vmatprep.subr.bf16.mxu0 %v6953
        %10051 = vmatpush1.bf16.msra.mxu0 %v6952
        %10052 = vmatprep.subr.bf16.mxu0 %v6949
        %10053 = vmatpush1.bf16.msra.mxu0 %v6948
        %10054 = vmatprep.subr.bf16.mxu0 %v6945
        %10055 = vmatpush1.bf16.msra.mxu0 %v6944
        %10056 = vmatprep.subr.bf16.mxu0 %v6941
        %10057 = vmatpush1.bf16.msra.mxu0 %v6940
        %10058 = vmatprep.subr.bf16.mxu0 %v7001
        %10059 = vmatpush2.bf16.msra.mxu0 %v7000
        %10060 = vmatprep.subr.bf16.mxu0 %v6997
        %10061 = vmatpush2.bf16.msra.mxu0 %v6996
        %10062 = vmatprep.subr.bf16.mxu0 %v6993
        %10063 = vmatpush2.bf16.msra.mxu0 %v6992
        %10064 = vmatprep.subr.bf16.mxu0 %v6989
        %10065 = vmatpush2.bf16.msra.mxu0 %v6988
        %10066 = vmatprep.subr.bf16.mxu0 %v6985
        %10067 = vmatpush2.bf16.msra.mxu0 %v6984
        %10068 = vmatprep.subr.bf16.mxu0 %v6981
        %10069 = vmatpush2.bf16.msra.mxu0 %v6980
        %10070 = vmatprep.subr.bf16.mxu0 %v6977
        %10071 = vmatpush2.bf16.msra.mxu0 %v6976
        %10072 = vmatprep.subr.bf16.mxu0 %v6973
        %10073 = vmatpush2.bf16.msra.mxu0 %v6972
        %10074 = vmatprep.mubr.bf16.mxu0 %v1009
        %10075 = vmatmul.mubr.bf16.gmra.mxu0 %v1008
        %v10076 = vpop.f32.mrf.mxu0
        %v10077 = vadd.f32 %v10036, %v10076
        %v10078 = vpop.f32.mrf.mxu0
        %v10079 = vadd.f32 %v10038, %v10078
        %v10080 = vpop.f32.mrf.mxu0
        %v10081 = vpop.f32.mrf.mxu0
        %10082 = vdwg.mxu0
        %10083 = vmatprep.subr.bf16.mxu0 %v7033
        %10084 = vmatpush1.bf16.msra.mxu0 %v7032
        %10085 = vmatprep.subr.bf16.mxu0 %v7029
        %10086 = vmatpush1.bf16.msra.mxu0 %v7028
        %10087 = vmatprep.subr.bf16.mxu0 %v7025
        %10088 = vmatpush1.bf16.msra.mxu0 %v7024
        %10089 = vmatprep.subr.bf16.mxu0 %v7021
        %10090 = vmatpush1.bf16.msra.mxu0 %v7020
        %10091 = vmatprep.subr.bf16.mxu0 %v7017
        %10092 = vmatpush1.bf16.msra.mxu0 %v7016
        %10093 = vmatprep.subr.bf16.mxu0 %v7013
        %10094 = vmatpush1.bf16.msra.mxu0 %v7012
        %10095 = vmatprep.subr.bf16.mxu0 %v7009
        %10096 = vmatpush1.bf16.msra.mxu0 %v7008
        %10097 = vmatprep.subr.bf16.mxu0 %v7005
        %10098 = vmatpush1.bf16.msra.mxu0 %v7004
        %10099 = vmatprep.subr.bf16.mxu0 %v7065
        %10100 = vmatpush2.bf16.msra.mxu0 %v7064
        %10101 = vmatprep.subr.bf16.mxu0 %v7061
        %10102 = vmatpush2.bf16.msra.mxu0 %v7060
        %10103 = vmatprep.subr.bf16.mxu0 %v7057
        %10104 = vmatpush2.bf16.msra.mxu0 %v7056
        %10105 = vmatprep.subr.bf16.mxu0 %v7053
        %10106 = vmatpush2.bf16.msra.mxu0 %v7052
        %10107 = vmatprep.subr.bf16.mxu0 %v7049
        %10108 = vmatpush2.bf16.msra.mxu0 %v7048
        %10109 = vmatprep.subr.bf16.mxu0 %v7045
        %10110 = vmatpush2.bf16.msra.mxu0 %v7044
        %10111 = vmatprep.subr.bf16.mxu0 %v7041
        %10112 = vmatpush2.bf16.msra.mxu0 %v7040
        %10113 = vmatprep.subr.bf16.mxu0 %v7037
        %10114 = vmatpush2.bf16.msra.mxu0 %v7036
        %10115 = vmatprep.mubr.bf16.mxu0 %v1011
        %10116 = vmatmul.mubr.bf16.gmra.mxu0 %v1010
        %v10117 = vpop.f32.mrf.mxu0
        %v10118 = vadd.f32 %v10077, %v10117
        %v10119 = vpop.f32.mrf.mxu0
        %v10120 = vadd.f32 %v10079, %v10119
        %v10121 = vpop.f32.mrf.mxu0
        %v10122 = vpop.f32.mrf.mxu0
        %10123 = vdwg.mxu0
        %10124 = vmatprep.subr.bf16.mxu0 %v7097
        %10125 = vmatpush1.bf16.msra.mxu0 %v7096
        %10126 = vmatprep.subr.bf16.mxu0 %v7093
        %10127 = vmatpush1.bf16.msra.mxu0 %v7092
        %10128 = vmatprep.subr.bf16.mxu0 %v7089
        %10129 = vmatpush1.bf16.msra.mxu0 %v7088
        %10130 = vmatprep.subr.bf16.mxu0 %v7085
        %10131 = vmatpush1.bf16.msra.mxu0 %v7084
        %10132 = vmatprep.subr.bf16.mxu0 %v7081
        %10133 = vmatpush1.bf16.msra.mxu0 %v7080
        %10134 = vmatprep.subr.bf16.mxu0 %v7077
        %10135 = vmatpush1.bf16.msra.mxu0 %v7076
        %10136 = vmatprep.subr.bf16.mxu0 %v7073
        %10137 = vmatpush1.bf16.msra.mxu0 %v7072
        %10138 = vmatprep.subr.bf16.mxu0 %v7069
        %10139 = vmatpush1.bf16.msra.mxu0 %v7068
        %10140 = vmatprep.subr.bf16.mxu0 %v7129
        %10141 = vmatpush2.bf16.msra.mxu0 %v7128
        %10142 = vmatprep.subr.bf16.mxu0 %v7125
        %10143 = vmatpush2.bf16.msra.mxu0 %v7124
        %10144 = vmatprep.subr.bf16.mxu0 %v7121
        %10145 = vmatpush2.bf16.msra.mxu0 %v7120
        %10146 = vmatprep.subr.bf16.mxu0 %v7117
        %10147 = vmatpush2.bf16.msra.mxu0 %v7116
        %10148 = vmatprep.subr.bf16.mxu0 %v7113
        %10149 = vmatpush2.bf16.msra.mxu0 %v7112
        %10150 = vmatprep.subr.bf16.mxu0 %v7109
        %10151 = vmatpush2.bf16.msra.mxu0 %v7108
        %10152 = vmatprep.subr.bf16.mxu0 %v7105
        %10153 = vmatpush2.bf16.msra.mxu0 %v7104
        %10154 = vmatprep.subr.bf16.mxu0 %v7101
        %10155 = vmatpush2.bf16.msra.mxu0 %v7100
        %10156 = vmatprep.mubr.bf16.mxu0 %v1013
        %10157 = vmatmul.mubr.bf16.gmra.mxu0 %v1012
        %v10158 = vpop.f32.mrf.mxu0
        %v10159 = vadd.f32 %v10118, %v10158
        %v10160 = vpop.f32.mrf.mxu0
        %v10161 = vadd.f32 %v10120, %v10160
        %v10162 = vpop.f32.mrf.mxu0
        %v10163 = vpop.f32.mrf.mxu0
        %10164 = vdwg.mxu0
        %10165 = vmatprep.subr.bf16.mxu0 %v7161
        %10166 = vmatpush1.bf16.msra.mxu0 %v7160
        %10167 = vmatprep.subr.bf16.mxu0 %v7157
        %10168 = vmatpush1.bf16.msra.mxu0 %v7156
        %10169 = vmatprep.subr.bf16.mxu0 %v7153
        %10170 = vmatpush1.bf16.msra.mxu0 %v7152
        %10171 = vmatprep.subr.bf16.mxu0 %v7149
        %10172 = vmatpush1.bf16.msra.mxu0 %v7148
        %10173 = vmatprep.subr.bf16.mxu0 %v7145
        %10174 = vmatpush1.bf16.msra.mxu0 %v7144
        %10175 = vmatprep.subr.bf16.mxu0 %v7141
        %10176 = vmatpush1.bf16.msra.mxu0 %v7140
        %10177 = vmatprep.subr.bf16.mxu0 %v7137
        %10178 = vmatpush1.bf16.msra.mxu0 %v7136
        %10179 = vmatprep.subr.bf16.mxu0 %v7133
        %10180 = vmatpush1.bf16.msra.mxu0 %v7132
        %10181 = vmatprep.subr.bf16.mxu0 %v7193
        %10182 = vmatpush2.bf16.msra.mxu0 %v7192
        %10183 = vmatprep.subr.bf16.mxu0 %v7189
        %10184 = vmatpush2.bf16.msra.mxu0 %v7188
        %10185 = vmatprep.subr.bf16.mxu0 %v7185
        %10186 = vmatpush2.bf16.msra.mxu0 %v7184
        %10187 = vmatprep.subr.bf16.mxu0 %v7181
        %10188 = vmatpush2.bf16.msra.mxu0 %v7180
        %10189 = vmatprep.subr.bf16.mxu0 %v7177
        %10190 = vmatpush2.bf16.msra.mxu0 %v7176
        %10191 = vmatprep.subr.bf16.mxu0 %v7173
        %10192 = vmatpush2.bf16.msra.mxu0 %v7172
        %10193 = vmatprep.subr.bf16.mxu0 %v7169
        %10194 = vmatpush2.bf16.msra.mxu0 %v7168
        %10195 = vmatprep.subr.bf16.mxu0 %v7165
        %10196 = vmatpush2.bf16.msra.mxu0 %v7164
        %10197 = vmatprep.mubr.bf16.mxu0 %v1015
        %10198 = vmatmul.mubr.bf16.gmra.mxu0 %v1014
        %v10199 = vpop.f32.mrf.mxu0
        %v10200 = vadd.f32 %v10159, %v10199
        %v10201 = vpop.f32.mrf.mxu0
        %v10202 = vadd.f32 %v10161, %v10201
        %v10203 = vpop.f32.mrf.mxu0
        %v10204 = vpop.f32.mrf.mxu0
        %10205 = vdwg.mxu0
        %10206 = vmatprep.subr.bf16.mxu0 %v7225
        %10207 = vmatpush1.bf16.msra.mxu0 %v7224
        %10208 = vmatprep.subr.bf16.mxu0 %v7221
        %10209 = vmatpush1.bf16.msra.mxu0 %v7220
        %10210 = vmatprep.subr.bf16.mxu0 %v7217
        %10211 = vmatpush1.bf16.msra.mxu0 %v7216
        %10212 = vmatprep.subr.bf16.mxu0 %v7213
        %10213 = vmatpush1.bf16.msra.mxu0 %v7212
        %10214 = vmatprep.subr.bf16.mxu0 %v7209
        %10215 = vmatpush1.bf16.msra.mxu0 %v7208
        %10216 = vmatprep.subr.bf16.mxu0 %v7205
        %10217 = vmatpush1.bf16.msra.mxu0 %v7204
        %10218 = vmatprep.subr.bf16.mxu0 %v7201
        %10219 = vmatpush1.bf16.msra.mxu0 %v7200
        %10220 = vmatprep.subr.bf16.mxu0 %v7197
        %10221 = vmatpush1.bf16.msra.mxu0 %v7196
        %10222 = vmatprep.subr.bf16.mxu0 %v7257
        %10223 = vmatpush2.bf16.msra.mxu0 %v7256
        %10224 = vmatprep.subr.bf16.mxu0 %v7253
        %10225 = vmatpush2.bf16.msra.mxu0 %v7252
        %10226 = vmatprep.subr.bf16.mxu0 %v7249
        %10227 = vmatpush2.bf16.msra.mxu0 %v7248
        %10228 = vmatprep.subr.bf16.mxu0 %v7245
        %10229 = vmatpush2.bf16.msra.mxu0 %v7244
        %10230 = vmatprep.subr.bf16.mxu0 %v7241
        %10231 = vmatpush2.bf16.msra.mxu0 %v7240
        %10232 = vmatprep.subr.bf16.mxu0 %v7237
        %10233 = vmatpush2.bf16.msra.mxu0 %v7236
        %10234 = vmatprep.subr.bf16.mxu0 %v7233
        %10235 = vmatpush2.bf16.msra.mxu0 %v7232
        %10236 = vmatprep.subr.bf16.mxu0 %v7229
        %10237 = vmatpush2.bf16.msra.mxu0 %v7228
        %10238 = vmatprep.mubr.bf16.mxu0 %v1017
        %10239 = vmatmul.mubr.bf16.gmra.mxu0 %v1016
        %v10240 = vpop.f32.mrf.mxu0
        %v10241 = vadd.f32 %v10200, %v10240
        %v10242 = vpop.f32.mrf.mxu0
        %v10243 = vadd.f32 %v10202, %v10242
        %v10244 = vpop.f32.mrf.mxu0
        %v10245 = vpop.f32.mrf.mxu0
        %10246 = vdwg.mxu0
        %10247 = vmatprep.subr.bf16.mxu0 %v7289
        %10248 = vmatpush1.bf16.msra.mxu0 %v7288
        %10249 = vmatprep.subr.bf16.mxu0 %v7285
        %10250 = vmatpush1.bf16.msra.mxu0 %v7284
        %10251 = vmatprep.subr.bf16.mxu0 %v7281
        %10252 = vmatpush1.bf16.msra.mxu0 %v7280
        %10253 = vmatprep.subr.bf16.mxu0 %v7277
        %10254 = vmatpush1.bf16.msra.mxu0 %v7276
        %10255 = vmatprep.subr.bf16.mxu0 %v7273
        %10256 = vmatpush1.bf16.msra.mxu0 %v7272
        %10257 = vmatprep.subr.bf16.mxu0 %v7269
        %10258 = vmatpush1.bf16.msra.mxu0 %v7268
        %10259 = vmatprep.subr.bf16.mxu0 %v7265
        %10260 = vmatpush1.bf16.msra.mxu0 %v7264
        %10261 = vmatprep.subr.bf16.mxu0 %v7261
        %10262 = vmatpush1.bf16.msra.mxu0 %v7260
        %10263 = vmatprep.subr.bf16.mxu0 %v7321
        %10264 = vmatpush2.bf16.msra.mxu0 %v7320
        %10265 = vmatprep.subr.bf16.mxu0 %v7317
        %10266 = vmatpush2.bf16.msra.mxu0 %v7316
        %10267 = vmatprep.subr.bf16.mxu0 %v7313
        %10268 = vmatpush2.bf16.msra.mxu0 %v7312
        %10269 = vmatprep.subr.bf16.mxu0 %v7309
        %10270 = vmatpush2.bf16.msra.mxu0 %v7308
        %10271 = vmatprep.subr.bf16.mxu0 %v7305
        %10272 = vmatpush2.bf16.msra.mxu0 %v7304
        %10273 = vmatprep.subr.bf16.mxu0 %v7301
        %10274 = vmatpush2.bf16.msra.mxu0 %v7300
        %10275 = vmatprep.subr.bf16.mxu0 %v7297
        %10276 = vmatpush2.bf16.msra.mxu0 %v7296
        %10277 = vmatprep.subr.bf16.mxu0 %v7293
        %10278 = vmatpush2.bf16.msra.mxu0 %v7292
        %10279 = vmatprep.mubr.bf16.mxu0 %v1019
        %10280 = vmatmul.mubr.bf16.gmra.mxu0 %v1018
        %v10281 = vpop.f32.mrf.mxu0
        %v10282 = vadd.f32 %v10241, %v10281
        %v10283 = vpop.f32.mrf.mxu0
        %v10284 = vadd.f32 %v10243, %v10283
        %v10285 = vpop.f32.mrf.mxu0
        %v10286 = vpop.f32.mrf.mxu0
        %10287 = vdwg.mxu0
        %10288 = vmatprep.subr.bf16.mxu0 %v7353
        %10289 = vmatpush1.bf16.msra.mxu0 %v7352
        %10290 = vmatprep.subr.bf16.mxu0 %v7349
        %10291 = vmatpush1.bf16.msra.mxu0 %v7348
        %10292 = vmatprep.subr.bf16.mxu0 %v7345
        %10293 = vmatpush1.bf16.msra.mxu0 %v7344
        %10294 = vmatprep.subr.bf16.mxu0 %v7341
        %10295 = vmatpush1.bf16.msra.mxu0 %v7340
        %10296 = vmatprep.subr.bf16.mxu0 %v7337
        %10297 = vmatpush1.bf16.msra.mxu0 %v7336
        %10298 = vmatprep.subr.bf16.mxu0 %v7333
        %10299 = vmatpush1.bf16.msra.mxu0 %v7332
        %10300 = vmatprep.subr.bf16.mxu0 %v7329
        %10301 = vmatpush1.bf16.msra.mxu0 %v7328
        %10302 = vmatprep.subr.bf16.mxu0 %v7325
        %10303 = vmatpush1.bf16.msra.mxu0 %v7324
        %10304 = vmatprep.subr.bf16.mxu0 %v7385
        %10305 = vmatpush2.bf16.msra.mxu0 %v7384
        %10306 = vmatprep.subr.bf16.mxu0 %v7381
        %10307 = vmatpush2.bf16.msra.mxu0 %v7380
        %10308 = vmatprep.subr.bf16.mxu0 %v7377
        %10309 = vmatpush2.bf16.msra.mxu0 %v7376
        %10310 = vmatprep.subr.bf16.mxu0 %v7373
        %10311 = vmatpush2.bf16.msra.mxu0 %v7372
        %10312 = vmatprep.subr.bf16.mxu0 %v7369
        %10313 = vmatpush2.bf16.msra.mxu0 %v7368
        %10314 = vmatprep.subr.bf16.mxu0 %v7365
        %10315 = vmatpush2.bf16.msra.mxu0 %v7364
        %10316 = vmatprep.subr.bf16.mxu0 %v7361
        %10317 = vmatpush2.bf16.msra.mxu0 %v7360
        %10318 = vmatprep.subr.bf16.mxu0 %v7357
        %10319 = vmatpush2.bf16.msra.mxu0 %v7356
        %10320 = vmatprep.mubr.bf16.mxu0 %v1021
        %10321 = vmatmul.mubr.bf16.gmra.mxu0 %v1020
        %v10322 = vpop.f32.mrf.mxu0
        %v10323 = vadd.f32 %v10282, %v10322
        %v10324 = vpop.f32.mrf.mxu0
        %v10325 = vadd.f32 %v10284, %v10324
        %v10326 = vpop.f32.mrf.mxu0
        %v10327 = vpop.f32.mrf.mxu0
        %10328 = vdwg.mxu0
        %10329 = vmatprep.subr.bf16.mxu0 %v7417
        %10330 = vmatpush1.bf16.msra.mxu0 %v7416
        %10331 = vmatprep.subr.bf16.mxu0 %v7413
        %10332 = vmatpush1.bf16.msra.mxu0 %v7412
        %10333 = vmatprep.subr.bf16.mxu0 %v7409
        %10334 = vmatpush1.bf16.msra.mxu0 %v7408
        %10335 = vmatprep.subr.bf16.mxu0 %v7405
        %10336 = vmatpush1.bf16.msra.mxu0 %v7404
        %10337 = vmatprep.subr.bf16.mxu0 %v7401
        %10338 = vmatpush1.bf16.msra.mxu0 %v7400
        %10339 = vmatprep.subr.bf16.mxu0 %v7397
        %10340 = vmatpush1.bf16.msra.mxu0 %v7396
        %10341 = vmatprep.subr.bf16.mxu0 %v7393
        %10342 = vmatpush1.bf16.msra.mxu0 %v7392
        %10343 = vmatprep.subr.bf16.mxu0 %v7389
        %10344 = vmatpush1.bf16.msra.mxu0 %v7388
        %10345 = vmatprep.subr.bf16.mxu0 %v7449
        %10346 = vmatpush2.bf16.msra.mxu0 %v7448
        %10347 = vmatprep.subr.bf16.mxu0 %v7445
        %10348 = vmatpush2.bf16.msra.mxu0 %v7444
        %10349 = vmatprep.subr.bf16.mxu0 %v7441
        %10350 = vmatpush2.bf16.msra.mxu0 %v7440
        %10351 = vmatprep.subr.bf16.mxu0 %v7437
        %10352 = vmatpush2.bf16.msra.mxu0 %v7436
        %10353 = vmatprep.subr.bf16.mxu0 %v7433
        %10354 = vmatpush2.bf16.msra.mxu0 %v7432
        %10355 = vmatprep.subr.bf16.mxu0 %v7429
        %10356 = vmatpush2.bf16.msra.mxu0 %v7428
        %10357 = vmatprep.subr.bf16.mxu0 %v7425
        %10358 = vmatpush2.bf16.msra.mxu0 %v7424
        %10359 = vmatprep.subr.bf16.mxu0 %v7421
        %10360 = vmatpush2.bf16.msra.mxu0 %v7420
        %10361 = vmatprep.mubr.bf16.mxu0 %v1023
        %10362 = vmatmul.mubr.bf16.gmra.mxu0 %v1022
        %v10363 = vpop.f32.mrf.mxu0
        %v10364 = vadd.f32 %v10323, %v10363
        %v10365 = vpop.f32.mrf.mxu0
        %v10366 = vadd.f32 %v10325, %v10365
        %v10367 = vpop.f32.mrf.mxu0
        %v10368 = vpop.f32.mrf.mxu0
        %10369 = vdwg.mxu0
        %v10370 = vmax.f32 %v9544, 0.0
        %v10371 = vmax.f32 %v9546, 0.0
        %v10372 = vmax.f32 %v10364, 0.0
        %v10373 = vmax.f32 %v10366, 0.0
        %v10374 = vld [vmem:[%s5] sm:$0xff]
        %v10375 = vld [vmem:[%s5 + $0x8] sm:$0xff]
        %v10376 = vld [vmem:[%s5 + $0x10] sm:$0xff]
        %v10377 = vld [vmem:[%s5 + $0x18] sm:$0xff]
        %v10378 = vld [vmem:[%s5 + $0x20] sm:$0xff]
        %v10379 = vld [vmem:[%s5 + $0x28] sm:$0xff]
        %v10380 = vld [vmem:[%s5 + $0x30] sm:$0xff]
        %v10381 = vld [vmem:[%s5 + $0x38] sm:$0xff]
        %v10382 = vld [vmem:[%s5 + $0x40] sm:$0xff]
        %v10383 = vld [vmem:[%s5 + $0x48] sm:$0xff]
        %v10384 = vld [vmem:[%s5 + $0x50] sm:$0xff]
        %v10385 = vld [vmem:[%s5 + $0x58] sm:$0xff]
        %v10386 = vld [vmem:[%s5 + $0x60] sm:$0xff]
        %v10387 = vld [vmem:[%s5 + $0x68] sm:$0xff]
        %v10388 = vld [vmem:[%s5 + $0x70] sm:$0xff]
        %v10389 = vld [vmem:[%s5 + $0x78] sm:$0xff]
        %v10390 = vld [vmem:[%s5 + $0x80] sm:$0xff]
        %v10391 = vld [vmem:[%s5 + $0x88] sm:$0xff]
        %v10392 = vld [vmem:[%s5 + $0x90] sm:$0xff]
        %v10393 = vld [vmem:[%s5 + $0x98] sm:$0xff]
        %v10394 = vld [vmem:[%s5 + $0xa0] sm:$0xff]
        %v10395 = vld [vmem:[%s5 + $0xa8] sm:$0xff]
        %v10396 = vld [vmem:[%s5 + $0xb0] sm:$0xff]
        %v10397 = vld [vmem:[%s5 + $0xb8] sm:$0xff]
        %v10398 = vld [vmem:[%s5 + $0xc0] sm:$0xff]
        %v10399 = vld [vmem:[%s5 + $0xc8] sm:$0xff]
        %v10400 = vld [vmem:[%s5 + $0xd0] sm:$0xff]
        %v10401 = vld [vmem:[%s5 + $0xd8] sm:$0xff]
        %v10402 = vld [vmem:[%s5 + $0xe0] sm:$0xff]
        %v10403 = vld [vmem:[%s5 + $0xe8] sm:$0xff]
        %v10404 = vld [vmem:[%s5 + $0xf0] sm:$0xff]
        %v10405 = vld [vmem:[%s5 + $0xf8] sm:$0xff]
        %v10406 = vld [vmem:[%s5 + $0x100] sm:$0xff]
        %v10407 = vld [vmem:[%s5 + $0x108] sm:$0xff]
        %v10408 = vld [vmem:[%s5 + $0x110] sm:$0xff]
        %v10409 = vld [vmem:[%s5 + $0x118] sm:$0xff]
        %v10410 = vld [vmem:[%s5 + $0x120] sm:$0xff]
        %v10411 = vld [vmem:[%s5 + $0x128] sm:$0xff]
        %v10412 = vld [vmem:[%s5 + $0x130] sm:$0xff]
        %v10413 = vld [vmem:[%s5 + $0x138] sm:$0xff]
        %v10414 = vld [vmem:[%s5 + $0x140] sm:$0xff]
        %v10415 = vld [vmem:[%s5 + $0x148] sm:$0xff]
        %v10416 = vld [vmem:[%s5 + $0x150] sm:$0xff]
        %v10417 = vld [vmem:[%s5 + $0x158] sm:$0xff]
        %v10418 = vld [vmem:[%s5 + $0x160] sm:$0xff]
        %v10419 = vld [vmem:[%s5 + $0x168] sm:$0xff]
        %v10420 = vld [vmem:[%s5 + $0x170] sm:$0xff]
        %v10421 = vld [vmem:[%s5 + $0x178] sm:$0xff]
        %v10422 = vld [vmem:[%s5 + $0x180] sm:$0xff]
        %v10423 = vld [vmem:[%s5 + $0x188] sm:$0xff]
        %v10424 = vld [vmem:[%s5 + $0x190] sm:$0xff]
        %v10425 = vld [vmem:[%s5 + $0x198] sm:$0xff]
        %v10426 = vld [vmem:[%s5 + $0x1a0] sm:$0xff]
        %v10427 = vld [vmem:[%s5 + $0x1a8] sm:$0xff]
        %v10428 = vld [vmem:[%s5 + $0x1b0] sm:$0xff]
        %v10429 = vld [vmem:[%s5 + $0x1b8] sm:$0xff]
        %v10430 = vld [vmem:[%s5 + $0x1c0] sm:$0xff]
        %v10431 = vld [vmem:[%s5 + $0x1c8] sm:$0xff]
        %v10432 = vld [vmem:[%s5 + $0x1d0] sm:$0xff]
        %v10433 = vld [vmem:[%s5 + $0x1d8] sm:$0xff]
        %v10434 = vld [vmem:[%s5 + $0x1e0] sm:$0xff]
        %v10435 = vld [vmem:[%s5 + $0x1e8] sm:$0xff]
        %v10436 = vld [vmem:[%s5 + $0x1f0] sm:$0xff]
        %v10437 = vld [vmem:[%s5 + $0x1f8] sm:$0xff]
        %v10438 = vld [vmem:[#allocation8] sm:$0x3]
        %v10439 = vmax.f32 %v10438, 0.0
        %v10440 = vld [vmem:[%s6] sm:$0xff]
        %vm10441 = vcmask 64512
        %v10443 = vsel %vm10441, %v10439, 0
        %10445 = vmatprep.subr.mxu0 0.0
        %10446 = vmatpush1.msra.mxu0 0.0
        %10447 = vmatprep.subr.mxu0 0.0
        %10448 = vmatpush1.msra.mxu0 0.0
        %10449 = vmatprep.subr.mxu0 0.0
        %10450 = vmatpush1.msra.mxu0 0.0
        %10451 = vmatprep.subr.mxu0 0.0
        %10452 = vmatpush1.msra.mxu0 0.0
        %10453 = vmatprep.subr.mxu0 0.0
        %10454 = vmatpush1.msra.mxu0 0.0
        %10455 = vmatprep.subr.mxu0 0.0
        %10456 = vmatpush1.msra.mxu0 0.0
        %10457 = vmatprep.subr.mxu0 0.0
        %10458 = vmatpush1.msra.mxu0 0.0
        %10459 = vmatprep.subr.mxu0 0.0
        %10460 = vmatpush1.msra.mxu0 0.0
        %10461 = vmatprep.subr.mxu0 0.0
        %10462 = vmatpush1.msra.mxu0 0.0
        %10463 = vmatprep.subr.mxu0 0.0
        %10464 = vmatpush1.msra.mxu0 0.0
        %10465 = vmatprep.subr.mxu0 0.0
        %10466 = vmatpush1.msra.mxu0 0.0
        %10467 = vmatprep.subr.mxu0 0.0
        %10468 = vmatpush1.msra.mxu0 0.0
        %10469 = vmatprep.subr.mxu0 0.0
        %10470 = vmatpush1.msra.mxu0 0.0
        %10471 = vmatprep.subr.mxu0 0.0
        %10472 = vmatpush1.msra.mxu0 0.0
        %10473 = vmatprep.subr.mxu0 0.0
        %10474 = vmatpush1.msra.mxu0 0.0
        %10475 = vmatprep.subr.mxu0 0.0
        %10476 = vmatpush1.msra.mxu0 %v10440
        %10477 = vmatprep.subr.mxu0 0.0
        %10478 = vmatpush2.msra.mxu0 0.0
        %10479 = vmatprep.subr.mxu0 0.0
        %10480 = vmatpush2.msra.mxu0 0.0
        %10481 = vmatprep.subr.mxu0 0.0
        %10482 = vmatpush2.msra.mxu0 0.0
        %10483 = vmatprep.subr.mxu0 0.0
        %10484 = vmatpush2.msra.mxu0 0.0
        %10485 = vmatprep.subr.mxu0 0.0
        %10486 = vmatpush2.msra.mxu0 0.0
        %10487 = vmatprep.subr.mxu0 0.0
        %10488 = vmatpush2.msra.mxu0 0.0
        %10489 = vmatprep.subr.mxu0 0.0
        %10490 = vmatpush2.msra.mxu0 0.0
        %10491 = vmatprep.subr.mxu0 0.0
        %10492 = vmatpush2.msra.mxu0 0.0
        %10493 = vmatprep.subr.mxu0 0.0
        %10494 = vmatpush2.msra.mxu0 0.0
        %10495 = vmatprep.subr.mxu0 0.0
        %10496 = vmatpush2.msra.mxu0 0.0
        %10497 = vmatprep.subr.mxu0 0.0
        %10498 = vmatpush2.msra.mxu0 0.0
        %10499 = vmatprep.subr.mxu0 0.0
        %10500 = vmatpush2.msra.mxu0 0.0
        %10501 = vmatprep.subr.mxu0 0.0
        %10502 = vmatpush2.msra.mxu0 0.0
        %10503 = vmatprep.subr.mxu0 0.0
        %10504 = vmatpush2.msra.mxu0 0.0
        %10505 = vmatprep.subr.mxu0 0.0
        %10506 = vmatpush2.msra.mxu0 0.0
        %10507 = vmatprep.subr.mxu0 0.0
        %10508 = vmatpush2.msra.mxu0 0.0
        %10509 = vmatprep.mubr.f32.mxu0 0.0
        %10510 = vmatmul.mubr.f32.gmra.mxu0 %v10443
        %v10511 = vpop.f32.mrf.mxu0
        %v10512 = vadd.f32 0.0, %v10511
        %v10513 = vpop.f32.mrf.mxu0
        %10514 = vdwg.mxu0
        %10515 = vmatprep.subr.mxu0 0.0
        %10516 = vmatpush1.msra.mxu0 %v10389
        %10517 = vmatprep.subr.mxu0 0.0
        %10518 = vmatpush1.msra.mxu0 %v10388
        %10519 = vmatprep.subr.mxu0 0.0
        %10520 = vmatpush1.msra.mxu0 %v10387
        %10521 = vmatprep.subr.mxu0 0.0
        %10522 = vmatpush1.msra.mxu0 %v10386
        %10523 = vmatprep.subr.mxu0 0.0
        %10524 = vmatpush1.msra.mxu0 %v10385
        %10525 = vmatprep.subr.mxu0 0.0
        %10526 = vmatpush1.msra.mxu0 %v10384
        %10527 = vmatprep.subr.mxu0 0.0
        %10528 = vmatpush1.msra.mxu0 %v10383
        %10529 = vmatprep.subr.mxu0 0.0
        %10530 = vmatpush1.msra.mxu0 %v10382
        %10531 = vmatprep.subr.mxu0 0.0
        %10532 = vmatpush1.msra.mxu0 %v10381
        %10533 = vmatprep.subr.mxu0 0.0
        %10534 = vmatpush1.msra.mxu0 %v10380
        %10535 = vmatprep.subr.mxu0 0.0
        %10536 = vmatpush1.msra.mxu0 %v10379
        %10537 = vmatprep.subr.mxu0 0.0
        %10538 = vmatpush1.msra.mxu0 %v10378
        %10539 = vmatprep.subr.mxu0 0.0
        %10540 = vmatpush1.msra.mxu0 %v10377
        %10541 = vmatprep.subr.mxu0 0.0
        %10542 = vmatpush1.msra.mxu0 %v10376
        %10543 = vmatprep.subr.mxu0 0.0
        %10544 = vmatpush1.msra.mxu0 %v10375
        %10545 = vmatprep.subr.mxu0 0.0
        %10546 = vmatpush1.msra.mxu0 %v10374
        %10547 = vmatprep.subr.mxu0 0.0
        %10548 = vmatpush2.msra.mxu0 %v10405
        %10549 = vmatprep.subr.mxu0 0.0
        %10550 = vmatpush2.msra.mxu0 %v10404
        %10551 = vmatprep.subr.mxu0 0.0
        %10552 = vmatpush2.msra.mxu0 %v10403
        %10553 = vmatprep.subr.mxu0 0.0
        %10554 = vmatpush2.msra.mxu0 %v10402
        %10555 = vmatprep.subr.mxu0 0.0
        %10556 = vmatpush2.msra.mxu0 %v10401
        %10557 = vmatprep.subr.mxu0 0.0
        %10558 = vmatpush2.msra.mxu0 %v10400
        %10559 = vmatprep.subr.mxu0 0.0
        %10560 = vmatpush2.msra.mxu0 %v10399
        %10561 = vmatprep.subr.mxu0 0.0
        %10562 = vmatpush2.msra.mxu0 %v10398
        %10563 = vmatprep.subr.mxu0 0.0
        %10564 = vmatpush2.msra.mxu0 %v10397
        %10565 = vmatprep.subr.mxu0 0.0
        %10566 = vmatpush2.msra.mxu0 %v10396
        %10567 = vmatprep.subr.mxu0 0.0
        %10568 = vmatpush2.msra.mxu0 %v10395
        %10569 = vmatprep.subr.mxu0 0.0
        %10570 = vmatpush2.msra.mxu0 %v10394
        %10571 = vmatprep.subr.mxu0 0.0
        %10572 = vmatpush2.msra.mxu0 %v10393
        %10573 = vmatprep.subr.mxu0 0.0
        %10574 = vmatpush2.msra.mxu0 %v10392
        %10575 = vmatprep.subr.mxu0 0.0
        %10576 = vmatpush2.msra.mxu0 %v10391
        %10577 = vmatprep.subr.mxu0 0.0
        %10578 = vmatpush2.msra.mxu0 %v10390
        %10579 = vmatprep.mubr.f32.mxu0 %v10371
        %10580 = vmatmul.mubr.f32.gmra.mxu0 %v10370
        %v10581 = vpop.f32.mrf.mxu0
        %v10582 = vadd.f32 %v10512, %v10581
        %v10583 = vpop.f32.mrf.mxu0
        %10584 = vdwg.mxu0
        %10585 = vmatprep.subr.mxu0 0.0
        %10586 = vmatpush1.msra.mxu0 %v10421
        %10587 = vmatprep.subr.mxu0 0.0
        %10588 = vmatpush1.msra.mxu0 %v10420
        %10589 = vmatprep.subr.mxu0 0.0
        %10590 = vmatpush1.msra.mxu0 %v10419
        %10591 = vmatprep.subr.mxu0 0.0
        %10592 = vmatpush1.msra.mxu0 %v10418
        %10593 = vmatprep.subr.mxu0 0.0
        %10594 = vmatpush1.msra.mxu0 %v10417
        %10595 = vmatprep.subr.mxu0 0.0
        %10596 = vmatpush1.msra.mxu0 %v10416
        %10597 = vmatprep.subr.mxu0 0.0
        %10598 = vmatpush1.msra.mxu0 %v10415
        %10599 = vmatprep.subr.mxu0 0.0
        %10600 = vmatpush1.msra.mxu0 %v10414
        %10601 = vmatprep.subr.mxu0 0.0
        %10602 = vmatpush1.msra.mxu0 %v10413
        %10603 = vmatprep.subr.mxu0 0.0
        %10604 = vmatpush1.msra.mxu0 %v10412
        %10605 = vmatprep.subr.mxu0 0.0
        %10606 = vmatpush1.msra.mxu0 %v10411
        %10607 = vmatprep.subr.mxu0 0.0
        %10608 = vmatpush1.msra.mxu0 %v10410
        %10609 = vmatprep.subr.mxu0 0.0
        %10610 = vmatpush1.msra.mxu0 %v10409
        %10611 = vmatprep.subr.mxu0 0.0
        %10612 = vmatpush1.msra.mxu0 %v10408
        %10613 = vmatprep.subr.mxu0 0.0
        %10614 = vmatpush1.msra.mxu0 %v10407
        %10615 = vmatprep.subr.mxu0 0.0
        %10616 = vmatpush1.msra.mxu0 %v10406
        %10617 = vmatprep.subr.mxu0 0.0
        %10618 = vmatpush2.msra.mxu0 %v10437
        %10619 = vmatprep.subr.mxu0 0.0
        %10620 = vmatpush2.msra.mxu0 %v10436
        %10621 = vmatprep.subr.mxu0 0.0
        %10622 = vmatpush2.msra.mxu0 %v10435
        %10623 = vmatprep.subr.mxu0 0.0
        %10624 = vmatpush2.msra.mxu0 %v10434
        %10625 = vmatprep.subr.mxu0 0.0
        %10626 = vmatpush2.msra.mxu0 %v10433
        %10627 = vmatprep.subr.mxu0 0.0
        %10628 = vmatpush2.msra.mxu0 %v10432
        %10629 = vmatprep.subr.mxu0 0.0
        %10630 = vmatpush2.msra.mxu0 %v10431
        %10631 = vmatprep.subr.mxu0 0.0
        %10632 = vmatpush2.msra.mxu0 %v10430
        %10633 = vmatprep.subr.mxu0 0.0
        %10634 = vmatpush2.msra.mxu0 %v10429
        %10635 = vmatprep.subr.mxu0 0.0
        %10636 = vmatpush2.msra.mxu0 %v10428
        %10637 = vmatprep.subr.mxu0 0.0
        %10638 = vmatpush2.msra.mxu0 %v10427
        %10639 = vmatprep.subr.mxu0 0.0
        %10640 = vmatpush2.msra.mxu0 %v10426
        %10641 = vmatprep.subr.mxu0 0.0
        %10642 = vmatpush2.msra.mxu0 %v10425
        %10643 = vmatprep.subr.mxu0 0.0
        %10644 = vmatpush2.msra.mxu0 %v10424
        %10645 = vmatprep.subr.mxu0 0.0
        %10646 = vmatpush2.msra.mxu0 %v10423
        %10647 = vmatprep.subr.mxu0 0.0
        %10648 = vmatpush2.msra.mxu0 %v10422
        %10649 = vmatprep.mubr.f32.mxu0 %v10373
        %10650 = vmatmul.mubr.f32.gmra.mxu0 %v10372
        %v10651 = vpop.f32.mrf.mxu0
        %v10652 = vadd.f32 %v10582, %v10651
        %v10653 = vpop.f32.mrf.mxu0
        %10654 = vdwg.mxu0
        %v10655 = vld [vmem:[#allocation10] sm:$0x1]
        %v10657 = vlaneseq
        %v10658 = vshrl.u32 %v10657, 7
        %v10659 = vsub.s32 0, %v10658
        %v10660 = vrot.slane %v10655, %v10659
        %v10662 = vadd.f32 %v10652, %v10660
        %vm10663 = vcmask 25600
        %10664 = vst.msk [vmem:[%s383] sm:$0x3] %vm10663, %v10662
        %p10665 = scmp.lt.s32.totalorder %s22, 9
        %s10666 = scalar_select %p10665, %s22, 9
        %s10667 = smul.addr %s10666, 2
        %s10668 = scalar_lea.vmem %s8, %s10667
        // Predicated region
        $region77: #{tpu_custom_call.1} parent=51 // pred_check
          %p10669 = pneg %p213
        $region78: #{tpu_custom_call.1} parent=51 // pred_check_branch
          %10671 = sbr.rel (%p10669) target = $region80
        $region79: #{tpu_custom_call.1} parent=51 // pred_region
          _
        $region80: #{tpu_custom_call.1} parent=51 // pred_fallthru
          _
      $region52: #{tpu_custom_call.1} parent=5 // pred_fallthru
        _
      %p10672 = scmp.le.s32.totalorder 2, %s17
      // Predicated region
      $region81: #{tpu_custom_call.1} parent=5 // pred_check
        %p10673 = pneg %p10672
      $region82: #{tpu_custom_call.1} parent=5 // pred_check_branch
        %10675 = sbr.rel (%p10673) target = $region84
      $region83: #{tpu_custom_call.1} parent=5 // pred_region
        %s10676 = ssub.s32 %s17, 2
        // Predicated region
        $region85: #{tpu_custom_call.1} parent=83 // pred_check
          %p10677 = pneg %p219
        $region86: #{tpu_custom_call.1} parent=83 // pred_check_branch
          %10679 = sbr.rel (%p10677) target = $region88
        $region87: #{tpu_custom_call.1} parent=83 // pred_region
          %p10680 = scmp.lt.s32.totalorder %s23, 9
          %s10681 = scalar_select %p10680, %s23, 9
          %s10682 = smul.addr %s10681, 2
          %s10683 = scalar_lea.vmem %s8, %s10682
        $region88: #{tpu_custom_call.1} parent=83 // pred_fallthru
          _
      $region84: #{tpu_custom_call.1} parent=5 // pred_fallthru
        _
    $region6: #{tpu_custom_call.1} parent=1 // loop_footer
      %s21 = sadd.s32 1, %s17
    $region7: #{tpu_custom_call.1} parent=1 // loop_footer_branch
      %16 = sbr.rel target = $region3
    $region8: #{tpu_custom_call.1} parent=1 // loop_exit
      _
    %10684 = vsyncpa [#allocation3], 1
    %s10685 = scalar_lea.sflag [#allocation3], 1
    %10686 = vsyncpa %s10685, 1
    %10687 = vsyncpa [#allocation5], 1
    %10688 = vsyncpa [#allocation9], 1

</llo_original>
